<compile_context>
chip_gen: v7x
topology: tpu7x:2x2x1
jax: 0.10.0
libtpu: 0.0.40
codegen_flags: <defaults>
</compile_context>

<pallas_src>
import numpy as np
import jax
import jax.numpy as jnp
from jax.experimental import pallas as pl
from jax.experimental.pallas import tpu as pltpu

# ---- small, forward-consistent shapes -------------------------------------------------
INPUT_DIM = 6
HIDDEN_DIM = 32
OUTPUT_DIM = 2
NUM_LAYERS = 2
SEQ_LEN = 8          # history length
OUT_SEQ_LEN = 12     # output_seq_len (kept small for the demo)
BATCH = 2
NUM_AGENTS = 3


# ---------------------------------------------------------------------------------------
# Kernel
#   ego_ref : [T_in + 1, B, H]   time-major ego history (features zero-padded to H);
#                                row T_in is the decoder seed ego[:, -1, :OUTPUT_DIM] padded.
#   w_ref   : [5, 2H, 4H]        fused GRU weight slabs: 0=enc0, 1=enc1, 2=dec0 (seed step),
#                                3=dec1, 4=dec0 with the FC head folded into its x-path.
#   b_ref   : [5, 4H]            per-slab biases: [ (b_ih+b_hh)[:2H] | b_in | b_hn ]
#   fcw_ref : [H, H]             fc_w.T zero-padded to H output columns
#   fcb_ref : [1, H]             fc_b zero-padded to H columns
#   out_ref : [T_out, B, H]      lane-dense per-step outputs (sliced to OUTPUT_DIM outside)
# ---------------------------------------------------------------------------------------
def seq2seq_gru_kernel(ego_ref, w_ref, b_ref, fcw_ref, fcb_ref, out_ref):
    H = HIDDEN_DIM
    T_in = ego_ref.shape[0] - 1
    B = ego_ref.shape[1]

    def sigmoid(x):
        # single EUP tanh push; avoids an exp + VPU divide lowering
        return 0.5 * jnp.tanh(0.5 * x) + 0.5

    def cell(x, h, idx):
        # Weight/bias reads at the use site (static slices) keep live ranges local so the
        # unrolled body does not have to hold all 5 slabs (~40 vregs) live -> no spills.
        wf = w_ref[idx]                                   # [2H, 4H]
        bf = b_ref[idx:idx + 1, :]                        # [1, 4H]
        xh = jnp.concatenate([x, h], axis=1)              # [B, 2H]
        g = jnp.dot(xh, wf, preferred_element_type=jnp.float32)   # [B, 4H] — one MXU push
        rz = sigmoid(g[:, :2 * H] + bf[:, :2 * H])        # r and z in one nonlinearity
        r = rz[:, :H]
        z = rz[:, H:]
        n = jnp.tanh(g[:, 2 * H:3 * H] + bf[:, 2 * H:3 * H]
                     + r * (g[:, 3 * H:] + bf[:, 3 * H:]))
        return n + z * (h - n)                            # == (1-z)*n + z*h

    h0 = jnp.zeros((B, H), jnp.float32)
    h1 = jnp.zeros((B, H), jnp.float32)

    # ----- encoder: 2-layer GRU over the (small, static) history -----
    for t in range(T_in):
        x_t = ego_ref[t]                                  # [B, H]
        h0 = cell(x_t, h0, 0)
        h1 = cell(h0, h1, 1)

    # ----- decoder: autoregressive (eval mode => no teacher forcing) -----
    def emit_out(t, h1_state):
        # FC head: only feeds the OUTPUT, not the recurrence (FC is folded into slab 4),
        # so this matmul sits off the critical path.
        y = jnp.dot(h1_state, fcw_ref[...],
                    preferred_element_type=jnp.float32) + fcb_ref[...]   # [B, H], tail = 0
        out_ref[t] = y                                    # lane-dense per-step store

    # step 0: zero-padded seed goes through the un-fused dec0 slab
    h0 = cell(ego_ref[T_in], h0, 2)
    h1 = cell(h0, h1, 3)
    emit_out(0, h1)

    # steps 1..T-1: FC folded into dec0's x-path, so h1 feeds back directly and the
    # per-step dependent chain is two cells (2 matmul stages) instead of three.
    for t in range(1, OUT_SEQ_LEN):
        h0 = cell(h1, h0, 4)
        h1 = cell(h0, h1, 3)
        emit_out(t, h1)


# ---------------------------------------------------------------------------------------
# Parameter construction (deterministic, PyTorch-style U(-1/sqrt(H), 1/sqrt(H)) init)
# PyTorch layout: w_ih [3H, in], w_hh [3H, H], biases [3H]; gate order (r, z, n).
# ---------------------------------------------------------------------------------------
def _init_gru_layer(key, in_dim, H):
    k1, k2, k3, k4 = jax.random.split(key, 4)
    s = 1.0 / np.sqrt(H)
    w_ih = jax.random.uniform(k1, (3 * H, in_dim), jnp.float32, -s, s)
    w_hh = jax.random.uniform(k2, (3 * H, H), jnp.float32, -s, s)
    b_ih = jax.random.uniform(k3, (3 * H,), jnp.float32, -s, s)
    b_hh = jax.random.uniform(k4, (3 * H,), jnp.float32, -s, s)
    return (w_ih, w_hh, b_ih, b_hh)


def init_params(key):
    keys = jax.random.split(key, 6)
    enc = [_init_gru_layer(keys[0], INPUT_DIM, HIDDEN_DIM),
           _init_gru_layer(keys[1], HIDDEN_DIM, HIDDEN_DIM)]
    dec = [_init_gru_layer(keys[2], OUTPUT_DIM, HIDDEN_DIM),
           _init_gru_layer(keys[3], HIDDEN_DIM, HIDDEN_DIM)]
    s = 1.0 / np.sqrt(HIDDEN_DIM)
    fc_w = jax.random.uniform(keys[4], (OUTPUT_DIM, HIDDEN_DIM), jnp.float32, -s, s)
    fc_b = jax.random.uniform(keys[5], (OUTPUT_DIM,), jnp.float32, -s, s)
    return enc, dec, fc_w, fc_b


# ---------------------------------------------------------------------------------------
# Wrapper-side packing into a few VMEM slabs
# ---------------------------------------------------------------------------------------
def _pack_layer(layer, in_dim, H):
    w_ih, w_hh, b_ih, b_hh = layer
    w_ih_t = w_ih.T.astype(jnp.float32)       # [in, 3H]
    w_hh_t = w_hh.T.astype(jnp.float32)       # [H, 3H]
    wf = jnp.zeros((2 * H, 4 * H), jnp.float32)
    # x rows: r,z columns + i_n group
    wf = wf.at[:in_dim, :2 * H].set(w_ih_t[:, :2 * H])
    wf = wf.at[:in_dim, 2 * H:3 * H].set(w_ih_t[:, 2 * H:])
    # h rows: r,z columns + h_n group
    wf = wf.at[H:, :2 * H].set(w_hh_t[:, :2 * H])
    wf = wf.at[H:, 3 * H:].set(w_hh_t[:, 2 * H:])
    bf = jnp.concatenate([(b_ih[:2 * H] + b_hh[:2 * H]),      # pre-summed r,z biases
                          b_ih[2 * H:],                       # b_in (kept separate)
                          b_hh[2 * H:]]).astype(jnp.float32)  # b_hn (kept separate)
    return wf, bf


def seq2seq_gru_forward(history, params):
    """history: [B, num_agents, T_in, D_in]  ->  predictions: [B, T_out, D_out]"""
    enc, dec, fc_w, fc_b = params
    H = HIDDEN_DIM
    ego = history[:, 0, :, :].astype(jnp.float32)            # [B, T_in, D_in]
    B, T_in, D_in = ego.shape

    # ego features zero-padded to H, laid out time-major; decoder seed appended as step T_in
    ego_pad = jnp.pad(ego, ((0, 0), (0, 0), (0, H - D_in)))                      # [B, T, H]
    seed = jnp.pad(ego[:, -1, :OUTPUT_DIM], ((0, 0), (0, H - OUTPUT_DIM)))       # [B, H]
    ego_slab = jnp.concatenate(
        [jnp.transpose(ego_pad, (1, 0, 2)), seed[None]], axis=0)                 # [T+1, B, H]

    fcw_pad = jnp.zeros((H, H), jnp.float32).at[:, :OUTPUT_DIM].set(fc_w.T)      # [H, H]
    fcb_pad = jnp.zeros((1, H), jnp.float32).at[0, :OUTPUT_DIM].set(fc_b)        # [1, H]

    wf_e0, bf_e0 = _pack_layer(enc[0], INPUT_DIM, H)
    wf_e1, bf_e1 = _pack_layer(enc[1], H, H)
    wf_d0, bf_d0 = _pack_layer(dec[0], OUTPUT_DIM, H)
    wf_d1, bf_d1 = _pack_layer(dec[1], H, H)

    # FC-fused dec0 slab: y = h1 @ fcw + fcb is folded into the next step's dec0 x-path.
    # Exact because fcw_pad columns >= OUTPUT_DIM and dec0 x-rows >= OUTPUT_DIM are zero,
    # and the x-row block has zero columns in the h_n group (so b_hn stays untouched).
    x_blk = wf_d0[:H, :]                                     # [H, 4H] x-row block of dec0
    wf_d0f = wf_d0.at[:H, :].set(fcw_pad @ x_blk)            # W'_x = fcw @ W_x_dec0
    bf_d0f = bf_d0 + (fcb_pad @ x_blk)[0]                    # fold fcb through the x-path

    gru_w = jnp.stack([wf_e0, wf_e1, wf_d0, wf_d1, wf_d0f])  # [5, 2H, 4H]
    gru_b = jnp.stack([bf_e0, bf_e1, bf_d0, bf_d1, bf_d0f])  # [5, 4H]

    vmem = pl.BlockSpec(memory_space=pltpu.MemorySpace.VMEM)
    out = pl.pallas_call(
        seq2seq_gru_kernel,
        out_shape=jax.ShapeDtypeStruct((OUT_SEQ_LEN, B, H), jnp.float32),
        in_specs=[vmem] * 5,
        out_specs=vmem,
    )(ego_slab, gru_w, gru_b, fcw_pad, fcb_pad)

    # lane-dense kernel output -> [B, T_out, D_out]
    return jnp.transpose(out, (1, 0, 2))[:, :, :OUTPUT_DIM]


# ---------------------------------------------------------------------------------------
# Pure-JAX reference (PyTorch weight layout, two matmuls per cell) for correctness check
# ---------------------------------------------------------------------------------------
def _ref_cell(x, h, layer):
    w_ih, w_hh, b_ih, b_hh = layer
    H = h.shape[-1]
    gi = x @ w_ih.T + b_ih
    gh = h @ w_hh.T + b_hh
    r = jax.nn.sigmoid(gi[:, :H] + gh[:, :H])
    z = jax.nn.sigmoid(gi[:, H:2 * H] + gh[:, H:2 * H])
    n = jnp.tanh(gi[:, 2 * H:] + r * gh[:, 2 * H:])
    return (1.0 - z) * n + z * h


def reference_forward(history, params):
    enc, dec, fc_w, fc_b = params
    ego = history[:, 0, :, :].astype(jnp.float32)
    B = ego.shape[0]
    h0 = jnp.zeros((B, HIDDEN_DIM), jnp.float32)
    h1 = jnp.zeros((B, HIDDEN_DIM), jnp.float32)
    for t in range(ego.shape[1]):
        h0 = _ref_cell(ego[:, t, :], h0, enc[0])
        h1 = _ref_cell(h0, h1, enc[1])
    dec_in = ego[:, -1, :OUTPUT_DIM]
    outs = []
    for _ in range(OUT_SEQ_LEN):
        h0 = _ref_cell(dec_in, h0, dec[0])
        h1 = _ref_cell(h0, h1, dec[1])
        y = h1 @ fc_w.T + fc_b
        outs.append(y[:, None, :])
        dec_in = y
    return jnp.concatenate(outs, axis=1)


if __name__ == "__main__":
    key = jax.random.PRNGKey(0)
    k_hist, k_params = jax.random.split(key)

    history = jax.random.normal(
        k_hist, (BATCH, NUM_AGENTS, SEQ_LEN, INPUT_DIM), dtype=jnp.float32)
    params = init_params(k_params)

    # TODO(synk): training-mode teacher forcing (torch.rand branch) is not implemented;
    # this kernel matches the eval-mode / inference forward only.
    preds = seq2seq_gru_forward(history, params)
    preds = jax.block_until_ready(preds)

    ref = jax.block_until_ready(reference_forward(history, params))

    assert preds.shape == (BATCH, OUT_SEQ_LEN, OUTPUT_DIM), preds.shape
    np.testing.assert_allclose(np.asarray(preds), np.asarray(ref), rtol=5e-3, atol=5e-3)
    print("KERNEL_OK")
</pallas_src>

<mosaic_0001>
module attributes {stable_mosaic.version = 11 : i64} {
  func.func @seq2seq_gru_kernel(%arg0: memref<9x2x32xf32, #tpu.memory_space<vmem>>, %arg1: memref<5x64x128xf32, #tpu.memory_space<vmem>>, %arg2: memref<5x128xf32, #tpu.memory_space<vmem>>, %arg3: memref<32x32xf32, #tpu.memory_space<vmem>>, %arg4: memref<1x32xf32, #tpu.memory_space<vmem>>, %arg5: memref<12x2x32xf32, #tpu.memory_space<vmem>>) attributes {dimension_semantics = [], scalar_prefetch = 0 : i64, scratch_operands = 0 : i64, tpu.core_type = #tpu.core_type<tc>} {
    %cst = arith.constant 0.000000e+00 : f32
    %0 = vector.broadcast %cst : f32 to vector<2x32xf32>
    %cst_0 = arith.constant 0.000000e+00 : f32
    %1 = vector.broadcast %cst_0 : f32 to vector<2x32xf32>
    %c0 = arith.constant 0 : index
    %c0_1 = arith.constant 0 : index
    %c0_2 = arith.constant 0 : index
    %2 = vector.load %arg0[%c0, %c0_1, %c0_2] : memref<9x2x32xf32, #tpu.memory_space<vmem>>, vector<1x2x32xf32>
    %3 = vector.shape_cast %2 : vector<1x2x32xf32> to vector<2x32xf32>
    %c0_3 = arith.constant 0 : index
    %c0_4 = arith.constant 0 : index
    %c0_5 = arith.constant 0 : index
    %4 = vector.load %arg1[%c0_3, %c0_4, %c0_5] : memref<5x64x128xf32, #tpu.memory_space<vmem>>, vector<1x64x128xf32>
    %5 = vector.shape_cast %4 : vector<1x64x128xf32> to vector<64x128xf32>
    %c0_6 = arith.constant 0 : index
    %c0_7 = arith.constant 0 : index
    %6 = vector.load %arg2[%c0_6, %c0_7] : memref<5x128xf32, #tpu.memory_space<vmem>>, vector<1x128xf32>
    %7 = tpu.concatenate %3, %0 in 1 : vector<2x32xf32>, vector<2x32xf32> -> vector<2x64xf32>
    %cst_8 = arith.constant dense<0.000000e+00> : vector<2x128xf32>
    %8 = tpu.matmul %7, %5, %cst_8 {dimension_numbers = #tpu.dot_dimension_numbers<[1], [0], [0], [1], [0, 0, 1, 1], [], []>} : vector<2x64xf32>, vector<64x128xf32>, vector<2x128xf32> -> vector<2x128xf32>
    %9 = vector.extract_strided_slice %8 {offsets = [0, 0], sizes = [2, 64], strides = [1, 1]} : vector<2x128xf32> to vector<2x64xf32>
    %10 = vector.extract_strided_slice %6 {offsets = [0, 0], sizes = [1, 64], strides = [1, 1]} : vector<1x128xf32> to vector<1x64xf32>
    %11 = vector.broadcast %10 : vector<1x64xf32> to vector<2x64xf32>
    %12 = arith.addf %9, %11 : vector<2x64xf32>
    %cst_9 = arith.constant 5.000000e-01 : f32
    %13 = vector.broadcast %cst_9 : f32 to vector<2x64xf32>
    %14 = arith.mulf %13, %12 : vector<2x64xf32>
    %15 = math.tanh %14 : vector<2x64xf32>
    %cst_10 = arith.constant 5.000000e-01 : f32
    %16 = vector.broadcast %cst_10 : f32 to vector<2x64xf32>
    %17 = arith.mulf %16, %15 : vector<2x64xf32>
    %cst_11 = arith.constant 5.000000e-01 : f32
    %18 = vector.broadcast %cst_11 : f32 to vector<2x64xf32>
    %19 = arith.addf %17, %18 : vector<2x64xf32>
    %20 = vector.extract_strided_slice %19 {offsets = [0, 0], sizes = [2, 32], strides = [1, 1]} : vector<2x64xf32> to vector<2x32xf32>
    %21 = vector.extract_strided_slice %19 {offsets = [0, 32], sizes = [2, 32], strides = [1, 1]} : vector<2x64xf32> to vector<2x32xf32>
    %22 = vector.extract_strided_slice %8 {offsets = [0, 64], sizes = [2, 32], strides = [1, 1]} : vector<2x128xf32> to vector<2x32xf32>
    %23 = vector.extract_strided_slice %6 {offsets = [0, 64], sizes = [1, 32], strides = [1, 1]} : vector<1x128xf32> to vector<1x32xf32>
    %24 = vector.broadcast %23 : vector<1x32xf32> to vector<2x32xf32>
    %25 = arith.addf %22, %24 : vector<2x32xf32>
    %26 = vector.extract_strided_slice %8 {offsets = [0, 96], sizes = [2, 32], strides = [1, 1]} : vector<2x128xf32> to vector<2x32xf32>
    %27 = vector.extract_strided_slice %6 {offsets = [0, 96], sizes = [1, 32], strides = [1, 1]} : vector<1x128xf32> to vector<1x32xf32>
    %28 = vector.broadcast %27 : vector<1x32xf32> to vector<2x32xf32>
    %29 = arith.addf %26, %28 : vector<2x32xf32>
    %30 = arith.mulf %20, %29 : vector<2x32xf32>
    %31 = arith.addf %25, %30 : vector<2x32xf32>
    %32 = math.tanh %31 : vector<2x32xf32>
    %33 = arith.subf %0, %32 : vector<2x32xf32>
    %34 = arith.mulf %21, %33 : vector<2x32xf32>
    %35 = arith.addf %32, %34 : vector<2x32xf32>
    %c1 = arith.constant 1 : index
    %c0_12 = arith.constant 0 : index
    %c0_13 = arith.constant 0 : index
    %36 = vector.load %arg1[%c1, %c0_12, %c0_13] : memref<5x64x128xf32, #tpu.memory_space<vmem>>, vector<1x64x128xf32>
    %37 = vector.shape_cast %36 : vector<1x64x128xf32> to vector<64x128xf32>
    %c1_14 = arith.constant 1 : index
    %c0_15 = arith.constant 0 : index
    %38 = vector.load %arg2[%c1_14, %c0_15] : memref<5x128xf32, #tpu.memory_space<vmem>>, vector<1x128xf32>
    %39 = tpu.concatenate %35, %1 in 1 : vector<2x32xf32>, vector<2x32xf32> -> vector<2x64xf32>
    %cst_16 = arith.constant dense<0.000000e+00> : vector<2x128xf32>
    %40 = tpu.matmul %39, %37, %cst_16 {dimension_numbers = #tpu.dot_dimension_numbers<[1], [0], [0], [1], [0, 0, 1, 1], [], []>} : vector<2x64xf32>, vector<64x128xf32>, vector<2x128xf32> -> vector<2x128xf32>
    %41 = vector.extract_strided_slice %40 {offsets = [0, 0], sizes = [2, 64], strides = [1, 1]} : vector<2x128xf32> to vector<2x64xf32>
    %42 = vector.extract_strided_slice %38 {offsets = [0, 0], sizes = [1, 64], strides = [1, 1]} : vector<1x128xf32> to vector<1x64xf32>
    %43 = vector.broadcast %42 : vector<1x64xf32> to vector<2x64xf32>
    %44 = arith.addf %41, %43 : vector<2x64xf32>
    %cst_17 = arith.constant 5.000000e-01 : f32
    %45 = vector.broadcast %cst_17 : f32 to vector<2x64xf32>
    %46 = arith.mulf %45, %44 : vector<2x64xf32>
    %47 = math.tanh %46 : vector<2x64xf32>
    %cst_18 = arith.constant 5.000000e-01 : f32
    %48 = vector.broadcast %cst_18 : f32 to vector<2x64xf32>
    %49 = arith.mulf %48, %47 : vector<2x64xf32>
    %cst_19 = arith.constant 5.000000e-01 : f32
    %50 = vector.broadcast %cst_19 : f32 to vector<2x64xf32>
    %51 = arith.addf %49, %50 : vector<2x64xf32>
    %52 = vector.extract_strided_slice %51 {offsets = [0, 0], sizes = [2, 32], strides = [1, 1]} : vector<2x64xf32> to vector<2x32xf32>
    %53 = vector.extract_strided_slice %51 {offsets = [0, 32], sizes = [2, 32], strides = [1, 1]} : vector<2x64xf32> to vector<2x32xf32>
    %54 = vector.extract_strided_slice %40 {offsets = [0, 64], sizes = [2, 32], strides = [1, 1]} : vector<2x128xf32> to vector<2x32xf32>
    %55 = vector.extract_strided_slice %38 {offsets = [0, 64], sizes = [1, 32], strides = [1, 1]} : vector<1x128xf32> to vector<1x32xf32>
    %56 = vector.broadcast %55 : vector<1x32xf32> to vector<2x32xf32>
    %57 = arith.addf %54, %56 : vector<2x32xf32>
    %58 = vector.extract_strided_slice %40 {offsets = [0, 96], sizes = [2, 32], strides = [1, 1]} : vector<2x128xf32> to vector<2x32xf32>
    %59 = vector.extract_strided_slice %38 {offsets = [0, 96], sizes = [1, 32], strides = [1, 1]} : vector<1x128xf32> to vector<1x32xf32>
    %60 = vector.broadcast %59 : vector<1x32xf32> to vector<2x32xf32>
    %61 = arith.addf %58, %60 : vector<2x32xf32>
    %62 = arith.mulf %52, %61 : vector<2x32xf32>
    %63 = arith.addf %57, %62 : vector<2x32xf32>
    %64 = math.tanh %63 : vector<2x32xf32>
    %65 = arith.subf %1, %64 : vector<2x32xf32>
    %66 = arith.mulf %53, %65 : vector<2x32xf32>
    %67 = arith.addf %64, %66 : vector<2x32xf32>
    %c1_20 = arith.constant 1 : index
    %c0_21 = arith.constant 0 : index
    %c0_22 = arith.constant 0 : index
    %68 = vector.load %arg0[%c1_20, %c0_21, %c0_22] : memref<9x2x32xf32, #tpu.memory_space<vmem>>, vector<1x2x32xf32>
    %69 = vector.shape_cast %68 : vector<1x2x32xf32> to vector<2x32xf32>
    %c0_23 = arith.constant 0 : index
    %c0_24 = arith.constant 0 : index
    %c0_25 = arith.constant 0 : index
    %70 = vector.load %arg1[%c0_23, %c0_24, %c0_25] : memref<5x64x128xf32, #tpu.memory_space<vmem>>, vector<1x64x128xf32>
    %71 = vector.shape_cast %70 : vector<1x64x128xf32> to vector<64x128xf32>
    %c0_26 = arith.constant 0 : index
    %c0_27 = arith.constant 0 : index
    %72 = vector.load %arg2[%c0_26, %c0_27] : memref<5x128xf32, #tpu.memory_space<vmem>>, vector<1x128xf32>
    %73 = tpu.concatenate %69, %35 in 1 : vector<2x32xf32>, vector<2x32xf32> -> vector<2x64xf32>
    %cst_28 = arith.constant dense<0.000000e+00> : vector<2x128xf32>
    %74 = tpu.matmul %73, %71, %cst_28 {dimension_numbers = #tpu.dot_dimension_numbers<[1], [0], [0], [1], [0, 0, 1, 1], [], []>} : vector<2x64xf32>, vector<64x128xf32>, vector<2x128xf32> -> vector<2x128xf32>
    %75 = vector.extract_strided_slice %74 {offsets = [0, 0], sizes = [2, 64], strides = [1, 1]} : vector<2x128xf32> to vector<2x64xf32>
    %76 = vector.extract_strided_slice %72 {offsets = [0, 0], sizes = [1, 64], strides = [1, 1]} : vector<1x128xf32> to vector<1x64xf32>
    %77 = vector.broadcast %76 : vector<1x64xf32> to vector<2x64xf32>
    %78 = arith.addf %75, %77 : vector<2x64xf32>
    %cst_29 = arith.constant 5.000000e-01 : f32
    %79 = vector.broadcast %cst_29 : f32 to vector<2x64xf32>
    %80 = arith.mulf %79, %78 : vector<2x64xf32>
    %81 = math.tanh %80 : vector<2x64xf32>
    %cst_30 = arith.constant 5.000000e-01 : f32
    %82 = vector.broadcast %cst_30 : f32 to vector<2x64xf32>
    %83 = arith.mulf %82, %81 : vector<2x64xf32>
    %cst_31 = arith.constant 5.000000e-01 : f32
    %84 = vector.broadcast %cst_31 : f32 to vector<2x64xf32>
    %85 = arith.addf %83, %84 : vector<2x64xf32>
    %86 = vector.extract_strided_slice %85 {offsets = [0, 0], sizes = [2, 32], strides = [1, 1]} : vector<2x64xf32> to vector<2x32xf32>
    %87 = vector.extract_strided_slice %85 {offsets = [0, 32], sizes = [2, 32], strides = [1, 1]} : vector<2x64xf32> to vector<2x32xf32>
    %88 = vector.extract_strided_slice %74 {offsets = [0, 64], sizes = [2, 32], strides = [1, 1]} : vector<2x128xf32> to vector<2x32xf32>
    %89 = vector.extract_strided_slice %72 {offsets = [0, 64], sizes = [1, 32], strides = [1, 1]} : vector<1x128xf32> to vector<1x32xf32>
    %90 = vector.broadcast %89 : vector<1x32xf32> to vector<2x32xf32>
    %91 = arith.addf %88, %90 : vector<2x32xf32>
    %92 = vector.extract_strided_slice %74 {offsets = [0, 96], sizes = [2, 32], strides = [1, 1]} : vector<2x128xf32> to vector<2x32xf32>
    %93 = vector.extract_strided_slice %72 {offsets = [0, 96], sizes = [1, 32], strides = [1, 1]} : vector<1x128xf32> to vector<1x32xf32>
    %94 = vector.broadcast %93 : vector<1x32xf32> to vector<2x32xf32>
    %95 = arith.addf %92, %94 : vector<2x32xf32>
    %96 = arith.mulf %86, %95 : vector<2x32xf32>
    %97 = arith.addf %91, %96 : vector<2x32xf32>
    %98 = math.tanh %97 : vector<2x32xf32>
    %99 = arith.subf %35, %98 : vector<2x32xf32>
    %100 = arith.mulf %87, %99 : vector<2x32xf32>
    %101 = arith.addf %98, %100 : vector<2x32xf32>
    %c1_32 = arith.constant 1 : index
    %c0_33 = arith.constant 0 : index
    %c0_34 = arith.constant 0 : index
    %102 = vector.load %arg1[%c1_32, %c0_33, %c0_34] : memref<5x64x128xf32, #tpu.memory_space<vmem>>, vector<1x64x128xf32>
    %103 = vector.shape_cast %102 : vector<1x64x128xf32> to vector<64x128xf32>
    %c1_35 = arith.constant 1 : index
    %c0_36 = arith.constant 0 : index
    %104 = vector.load %arg2[%c1_35, %c0_36] : memref<5x128xf32, #tpu.memory_space<vmem>>, vector<1x128xf32>
    %105 = tpu.concatenate %101, %67 in 1 : vector<2x32xf32>, vector<2x32xf32> -> vector<2x64xf32>
    %cst_37 = arith.constant dense<0.000000e+00> : vector<2x128xf32>
    %106 = tpu.matmul %105, %103, %cst_37 {dimension_numbers = #tpu.dot_dimension_numbers<[1], [0], [0], [1], [0, 0, 1, 1], [], []>} : vector<2x64xf32>, vector<64x128xf32>, vector<2x128xf32> -> vector<2x128xf32>
    %107 = vector.extract_strided_slice %106 {offsets = [0, 0], sizes = [2, 64], strides = [1, 1]} : vector<2x128xf32> to vector<2x64xf32>
    %108 = vector.extract_strided_slice %104 {offsets = [0, 0], sizes = [1, 64], strides = [1, 1]} : vector<1x128xf32> to vector<1x64xf32>
    %109 = vector.broadcast %108 : vector<1x64xf32> to vector<2x64xf32>
    %110 = arith.addf %107, %109 : vector<2x64xf32>
    %cst_38 = arith.constant 5.000000e-01 : f32
    %111 = vector.broadcast %cst_38 : f32 to vector<2x64xf32>
    %112 = arith.mulf %111, %110 : vector<2x64xf32>
    %113 = math.tanh %112 : vector<2x64xf32>
    %cst_39 = arith.constant 5.000000e-01 : f32
    %114 = vector.broadcast %cst_39 : f32 to vector<2x64xf32>
    %115 = arith.mulf %114, %113 : vector<2x64xf32>
    %cst_40 = arith.constant 5.000000e-01 : f32
    %116 = vector.broadcast %cst_40 : f32 to vector<2x64xf32>
    %117 = arith.addf %115, %116 : vector<2x64xf32>
    %118 = vector.extract_strided_slice %117 {offsets = [0, 0], sizes = [2, 32], strides = [1, 1]} : vector<2x64xf32> to vector<2x32xf32>
    %119 = vector.extract_strided_slice %117 {offsets = [0, 32], sizes = [2, 32], strides = [1, 1]} : vector<2x64xf32> to vector<2x32xf32>
    %120 = vector.extract_strided_slice %106 {offsets = [0, 64], sizes = [2, 32], strides = [1, 1]} : vector<2x128xf32> to vector<2x32xf32>
    %121 = vector.extract_strided_slice %104 {offsets = [0, 64], sizes = [1, 32], strides = [1, 1]} : vector<1x128xf32> to vector<1x32xf32>
    %122 = vector.broadcast %121 : vector<1x32xf32> to vector<2x32xf32>
    %123 = arith.addf %120, %122 : vector<2x32xf32>
    %124 = vector.extract_strided_slice %106 {offsets = [0, 96], sizes = [2, 32], strides = [1, 1]} : vector<2x128xf32> to vector<2x32xf32>
    %125 = vector.extract_strided_slice %104 {offsets = [0, 96], sizes = [1, 32], strides = [1, 1]} : vector<1x128xf32> to vector<1x32xf32>
    %126 = vector.broadcast %125 : vector<1x32xf32> to vector<2x32xf32>
    %127 = arith.addf %124, %126 : vector<2x32xf32>
    %128 = arith.mulf %118, %127 : vector<2x32xf32>
    %129 = arith.addf %123, %128 : vector<2x32xf32>
    %130 = math.tanh %129 : vector<2x32xf32>
    %131 = arith.subf %67, %130 : vector<2x32xf32>
    %132 = arith.mulf %119, %131 : vector<2x32xf32>
    %133 = arith.addf %130, %132 : vector<2x32xf32>
    %c2 = arith.constant 2 : index
    %c0_41 = arith.constant 0 : index
    %c0_42 = arith.constant 0 : index
    %134 = vector.load %arg0[%c2, %c0_41, %c0_42] : memref<9x2x32xf32, #tpu.memory_space<vmem>>, vector<1x2x32xf32>
    %135 = vector.shape_cast %134 : vector<1x2x32xf32> to vector<2x32xf32>
    %c0_43 = arith.constant 0 : index
    %c0_44 = arith.constant 0 : index
    %c0_45 = arith.constant 0 : index
    %136 = vector.load %arg1[%c0_43, %c0_44, %c0_45] : memref<5x64x128xf32, #tpu.memory_space<vmem>>, vector<1x64x128xf32>
    %137 = vector.shape_cast %136 : vector<1x64x128xf32> to vector<64x128xf32>
    %c0_46 = arith.constant 0 : index
    %c0_47 = arith.constant 0 : index
    %138 = vector.load %arg2[%c0_46, %c0_47] : memref<5x128xf32, #tpu.memory_space<vmem>>, vector<1x128xf32>
    %139 = tpu.concatenate %135, %101 in 1 : vector<2x32xf32>, vector<2x32xf32> -> vector<2x64xf32>
    %cst_48 = arith.constant dense<0.000000e+00> : vector<2x128xf32>
    %140 = tpu.matmul %139, %137, %cst_48 {dimension_numbers = #tpu.dot_dimension_numbers<[1], [0], [0], [1], [0, 0, 1, 1], [], []>} : vector<2x64xf32>, vector<64x128xf32>, vector<2x128xf32> -> vector<2x128xf32>
    %141 = vector.extract_strided_slice %140 {offsets = [0, 0], sizes = [2, 64], strides = [1, 1]} : vector<2x128xf32> to vector<2x64xf32>
    %142 = vector.extract_strided_slice %138 {offsets = [0, 0], sizes = [1, 64], strides = [1, 1]} : vector<1x128xf32> to vector<1x64xf32>
    %143 = vector.broadcast %142 : vector<1x64xf32> to vector<2x64xf32>
    %144 = arith.addf %141, %143 : vector<2x64xf32>
    %cst_49 = arith.constant 5.000000e-01 : f32
    %145 = vector.broadcast %cst_49 : f32 to vector<2x64xf32>
    %146 = arith.mulf %145, %144 : vector<2x64xf32>
    %147 = math.tanh %146 : vector<2x64xf32>
    %cst_50 = arith.constant 5.000000e-01 : f32
    %148 = vector.broadcast %cst_50 : f32 to vector<2x64xf32>
    %149 = arith.mulf %148, %147 : vector<2x64xf32>
    %cst_51 = arith.constant 5.000000e-01 : f32
    %150 = vector.broadcast %cst_51 : f32 to vector<2x64xf32>
    %151 = arith.addf %149, %150 : vector<2x64xf32>
    %152 = vector.extract_strided_slice %151 {offsets = [0, 0], sizes = [2, 32], strides = [1, 1]} : vector<2x64xf32> to vector<2x32xf32>
    %153 = vector.extract_strided_slice %151 {offsets = [0, 32], sizes = [2, 32], strides = [1, 1]} : vector<2x64xf32> to vector<2x32xf32>
    %154 = vector.extract_strided_slice %140 {offsets = [0, 64], sizes = [2, 32], strides = [1, 1]} : vector<2x128xf32> to vector<2x32xf32>
    %155 = vector.extract_strided_slice %138 {offsets = [0, 64], sizes = [1, 32], strides = [1, 1]} : vector<1x128xf32> to vector<1x32xf32>
    %156 = vector.broadcast %155 : vector<1x32xf32> to vector<2x32xf32>
    %157 = arith.addf %154, %156 : vector<2x32xf32>
    %158 = vector.extract_strided_slice %140 {offsets = [0, 96], sizes = [2, 32], strides = [1, 1]} : vector<2x128xf32> to vector<2x32xf32>
    %159 = vector.extract_strided_slice %138 {offsets = [0, 96], sizes = [1, 32], strides = [1, 1]} : vector<1x128xf32> to vector<1x32xf32>
    %160 = vector.broadcast %159 : vector<1x32xf32> to vector<2x32xf32>
    %161 = arith.addf %158, %160 : vector<2x32xf32>
    %162 = arith.mulf %152, %161 : vector<2x32xf32>
    %163 = arith.addf %157, %162 : vector<2x32xf32>
    %164 = math.tanh %163 : vector<2x32xf32>
    %165 = arith.subf %101, %164 : vector<2x32xf32>
    %166 = arith.mulf %153, %165 : vector<2x32xf32>
    %167 = arith.addf %164, %166 : vector<2x32xf32>
    %c1_52 = arith.constant 1 : index
    %c0_53 = arith.constant 0 : index
    %c0_54 = arith.constant 0 : index
    %168 = vector.load %arg1[%c1_52, %c0_53, %c0_54] : memref<5x64x128xf32, #tpu.memory_space<vmem>>, vector<1x64x128xf32>
    %169 = vector.shape_cast %168 : vector<1x64x128xf32> to vector<64x128xf32>
    %c1_55 = arith.constant 1 : index
    %c0_56 = arith.constant 0 : index
    %170 = vector.load %arg2[%c1_55, %c0_56] : memref<5x128xf32, #tpu.memory_space<vmem>>, vector<1x128xf32>
    %171 = tpu.concatenate %167, %133 in 1 : vector<2x32xf32>, vector<2x32xf32> -> vector<2x64xf32>
    %cst_57 = arith.constant dense<0.000000e+00> : vector<2x128xf32>
    %172 = tpu.matmul %171, %169, %cst_57 {dimension_numbers = #tpu.dot_dimension_numbers<[1], [0], [0], [1], [0, 0, 1, 1], [], []>} : vector<2x64xf32>, vector<64x128xf32>, vector<2x128xf32> -> vector<2x128xf32>
    %173 = vector.extract_strided_slice %172 {offsets = [0, 0], sizes = [2, 64], strides = [1, 1]} : vector<2x128xf32> to vector<2x64xf32>
    %174 = vector.extract_strided_slice %170 {offsets = [0, 0], sizes = [1, 64], strides = [1, 1]} : vector<1x128xf32> to vector<1x64xf32>
    %175 = vector.broadcast %174 : vector<1x64xf32> to vector<2x64xf32>
    %176 = arith.addf %173, %175 : vector<2x64xf32>
    %cst_58 = arith.constant 5.000000e-01 : f32
    %177 = vector.broadcast %cst_58 : f32 to vector<2x64xf32>
    %178 = arith.mulf %177, %176 : vector<2x64xf32>
    %179 = math.tanh %178 : vector<2x64xf32>
    %cst_59 = arith.constant 5.000000e-01 : f32
    %180 = vector.broadcast %cst_59 : f32 to vector<2x64xf32>
    %181 = arith.mulf %180, %179 : vector<2x64xf32>
    %cst_60 = arith.constant 5.000000e-01 : f32
    %182 = vector.broadcast %cst_60 : f32 to vector<2x64xf32>
    %183 = arith.addf %181, %182 : vector<2x64xf32>
    %184 = vector.extract_strided_slice %183 {offsets = [0, 0], sizes = [2, 32], strides = [1, 1]} : vector<2x64xf32> to vector<2x32xf32>
    %185 = vector.extract_strided_slice %183 {offsets = [0, 32], sizes = [2, 32], strides = [1, 1]} : vector<2x64xf32> to vector<2x32xf32>
    %186 = vector.extract_strided_slice %172 {offsets = [0, 64], sizes = [2, 32], strides = [1, 1]} : vector<2x128xf32> to vector<2x32xf32>
    %187 = vector.extract_strided_slice %170 {offsets = [0, 64], sizes = [1, 32], strides = [1, 1]} : vector<1x128xf32> to vector<1x32xf32>
    %188 = vector.broadcast %187 : vector<1x32xf32> to vector<2x32xf32>
    %189 = arith.addf %186, %188 : vector<2x32xf32>
    %190 = vector.extract_strided_slice %172 {offsets = [0, 96], sizes = [2, 32], strides = [1, 1]} : vector<2x128xf32> to vector<2x32xf32>
    %191 = vector.extract_strided_slice %170 {offsets = [0, 96], sizes = [1, 32], strides = [1, 1]} : vector<1x128xf32> to vector<1x32xf32>
    %192 = vector.broadcast %191 : vector<1x32xf32> to vector<2x32xf32>
    %193 = arith.addf %190, %192 : vector<2x32xf32>
    %194 = arith.mulf %184, %193 : vector<2x32xf32>
    %195 = arith.addf %189, %194 : vector<2x32xf32>
    %196 = math.tanh %195 : vector<2x32xf32>
    %197 = arith.subf %133, %196 : vector<2x32xf32>
    %198 = arith.mulf %185, %197 : vector<2x32xf32>
    %199 = arith.addf %196, %198 : vector<2x32xf32>
    %c3 = arith.constant 3 : index
    %c0_61 = arith.constant 0 : index
    %c0_62 = arith.constant 0 : index
    %200 = vector.load %arg0[%c3, %c0_61, %c0_62] : memref<9x2x32xf32, #tpu.memory_space<vmem>>, vector<1x2x32xf32>
    %201 = vector.shape_cast %200 : vector<1x2x32xf32> to vector<2x32xf32>
    %c0_63 = arith.constant 0 : index
    %c0_64 = arith.constant 0 : index
    %c0_65 = arith.constant 0 : index
    %202 = vector.load %arg1[%c0_63, %c0_64, %c0_65] : memref<5x64x128xf32, #tpu.memory_space<vmem>>, vector<1x64x128xf32>
    %203 = vector.shape_cast %202 : vector<1x64x128xf32> to vector<64x128xf32>
    %c0_66 = arith.constant 0 : index
    %c0_67 = arith.constant 0 : index
    %204 = vector.load %arg2[%c0_66, %c0_67] : memref<5x128xf32, #tpu.memory_space<vmem>>, vector<1x128xf32>
    %205 = tpu.concatenate %201, %167 in 1 : vector<2x32xf32>, vector<2x32xf32> -> vector<2x64xf32>
    %cst_68 = arith.constant dense<0.000000e+00> : vector<2x128xf32>
    %206 = tpu.matmul %205, %203, %cst_68 {dimension_numbers = #tpu.dot_dimension_numbers<[1], [0], [0], [1], [0, 0, 1, 1], [], []>} : vector<2x64xf32>, vector<64x128xf32>, vector<2x128xf32> -> vector<2x128xf32>
    %207 = vector.extract_strided_slice %206 {offsets = [0, 0], sizes = [2, 64], strides = [1, 1]} : vector<2x128xf32> to vector<2x64xf32>
    %208 = vector.extract_strided_slice %204 {offsets = [0, 0], sizes = [1, 64], strides = [1, 1]} : vector<1x128xf32> to vector<1x64xf32>
    %209 = vector.broadcast %208 : vector<1x64xf32> to vector<2x64xf32>
    %210 = arith.addf %207, %209 : vector<2x64xf32>
    %cst_69 = arith.constant 5.000000e-01 : f32
    %211 = vector.broadcast %cst_69 : f32 to vector<2x64xf32>
    %212 = arith.mulf %211, %210 : vector<2x64xf32>
    %213 = math.tanh %212 : vector<2x64xf32>
    %cst_70 = arith.constant 5.000000e-01 : f32
    %214 = vector.broadcast %cst_70 : f32 to vector<2x64xf32>
    %215 = arith.mulf %214, %213 : vector<2x64xf32>
    %cst_71 = arith.constant 5.000000e-01 : f32
    %216 = vector.broadcast %cst_71 : f32 to vector<2x64xf32>
    %217 = arith.addf %215, %216 : vector<2x64xf32>
    %218 = vector.extract_strided_slice %217 {offsets = [0, 0], sizes = [2, 32], strides = [1, 1]} : vector<2x64xf32> to vector<2x32xf32>
    %219 = vector.extract_strided_slice %217 {offsets = [0, 32], sizes = [2, 32], strides = [1, 1]} : vector<2x64xf32> to vector<2x32xf32>
    %220 = vector.extract_strided_slice %206 {offsets = [0, 64], sizes = [2, 32], strides = [1, 1]} : vector<2x128xf32> to vector<2x32xf32>
    %221 = vector.extract_strided_slice %204 {offsets = [0, 64], sizes = [1, 32], strides = [1, 1]} : vector<1x128xf32> to vector<1x32xf32>
    %222 = vector.broadcast %221 : vector<1x32xf32> to vector<2x32xf32>
    %223 = arith.addf %220, %222 : vector<2x32xf32>
    %224 = vector.extract_strided_slice %206 {offsets = [0, 96], sizes = [2, 32], strides = [1, 1]} : vector<2x128xf32> to vector<2x32xf32>
    %225 = vector.extract_strided_slice %204 {offsets = [0, 96], sizes = [1, 32], strides = [1, 1]} : vector<1x128xf32> to vector<1x32xf32>
    %226 = vector.broadcast %225 : vector<1x32xf32> to vector<2x32xf32>
    %227 = arith.addf %224, %226 : vector<2x32xf32>
    %228 = arith.mulf %218, %227 : vector<2x32xf32>
    %229 = arith.addf %223, %228 : vector<2x32xf32>
    %230 = math.tanh %229 : vector<2x32xf32>
    %231 = arith.subf %167, %230 : vector<2x32xf32>
    %232 = arith.mulf %219, %231 : vector<2x32xf32>
    %233 = arith.addf %230, %232 : vector<2x32xf32>
    %c1_72 = arith.constant 1 : index
    %c0_73 = arith.constant 0 : index
    %c0_74 = arith.constant 0 : index
    %234 = vector.load %arg1[%c1_72, %c0_73, %c0_74] : memref<5x64x128xf32, #tpu.memory_space<vmem>>, vector<1x64x128xf32>
    %235 = vector.shape_cast %234 : vector<1x64x128xf32> to vector<64x128xf32>
    %c1_75 = arith.constant 1 : index
    %c0_76 = arith.constant 0 : index
    %236 = vector.load %arg2[%c1_75, %c0_76] : memref<5x128xf32, #tpu.memory_space<vmem>>, vector<1x128xf32>
    %237 = tpu.concatenate %233, %199 in 1 : vector<2x32xf32>, vector<2x32xf32> -> vector<2x64xf32>
    %cst_77 = arith.constant dense<0.000000e+00> : vector<2x128xf32>
    %238 = tpu.matmul %237, %235, %cst_77 {dimension_numbers = #tpu.dot_dimension_numbers<[1], [0], [0], [1], [0, 0, 1, 1], [], []>} : vector<2x64xf32>, vector<64x128xf32>, vector<2x128xf32> -> vector<2x128xf32>
    %239 = vector.extract_strided_slice %238 {offsets = [0, 0], sizes = [2, 64], strides = [1, 1]} : vector<2x128xf32> to vector<2x64xf32>
    %240 = vector.extract_strided_slice %236 {offsets = [0, 0], sizes = [1, 64], strides = [1, 1]} : vector<1x128xf32> to vector<1x64xf32>
    %241 = vector.broadcast %240 : vector<1x64xf32> to vector<2x64xf32>
    %242 = arith.addf %239, %241 : vector<2x64xf32>
    %cst_78 = arith.constant 5.000000e-01 : f32
    %243 = vector.broadcast %cst_78 : f32 to vector<2x64xf32>
    %244 = arith.mulf %243, %242 : vector<2x64xf32>
    %245 = math.tanh %244 : vector<2x64xf32>
    %cst_79 = arith.constant 5.000000e-01 : f32
    %246 = vector.broadcast %cst_79 : f32 to vector<2x64xf32>
    %247 = arith.mulf %246, %245 : vector<2x64xf32>
    %cst_80 = arith.constant 5.000000e-01 : f32
    %248 = vector.broadcast %cst_80 : f32 to vector<2x64xf32>
    %249 = arith.addf %247, %248 : vector<2x64xf32>
    %250 = vector.extract_strided_slice %249 {offsets = [0, 0], sizes = [2, 32], strides = [1, 1]} : vector<2x64xf32> to vector<2x32xf32>
    %251 = vector.extract_strided_slice %249 {offsets = [0, 32], sizes = [2, 32], strides = [1, 1]} : vector<2x64xf32> to vector<2x32xf32>
    %252 = vector.extract_strided_slice %238 {offsets = [0, 64], sizes = [2, 32], strides = [1, 1]} : vector<2x128xf32> to vector<2x32xf32>
    %253 = vector.extract_strided_slice %236 {offsets = [0, 64], sizes = [1, 32], strides = [1, 1]} : vector<1x128xf32> to vector<1x32xf32>
    %254 = vector.broadcast %253 : vector<1x32xf32> to vector<2x32xf32>
    %255 = arith.addf %252, %254 : vector<2x32xf32>
    %256 = vector.extract_strided_slice %238 {offsets = [0, 96], sizes = [2, 32], strides = [1, 1]} : vector<2x128xf32> to vector<2x32xf32>
    %257 = vector.extract_strided_slice %236 {offsets = [0, 96], sizes = [1, 32], strides = [1, 1]} : vector<1x128xf32> to vector<1x32xf32>
    %258 = vector.broadcast %257 : vector<1x32xf32> to vector<2x32xf32>
    %259 = arith.addf %256, %258 : vector<2x32xf32>
    %260 = arith.mulf %250, %259 : vector<2x32xf32>
    %261 = arith.addf %255, %260 : vector<2x32xf32>
    %262 = math.tanh %261 : vector<2x32xf32>
    %263 = arith.subf %199, %262 : vector<2x32xf32>
    %264 = arith.mulf %251, %263 : vector<2x32xf32>
    %265 = arith.addf %262, %264 : vector<2x32xf32>
    %c4 = arith.constant 4 : index
    %c0_81 = arith.constant 0 : index
    %c0_82 = arith.constant 0 : index
    %266 = vector.load %arg0[%c4, %c0_81, %c0_82] : memref<9x2x32xf32, #tpu.memory_space<vmem>>, vector<1x2x32xf32>
    %267 = vector.shape_cast %266 : vector<1x2x32xf32> to vector<2x32xf32>
    %c0_83 = arith.constant 0 : index
    %c0_84 = arith.constant 0 : index
    %c0_85 = arith.constant 0 : index
    %268 = vector.load %arg1[%c0_83, %c0_84, %c0_85] : memref<5x64x128xf32, #tpu.memory_space<vmem>>, vector<1x64x128xf32>
    %269 = vector.shape_cast %268 : vector<1x64x128xf32> to vector<64x128xf32>
    %c0_86 = arith.constant 0 : index
    %c0_87 = arith.constant 0 : index
    %270 = vector.load %arg2[%c0_86, %c0_87] : memref<5x128xf32, #tpu.memory_space<vmem>>, vector<1x128xf32>
    %271 = tpu.concatenate %267, %233 in 1 : vector<2x32xf32>, vector<2x32xf32> -> vector<2x64xf32>
    %cst_88 = arith.constant dense<0.000000e+00> : vector<2x128xf32>
    %272 = tpu.matmul %271, %269, %cst_88 {dimension_numbers = #tpu.dot_dimension_numbers<[1], [0], [0], [1], [0, 0, 1, 1], [], []>} : vector<2x64xf32>, vector<64x128xf32>, vector<2x128xf32> -> vector<2x128xf32>
    %273 = vector.extract_strided_slice %272 {offsets = [0, 0], sizes = [2, 64], strides = [1, 1]} : vector<2x128xf32> to vector<2x64xf32>
    %274 = vector.extract_strided_slice %270 {offsets = [0, 0], sizes = [1, 64], strides = [1, 1]} : vector<1x128xf32> to vector<1x64xf32>
    %275 = vector.broadcast %274 : vector<1x64xf32> to vector<2x64xf32>
    %276 = arith.addf %273, %275 : vector<2x64xf32>
    %cst_89 = arith.constant 5.000000e-01 : f32
    %277 = vector.broadcast %cst_89 : f32 to vector<2x64xf32>
    %278 = arith.mulf %277, %276 : vector<2x64xf32>
    %279 = math.tanh %278 : vector<2x64xf32>
    %cst_90 = arith.constant 5.000000e-01 : f32
    %280 = vector.broadcast %cst_90 : f32 to vector<2x64xf32>
    %281 = arith.mulf %280, %279 : vector<2x64xf32>
    %cst_91 = arith.constant 5.000000e-01 : f32
    %282 = vector.broadcast %cst_91 : f32 to vector<2x64xf32>
    %283 = arith.addf %281, %282 : vector<2x64xf32>
    %284 = vector.extract_strided_slice %283 {offsets = [0, 0], sizes = [2, 32], strides = [1, 1]} : vector<2x64xf32> to vector<2x32xf32>
    %285 = vector.extract_strided_slice %283 {offsets = [0, 32], sizes = [2, 32], strides = [1, 1]} : vector<2x64xf32> to vector<2x32xf32>
    %286 = vector.extract_strided_slice %272 {offsets = [0, 64], sizes = [2, 32], strides = [1, 1]} : vector<2x128xf32> to vector<2x32xf32>
    %287 = vector.extract_strided_slice %270 {offsets = [0, 64], sizes = [1, 32], strides = [1, 1]} : vector<1x128xf32> to vector<1x32xf32>
    %288 = vector.broadcast %287 : vector<1x32xf32> to vector<2x32xf32>
    %289 = arith.addf %286, %288 : vector<2x32xf32>
    %290 = vector.extract_strided_slice %272 {offsets = [0, 96], sizes = [2, 32], strides = [1, 1]} : vector<2x128xf32> to vector<2x32xf32>
    %291 = vector.extract_strided_slice %270 {offsets = [0, 96], sizes = [1, 32], strides = [1, 1]} : vector<1x128xf32> to vector<1x32xf32>
    %292 = vector.broadcast %291 : vector<1x32xf32> to vector<2x32xf32>
    %293 = arith.addf %290, %292 : vector<2x32xf32>
    %294 = arith.mulf %284, %293 : vector<2x32xf32>
    %295 = arith.addf %289, %294 : vector<2x32xf32>
    %296 = math.tanh %295 : vector<2x32xf32>
    %297 = arith.subf %233, %296 : vector<2x32xf32>
    %298 = arith.mulf %285, %297 : vector<2x32xf32>
    %299 = arith.addf %296, %298 : vector<2x32xf32>
    %c1_92 = arith.constant 1 : index
    %c0_93 = arith.constant 0 : index
    %c0_94 = arith.constant 0 : index
    %300 = vector.load %arg1[%c1_92, %c0_93, %c0_94] : memref<5x64x128xf32, #tpu.memory_space<vmem>>, vector<1x64x128xf32>
    %301 = vector.shape_cast %300 : vector<1x64x128xf32> to vector<64x128xf32>
    %c1_95 = arith.constant 1 : index
    %c0_96 = arith.constant 0 : index
    %302 = vector.load %arg2[%c1_95, %c0_96] : memref<5x128xf32, #tpu.memory_space<vmem>>, vector<1x128xf32>
    %303 = tpu.concatenate %299, %265 in 1 : vector<2x32xf32>, vector<2x32xf32> -> vector<2x64xf32>
    %cst_97 = arith.constant dense<0.000000e+00> : vector<2x128xf32>
    %304 = tpu.matmul %303, %301, %cst_97 {dimension_numbers = #tpu.dot_dimension_numbers<[1], [0], [0], [1], [0, 0, 1, 1], [], []>} : vector<2x64xf32>, vector<64x128xf32>, vector<2x128xf32> -> vector<2x128xf32>
    %305 = vector.extract_strided_slice %304 {offsets = [0, 0], sizes = [2, 64], strides = [1, 1]} : vector<2x128xf32> to vector<2x64xf32>
    %306 = vector.extract_strided_slice %302 {offsets = [0, 0], sizes = [1, 64], strides = [1, 1]} : vector<1x128xf32> to vector<1x64xf32>
    %307 = vector.broadcast %306 : vector<1x64xf32> to vector<2x64xf32>
    %308 = arith.addf %305, %307 : vector<2x64xf32>
    %cst_98 = arith.constant 5.000000e-01 : f32
    %309 = vector.broadcast %cst_98 : f32 to vector<2x64xf32>
    %310 = arith.mulf %309, %308 : vector<2x64xf32>
    %311 = math.tanh %310 : vector<2x64xf32>
    %cst_99 = arith.constant 5.000000e-01 : f32
    %312 = vector.broadcast %cst_99 : f32 to vector<2x64xf32>
    %313 = arith.mulf %312, %311 : vector<2x64xf32>
    %cst_100 = arith.constant 5.000000e-01 : f32
    %314 = vector.broadcast %cst_100 : f32 to vector<2x64xf32>
    %315 = arith.addf %313, %314 : vector<2x64xf32>
    %316 = vector.extract_strided_slice %315 {offsets = [0, 0], sizes = [2, 32], strides = [1, 1]} : vector<2x64xf32> to vector<2x32xf32>
    %317 = vector.extract_strided_slice %315 {offsets = [0, 32], sizes = [2, 32], strides = [1, 1]} : vector<2x64xf32> to vector<2x32xf32>
    %318 = vector.extract_strided_slice %304 {offsets = [0, 64], sizes = [2, 32], strides = [1, 1]} : vector<2x128xf32> to vector<2x32xf32>
    %319 = vector.extract_strided_slice %302 {offsets = [0, 64], sizes = [1, 32], strides = [1, 1]} : vector<1x128xf32> to vector<1x32xf32>
    %320 = vector.broadcast %319 : vector<1x32xf32> to vector<2x32xf32>
    %321 = arith.addf %318, %320 : vector<2x32xf32>
    %322 = vector.extract_strided_slice %304 {offsets = [0, 96], sizes = [2, 32], strides = [1, 1]} : vector<2x128xf32> to vector<2x32xf32>
    %323 = vector.extract_strided_slice %302 {offsets = [0, 96], sizes = [1, 32], strides = [1, 1]} : vector<1x128xf32> to vector<1x32xf32>
    %324 = vector.broadcast %323 : vector<1x32xf32> to vector<2x32xf32>
    %325 = arith.addf %322, %324 : vector<2x32xf32>
    %326 = arith.mulf %316, %325 : vector<2x32xf32>
    %327 = arith.addf %321, %326 : vector<2x32xf32>
    %328 = math.tanh %327 : vector<2x32xf32>
    %329 = arith.subf %265, %328 : vector<2x32xf32>
    %330 = arith.mulf %317, %329 : vector<2x32xf32>
    %331 = arith.addf %328, %330 : vector<2x32xf32>
    %c5 = arith.constant 5 : index
    %c0_101 = arith.constant 0 : index
    %c0_102 = arith.constant 0 : index
    %332 = vector.load %arg0[%c5, %c0_101, %c0_102] : memref<9x2x32xf32, #tpu.memory_space<vmem>>, vector<1x2x32xf32>
    %333 = vector.shape_cast %332 : vector<1x2x32xf32> to vector<2x32xf32>
    %c0_103 = arith.constant 0 : index
    %c0_104 = arith.constant 0 : index
    %c0_105 = arith.constant 0 : index
    %334 = vector.load %arg1[%c0_103, %c0_104, %c0_105] : memref<5x64x128xf32, #tpu.memory_space<vmem>>, vector<1x64x128xf32>
    %335 = vector.shape_cast %334 : vector<1x64x128xf32> to vector<64x128xf32>
    %c0_106 = arith.constant 0 : index
    %c0_107 = arith.constant 0 : index
    %336 = vector.load %arg2[%c0_106, %c0_107] : memref<5x128xf32, #tpu.memory_space<vmem>>, vector<1x128xf32>
    %337 = tpu.concatenate %333, %299 in 1 : vector<2x32xf32>, vector<2x32xf32> -> vector<2x64xf32>
    %cst_108 = arith.constant dense<0.000000e+00> : vector<2x128xf32>
    %338 = tpu.matmul %337, %335, %cst_108 {dimension_numbers = #tpu.dot_dimension_numbers<[1], [0], [0], [1], [0, 0, 1, 1], [], []>} : vector<2x64xf32>, vector<64x128xf32>, vector<2x128xf32> -> vector<2x128xf32>
    %339 = vector.extract_strided_slice %338 {offsets = [0, 0], sizes = [2, 64], strides = [1, 1]} : vector<2x128xf32> to vector<2x64xf32>
    %340 = vector.extract_strided_slice %336 {offsets = [0, 0], sizes = [1, 64], strides = [1, 1]} : vector<1x128xf32> to vector<1x64xf32>
    %341 = vector.broadcast %340 : vector<1x64xf32> to vector<2x64xf32>
    %342 = arith.addf %339, %341 : vector<2x64xf32>
    %cst_109 = arith.constant 5.000000e-01 : f32
    %343 = vector.broadcast %cst_109 : f32 to vector<2x64xf32>
    %344 = arith.mulf %343, %342 : vector<2x64xf32>
    %345 = math.tanh %344 : vector<2x64xf32>
    %cst_110 = arith.constant 5.000000e-01 : f32
    %346 = vector.broadcast %cst_110 : f32 to vector<2x64xf32>
    %347 = arith.mulf %346, %345 : vector<2x64xf32>
    %cst_111 = arith.constant 5.000000e-01 : f32
    %348 = vector.broadcast %cst_111 : f32 to vector<2x64xf32>
    %349 = arith.addf %347, %348 : vector<2x64xf32>
    %350 = vector.extract_strided_slice %349 {offsets = [0, 0], sizes = [2, 32], strides = [1, 1]} : vector<2x64xf32> to vector<2x32xf32>
    %351 = vector.extract_strided_slice %349 {offsets = [0, 32], sizes = [2, 32], strides = [1, 1]} : vector<2x64xf32> to vector<2x32xf32>
    %352 = vector.extract_strided_slice %338 {offsets = [0, 64], sizes = [2, 32], strides = [1, 1]} : vector<2x128xf32> to vector<2x32xf32>
    %353 = vector.extract_strided_slice %336 {offsets = [0, 64], sizes = [1, 32], strides = [1, 1]} : vector<1x128xf32> to vector<1x32xf32>
    %354 = vector.broadcast %353 : vector<1x32xf32> to vector<2x32xf32>
    %355 = arith.addf %352, %354 : vector<2x32xf32>
    %356 = vector.extract_strided_slice %338 {offsets = [0, 96], sizes = [2, 32], strides = [1, 1]} : vector<2x128xf32> to vector<2x32xf32>
    %357 = vector.extract_strided_slice %336 {offsets = [0, 96], sizes = [1, 32], strides = [1, 1]} : vector<1x128xf32> to vector<1x32xf32>
    %358 = vector.broadcast %357 : vector<1x32xf32> to vector<2x32xf32>
    %359 = arith.addf %356, %358 : vector<2x32xf32>
    %360 = arith.mulf %350, %359 : vector<2x32xf32>
    %361 = arith.addf %355, %360 : vector<2x32xf32>
    %362 = math.tanh %361 : vector<2x32xf32>
    %363 = arith.subf %299, %362 : vector<2x32xf32>
    %364 = arith.mulf %351, %363 : vector<2x32xf32>
    %365 = arith.addf %362, %364 : vector<2x32xf32>
    %c1_112 = arith.constant 1 : index
    %c0_113 = arith.constant 0 : index
    %c0_114 = arith.constant 0 : index
    %366 = vector.load %arg1[%c1_112, %c0_113, %c0_114] : memref<5x64x128xf32, #tpu.memory_space<vmem>>, vector<1x64x128xf32>
    %367 = vector.shape_cast %366 : vector<1x64x128xf32> to vector<64x128xf32>
    %c1_115 = arith.constant 1 : index
    %c0_116 = arith.constant 0 : index
    %368 = vector.load %arg2[%c1_115, %c0_116] : memref<5x128xf32, #tpu.memory_space<vmem>>, vector<1x128xf32>
    %369 = tpu.concatenate %365, %331 in 1 : vector<2x32xf32>, vector<2x32xf32> -> vector<2x64xf32>
    %cst_117 = arith.constant dense<0.000000e+00> : vector<2x128xf32>
    %370 = tpu.matmul %369, %367, %cst_117 {dimension_numbers = #tpu.dot_dimension_numbers<[1], [0], [0], [1], [0, 0, 1, 1], [], []>} : vector<2x64xf32>, vector<64x128xf32>, vector<2x128xf32> -> vector<2x128xf32>
    %371 = vector.extract_strided_slice %370 {offsets = [0, 0], sizes = [2, 64], strides = [1, 1]} : vector<2x128xf32> to vector<2x64xf32>
    %372 = vector.extract_strided_slice %368 {offsets = [0, 0], sizes = [1, 64], strides = [1, 1]} : vector<1x128xf32> to vector<1x64xf32>
    %373 = vector.broadcast %372 : vector<1x64xf32> to vector<2x64xf32>
    %374 = arith.addf %371, %373 : vector<2x64xf32>
    %cst_118 = arith.constant 5.000000e-01 : f32
    %375 = vector.broadcast %cst_118 : f32 to vector<2x64xf32>
    %376 = arith.mulf %375, %374 : vector<2x64xf32>
    %377 = math.tanh %376 : vector<2x64xf32>
    %cst_119 = arith.constant 5.000000e-01 : f32
    %378 = vector.broadcast %cst_119 : f32 to vector<2x64xf32>
    %379 = arith.mulf %378, %377 : vector<2x64xf32>
    %cst_120 = arith.constant 5.000000e-01 : f32
    %380 = vector.broadcast %cst_120 : f32 to vector<2x64xf32>
    %381 = arith.addf %379, %380 : vector<2x64xf32>
    %382 = vector.extract_strided_slice %381 {offsets = [0, 0], sizes = [2, 32], strides = [1, 1]} : vector<2x64xf32> to vector<2x32xf32>
    %383 = vector.extract_strided_slice %381 {offsets = [0, 32], sizes = [2, 32], strides = [1, 1]} : vector<2x64xf32> to vector<2x32xf32>
    %384 = vector.extract_strided_slice %370 {offsets = [0, 64], sizes = [2, 32], strides = [1, 1]} : vector<2x128xf32> to vector<2x32xf32>
    %385 = vector.extract_strided_slice %368 {offsets = [0, 64], sizes = [1, 32], strides = [1, 1]} : vector<1x128xf32> to vector<1x32xf32>
    %386 = vector.broadcast %385 : vector<1x32xf32> to vector<2x32xf32>
    %387 = arith.addf %384, %386 : vector<2x32xf32>
    %388 = vector.extract_strided_slice %370 {offsets = [0, 96], sizes = [2, 32], strides = [1, 1]} : vector<2x128xf32> to vector<2x32xf32>
    %389 = vector.extract_strided_slice %368 {offsets = [0, 96], sizes = [1, 32], strides = [1, 1]} : vector<1x128xf32> to vector<1x32xf32>
    %390 = vector.broadcast %389 : vector<1x32xf32> to vector<2x32xf32>
    %391 = arith.addf %388, %390 : vector<2x32xf32>
    %392 = arith.mulf %382, %391 : vector<2x32xf32>
    %393 = arith.addf %387, %392 : vector<2x32xf32>
    %394 = math.tanh %393 : vector<2x32xf32>
    %395 = arith.subf %331, %394 : vector<2x32xf32>
    %396 = arith.mulf %383, %395 : vector<2x32xf32>
    %397 = arith.addf %394, %396 : vector<2x32xf32>
    %c6 = arith.constant 6 : index
    %c0_121 = arith.constant 0 : index
    %c0_122 = arith.constant 0 : index
    %398 = vector.load %arg0[%c6, %c0_121, %c0_122] : memref<9x2x32xf32, #tpu.memory_space<vmem>>, vector<1x2x32xf32>
    %399 = vector.shape_cast %398 : vector<1x2x32xf32> to vector<2x32xf32>
    %c0_123 = arith.constant 0 : index
    %c0_124 = arith.constant 0 : index
    %c0_125 = arith.constant 0 : index
    %400 = vector.load %arg1[%c0_123, %c0_124, %c0_125] : memref<5x64x128xf32, #tpu.memory_space<vmem>>, vector<1x64x128xf32>
    %401 = vector.shape_cast %400 : vector<1x64x128xf32> to vector<64x128xf32>
    %c0_126 = arith.constant 0 : index
    %c0_127 = arith.constant 0 : index
    %402 = vector.load %arg2[%c0_126, %c0_127] : memref<5x128xf32, #tpu.memory_space<vmem>>, vector<1x128xf32>
    %403 = tpu.concatenate %399, %365 in 1 : vector<2x32xf32>, vector<2x32xf32> -> vector<2x64xf32>
    %cst_128 = arith.constant dense<0.000000e+00> : vector<2x128xf32>
    %404 = tpu.matmul %403, %401, %cst_128 {dimension_numbers = #tpu.dot_dimension_numbers<[1], [0], [0], [1], [0, 0, 1, 1], [], []>} : vector<2x64xf32>, vector<64x128xf32>, vector<2x128xf32> -> vector<2x128xf32>
    %405 = vector.extract_strided_slice %404 {offsets = [0, 0], sizes = [2, 64], strides = [1, 1]} : vector<2x128xf32> to vector<2x64xf32>
    %406 = vector.extract_strided_slice %402 {offsets = [0, 0], sizes = [1, 64], strides = [1, 1]} : vector<1x128xf32> to vector<1x64xf32>
    %407 = vector.broadcast %406 : vector<1x64xf32> to vector<2x64xf32>
    %408 = arith.addf %405, %407 : vector<2x64xf32>
    %cst_129 = arith.constant 5.000000e-01 : f32
    %409 = vector.broadcast %cst_129 : f32 to vector<2x64xf32>
    %410 = arith.mulf %409, %408 : vector<2x64xf32>
    %411 = math.tanh %410 : vector<2x64xf32>
    %cst_130 = arith.constant 5.000000e-01 : f32
    %412 = vector.broadcast %cst_130 : f32 to vector<2x64xf32>
    %413 = arith.mulf %412, %411 : vector<2x64xf32>
    %cst_131 = arith.constant 5.000000e-01 : f32
    %414 = vector.broadcast %cst_131 : f32 to vector<2x64xf32>
    %415 = arith.addf %413, %414 : vector<2x64xf32>
    %416 = vector.extract_strided_slice %415 {offsets = [0, 0], sizes = [2, 32], strides = [1, 1]} : vector<2x64xf32> to vector<2x32xf32>
    %417 = vector.extract_strided_slice %415 {offsets = [0, 32], sizes = [2, 32], strides = [1, 1]} : vector<2x64xf32> to vector<2x32xf32>
    %418 = vector.extract_strided_slice %404 {offsets = [0, 64], sizes = [2, 32], strides = [1, 1]} : vector<2x128xf32> to vector<2x32xf32>
    %419 = vector.extract_strided_slice %402 {offsets = [0, 64], sizes = [1, 32], strides = [1, 1]} : vector<1x128xf32> to vector<1x32xf32>
    %420 = vector.broadcast %419 : vector<1x32xf32> to vector<2x32xf32>
    %421 = arith.addf %418, %420 : vector<2x32xf32>
    %422 = vector.extract_strided_slice %404 {offsets = [0, 96], sizes = [2, 32], strides = [1, 1]} : vector<2x128xf32> to vector<2x32xf32>
    %423 = vector.extract_strided_slice %402 {offsets = [0, 96], sizes = [1, 32], strides = [1, 1]} : vector<1x128xf32> to vector<1x32xf32>
    %424 = vector.broadcast %423 : vector<1x32xf32> to vector<2x32xf32>
    %425 = arith.addf %422, %424 : vector<2x32xf32>
    %426 = arith.mulf %416, %425 : vector<2x32xf32>
    %427 = arith.addf %421, %426 : vector<2x32xf32>
    %428 = math.tanh %427 : vector<2x32xf32>
    %429 = arith.subf %365, %428 : vector<2x32xf32>
    %430 = arith.mulf %417, %429 : vector<2x32xf32>
    %431 = arith.addf %428, %430 : vector<2x32xf32>
    %c1_132 = arith.constant 1 : index
    %c0_133 = arith.constant 0 : index
    %c0_134 = arith.constant 0 : index
    %432 = vector.load %arg1[%c1_132, %c0_133, %c0_134] : memref<5x64x128xf32, #tpu.memory_space<vmem>>, vector<1x64x128xf32>
    %433 = vector.shape_cast %432 : vector<1x64x128xf32> to vector<64x128xf32>
    %c1_135 = arith.constant 1 : index
    %c0_136 = arith.constant 0 : index
    %434 = vector.load %arg2[%c1_135, %c0_136] : memref<5x128xf32, #tpu.memory_space<vmem>>, vector<1x128xf32>
    %435 = tpu.concatenate %431, %397 in 1 : vector<2x32xf32>, vector<2x32xf32> -> vector<2x64xf32>
    %cst_137 = arith.constant dense<0.000000e+00> : vector<2x128xf32>
    %436 = tpu.matmul %435, %433, %cst_137 {dimension_numbers = #tpu.dot_dimension_numbers<[1], [0], [0], [1], [0, 0, 1, 1], [], []>} : vector<2x64xf32>, vector<64x128xf32>, vector<2x128xf32> -> vector<2x128xf32>
    %437 = vector.extract_strided_slice %436 {offsets = [0, 0], sizes = [2, 64], strides = [1, 1]} : vector<2x128xf32> to vector<2x64xf32>
    %438 = vector.extract_strided_slice %434 {offsets = [0, 0], sizes = [1, 64], strides = [1, 1]} : vector<1x128xf32> to vector<1x64xf32>
    %439 = vector.broadcast %438 : vector<1x64xf32> to vector<2x64xf32>
    %440 = arith.addf %437, %439 : vector<2x64xf32>
    %cst_138 = arith.constant 5.000000e-01 : f32
    %441 = vector.broadcast %cst_138 : f32 to vector<2x64xf32>
    %442 = arith.mulf %441, %440 : vector<2x64xf32>
    %443 = math.tanh %442 : vector<2x64xf32>
    %cst_139 = arith.constant 5.000000e-01 : f32
    %444 = vector.broadcast %cst_139 : f32 to vector<2x64xf32>
    %445 = arith.mulf %444, %443 : vector<2x64xf32>
    %cst_140 = arith.constant 5.000000e-01 : f32
    %446 = vector.broadcast %cst_140 : f32 to vector<2x64xf32>
    %447 = arith.addf %445, %446 : vector<2x64xf32>
    %448 = vector.extract_strided_slice %447 {offsets = [0, 0], sizes = [2, 32], strides = [1, 1]} : vector<2x64xf32> to vector<2x32xf32>
    %449 = vector.extract_strided_slice %447 {offsets = [0, 32], sizes = [2, 32], strides = [1, 1]} : vector<2x64xf32> to vector<2x32xf32>
    %450 = vector.extract_strided_slice %436 {offsets = [0, 64], sizes = [2, 32], strides = [1, 1]} : vector<2x128xf32> to vector<2x32xf32>
    %451 = vector.extract_strided_slice %434 {offsets = [0, 64], sizes = [1, 32], strides = [1, 1]} : vector<1x128xf32> to vector<1x32xf32>
    %452 = vector.broadcast %451 : vector<1x32xf32> to vector<2x32xf32>
    %453 = arith.addf %450, %452 : vector<2x32xf32>
    %454 = vector.extract_strided_slice %436 {offsets = [0, 96], sizes = [2, 32], strides = [1, 1]} : vector<2x128xf32> to vector<2x32xf32>
    %455 = vector.extract_strided_slice %434 {offsets = [0, 96], sizes = [1, 32], strides = [1, 1]} : vector<1x128xf32> to vector<1x32xf32>
    %456 = vector.broadcast %455 : vector<1x32xf32> to vector<2x32xf32>
    %457 = arith.addf %454, %456 : vector<2x32xf32>
    %458 = arith.mulf %448, %457 : vector<2x32xf32>
    %459 = arith.addf %453, %458 : vector<2x32xf32>
    %460 = math.tanh %459 : vector<2x32xf32>
    %461 = arith.subf %397, %460 : vector<2x32xf32>
    %462 = arith.mulf %449, %461 : vector<2x32xf32>
    %463 = arith.addf %460, %462 : vector<2x32xf32>
    %c7 = arith.constant 7 : index
    %c0_141 = arith.constant 0 : index
    %c0_142 = arith.constant 0 : index
    %464 = vector.load %arg0[%c7, %c0_141, %c0_142] : memref<9x2x32xf32, #tpu.memory_space<vmem>>, vector<1x2x32xf32>
    %465 = vector.shape_cast %464 : vector<1x2x32xf32> to vector<2x32xf32>
    %c0_143 = arith.constant 0 : index
    %c0_144 = arith.constant 0 : index
    %c0_145 = arith.constant 0 : index
    %466 = vector.load %arg1[%c0_143, %c0_144, %c0_145] : memref<5x64x128xf32, #tpu.memory_space<vmem>>, vector<1x64x128xf32>
    %467 = vector.shape_cast %466 : vector<1x64x128xf32> to vector<64x128xf32>
    %c0_146 = arith.constant 0 : index
    %c0_147 = arith.constant 0 : index
    %468 = vector.load %arg2[%c0_146, %c0_147] : memref<5x128xf32, #tpu.memory_space<vmem>>, vector<1x128xf32>
    %469 = tpu.concatenate %465, %431 in 1 : vector<2x32xf32>, vector<2x32xf32> -> vector<2x64xf32>
    %cst_148 = arith.constant dense<0.000000e+00> : vector<2x128xf32>
    %470 = tpu.matmul %469, %467, %cst_148 {dimension_numbers = #tpu.dot_dimension_numbers<[1], [0], [0], [1], [0, 0, 1, 1], [], []>} : vector<2x64xf32>, vector<64x128xf32>, vector<2x128xf32> -> vector<2x128xf32>
    %471 = vector.extract_strided_slice %470 {offsets = [0, 0], sizes = [2, 64], strides = [1, 1]} : vector<2x128xf32> to vector<2x64xf32>
    %472 = vector.extract_strided_slice %468 {offsets = [0, 0], sizes = [1, 64], strides = [1, 1]} : vector<1x128xf32> to vector<1x64xf32>
    %473 = vector.broadcast %472 : vector<1x64xf32> to vector<2x64xf32>
    %474 = arith.addf %471, %473 : vector<2x64xf32>
    %cst_149 = arith.constant 5.000000e-01 : f32
    %475 = vector.broadcast %cst_149 : f32 to vector<2x64xf32>
    %476 = arith.mulf %475, %474 : vector<2x64xf32>
    %477 = math.tanh %476 : vector<2x64xf32>
    %cst_150 = arith.constant 5.000000e-01 : f32
    %478 = vector.broadcast %cst_150 : f32 to vector<2x64xf32>
    %479 = arith.mulf %478, %477 : vector<2x64xf32>
    %cst_151 = arith.constant 5.000000e-01 : f32
    %480 = vector.broadcast %cst_151 : f32 to vector<2x64xf32>
    %481 = arith.addf %479, %480 : vector<2x64xf32>
    %482 = vector.extract_strided_slice %481 {offsets = [0, 0], sizes = [2, 32], strides = [1, 1]} : vector<2x64xf32> to vector<2x32xf32>
    %483 = vector.extract_strided_slice %481 {offsets = [0, 32], sizes = [2, 32], strides = [1, 1]} : vector<2x64xf32> to vector<2x32xf32>
    %484 = vector.extract_strided_slice %470 {offsets = [0, 64], sizes = [2, 32], strides = [1, 1]} : vector<2x128xf32> to vector<2x32xf32>
    %485 = vector.extract_strided_slice %468 {offsets = [0, 64], sizes = [1, 32], strides = [1, 1]} : vector<1x128xf32> to vector<1x32xf32>
    %486 = vector.broadcast %485 : vector<1x32xf32> to vector<2x32xf32>
    %487 = arith.addf %484, %486 : vector<2x32xf32>
    %488 = vector.extract_strided_slice %470 {offsets = [0, 96], sizes = [2, 32], strides = [1, 1]} : vector<2x128xf32> to vector<2x32xf32>
    %489 = vector.extract_strided_slice %468 {offsets = [0, 96], sizes = [1, 32], strides = [1, 1]} : vector<1x128xf32> to vector<1x32xf32>
    %490 = vector.broadcast %489 : vector<1x32xf32> to vector<2x32xf32>
    %491 = arith.addf %488, %490 : vector<2x32xf32>
    %492 = arith.mulf %482, %491 : vector<2x32xf32>
    %493 = arith.addf %487, %492 : vector<2x32xf32>
    %494 = math.tanh %493 : vector<2x32xf32>
    %495 = arith.subf %431, %494 : vector<2x32xf32>
    %496 = arith.mulf %483, %495 : vector<2x32xf32>
    %497 = arith.addf %494, %496 : vector<2x32xf32>
    %c1_152 = arith.constant 1 : index
    %c0_153 = arith.constant 0 : index
    %c0_154 = arith.constant 0 : index
    %498 = vector.load %arg1[%c1_152, %c0_153, %c0_154] : memref<5x64x128xf32, #tpu.memory_space<vmem>>, vector<1x64x128xf32>
    %499 = vector.shape_cast %498 : vector<1x64x128xf32> to vector<64x128xf32>
    %c1_155 = arith.constant 1 : index
    %c0_156 = arith.constant 0 : index
    %500 = vector.load %arg2[%c1_155, %c0_156] : memref<5x128xf32, #tpu.memory_space<vmem>>, vector<1x128xf32>
    %501 = tpu.concatenate %497, %463 in 1 : vector<2x32xf32>, vector<2x32xf32> -> vector<2x64xf32>
    %cst_157 = arith.constant dense<0.000000e+00> : vector<2x128xf32>
    %502 = tpu.matmul %501, %499, %cst_157 {dimension_numbers = #tpu.dot_dimension_numbers<[1], [0], [0], [1], [0, 0, 1, 1], [], []>} : vector<2x64xf32>, vector<64x128xf32>, vector<2x128xf32> -> vector<2x128xf32>
    %503 = vector.extract_strided_slice %502 {offsets = [0, 0], sizes = [2, 64], strides = [1, 1]} : vector<2x128xf32> to vector<2x64xf32>
    %504 = vector.extract_strided_slice %500 {offsets = [0, 0], sizes = [1, 64], strides = [1, 1]} : vector<1x128xf32> to vector<1x64xf32>
    %505 = vector.broadcast %504 : vector<1x64xf32> to vector<2x64xf32>
    %506 = arith.addf %503, %505 : vector<2x64xf32>
    %cst_158 = arith.constant 5.000000e-01 : f32
    %507 = vector.broadcast %cst_158 : f32 to vector<2x64xf32>
    %508 = arith.mulf %507, %506 : vector<2x64xf32>
    %509 = math.tanh %508 : vector<2x64xf32>
    %cst_159 = arith.constant 5.000000e-01 : f32
    %510 = vector.broadcast %cst_159 : f32 to vector<2x64xf32>
    %511 = arith.mulf %510, %509 : vector<2x64xf32>
    %cst_160 = arith.constant 5.000000e-01 : f32
    %512 = vector.broadcast %cst_160 : f32 to vector<2x64xf32>
    %513 = arith.addf %511, %512 : vector<2x64xf32>
    %514 = vector.extract_strided_slice %513 {offsets = [0, 0], sizes = [2, 32], strides = [1, 1]} : vector<2x64xf32> to vector<2x32xf32>
    %515 = vector.extract_strided_slice %513 {offsets = [0, 32], sizes = [2, 32], strides = [1, 1]} : vector<2x64xf32> to vector<2x32xf32>
    %516 = vector.extract_strided_slice %502 {offsets = [0, 64], sizes = [2, 32], strides = [1, 1]} : vector<2x128xf32> to vector<2x32xf32>
    %517 = vector.extract_strided_slice %500 {offsets = [0, 64], sizes = [1, 32], strides = [1, 1]} : vector<1x128xf32> to vector<1x32xf32>
    %518 = vector.broadcast %517 : vector<1x32xf32> to vector<2x32xf32>
    %519 = arith.addf %516, %518 : vector<2x32xf32>
    %520 = vector.extract_strided_slice %502 {offsets = [0, 96], sizes = [2, 32], strides = [1, 1]} : vector<2x128xf32> to vector<2x32xf32>
    %521 = vector.extract_strided_slice %500 {offsets = [0, 96], sizes = [1, 32], strides = [1, 1]} : vector<1x128xf32> to vector<1x32xf32>
    %522 = vector.broadcast %521 : vector<1x32xf32> to vector<2x32xf32>
    %523 = arith.addf %520, %522 : vector<2x32xf32>
    %524 = arith.mulf %514, %523 : vector<2x32xf32>
    %525 = arith.addf %519, %524 : vector<2x32xf32>
    %526 = math.tanh %525 : vector<2x32xf32>
    %527 = arith.subf %463, %526 : vector<2x32xf32>
    %528 = arith.mulf %515, %527 : vector<2x32xf32>
    %529 = arith.addf %526, %528 : vector<2x32xf32>
    %c8 = arith.constant 8 : index
    %c0_161 = arith.constant 0 : index
    %c0_162 = arith.constant 0 : index
    %530 = vector.load %arg0[%c8, %c0_161, %c0_162] : memref<9x2x32xf32, #tpu.memory_space<vmem>>, vector<1x2x32xf32>
    %531 = vector.shape_cast %530 : vector<1x2x32xf32> to vector<2x32xf32>
    %c2_163 = arith.constant 2 : index
    %c0_164 = arith.constant 0 : index
    %c0_165 = arith.constant 0 : index
    %532 = vector.load %arg1[%c2_163, %c0_164, %c0_165] : memref<5x64x128xf32, #tpu.memory_space<vmem>>, vector<1x64x128xf32>
    %533 = vector.shape_cast %532 : vector<1x64x128xf32> to vector<64x128xf32>
    %c2_166 = arith.constant 2 : index
    %c0_167 = arith.constant 0 : index
    %534 = vector.load %arg2[%c2_166, %c0_167] : memref<5x128xf32, #tpu.memory_space<vmem>>, vector<1x128xf32>
    %535 = tpu.concatenate %531, %497 in 1 : vector<2x32xf32>, vector<2x32xf32> -> vector<2x64xf32>
    %cst_168 = arith.constant dense<0.000000e+00> : vector<2x128xf32>
    %536 = tpu.matmul %535, %533, %cst_168 {dimension_numbers = #tpu.dot_dimension_numbers<[1], [0], [0], [1], [0, 0, 1, 1], [], []>} : vector<2x64xf32>, vector<64x128xf32>, vector<2x128xf32> -> vector<2x128xf32>
    %537 = vector.extract_strided_slice %536 {offsets = [0, 0], sizes = [2, 64], strides = [1, 1]} : vector<2x128xf32> to vector<2x64xf32>
    %538 = vector.extract_strided_slice %534 {offsets = [0, 0], sizes = [1, 64], strides = [1, 1]} : vector<1x128xf32> to vector<1x64xf32>
    %539 = vector.broadcast %538 : vector<1x64xf32> to vector<2x64xf32>
    %540 = arith.addf %537, %539 : vector<2x64xf32>
    %cst_169 = arith.constant 5.000000e-01 : f32
    %541 = vector.broadcast %cst_169 : f32 to vector<2x64xf32>
    %542 = arith.mulf %541, %540 : vector<2x64xf32>
    %543 = math.tanh %542 : vector<2x64xf32>
    %cst_170 = arith.constant 5.000000e-01 : f32
    %544 = vector.broadcast %cst_170 : f32 to vector<2x64xf32>
    %545 = arith.mulf %544, %543 : vector<2x64xf32>
    %cst_171 = arith.constant 5.000000e-01 : f32
    %546 = vector.broadcast %cst_171 : f32 to vector<2x64xf32>
    %547 = arith.addf %545, %546 : vector<2x64xf32>
    %548 = vector.extract_strided_slice %547 {offsets = [0, 0], sizes = [2, 32], strides = [1, 1]} : vector<2x64xf32> to vector<2x32xf32>
    %549 = vector.extract_strided_slice %547 {offsets = [0, 32], sizes = [2, 32], strides = [1, 1]} : vector<2x64xf32> to vector<2x32xf32>
    %550 = vector.extract_strided_slice %536 {offsets = [0, 64], sizes = [2, 32], strides = [1, 1]} : vector<2x128xf32> to vector<2x32xf32>
    %551 = vector.extract_strided_slice %534 {offsets = [0, 64], sizes = [1, 32], strides = [1, 1]} : vector<1x128xf32> to vector<1x32xf32>
    %552 = vector.broadcast %551 : vector<1x32xf32> to vector<2x32xf32>
    %553 = arith.addf %550, %552 : vector<2x32xf32>
    %554 = vector.extract_strided_slice %536 {offsets = [0, 96], sizes = [2, 32], strides = [1, 1]} : vector<2x128xf32> to vector<2x32xf32>
    %555 = vector.extract_strided_slice %534 {offsets = [0, 96], sizes = [1, 32], strides = [1, 1]} : vector<1x128xf32> to vector<1x32xf32>
    %556 = vector.broadcast %555 : vector<1x32xf32> to vector<2x32xf32>
    %557 = arith.addf %554, %556 : vector<2x32xf32>
    %558 = arith.mulf %548, %557 : vector<2x32xf32>
    %559 = arith.addf %553, %558 : vector<2x32xf32>
    %560 = math.tanh %559 : vector<2x32xf32>
    %561 = arith.subf %497, %560 : vector<2x32xf32>
    %562 = arith.mulf %549, %561 : vector<2x32xf32>
    %563 = arith.addf %560, %562 : vector<2x32xf32>
    %c3_172 = arith.constant 3 : index
    %c0_173 = arith.constant 0 : index
    %c0_174 = arith.constant 0 : index
    %564 = vector.load %arg1[%c3_172, %c0_173, %c0_174] : memref<5x64x128xf32, #tpu.memory_space<vmem>>, vector<1x64x128xf32>
    %565 = vector.shape_cast %564 : vector<1x64x128xf32> to vector<64x128xf32>
    %c3_175 = arith.constant 3 : index
    %c0_176 = arith.constant 0 : index
    %566 = vector.load %arg2[%c3_175, %c0_176] : memref<5x128xf32, #tpu.memory_space<vmem>>, vector<1x128xf32>
    %567 = tpu.concatenate %563, %529 in 1 : vector<2x32xf32>, vector<2x32xf32> -> vector<2x64xf32>
    %cst_177 = arith.constant dense<0.000000e+00> : vector<2x128xf32>
    %568 = tpu.matmul %567, %565, %cst_177 {dimension_numbers = #tpu.dot_dimension_numbers<[1], [0], [0], [1], [0, 0, 1, 1], [], []>} : vector<2x64xf32>, vector<64x128xf32>, vector<2x128xf32> -> vector<2x128xf32>
    %569 = vector.extract_strided_slice %568 {offsets = [0, 0], sizes = [2, 64], strides = [1, 1]} : vector<2x128xf32> to vector<2x64xf32>
    %570 = vector.extract_strided_slice %566 {offsets = [0, 0], sizes = [1, 64], strides = [1, 1]} : vector<1x128xf32> to vector<1x64xf32>
    %571 = vector.broadcast %570 : vector<1x64xf32> to vector<2x64xf32>
    %572 = arith.addf %569, %571 : vector<2x64xf32>
    %cst_178 = arith.constant 5.000000e-01 : f32
    %573 = vector.broadcast %cst_178 : f32 to vector<2x64xf32>
    %574 = arith.mulf %573, %572 : vector<2x64xf32>
    %575 = math.tanh %574 : vector<2x64xf32>
    %cst_179 = arith.constant 5.000000e-01 : f32
    %576 = vector.broadcast %cst_179 : f32 to vector<2x64xf32>
    %577 = arith.mulf %576, %575 : vector<2x64xf32>
    %cst_180 = arith.constant 5.000000e-01 : f32
    %578 = vector.broadcast %cst_180 : f32 to vector<2x64xf32>
    %579 = arith.addf %577, %578 : vector<2x64xf32>
    %580 = vector.extract_strided_slice %579 {offsets = [0, 0], sizes = [2, 32], strides = [1, 1]} : vector<2x64xf32> to vector<2x32xf32>
    %581 = vector.extract_strided_slice %579 {offsets = [0, 32], sizes = [2, 32], strides = [1, 1]} : vector<2x64xf32> to vector<2x32xf32>
    %582 = vector.extract_strided_slice %568 {offsets = [0, 64], sizes = [2, 32], strides = [1, 1]} : vector<2x128xf32> to vector<2x32xf32>
    %583 = vector.extract_strided_slice %566 {offsets = [0, 64], sizes = [1, 32], strides = [1, 1]} : vector<1x128xf32> to vector<1x32xf32>
    %584 = vector.broadcast %583 : vector<1x32xf32> to vector<2x32xf32>
    %585 = arith.addf %582, %584 : vector<2x32xf32>
    %586 = vector.extract_strided_slice %568 {offsets = [0, 96], sizes = [2, 32], strides = [1, 1]} : vector<2x128xf32> to vector<2x32xf32>
    %587 = vector.extract_strided_slice %566 {offsets = [0, 96], sizes = [1, 32], strides = [1, 1]} : vector<1x128xf32> to vector<1x32xf32>
    %588 = vector.broadcast %587 : vector<1x32xf32> to vector<2x32xf32>
    %589 = arith.addf %586, %588 : vector<2x32xf32>
    %590 = arith.mulf %580, %589 : vector<2x32xf32>
    %591 = arith.addf %585, %590 : vector<2x32xf32>
    %592 = math.tanh %591 : vector<2x32xf32>
    %593 = arith.subf %529, %592 : vector<2x32xf32>
    %594 = arith.mulf %581, %593 : vector<2x32xf32>
    %595 = arith.addf %592, %594 : vector<2x32xf32>
    %c0_181 = arith.constant 0 : index
    %c0_182 = arith.constant 0 : index
    %596 = vector.load %arg3[%c0_181, %c0_182] : memref<32x32xf32, #tpu.memory_space<vmem>>, vector<32x32xf32>
    %cst_183 = arith.constant dense<0.000000e+00> : vector<2x32xf32>
    %597 = tpu.matmul %595, %596, %cst_183 {dimension_numbers = #tpu.dot_dimension_numbers<[1], [0], [0], [1], [0, 0, 1, 1], [], []>} : vector<2x32xf32>, vector<32x32xf32>, vector<2x32xf32> -> vector<2x32xf32>
    %c0_184 = arith.constant 0 : index
    %c0_185 = arith.constant 0 : index
    %598 = vector.load %arg4[%c0_184, %c0_185] : memref<1x32xf32, #tpu.memory_space<vmem>>, vector<1x32xf32>
    %599 = vector.broadcast %598 : vector<1x32xf32> to vector<2x32xf32>
    %600 = arith.addf %597, %599 : vector<2x32xf32>
    %c0_186 = arith.constant 0 : index
    %c0_187 = arith.constant 0 : index
    %c0_188 = arith.constant 0 : index
    %601 = vector.load %arg5[%c0_186, %c0_187, %c0_188] : memref<12x2x32xf32, #tpu.memory_space<vmem>>, vector<1x2x32xf32>
    %602 = vector.shape_cast %601 : vector<1x2x32xf32> to vector<2x32xf32>
    %603 = vector.shape_cast %600 : vector<2x32xf32> to vector<1x2x32xf32>
    tpu.vector_store %arg5[%c0_186, %c0_187, %c0_188], %603 {strides = array<i32>} : memref<12x2x32xf32, #tpu.memory_space<vmem>>, vector<1x2x32xf32>,
    %c4_189 = arith.constant 4 : index
    %c0_190 = arith.constant 0 : index
    %c0_191 = arith.constant 0 : index
    %604 = vector.load %arg1[%c4_189, %c0_190, %c0_191] : memref<5x64x128xf32, #tpu.memory_space<vmem>>, vector<1x64x128xf32>
    %605 = vector.shape_cast %604 : vector<1x64x128xf32> to vector<64x128xf32>
    %c4_192 = arith.constant 4 : index
    %c0_193 = arith.constant 0 : index
    %606 = vector.load %arg2[%c4_192, %c0_193] : memref<5x128xf32, #tpu.memory_space<vmem>>, vector<1x128xf32>
    %607 = tpu.concatenate %595, %563 in 1 : vector<2x32xf32>, vector<2x32xf32> -> vector<2x64xf32>
    %cst_194 = arith.constant dense<0.000000e+00> : vector<2x128xf32>
    %608 = tpu.matmul %607, %605, %cst_194 {dimension_numbers = #tpu.dot_dimension_numbers<[1], [0], [0], [1], [0, 0, 1, 1], [], []>} : vector<2x64xf32>, vector<64x128xf32>, vector<2x128xf32> -> vector<2x128xf32>
    %609 = vector.extract_strided_slice %608 {offsets = [0, 0], sizes = [2, 64], strides = [1, 1]} : vector<2x128xf32> to vector<2x64xf32>
    %610 = vector.extract_strided_slice %606 {offsets = [0, 0], sizes = [1, 64], strides = [1, 1]} : vector<1x128xf32> to vector<1x64xf32>
    %611 = vector.broadcast %610 : vector<1x64xf32> to vector<2x64xf32>
    %612 = arith.addf %609, %611 : vector<2x64xf32>
    %cst_195 = arith.constant 5.000000e-01 : f32
    %613 = vector.broadcast %cst_195 : f32 to vector<2x64xf32>
    %614 = arith.mulf %613, %612 : vector<2x64xf32>
    %615 = math.tanh %614 : vector<2x64xf32>
    %cst_196 = arith.constant 5.000000e-01 : f32
    %616 = vector.broadcast %cst_196 : f32 to vector<2x64xf32>
    %617 = arith.mulf %616, %615 : vector<2x64xf32>
    %cst_197 = arith.constant 5.000000e-01 : f32
    %618 = vector.broadcast %cst_197 : f32 to vector<2x64xf32>
    %619 = arith.addf %617, %618 : vector<2x64xf32>
    %620 = vector.extract_strided_slice %619 {offsets = [0, 0], sizes = [2, 32], strides = [1, 1]} : vector<2x64xf32> to vector<2x32xf32>
    %621 = vector.extract_strided_slice %619 {offsets = [0, 32], sizes = [2, 32], strides = [1, 1]} : vector<2x64xf32> to vector<2x32xf32>
    %622 = vector.extract_strided_slice %608 {offsets = [0, 64], sizes = [2, 32], strides = [1, 1]} : vector<2x128xf32> to vector<2x32xf32>
    %623 = vector.extract_strided_slice %606 {offsets = [0, 64], sizes = [1, 32], strides = [1, 1]} : vector<1x128xf32> to vector<1x32xf32>
    %624 = vector.broadcast %623 : vector<1x32xf32> to vector<2x32xf32>
    %625 = arith.addf %622, %624 : vector<2x32xf32>
    %626 = vector.extract_strided_slice %608 {offsets = [0, 96], sizes = [2, 32], strides = [1, 1]} : vector<2x128xf32> to vector<2x32xf32>
    %627 = vector.extract_strided_slice %606 {offsets = [0, 96], sizes = [1, 32], strides = [1, 1]} : vector<1x128xf32> to vector<1x32xf32>
    %628 = vector.broadcast %627 : vector<1x32xf32> to vector<2x32xf32>
    %629 = arith.addf %626, %628 : vector<2x32xf32>
    %630 = arith.mulf %620, %629 : vector<2x32xf32>
    %631 = arith.addf %625, %630 : vector<2x32xf32>
    %632 = math.tanh %631 : vector<2x32xf32>
    %633 = arith.subf %563, %632 : vector<2x32xf32>
    %634 = arith.mulf %621, %633 : vector<2x32xf32>
    %635 = arith.addf %632, %634 : vector<2x32xf32>
    %c3_198 = arith.constant 3 : index
    %c0_199 = arith.constant 0 : index
    %c0_200 = arith.constant 0 : index
    %636 = vector.load %arg1[%c3_198, %c0_199, %c0_200] : memref<5x64x128xf32, #tpu.memory_space<vmem>>, vector<1x64x128xf32>
    %637 = vector.shape_cast %636 : vector<1x64x128xf32> to vector<64x128xf32>
    %c3_201 = arith.constant 3 : index
    %c0_202 = arith.constant 0 : index
    %638 = vector.load %arg2[%c3_201, %c0_202] : memref<5x128xf32, #tpu.memory_space<vmem>>, vector<1x128xf32>
    %639 = tpu.concatenate %635, %595 in 1 : vector<2x32xf32>, vector<2x32xf32> -> vector<2x64xf32>
    %cst_203 = arith.constant dense<0.000000e+00> : vector<2x128xf32>
    %640 = tpu.matmul %639, %637, %cst_203 {dimension_numbers = #tpu.dot_dimension_numbers<[1], [0], [0], [1], [0, 0, 1, 1], [], []>} : vector<2x64xf32>, vector<64x128xf32>, vector<2x128xf32> -> vector<2x128xf32>
    %641 = vector.extract_strided_slice %640 {offsets = [0, 0], sizes = [2, 64], strides = [1, 1]} : vector<2x128xf32> to vector<2x64xf32>
    %642 = vector.extract_strided_slice %638 {offsets = [0, 0], sizes = [1, 64], strides = [1, 1]} : vector<1x128xf32> to vector<1x64xf32>
    %643 = vector.broadcast %642 : vector<1x64xf32> to vector<2x64xf32>
    %644 = arith.addf %641, %643 : vector<2x64xf32>
    %cst_204 = arith.constant 5.000000e-01 : f32
    %645 = vector.broadcast %cst_204 : f32 to vector<2x64xf32>
    %646 = arith.mulf %645, %644 : vector<2x64xf32>
    %647 = math.tanh %646 : vector<2x64xf32>
    %cst_205 = arith.constant 5.000000e-01 : f32
    %648 = vector.broadcast %cst_205 : f32 to vector<2x64xf32>
    %649 = arith.mulf %648, %647 : vector<2x64xf32>
    %cst_206 = arith.constant 5.000000e-01 : f32
    %650 = vector.broadcast %cst_206 : f32 to vector<2x64xf32>
    %651 = arith.addf %649, %650 : vector<2x64xf32>
    %652 = vector.extract_strided_slice %651 {offsets = [0, 0], sizes = [2, 32], strides = [1, 1]} : vector<2x64xf32> to vector<2x32xf32>
    %653 = vector.extract_strided_slice %651 {offsets = [0, 32], sizes = [2, 32], strides = [1, 1]} : vector<2x64xf32> to vector<2x32xf32>
    %654 = vector.extract_strided_slice %640 {offsets = [0, 64], sizes = [2, 32], strides = [1, 1]} : vector<2x128xf32> to vector<2x32xf32>
    %655 = vector.extract_strided_slice %638 {offsets = [0, 64], sizes = [1, 32], strides = [1, 1]} : vector<1x128xf32> to vector<1x32xf32>
    %656 = vector.broadcast %655 : vector<1x32xf32> to vector<2x32xf32>
    %657 = arith.addf %654, %656 : vector<2x32xf32>
    %658 = vector.extract_strided_slice %640 {offsets = [0, 96], sizes = [2, 32], strides = [1, 1]} : vector<2x128xf32> to vector<2x32xf32>
    %659 = vector.extract_strided_slice %638 {offsets = [0, 96], sizes = [1, 32], strides = [1, 1]} : vector<1x128xf32> to vector<1x32xf32>
    %660 = vector.broadcast %659 : vector<1x32xf32> to vector<2x32xf32>
    %661 = arith.addf %658, %660 : vector<2x32xf32>
    %662 = arith.mulf %652, %661 : vector<2x32xf32>
    %663 = arith.addf %657, %662 : vector<2x32xf32>
    %664 = math.tanh %663 : vector<2x32xf32>
    %665 = arith.subf %595, %664 : vector<2x32xf32>
    %666 = arith.mulf %653, %665 : vector<2x32xf32>
    %667 = arith.addf %664, %666 : vector<2x32xf32>
    %c0_207 = arith.constant 0 : index
    %c0_208 = arith.constant 0 : index
    %668 = vector.load %arg3[%c0_207, %c0_208] : memref<32x32xf32, #tpu.memory_space<vmem>>, vector<32x32xf32>
    %cst_209 = arith.constant dense<0.000000e+00> : vector<2x32xf32>
    %669 = tpu.matmul %667, %668, %cst_209 {dimension_numbers = #tpu.dot_dimension_numbers<[1], [0], [0], [1], [0, 0, 1, 1], [], []>} : vector<2x32xf32>, vector<32x32xf32>, vector<2x32xf32> -> vector<2x32xf32>
    %c0_210 = arith.constant 0 : index
    %c0_211 = arith.constant 0 : index
    %670 = vector.load %arg4[%c0_210, %c0_211] : memref<1x32xf32, #tpu.memory_space<vmem>>, vector<1x32xf32>
    %671 = vector.broadcast %670 : vector<1x32xf32> to vector<2x32xf32>
    %672 = arith.addf %669, %671 : vector<2x32xf32>
    %c1_212 = arith.constant 1 : index
    %c0_213 = arith.constant 0 : index
    %c0_214 = arith.constant 0 : index
    %673 = vector.load %arg5[%c1_212, %c0_213, %c0_214] : memref<12x2x32xf32, #tpu.memory_space<vmem>>, vector<1x2x32xf32>
    %674 = vector.shape_cast %673 : vector<1x2x32xf32> to vector<2x32xf32>
    %675 = vector.shape_cast %672 : vector<2x32xf32> to vector<1x2x32xf32>
    tpu.vector_store %arg5[%c1_212, %c0_213, %c0_214], %675 {strides = array<i32>} : memref<12x2x32xf32, #tpu.memory_space<vmem>>, vector<1x2x32xf32>,
    %c4_215 = arith.constant 4 : index
    %c0_216 = arith.constant 0 : index
    %c0_217 = arith.constant 0 : index
    %676 = vector.load %arg1[%c4_215, %c0_216, %c0_217] : memref<5x64x128xf32, #tpu.memory_space<vmem>>, vector<1x64x128xf32>
    %677 = vector.shape_cast %676 : vector<1x64x128xf32> to vector<64x128xf32>
    %c4_218 = arith.constant 4 : index
    %c0_219 = arith.constant 0 : index
    %678 = vector.load %arg2[%c4_218, %c0_219] : memref<5x128xf32, #tpu.memory_space<vmem>>, vector<1x128xf32>
    %679 = tpu.concatenate %667, %635 in 1 : vector<2x32xf32>, vector<2x32xf32> -> vector<2x64xf32>
    %cst_220 = arith.constant dense<0.000000e+00> : vector<2x128xf32>
    %680 = tpu.matmul %679, %677, %cst_220 {dimension_numbers = #tpu.dot_dimension_numbers<[1], [0], [0], [1], [0, 0, 1, 1], [], []>} : vector<2x64xf32>, vector<64x128xf32>, vector<2x128xf32> -> vector<2x128xf32>
    %681 = vector.extract_strided_slice %680 {offsets = [0, 0], sizes = [2, 64], strides = [1, 1]} : vector<2x128xf32> to vector<2x64xf32>
    %682 = vector.extract_strided_slice %678 {offsets = [0, 0], sizes = [1, 64], strides = [1, 1]} : vector<1x128xf32> to vector<1x64xf32>
    %683 = vector.broadcast %682 : vector<1x64xf32> to vector<2x64xf32>
    %684 = arith.addf %681, %683 : vector<2x64xf32>
    %cst_221 = arith.constant 5.000000e-01 : f32
    %685 = vector.broadcast %cst_221 : f32 to vector<2x64xf32>
    %686 = arith.mulf %685, %684 : vector<2x64xf32>
    %687 = math.tanh %686 : vector<2x64xf32>
    %cst_222 = arith.constant 5.000000e-01 : f32
    %688 = vector.broadcast %cst_222 : f32 to vector<2x64xf32>
    %689 = arith.mulf %688, %687 : vector<2x64xf32>
    %cst_223 = arith.constant 5.000000e-01 : f32
    %690 = vector.broadcast %cst_223 : f32 to vector<2x64xf32>
    %691 = arith.addf %689, %690 : vector<2x64xf32>
    %692 = vector.extract_strided_slice %691 {offsets = [0, 0], sizes = [2, 32], strides = [1, 1]} : vector<2x64xf32> to vector<2x32xf32>
    %693 = vector.extract_strided_slice %691 {offsets = [0, 32], sizes = [2, 32], strides = [1, 1]} : vector<2x64xf32> to vector<2x32xf32>
    %694 = vector.extract_strided_slice %680 {offsets = [0, 64], sizes = [2, 32], strides = [1, 1]} : vector<2x128xf32> to vector<2x32xf32>
    %695 = vector.extract_strided_slice %678 {offsets = [0, 64], sizes = [1, 32], strides = [1, 1]} : vector<1x128xf32> to vector<1x32xf32>
    %696 = vector.broadcast %695 : vector<1x32xf32> to vector<2x32xf32>
    %697 = arith.addf %694, %696 : vector<2x32xf32>
    %698 = vector.extract_strided_slice %680 {offsets = [0, 96], sizes = [2, 32], strides = [1, 1]} : vector<2x128xf32> to vector<2x32xf32>
    %699 = vector.extract_strided_slice %678 {offsets = [0, 96], sizes = [1, 32], strides = [1, 1]} : vector<1x128xf32> to vector<1x32xf32>
    %700 = vector.broadcast %699 : vector<1x32xf32> to vector<2x32xf32>
    %701 = arith.addf %698, %700 : vector<2x32xf32>
    %702 = arith.mulf %692, %701 : vector<2x32xf32>
    %703 = arith.addf %697, %702 : vector<2x32xf32>
    %704 = math.tanh %703 : vector<2x32xf32>
    %705 = arith.subf %635, %704 : vector<2x32xf32>
    %706 = arith.mulf %693, %705 : vector<2x32xf32>
    %707 = arith.addf %704, %706 : vector<2x32xf32>
    %c3_224 = arith.constant 3 : index
    %c0_225 = arith.constant 0 : index
    %c0_226 = arith.constant 0 : index
    %708 = vector.load %arg1[%c3_224, %c0_225, %c0_226] : memref<5x64x128xf32, #tpu.memory_space<vmem>>, vector<1x64x128xf32>
    %709 = vector.shape_cast %708 : vector<1x64x128xf32> to vector<64x128xf32>
    %c3_227 = arith.constant 3 : index
    %c0_228 = arith.constant 0 : index
    %710 = vector.load %arg2[%c3_227, %c0_228] : memref<5x128xf32, #tpu.memory_space<vmem>>, vector<1x128xf32>
    %711 = tpu.concatenate %707, %667 in 1 : vector<2x32xf32>, vector<2x32xf32> -> vector<2x64xf32>
    %cst_229 = arith.constant dense<0.000000e+00> : vector<2x128xf32>
    %712 = tpu.matmul %711, %709, %cst_229 {dimension_numbers = #tpu.dot_dimension_numbers<[1], [0], [0], [1], [0, 0, 1, 1], [], []>} : vector<2x64xf32>, vector<64x128xf32>, vector<2x128xf32> -> vector<2x128xf32>
    %713 = vector.extract_strided_slice %712 {offsets = [0, 0], sizes = [2, 64], strides = [1, 1]} : vector<2x128xf32> to vector<2x64xf32>
    %714 = vector.extract_strided_slice %710 {offsets = [0, 0], sizes = [1, 64], strides = [1, 1]} : vector<1x128xf32> to vector<1x64xf32>
    %715 = vector.broadcast %714 : vector<1x64xf32> to vector<2x64xf32>
    %716 = arith.addf %713, %715 : vector<2x64xf32>
    %cst_230 = arith.constant 5.000000e-01 : f32
    %717 = vector.broadcast %cst_230 : f32 to vector<2x64xf32>
    %718 = arith.mulf %717, %716 : vector<2x64xf32>
    %719 = math.tanh %718 : vector<2x64xf32>
    %cst_231 = arith.constant 5.000000e-01 : f32
    %720 = vector.broadcast %cst_231 : f32 to vector<2x64xf32>
    %721 = arith.mulf %720, %719 : vector<2x64xf32>
    %cst_232 = arith.constant 5.000000e-01 : f32
    %722 = vector.broadcast %cst_232 : f32 to vector<2x64xf32>
    %723 = arith.addf %721, %722 : vector<2x64xf32>
    %724 = vector.extract_strided_slice %723 {offsets = [0, 0], sizes = [2, 32], strides = [1, 1]} : vector<2x64xf32> to vector<2x32xf32>
    %725 = vector.extract_strided_slice %723 {offsets = [0, 32], sizes = [2, 32], strides = [1, 1]} : vector<2x64xf32> to vector<2x32xf32>
    %726 = vector.extract_strided_slice %712 {offsets = [0, 64], sizes = [2, 32], strides = [1, 1]} : vector<2x128xf32> to vector<2x32xf32>
    %727 = vector.extract_strided_slice %710 {offsets = [0, 64], sizes = [1, 32], strides = [1, 1]} : vector<1x128xf32> to vector<1x32xf32>
    %728 = vector.broadcast %727 : vector<1x32xf32> to vector<2x32xf32>
    %729 = arith.addf %726, %728 : vector<2x32xf32>
    %730 = vector.extract_strided_slice %712 {offsets = [0, 96], sizes = [2, 32], strides = [1, 1]} : vector<2x128xf32> to vector<2x32xf32>
    %731 = vector.extract_strided_slice %710 {offsets = [0, 96], sizes = [1, 32], strides = [1, 1]} : vector<1x128xf32> to vector<1x32xf32>
    %732 = vector.broadcast %731 : vector<1x32xf32> to vector<2x32xf32>
    %733 = arith.addf %730, %732 : vector<2x32xf32>
    %734 = arith.mulf %724, %733 : vector<2x32xf32>
    %735 = arith.addf %729, %734 : vector<2x32xf32>
    %736 = math.tanh %735 : vector<2x32xf32>
    %737 = arith.subf %667, %736 : vector<2x32xf32>
    %738 = arith.mulf %725, %737 : vector<2x32xf32>
    %739 = arith.addf %736, %738 : vector<2x32xf32>
    %c0_233 = arith.constant 0 : index
    %c0_234 = arith.constant 0 : index
    %740 = vector.load %arg3[%c0_233, %c0_234] : memref<32x32xf32, #tpu.memory_space<vmem>>, vector<32x32xf32>
    %cst_235 = arith.constant dense<0.000000e+00> : vector<2x32xf32>
    %741 = tpu.matmul %739, %740, %cst_235 {dimension_numbers = #tpu.dot_dimension_numbers<[1], [0], [0], [1], [0, 0, 1, 1], [], []>} : vector<2x32xf32>, vector<32x32xf32>, vector<2x32xf32> -> vector<2x32xf32>
    %c0_236 = arith.constant 0 : index
    %c0_237 = arith.constant 0 : index
    %742 = vector.load %arg4[%c0_236, %c0_237] : memref<1x32xf32, #tpu.memory_space<vmem>>, vector<1x32xf32>
    %743 = vector.broadcast %742 : vector<1x32xf32> to vector<2x32xf32>
    %744 = arith.addf %741, %743 : vector<2x32xf32>
    %c2_238 = arith.constant 2 : index
    %c0_239 = arith.constant 0 : index
    %c0_240 = arith.constant 0 : index
    %745 = vector.load %arg5[%c2_238, %c0_239, %c0_240] : memref<12x2x32xf32, #tpu.memory_space<vmem>>, vector<1x2x32xf32>
    %746 = vector.shape_cast %745 : vector<1x2x32xf32> to vector<2x32xf32>
    %747 = vector.shape_cast %744 : vector<2x32xf32> to vector<1x2x32xf32>
    tpu.vector_store %arg5[%c2_238, %c0_239, %c0_240], %747 {strides = array<i32>} : memref<12x2x32xf32, #tpu.memory_space<vmem>>, vector<1x2x32xf32>,
    %c4_241 = arith.constant 4 : index
    %c0_242 = arith.constant 0 : index
    %c0_243 = arith.constant 0 : index
    %748 = vector.load %arg1[%c4_241, %c0_242, %c0_243] : memref<5x64x128xf32, #tpu.memory_space<vmem>>, vector<1x64x128xf32>
    %749 = vector.shape_cast %748 : vector<1x64x128xf32> to vector<64x128xf32>
    %c4_244 = arith.constant 4 : index
    %c0_245 = arith.constant 0 : index
    %750 = vector.load %arg2[%c4_244, %c0_245] : memref<5x128xf32, #tpu.memory_space<vmem>>, vector<1x128xf32>
    %751 = tpu.concatenate %739, %707 in 1 : vector<2x32xf32>, vector<2x32xf32> -> vector<2x64xf32>
    %cst_246 = arith.constant dense<0.000000e+00> : vector<2x128xf32>
    %752 = tpu.matmul %751, %749, %cst_246 {dimension_numbers = #tpu.dot_dimension_numbers<[1], [0], [0], [1], [0, 0, 1, 1], [], []>} : vector<2x64xf32>, vector<64x128xf32>, vector<2x128xf32> -> vector<2x128xf32>
    %753 = vector.extract_strided_slice %752 {offsets = [0, 0], sizes = [2, 64], strides = [1, 1]} : vector<2x128xf32> to vector<2x64xf32>
    %754 = vector.extract_strided_slice %750 {offsets = [0, 0], sizes = [1, 64], strides = [1, 1]} : vector<1x128xf32> to vector<1x64xf32>
    %755 = vector.broadcast %754 : vector<1x64xf32> to vector<2x64xf32>
    %756 = arith.addf %753, %755 : vector<2x64xf32>
    %cst_247 = arith.constant 5.000000e-01 : f32
    %757 = vector.broadcast %cst_247 : f32 to vector<2x64xf32>
    %758 = arith.mulf %757, %756 : vector<2x64xf32>
    %759 = math.tanh %758 : vector<2x64xf32>
    %cst_248 = arith.constant 5.000000e-01 : f32
    %760 = vector.broadcast %cst_248 : f32 to vector<2x64xf32>
    %761 = arith.mulf %760, %759 : vector<2x64xf32>
    %cst_249 = arith.constant 5.000000e-01 : f32
    %762 = vector.broadcast %cst_249 : f32 to vector<2x64xf32>
    %763 = arith.addf %761, %762 : vector<2x64xf32>
    %764 = vector.extract_strided_slice %763 {offsets = [0, 0], sizes = [2, 32], strides = [1, 1]} : vector<2x64xf32> to vector<2x32xf32>
    %765 = vector.extract_strided_slice %763 {offsets = [0, 32], sizes = [2, 32], strides = [1, 1]} : vector<2x64xf32> to vector<2x32xf32>
    %766 = vector.extract_strided_slice %752 {offsets = [0, 64], sizes = [2, 32], strides = [1, 1]} : vector<2x128xf32> to vector<2x32xf32>
    %767 = vector.extract_strided_slice %750 {offsets = [0, 64], sizes = [1, 32], strides = [1, 1]} : vector<1x128xf32> to vector<1x32xf32>
    %768 = vector.broadcast %767 : vector<1x32xf32> to vector<2x32xf32>
    %769 = arith.addf %766, %768 : vector<2x32xf32>
    %770 = vector.extract_strided_slice %752 {offsets = [0, 96], sizes = [2, 32], strides = [1, 1]} : vector<2x128xf32> to vector<2x32xf32>
    %771 = vector.extract_strided_slice %750 {offsets = [0, 96], sizes = [1, 32], strides = [1, 1]} : vector<1x128xf32> to vector<1x32xf32>
    %772 = vector.broadcast %771 : vector<1x32xf32> to vector<2x32xf32>
    %773 = arith.addf %770, %772 : vector<2x32xf32>
    %774 = arith.mulf %764, %773 : vector<2x32xf32>
    %775 = arith.addf %769, %774 : vector<2x32xf32>
    %776 = math.tanh %775 : vector<2x32xf32>
    %777 = arith.subf %707, %776 : vector<2x32xf32>
    %778 = arith.mulf %765, %777 : vector<2x32xf32>
    %779 = arith.addf %776, %778 : vector<2x32xf32>
    %c3_250 = arith.constant 3 : index
    %c0_251 = arith.constant 0 : index
    %c0_252 = arith.constant 0 : index
    %780 = vector.load %arg1[%c3_250, %c0_251, %c0_252] : memref<5x64x128xf32, #tpu.memory_space<vmem>>, vector<1x64x128xf32>
    %781 = vector.shape_cast %780 : vector<1x64x128xf32> to vector<64x128xf32>
    %c3_253 = arith.constant 3 : index
    %c0_254 = arith.constant 0 : index
    %782 = vector.load %arg2[%c3_253, %c0_254] : memref<5x128xf32, #tpu.memory_space<vmem>>, vector<1x128xf32>
    %783 = tpu.concatenate %779, %739 in 1 : vector<2x32xf32>, vector<2x32xf32> -> vector<2x64xf32>
    %cst_255 = arith.constant dense<0.000000e+00> : vector<2x128xf32>
    %784 = tpu.matmul %783, %781, %cst_255 {dimension_numbers = #tpu.dot_dimension_numbers<[1], [0], [0], [1], [0, 0, 1, 1], [], []>} : vector<2x64xf32>, vector<64x128xf32>, vector<2x128xf32> -> vector<2x128xf32>
    %785 = vector.extract_strided_slice %784 {offsets = [0, 0], sizes = [2, 64], strides = [1, 1]} : vector<2x128xf32> to vector<2x64xf32>
    %786 = vector.extract_strided_slice %782 {offsets = [0, 0], sizes = [1, 64], strides = [1, 1]} : vector<1x128xf32> to vector<1x64xf32>
    %787 = vector.broadcast %786 : vector<1x64xf32> to vector<2x64xf32>
    %788 = arith.addf %785, %787 : vector<2x64xf32>
    %cst_256 = arith.constant 5.000000e-01 : f32
    %789 = vector.broadcast %cst_256 : f32 to vector<2x64xf32>
    %790 = arith.mulf %789, %788 : vector<2x64xf32>
    %791 = math.tanh %790 : vector<2x64xf32>
    %cst_257 = arith.constant 5.000000e-01 : f32
    %792 = vector.broadcast %cst_257 : f32 to vector<2x64xf32>
    %793 = arith.mulf %792, %791 : vector<2x64xf32>
    %cst_258 = arith.constant 5.000000e-01 : f32
    %794 = vector.broadcast %cst_258 : f32 to vector<2x64xf32>
    %795 = arith.addf %793, %794 : vector<2x64xf32>
    %796 = vector.extract_strided_slice %795 {offsets = [0, 0], sizes = [2, 32], strides = [1, 1]} : vector<2x64xf32> to vector<2x32xf32>
    %797 = vector.extract_strided_slice %795 {offsets = [0, 32], sizes = [2, 32], strides = [1, 1]} : vector<2x64xf32> to vector<2x32xf32>
    %798 = vector.extract_strided_slice %784 {offsets = [0, 64], sizes = [2, 32], strides = [1, 1]} : vector<2x128xf32> to vector<2x32xf32>
    %799 = vector.extract_strided_slice %782 {offsets = [0, 64], sizes = [1, 32], strides = [1, 1]} : vector<1x128xf32> to vector<1x32xf32>
    %800 = vector.broadcast %799 : vector<1x32xf32> to vector<2x32xf32>
    %801 = arith.addf %798, %800 : vector<2x32xf32>
    %802 = vector.extract_strided_slice %784 {offsets = [0, 96], sizes = [2, 32], strides = [1, 1]} : vector<2x128xf32> to vector<2x32xf32>
    %803 = vector.extract_strided_slice %782 {offsets = [0, 96], sizes = [1, 32], strides = [1, 1]} : vector<1x128xf32> to vector<1x32xf32>
    %804 = vector.broadcast %803 : vector<1x32xf32> to vector<2x32xf32>
    %805 = arith.addf %802, %804 : vector<2x32xf32>
    %806 = arith.mulf %796, %805 : vector<2x32xf32>
    %807 = arith.addf %801, %806 : vector<2x32xf32>
    %808 = math.tanh %807 : vector<2x32xf32>
    %809 = arith.subf %739, %808 : vector<2x32xf32>
    %810 = arith.mulf %797, %809 : vector<2x32xf32>
    %811 = arith.addf %808, %810 : vector<2x32xf32>
    %c0_259 = arith.constant 0 : index
    %c0_260 = arith.constant 0 : index
    %812 = vector.load %arg3[%c0_259, %c0_260] : memref<32x32xf32, #tpu.memory_space<vmem>>, vector<32x32xf32>
    %cst_261 = arith.constant dense<0.000000e+00> : vector<2x32xf32>
    %813 = tpu.matmul %811, %812, %cst_261 {dimension_numbers = #tpu.dot_dimension_numbers<[1], [0], [0], [1], [0, 0, 1, 1], [], []>} : vector<2x32xf32>, vector<32x32xf32>, vector<2x32xf32> -> vector<2x32xf32>
    %c0_262 = arith.constant 0 : index
    %c0_263 = arith.constant 0 : index
    %814 = vector.load %arg4[%c0_262, %c0_263] : memref<1x32xf32, #tpu.memory_space<vmem>>, vector<1x32xf32>
    %815 = vector.broadcast %814 : vector<1x32xf32> to vector<2x32xf32>
    %816 = arith.addf %813, %815 : vector<2x32xf32>
    %c3_264 = arith.constant 3 : index
    %c0_265 = arith.constant 0 : index
    %c0_266 = arith.constant 0 : index
    %817 = vector.load %arg5[%c3_264, %c0_265, %c0_266] : memref<12x2x32xf32, #tpu.memory_space<vmem>>, vector<1x2x32xf32>
    %818 = vector.shape_cast %817 : vector<1x2x32xf32> to vector<2x32xf32>
    %819 = vector.shape_cast %816 : vector<2x32xf32> to vector<1x2x32xf32>
    tpu.vector_store %arg5[%c3_264, %c0_265, %c0_266], %819 {strides = array<i32>} : memref<12x2x32xf32, #tpu.memory_space<vmem>>, vector<1x2x32xf32>,
    %c4_267 = arith.constant 4 : index
    %c0_268 = arith.constant 0 : index
    %c0_269 = arith.constant 0 : index
    %820 = vector.load %arg1[%c4_267, %c0_268, %c0_269] : memref<5x64x128xf32, #tpu.memory_space<vmem>>, vector<1x64x128xf32>
    %821 = vector.shape_cast %820 : vector<1x64x128xf32> to vector<64x128xf32>
    %c4_270 = arith.constant 4 : index
    %c0_271 = arith.constant 0 : index
    %822 = vector.load %arg2[%c4_270, %c0_271] : memref<5x128xf32, #tpu.memory_space<vmem>>, vector<1x128xf32>
    %823 = tpu.concatenate %811, %779 in 1 : vector<2x32xf32>, vector<2x32xf32> -> vector<2x64xf32>
    %cst_272 = arith.constant dense<0.000000e+00> : vector<2x128xf32>
    %824 = tpu.matmul %823, %821, %cst_272 {dimension_numbers = #tpu.dot_dimension_numbers<[1], [0], [0], [1], [0, 0, 1, 1], [], []>} : vector<2x64xf32>, vector<64x128xf32>, vector<2x128xf32> -> vector<2x128xf32>
    %825 = vector.extract_strided_slice %824 {offsets = [0, 0], sizes = [2, 64], strides = [1, 1]} : vector<2x128xf32> to vector<2x64xf32>
    %826 = vector.extract_strided_slice %822 {offsets = [0, 0], sizes = [1, 64], strides = [1, 1]} : vector<1x128xf32> to vector<1x64xf32>
    %827 = vector.broadcast %826 : vector<1x64xf32> to vector<2x64xf32>
    %828 = arith.addf %825, %827 : vector<2x64xf32>
    %cst_273 = arith.constant 5.000000e-01 : f32
    %829 = vector.broadcast %cst_273 : f32 to vector<2x64xf32>
    %830 = arith.mulf %829, %828 : vector<2x64xf32>
    %831 = math.tanh %830 : vector<2x64xf32>
    %cst_274 = arith.constant 5.000000e-01 : f32
    %832 = vector.broadcast %cst_274 : f32 to vector<2x64xf32>
    %833 = arith.mulf %832, %831 : vector<2x64xf32>
    %cst_275 = arith.constant 5.000000e-01 : f32
    %834 = vector.broadcast %cst_275 : f32 to vector<2x64xf32>
    %835 = arith.addf %833, %834 : vector<2x64xf32>
    %836 = vector.extract_strided_slice %835 {offsets = [0, 0], sizes = [2, 32], strides = [1, 1]} : vector<2x64xf32> to vector<2x32xf32>
    %837 = vector.extract_strided_slice %835 {offsets = [0, 32], sizes = [2, 32], strides = [1, 1]} : vector<2x64xf32> to vector<2x32xf32>
    %838 = vector.extract_strided_slice %824 {offsets = [0, 64], sizes = [2, 32], strides = [1, 1]} : vector<2x128xf32> to vector<2x32xf32>
    %839 = vector.extract_strided_slice %822 {offsets = [0, 64], sizes = [1, 32], strides = [1, 1]} : vector<1x128xf32> to vector<1x32xf32>
    %840 = vector.broadcast %839 : vector<1x32xf32> to vector<2x32xf32>
    %841 = arith.addf %838, %840 : vector<2x32xf32>
    %842 = vector.extract_strided_slice %824 {offsets = [0, 96], sizes = [2, 32], strides = [1, 1]} : vector<2x128xf32> to vector<2x32xf32>
    %843 = vector.extract_strided_slice %822 {offsets = [0, 96], sizes = [1, 32], strides = [1, 1]} : vector<1x128xf32> to vector<1x32xf32>
    %844 = vector.broadcast %843 : vector<1x32xf32> to vector<2x32xf32>
    %845 = arith.addf %842, %844 : vector<2x32xf32>
    %846 = arith.mulf %836, %845 : vector<2x32xf32>
    %847 = arith.addf %841, %846 : vector<2x32xf32>
    %848 = math.tanh %847 : vector<2x32xf32>
    %849 = arith.subf %779, %848 : vector<2x32xf32>
    %850 = arith.mulf %837, %849 : vector<2x32xf32>
    %851 = arith.addf %848, %850 : vector<2x32xf32>
    %c3_276 = arith.constant 3 : index
    %c0_277 = arith.constant 0 : index
    %c0_278 = arith.constant 0 : index
    %852 = vector.load %arg1[%c3_276, %c0_277, %c0_278] : memref<5x64x128xf32, #tpu.memory_space<vmem>>, vector<1x64x128xf32>
    %853 = vector.shape_cast %852 : vector<1x64x128xf32> to vector<64x128xf32>
    %c3_279 = arith.constant 3 : index
    %c0_280 = arith.constant 0 : index
    %854 = vector.load %arg2[%c3_279, %c0_280] : memref<5x128xf32, #tpu.memory_space<vmem>>, vector<1x128xf32>
    %855 = tpu.concatenate %851, %811 in 1 : vector<2x32xf32>, vector<2x32xf32> -> vector<2x64xf32>
    %cst_281 = arith.constant dense<0.000000e+00> : vector<2x128xf32>
    %856 = tpu.matmul %855, %853, %cst_281 {dimension_numbers = #tpu.dot_dimension_numbers<[1], [0], [0], [1], [0, 0, 1, 1], [], []>} : vector<2x64xf32>, vector<64x128xf32>, vector<2x128xf32> -> vector<2x128xf32>
    %857 = vector.extract_strided_slice %856 {offsets = [0, 0], sizes = [2, 64], strides = [1, 1]} : vector<2x128xf32> to vector<2x64xf32>
    %858 = vector.extract_strided_slice %854 {offsets = [0, 0], sizes = [1, 64], strides = [1, 1]} : vector<1x128xf32> to vector<1x64xf32>
    %859 = vector.broadcast %858 : vector<1x64xf32> to vector<2x64xf32>
    %860 = arith.addf %857, %859 : vector<2x64xf32>
    %cst_282 = arith.constant 5.000000e-01 : f32
    %861 = vector.broadcast %cst_282 : f32 to vector<2x64xf32>
    %862 = arith.mulf %861, %860 : vector<2x64xf32>
    %863 = math.tanh %862 : vector<2x64xf32>
    %cst_283 = arith.constant 5.000000e-01 : f32
    %864 = vector.broadcast %cst_283 : f32 to vector<2x64xf32>
    %865 = arith.mulf %864, %863 : vector<2x64xf32>
    %cst_284 = arith.constant 5.000000e-01 : f32
    %866 = vector.broadcast %cst_284 : f32 to vector<2x64xf32>
    %867 = arith.addf %865, %866 : vector<2x64xf32>
    %868 = vector.extract_strided_slice %867 {offsets = [0, 0], sizes = [2, 32], strides = [1, 1]} : vector<2x64xf32> to vector<2x32xf32>
    %869 = vector.extract_strided_slice %867 {offsets = [0, 32], sizes = [2, 32], strides = [1, 1]} : vector<2x64xf32> to vector<2x32xf32>
    %870 = vector.extract_strided_slice %856 {offsets = [0, 64], sizes = [2, 32], strides = [1, 1]} : vector<2x128xf32> to vector<2x32xf32>
    %871 = vector.extract_strided_slice %854 {offsets = [0, 64], sizes = [1, 32], strides = [1, 1]} : vector<1x128xf32> to vector<1x32xf32>
    %872 = vector.broadcast %871 : vector<1x32xf32> to vector<2x32xf32>
    %873 = arith.addf %870, %872 : vector<2x32xf32>
    %874 = vector.extract_strided_slice %856 {offsets = [0, 96], sizes = [2, 32], strides = [1, 1]} : vector<2x128xf32> to vector<2x32xf32>
    %875 = vector.extract_strided_slice %854 {offsets = [0, 96], sizes = [1, 32], strides = [1, 1]} : vector<1x128xf32> to vector<1x32xf32>
    %876 = vector.broadcast %875 : vector<1x32xf32> to vector<2x32xf32>
    %877 = arith.addf %874, %876 : vector<2x32xf32>
    %878 = arith.mulf %868, %877 : vector<2x32xf32>
    %879 = arith.addf %873, %878 : vector<2x32xf32>
    %880 = math.tanh %879 : vector<2x32xf32>
    %881 = arith.subf %811, %880 : vector<2x32xf32>
    %882 = arith.mulf %869, %881 : vector<2x32xf32>
    %883 = arith.addf %880, %882 : vector<2x32xf32>
    %c0_285 = arith.constant 0 : index
    %c0_286 = arith.constant 0 : index
    %884 = vector.load %arg3[%c0_285, %c0_286] : memref<32x32xf32, #tpu.memory_space<vmem>>, vector<32x32xf32>
    %cst_287 = arith.constant dense<0.000000e+00> : vector<2x32xf32>
    %885 = tpu.matmul %883, %884, %cst_287 {dimension_numbers = #tpu.dot_dimension_numbers<[1], [0], [0], [1], [0, 0, 1, 1], [], []>} : vector<2x32xf32>, vector<32x32xf32>, vector<2x32xf32> -> vector<2x32xf32>
    %c0_288 = arith.constant 0 : index
    %c0_289 = arith.constant 0 : index
    %886 = vector.load %arg4[%c0_288, %c0_289] : memref<1x32xf32, #tpu.memory_space<vmem>>, vector<1x32xf32>
    %887 = vector.broadcast %886 : vector<1x32xf32> to vector<2x32xf32>
    %888 = arith.addf %885, %887 : vector<2x32xf32>
    %c4_290 = arith.constant 4 : index
    %c0_291 = arith.constant 0 : index
    %c0_292 = arith.constant 0 : index
    %889 = vector.load %arg5[%c4_290, %c0_291, %c0_292] : memref<12x2x32xf32, #tpu.memory_space<vmem>>, vector<1x2x32xf32>
    %890 = vector.shape_cast %889 : vector<1x2x32xf32> to vector<2x32xf32>
    %891 = vector.shape_cast %888 : vector<2x32xf32> to vector<1x2x32xf32>
    tpu.vector_store %arg5[%c4_290, %c0_291, %c0_292], %891 {strides = array<i32>} : memref<12x2x32xf32, #tpu.memory_space<vmem>>, vector<1x2x32xf32>,
    %c4_293 = arith.constant 4 : index
    %c0_294 = arith.constant 0 : index
    %c0_295 = arith.constant 0 : index
    %892 = vector.load %arg1[%c4_293, %c0_294, %c0_295] : memref<5x64x128xf32, #tpu.memory_space<vmem>>, vector<1x64x128xf32>
    %893 = vector.shape_cast %892 : vector<1x64x128xf32> to vector<64x128xf32>
    %c4_296 = arith.constant 4 : index
    %c0_297 = arith.constant 0 : index
    %894 = vector.load %arg2[%c4_296, %c0_297] : memref<5x128xf32, #tpu.memory_space<vmem>>, vector<1x128xf32>
    %895 = tpu.concatenate %883, %851 in 1 : vector<2x32xf32>, vector<2x32xf32> -> vector<2x64xf32>
    %cst_298 = arith.constant dense<0.000000e+00> : vector<2x128xf32>
    %896 = tpu.matmul %895, %893, %cst_298 {dimension_numbers = #tpu.dot_dimension_numbers<[1], [0], [0], [1], [0, 0, 1, 1], [], []>} : vector<2x64xf32>, vector<64x128xf32>, vector<2x128xf32> -> vector<2x128xf32>
    %897 = vector.extract_strided_slice %896 {offsets = [0, 0], sizes = [2, 64], strides = [1, 1]} : vector<2x128xf32> to vector<2x64xf32>
    %898 = vector.extract_strided_slice %894 {offsets = [0, 0], sizes = [1, 64], strides = [1, 1]} : vector<1x128xf32> to vector<1x64xf32>
    %899 = vector.broadcast %898 : vector<1x64xf32> to vector<2x64xf32>
    %900 = arith.addf %897, %899 : vector<2x64xf32>
    %cst_299 = arith.constant 5.000000e-01 : f32
    %901 = vector.broadcast %cst_299 : f32 to vector<2x64xf32>
    %902 = arith.mulf %901, %900 : vector<2x64xf32>
    %903 = math.tanh %902 : vector<2x64xf32>
    %cst_300 = arith.constant 5.000000e-01 : f32
    %904 = vector.broadcast %cst_300 : f32 to vector<2x64xf32>
    %905 = arith.mulf %904, %903 : vector<2x64xf32>
    %cst_301 = arith.constant 5.000000e-01 : f32
    %906 = vector.broadcast %cst_301 : f32 to vector<2x64xf32>
    %907 = arith.addf %905, %906 : vector<2x64xf32>
    %908 = vector.extract_strided_slice %907 {offsets = [0, 0], sizes = [2, 32], strides = [1, 1]} : vector<2x64xf32> to vector<2x32xf32>
    %909 = vector.extract_strided_slice %907 {offsets = [0, 32], sizes = [2, 32], strides = [1, 1]} : vector<2x64xf32> to vector<2x32xf32>
    %910 = vector.extract_strided_slice %896 {offsets = [0, 64], sizes = [2, 32], strides = [1, 1]} : vector<2x128xf32> to vector<2x32xf32>
    %911 = vector.extract_strided_slice %894 {offsets = [0, 64], sizes = [1, 32], strides = [1, 1]} : vector<1x128xf32> to vector<1x32xf32>
    %912 = vector.broadcast %911 : vector<1x32xf32> to vector<2x32xf32>
    %913 = arith.addf %910, %912 : vector<2x32xf32>
    %914 = vector.extract_strided_slice %896 {offsets = [0, 96], sizes = [2, 32], strides = [1, 1]} : vector<2x128xf32> to vector<2x32xf32>
    %915 = vector.extract_strided_slice %894 {offsets = [0, 96], sizes = [1, 32], strides = [1, 1]} : vector<1x128xf32> to vector<1x32xf32>
    %916 = vector.broadcast %915 : vector<1x32xf32> to vector<2x32xf32>
    %917 = arith.addf %914, %916 : vector<2x32xf32>
    %918 = arith.mulf %908, %917 : vector<2x32xf32>
    %919 = arith.addf %913, %918 : vector<2x32xf32>
    %920 = math.tanh %919 : vector<2x32xf32>
    %921 = arith.subf %851, %920 : vector<2x32xf32>
    %922 = arith.mulf %909, %921 : vector<2x32xf32>
    %923 = arith.addf %920, %922 : vector<2x32xf32>
    %c3_302 = arith.constant 3 : index
    %c0_303 = arith.constant 0 : index
    %c0_304 = arith.constant 0 : index
    %924 = vector.load %arg1[%c3_302, %c0_303, %c0_304] : memref<5x64x128xf32, #tpu.memory_space<vmem>>, vector<1x64x128xf32>
    %925 = vector.shape_cast %924 : vector<1x64x128xf32> to vector<64x128xf32>
    %c3_305 = arith.constant 3 : index
    %c0_306 = arith.constant 0 : index
    %926 = vector.load %arg2[%c3_305, %c0_306] : memref<5x128xf32, #tpu.memory_space<vmem>>, vector<1x128xf32>
    %927 = tpu.concatenate %923, %883 in 1 : vector<2x32xf32>, vector<2x32xf32> -> vector<2x64xf32>
    %cst_307 = arith.constant dense<0.000000e+00> : vector<2x128xf32>
    %928 = tpu.matmul %927, %925, %cst_307 {dimension_numbers = #tpu.dot_dimension_numbers<[1], [0], [0], [1], [0, 0, 1, 1], [], []>} : vector<2x64xf32>, vector<64x128xf32>, vector<2x128xf32> -> vector<2x128xf32>
    %929 = vector.extract_strided_slice %928 {offsets = [0, 0], sizes = [2, 64], strides = [1, 1]} : vector<2x128xf32> to vector<2x64xf32>
    %930 = vector.extract_strided_slice %926 {offsets = [0, 0], sizes = [1, 64], strides = [1, 1]} : vector<1x128xf32> to vector<1x64xf32>
    %931 = vector.broadcast %930 : vector<1x64xf32> to vector<2x64xf32>
    %932 = arith.addf %929, %931 : vector<2x64xf32>
    %cst_308 = arith.constant 5.000000e-01 : f32
    %933 = vector.broadcast %cst_308 : f32 to vector<2x64xf32>
    %934 = arith.mulf %933, %932 : vector<2x64xf32>
    %935 = math.tanh %934 : vector<2x64xf32>
    %cst_309 = arith.constant 5.000000e-01 : f32
    %936 = vector.broadcast %cst_309 : f32 to vector<2x64xf32>
    %937 = arith.mulf %936, %935 : vector<2x64xf32>
    %cst_310 = arith.constant 5.000000e-01 : f32
    %938 = vector.broadcast %cst_310 : f32 to vector<2x64xf32>
    %939 = arith.addf %937, %938 : vector<2x64xf32>
    %940 = vector.extract_strided_slice %939 {offsets = [0, 0], sizes = [2, 32], strides = [1, 1]} : vector<2x64xf32> to vector<2x32xf32>
    %941 = vector.extract_strided_slice %939 {offsets = [0, 32], sizes = [2, 32], strides = [1, 1]} : vector<2x64xf32> to vector<2x32xf32>
    %942 = vector.extract_strided_slice %928 {offsets = [0, 64], sizes = [2, 32], strides = [1, 1]} : vector<2x128xf32> to vector<2x32xf32>
    %943 = vector.extract_strided_slice %926 {offsets = [0, 64], sizes = [1, 32], strides = [1, 1]} : vector<1x128xf32> to vector<1x32xf32>
    %944 = vector.broadcast %943 : vector<1x32xf32> to vector<2x32xf32>
    %945 = arith.addf %942, %944 : vector<2x32xf32>
    %946 = vector.extract_strided_slice %928 {offsets = [0, 96], sizes = [2, 32], strides = [1, 1]} : vector<2x128xf32> to vector<2x32xf32>
    %947 = vector.extract_strided_slice %926 {offsets = [0, 96], sizes = [1, 32], strides = [1, 1]} : vector<1x128xf32> to vector<1x32xf32>
    %948 = vector.broadcast %947 : vector<1x32xf32> to vector<2x32xf32>
    %949 = arith.addf %946, %948 : vector<2x32xf32>
    %950 = arith.mulf %940, %949 : vector<2x32xf32>
    %951 = arith.addf %945, %950 : vector<2x32xf32>
    %952 = math.tanh %951 : vector<2x32xf32>
    %953 = arith.subf %883, %952 : vector<2x32xf32>
    %954 = arith.mulf %941, %953 : vector<2x32xf32>
    %955 = arith.addf %952, %954 : vector<2x32xf32>
    %c0_311 = arith.constant 0 : index
    %c0_312 = arith.constant 0 : index
    %956 = vector.load %arg3[%c0_311, %c0_312] : memref<32x32xf32, #tpu.memory_space<vmem>>, vector<32x32xf32>
    %cst_313 = arith.constant dense<0.000000e+00> : vector<2x32xf32>
    %957 = tpu.matmul %955, %956, %cst_313 {dimension_numbers = #tpu.dot_dimension_numbers<[1], [0], [0], [1], [0, 0, 1, 1], [], []>} : vector<2x32xf32>, vector<32x32xf32>, vector<2x32xf32> -> vector<2x32xf32>
    %c0_314 = arith.constant 0 : index
    %c0_315 = arith.constant 0 : index
    %958 = vector.load %arg4[%c0_314, %c0_315] : memref<1x32xf32, #tpu.memory_space<vmem>>, vector<1x32xf32>
    %959 = vector.broadcast %958 : vector<1x32xf32> to vector<2x32xf32>
    %960 = arith.addf %957, %959 : vector<2x32xf32>
    %c5_316 = arith.constant 5 : index
    %c0_317 = arith.constant 0 : index
    %c0_318 = arith.constant 0 : index
    %961 = vector.load %arg5[%c5_316, %c0_317, %c0_318] : memref<12x2x32xf32, #tpu.memory_space<vmem>>, vector<1x2x32xf32>
    %962 = vector.shape_cast %961 : vector<1x2x32xf32> to vector<2x32xf32>
    %963 = vector.shape_cast %960 : vector<2x32xf32> to vector<1x2x32xf32>
    tpu.vector_store %arg5[%c5_316, %c0_317, %c0_318], %963 {strides = array<i32>} : memref<12x2x32xf32, #tpu.memory_space<vmem>>, vector<1x2x32xf32>,
    %c4_319 = arith.constant 4 : index
    %c0_320 = arith.constant 0 : index
    %c0_321 = arith.constant 0 : index
    %964 = vector.load %arg1[%c4_319, %c0_320, %c0_321] : memref<5x64x128xf32, #tpu.memory_space<vmem>>, vector<1x64x128xf32>
    %965 = vector.shape_cast %964 : vector<1x64x128xf32> to vector<64x128xf32>
    %c4_322 = arith.constant 4 : index
    %c0_323 = arith.constant 0 : index
    %966 = vector.load %arg2[%c4_322, %c0_323] : memref<5x128xf32, #tpu.memory_space<vmem>>, vector<1x128xf32>
    %967 = tpu.concatenate %955, %923 in 1 : vector<2x32xf32>, vector<2x32xf32> -> vector<2x64xf32>
    %cst_324 = arith.constant dense<0.000000e+00> : vector<2x128xf32>
    %968 = tpu.matmul %967, %965, %cst_324 {dimension_numbers = #tpu.dot_dimension_numbers<[1], [0], [0], [1], [0, 0, 1, 1], [], []>} : vector<2x64xf32>, vector<64x128xf32>, vector<2x128xf32> -> vector<2x128xf32>
    %969 = vector.extract_strided_slice %968 {offsets = [0, 0], sizes = [2, 64], strides = [1, 1]} : vector<2x128xf32> to vector<2x64xf32>
    %970 = vector.extract_strided_slice %966 {offsets = [0, 0], sizes = [1, 64], strides = [1, 1]} : vector<1x128xf32> to vector<1x64xf32>
    %971 = vector.broadcast %970 : vector<1x64xf32> to vector<2x64xf32>
    %972 = arith.addf %969, %971 : vector<2x64xf32>
    %cst_325 = arith.constant 5.000000e-01 : f32
    %973 = vector.broadcast %cst_325 : f32 to vector<2x64xf32>
    %974 = arith.mulf %973, %972 : vector<2x64xf32>
    %975 = math.tanh %974 : vector<2x64xf32>
    %cst_326 = arith.constant 5.000000e-01 : f32
    %976 = vector.broadcast %cst_326 : f32 to vector<2x64xf32>
    %977 = arith.mulf %976, %975 : vector<2x64xf32>
    %cst_327 = arith.constant 5.000000e-01 : f32
    %978 = vector.broadcast %cst_327 : f32 to vector<2x64xf32>
    %979 = arith.addf %977, %978 : vector<2x64xf32>
    %980 = vector.extract_strided_slice %979 {offsets = [0, 0], sizes = [2, 32], strides = [1, 1]} : vector<2x64xf32> to vector<2x32xf32>
    %981 = vector.extract_strided_slice %979 {offsets = [0, 32], sizes = [2, 32], strides = [1, 1]} : vector<2x64xf32> to vector<2x32xf32>
    %982 = vector.extract_strided_slice %968 {offsets = [0, 64], sizes = [2, 32], strides = [1, 1]} : vector<2x128xf32> to vector<2x32xf32>
    %983 = vector.extract_strided_slice %966 {offsets = [0, 64], sizes = [1, 32], strides = [1, 1]} : vector<1x128xf32> to vector<1x32xf32>
    %984 = vector.broadcast %983 : vector<1x32xf32> to vector<2x32xf32>
    %985 = arith.addf %982, %984 : vector<2x32xf32>
    %986 = vector.extract_strided_slice %968 {offsets = [0, 96], sizes = [2, 32], strides = [1, 1]} : vector<2x128xf32> to vector<2x32xf32>
    %987 = vector.extract_strided_slice %966 {offsets = [0, 96], sizes = [1, 32], strides = [1, 1]} : vector<1x128xf32> to vector<1x32xf32>
    %988 = vector.broadcast %987 : vector<1x32xf32> to vector<2x32xf32>
    %989 = arith.addf %986, %988 : vector<2x32xf32>
    %990 = arith.mulf %980, %989 : vector<2x32xf32>
    %991 = arith.addf %985, %990 : vector<2x32xf32>
    %992 = math.tanh %991 : vector<2x32xf32>
    %993 = arith.subf %923, %992 : vector<2x32xf32>
    %994 = arith.mulf %981, %993 : vector<2x32xf32>
    %995 = arith.addf %992, %994 : vector<2x32xf32>
    %c3_328 = arith.constant 3 : index
    %c0_329 = arith.constant 0 : index
    %c0_330 = arith.constant 0 : index
    %996 = vector.load %arg1[%c3_328, %c0_329, %c0_330] : memref<5x64x128xf32, #tpu.memory_space<vmem>>, vector<1x64x128xf32>
    %997 = vector.shape_cast %996 : vector<1x64x128xf32> to vector<64x128xf32>
    %c3_331 = arith.constant 3 : index
    %c0_332 = arith.constant 0 : index
    %998 = vector.load %arg2[%c3_331, %c0_332] : memref<5x128xf32, #tpu.memory_space<vmem>>, vector<1x128xf32>
    %999 = tpu.concatenate %995, %955 in 1 : vector<2x32xf32>, vector<2x32xf32> -> vector<2x64xf32>
    %cst_333 = arith.constant dense<0.000000e+00> : vector<2x128xf32>
    %1000 = tpu.matmul %999, %997, %cst_333 {dimension_numbers = #tpu.dot_dimension_numbers<[1], [0], [0], [1], [0, 0, 1, 1], [], []>} : vector<2x64xf32>, vector<64x128xf32>, vector<2x128xf32> -> vector<2x128xf32>
    %1001 = vector.extract_strided_slice %1000 {offsets = [0, 0], sizes = [2, 64], strides = [1, 1]} : vector<2x128xf32> to vector<2x64xf32>
    %1002 = vector.extract_strided_slice %998 {offsets = [0, 0], sizes = [1, 64], strides = [1, 1]} : vector<1x128xf32> to vector<1x64xf32>
    %1003 = vector.broadcast %1002 : vector<1x64xf32> to vector<2x64xf32>
    %1004 = arith.addf %1001, %1003 : vector<2x64xf32>
    %cst_334 = arith.constant 5.000000e-01 : f32
    %1005 = vector.broadcast %cst_334 : f32 to vector<2x64xf32>
    %1006 = arith.mulf %1005, %1004 : vector<2x64xf32>
    %1007 = math.tanh %1006 : vector<2x64xf32>
    %cst_335 = arith.constant 5.000000e-01 : f32
    %1008 = vector.broadcast %cst_335 : f32 to vector<2x64xf32>
    %1009 = arith.mulf %1008, %1007 : vector<2x64xf32>
    %cst_336 = arith.constant 5.000000e-01 : f32
    %1010 = vector.broadcast %cst_336 : f32 to vector<2x64xf32>
    %1011 = arith.addf %1009, %1010 : vector<2x64xf32>
    %1012 = vector.extract_strided_slice %1011 {offsets = [0, 0], sizes = [2, 32], strides = [1, 1]} : vector<2x64xf32> to vector<2x32xf32>
    %1013 = vector.extract_strided_slice %1011 {offsets = [0, 32], sizes = [2, 32], strides = [1, 1]} : vector<2x64xf32> to vector<2x32xf32>
    %1014 = vector.extract_strided_slice %1000 {offsets = [0, 64], sizes = [2, 32], strides = [1, 1]} : vector<2x128xf32> to vector<2x32xf32>
    %1015 = vector.extract_strided_slice %998 {offsets = [0, 64], sizes = [1, 32], strides = [1, 1]} : vector<1x128xf32> to vector<1x32xf32>
    %1016 = vector.broadcast %1015 : vector<1x32xf32> to vector<2x32xf32>
    %1017 = arith.addf %1014, %1016 : vector<2x32xf32>
    %1018 = vector.extract_strided_slice %1000 {offsets = [0, 96], sizes = [2, 32], strides = [1, 1]} : vector<2x128xf32> to vector<2x32xf32>
    %1019 = vector.extract_strided_slice %998 {offsets = [0, 96], sizes = [1, 32], strides = [1, 1]} : vector<1x128xf32> to vector<1x32xf32>
    %1020 = vector.broadcast %1019 : vector<1x32xf32> to vector<2x32xf32>
    %1021 = arith.addf %1018, %1020 : vector<2x32xf32>
    %1022 = arith.mulf %1012, %1021 : vector<2x32xf32>
    %1023 = arith.addf %1017, %1022 : vector<2x32xf32>
    %1024 = math.tanh %1023 : vector<2x32xf32>
    %1025 = arith.subf %955, %1024 : vector<2x32xf32>
    %1026 = arith.mulf %1013, %1025 : vector<2x32xf32>
    %1027 = arith.addf %1024, %1026 : vector<2x32xf32>
    %c0_337 = arith.constant 0 : index
    %c0_338 = arith.constant 0 : index
    %1028 = vector.load %arg3[%c0_337, %c0_338] : memref<32x32xf32, #tpu.memory_space<vmem>>, vector<32x32xf32>
    %cst_339 = arith.constant dense<0.000000e+00> : vector<2x32xf32>
    %1029 = tpu.matmul %1027, %1028, %cst_339 {dimension_numbers = #tpu.dot_dimension_numbers<[1], [0], [0], [1], [0, 0, 1, 1], [], []>} : vector<2x32xf32>, vector<32x32xf32>, vector<2x32xf32> -> vector<2x32xf32>
    %c0_340 = arith.constant 0 : index
    %c0_341 = arith.constant 0 : index
    %1030 = vector.load %arg4[%c0_340, %c0_341] : memref<1x32xf32, #tpu.memory_space<vmem>>, vector<1x32xf32>
    %1031 = vector.broadcast %1030 : vector<1x32xf32> to vector<2x32xf32>
    %1032 = arith.addf %1029, %1031 : vector<2x32xf32>
    %c6_342 = arith.constant 6 : index
    %c0_343 = arith.constant 0 : index
    %c0_344 = arith.constant 0 : index
    %1033 = vector.load %arg5[%c6_342, %c0_343, %c0_344] : memref<12x2x32xf32, #tpu.memory_space<vmem>>, vector<1x2x32xf32>
    %1034 = vector.shape_cast %1033 : vector<1x2x32xf32> to vector<2x32xf32>
    %1035 = vector.shape_cast %1032 : vector<2x32xf32> to vector<1x2x32xf32>
    tpu.vector_store %arg5[%c6_342, %c0_343, %c0_344], %1035 {strides = array<i32>} : memref<12x2x32xf32, #tpu.memory_space<vmem>>, vector<1x2x32xf32>,
    %c4_345 = arith.constant 4 : index
    %c0_346 = arith.constant 0 : index
    %c0_347 = arith.constant 0 : index
    %1036 = vector.load %arg1[%c4_345, %c0_346, %c0_347] : memref<5x64x128xf32, #tpu.memory_space<vmem>>, vector<1x64x128xf32>
    %1037 = vector.shape_cast %1036 : vector<1x64x128xf32> to vector<64x128xf32>
    %c4_348 = arith.constant 4 : index
    %c0_349 = arith.constant 0 : index
    %1038 = vector.load %arg2[%c4_348, %c0_349] : memref<5x128xf32, #tpu.memory_space<vmem>>, vector<1x128xf32>
    %1039 = tpu.concatenate %1027, %995 in 1 : vector<2x32xf32>, vector<2x32xf32> -> vector<2x64xf32>
    %cst_350 = arith.constant dense<0.000000e+00> : vector<2x128xf32>
    %1040 = tpu.matmul %1039, %1037, %cst_350 {dimension_numbers = #tpu.dot_dimension_numbers<[1], [0], [0], [1], [0, 0, 1, 1], [], []>} : vector<2x64xf32>, vector<64x128xf32>, vector<2x128xf32> -> vector<2x128xf32>
    %1041 = vector.extract_strided_slice %1040 {offsets = [0, 0], sizes = [2, 64], strides = [1, 1]} : vector<2x128xf32> to vector<2x64xf32>
    %1042 = vector.extract_strided_slice %1038 {offsets = [0, 0], sizes = [1, 64], strides = [1, 1]} : vector<1x128xf32> to vector<1x64xf32>
    %1043 = vector.broadcast %1042 : vector<1x64xf32> to vector<2x64xf32>
    %1044 = arith.addf %1041, %1043 : vector<2x64xf32>
    %cst_351 = arith.constant 5.000000e-01 : f32
    %1045 = vector.broadcast %cst_351 : f32 to vector<2x64xf32>
    %1046 = arith.mulf %1045, %1044 : vector<2x64xf32>
    %1047 = math.tanh %1046 : vector<2x64xf32>
    %cst_352 = arith.constant 5.000000e-01 : f32
    %1048 = vector.broadcast %cst_352 : f32 to vector<2x64xf32>
    %1049 = arith.mulf %1048, %1047 : vector<2x64xf32>
    %cst_353 = arith.constant 5.000000e-01 : f32
    %1050 = vector.broadcast %cst_353 : f32 to vector<2x64xf32>
    %1051 = arith.addf %1049, %1050 : vector<2x64xf32>
    %1052 = vector.extract_strided_slice %1051 {offsets = [0, 0], sizes = [2, 32], strides = [1, 1]} : vector<2x64xf32> to vector<2x32xf32>
    %1053 = vector.extract_strided_slice %1051 {offsets = [0, 32], sizes = [2, 32], strides = [1, 1]} : vector<2x64xf32> to vector<2x32xf32>
    %1054 = vector.extract_strided_slice %1040 {offsets = [0, 64], sizes = [2, 32], strides = [1, 1]} : vector<2x128xf32> to vector<2x32xf32>
    %1055 = vector.extract_strided_slice %1038 {offsets = [0, 64], sizes = [1, 32], strides = [1, 1]} : vector<1x128xf32> to vector<1x32xf32>
    %1056 = vector.broadcast %1055 : vector<1x32xf32> to vector<2x32xf32>
    %1057 = arith.addf %1054, %1056 : vector<2x32xf32>
    %1058 = vector.extract_strided_slice %1040 {offsets = [0, 96], sizes = [2, 32], strides = [1, 1]} : vector<2x128xf32> to vector<2x32xf32>
    %1059 = vector.extract_strided_slice %1038 {offsets = [0, 96], sizes = [1, 32], strides = [1, 1]} : vector<1x128xf32> to vector<1x32xf32>
    %1060 = vector.broadcast %1059 : vector<1x32xf32> to vector<2x32xf32>
    %1061 = arith.addf %1058, %1060 : vector<2x32xf32>
    %1062 = arith.mulf %1052, %1061 : vector<2x32xf32>
    %1063 = arith.addf %1057, %1062 : vector<2x32xf32>
    %1064 = math.tanh %1063 : vector<2x32xf32>
    %1065 = arith.subf %995, %1064 : vector<2x32xf32>
    %1066 = arith.mulf %1053, %1065 : vector<2x32xf32>
    %1067 = arith.addf %1064, %1066 : vector<2x32xf32>
    %c3_354 = arith.constant 3 : index
    %c0_355 = arith.constant 0 : index
    %c0_356 = arith.constant 0 : index
    %1068 = vector.load %arg1[%c3_354, %c0_355, %c0_356] : memref<5x64x128xf32, #tpu.memory_space<vmem>>, vector<1x64x128xf32>
    %1069 = vector.shape_cast %1068 : vector<1x64x128xf32> to vector<64x128xf32>
    %c3_357 = arith.constant 3 : index
    %c0_358 = arith.constant 0 : index
    %1070 = vector.load %arg2[%c3_357, %c0_358] : memref<5x128xf32, #tpu.memory_space<vmem>>, vector<1x128xf32>
    %1071 = tpu.concatenate %1067, %1027 in 1 : vector<2x32xf32>, vector<2x32xf32> -> vector<2x64xf32>
    %cst_359 = arith.constant dense<0.000000e+00> : vector<2x128xf32>
    %1072 = tpu.matmul %1071, %1069, %cst_359 {dimension_numbers = #tpu.dot_dimension_numbers<[1], [0], [0], [1], [0, 0, 1, 1], [], []>} : vector<2x64xf32>, vector<64x128xf32>, vector<2x128xf32> -> vector<2x128xf32>
    %1073 = vector.extract_strided_slice %1072 {offsets = [0, 0], sizes = [2, 64], strides = [1, 1]} : vector<2x128xf32> to vector<2x64xf32>
    %1074 = vector.extract_strided_slice %1070 {offsets = [0, 0], sizes = [1, 64], strides = [1, 1]} : vector<1x128xf32> to vector<1x64xf32>
    %1075 = vector.broadcast %1074 : vector<1x64xf32> to vector<2x64xf32>
    %1076 = arith.addf %1073, %1075 : vector<2x64xf32>
    %cst_360 = arith.constant 5.000000e-01 : f32
    %1077 = vector.broadcast %cst_360 : f32 to vector<2x64xf32>
    %1078 = arith.mulf %1077, %1076 : vector<2x64xf32>
    %1079 = math.tanh %1078 : vector<2x64xf32>
    %cst_361 = arith.constant 5.000000e-01 : f32
    %1080 = vector.broadcast %cst_361 : f32 to vector<2x64xf32>
    %1081 = arith.mulf %1080, %1079 : vector<2x64xf32>
    %cst_362 = arith.constant 5.000000e-01 : f32
    %1082 = vector.broadcast %cst_362 : f32 to vector<2x64xf32>
    %1083 = arith.addf %1081, %1082 : vector<2x64xf32>
    %1084 = vector.extract_strided_slice %1083 {offsets = [0, 0], sizes = [2, 32], strides = [1, 1]} : vector<2x64xf32> to vector<2x32xf32>
    %1085 = vector.extract_strided_slice %1083 {offsets = [0, 32], sizes = [2, 32], strides = [1, 1]} : vector<2x64xf32> to vector<2x32xf32>
    %1086 = vector.extract_strided_slice %1072 {offsets = [0, 64], sizes = [2, 32], strides = [1, 1]} : vector<2x128xf32> to vector<2x32xf32>
    %1087 = vector.extract_strided_slice %1070 {offsets = [0, 64], sizes = [1, 32], strides = [1, 1]} : vector<1x128xf32> to vector<1x32xf32>
    %1088 = vector.broadcast %1087 : vector<1x32xf32> to vector<2x32xf32>
    %1089 = arith.addf %1086, %1088 : vector<2x32xf32>
    %1090 = vector.extract_strided_slice %1072 {offsets = [0, 96], sizes = [2, 32], strides = [1, 1]} : vector<2x128xf32> to vector<2x32xf32>
    %1091 = vector.extract_strided_slice %1070 {offsets = [0, 96], sizes = [1, 32], strides = [1, 1]} : vector<1x128xf32> to vector<1x32xf32>
    %1092 = vector.broadcast %1091 : vector<1x32xf32> to vector<2x32xf32>
    %1093 = arith.addf %1090, %1092 : vector<2x32xf32>
    %1094 = arith.mulf %1084, %1093 : vector<2x32xf32>
    %1095 = arith.addf %1089, %1094 : vector<2x32xf32>
    %1096 = math.tanh %1095 : vector<2x32xf32>
    %1097 = arith.subf %1027, %1096 : vector<2x32xf32>
    %1098 = arith.mulf %1085, %1097 : vector<2x32xf32>
    %1099 = arith.addf %1096, %1098 : vector<2x32xf32>
    %c0_363 = arith.constant 0 : index
    %c0_364 = arith.constant 0 : index
    %1100 = vector.load %arg3[%c0_363, %c0_364] : memref<32x32xf32, #tpu.memory_space<vmem>>, vector<32x32xf32>
    %cst_365 = arith.constant dense<0.000000e+00> : vector<2x32xf32>
    %1101 = tpu.matmul %1099, %1100, %cst_365 {dimension_numbers = #tpu.dot_dimension_numbers<[1], [0], [0], [1], [0, 0, 1, 1], [], []>} : vector<2x32xf32>, vector<32x32xf32>, vector<2x32xf32> -> vector<2x32xf32>
    %c0_366 = arith.constant 0 : index
    %c0_367 = arith.constant 0 : index
    %1102 = vector.load %arg4[%c0_366, %c0_367] : memref<1x32xf32, #tpu.memory_space<vmem>>, vector<1x32xf32>
    %1103 = vector.broadcast %1102 : vector<1x32xf32> to vector<2x32xf32>
    %1104 = arith.addf %1101, %1103 : vector<2x32xf32>
    %c7_368 = arith.constant 7 : index
    %c0_369 = arith.constant 0 : index
    %c0_370 = arith.constant 0 : index
    %1105 = vector.load %arg5[%c7_368, %c0_369, %c0_370] : memref<12x2x32xf32, #tpu.memory_space<vmem>>, vector<1x2x32xf32>
    %1106 = vector.shape_cast %1105 : vector<1x2x32xf32> to vector<2x32xf32>
    %1107 = vector.shape_cast %1104 : vector<2x32xf32> to vector<1x2x32xf32>
    tpu.vector_store %arg5[%c7_368, %c0_369, %c0_370], %1107 {strides = array<i32>} : memref<12x2x32xf32, #tpu.memory_space<vmem>>, vector<1x2x32xf32>,
    %c4_371 = arith.constant 4 : index
    %c0_372 = arith.constant 0 : index
    %c0_373 = arith.constant 0 : index
    %1108 = vector.load %arg1[%c4_371, %c0_372, %c0_373] : memref<5x64x128xf32, #tpu.memory_space<vmem>>, vector<1x64x128xf32>
    %1109 = vector.shape_cast %1108 : vector<1x64x128xf32> to vector<64x128xf32>
    %c4_374 = arith.constant 4 : index
    %c0_375 = arith.constant 0 : index
    %1110 = vector.load %arg2[%c4_374, %c0_375] : memref<5x128xf32, #tpu.memory_space<vmem>>, vector<1x128xf32>
    %1111 = tpu.concatenate %1099, %1067 in 1 : vector<2x32xf32>, vector<2x32xf32> -> vector<2x64xf32>
    %cst_376 = arith.constant dense<0.000000e+00> : vector<2x128xf32>
    %1112 = tpu.matmul %1111, %1109, %cst_376 {dimension_numbers = #tpu.dot_dimension_numbers<[1], [0], [0], [1], [0, 0, 1, 1], [], []>} : vector<2x64xf32>, vector<64x128xf32>, vector<2x128xf32> -> vector<2x128xf32>
    %1113 = vector.extract_strided_slice %1112 {offsets = [0, 0], sizes = [2, 64], strides = [1, 1]} : vector<2x128xf32> to vector<2x64xf32>
    %1114 = vector.extract_strided_slice %1110 {offsets = [0, 0], sizes = [1, 64], strides = [1, 1]} : vector<1x128xf32> to vector<1x64xf32>
    %1115 = vector.broadcast %1114 : vector<1x64xf32> to vector<2x64xf32>
    %1116 = arith.addf %1113, %1115 : vector<2x64xf32>
    %cst_377 = arith.constant 5.000000e-01 : f32
    %1117 = vector.broadcast %cst_377 : f32 to vector<2x64xf32>
    %1118 = arith.mulf %1117, %1116 : vector<2x64xf32>
    %1119 = math.tanh %1118 : vector<2x64xf32>
    %cst_378 = arith.constant 5.000000e-01 : f32
    %1120 = vector.broadcast %cst_378 : f32 to vector<2x64xf32>
    %1121 = arith.mulf %1120, %1119 : vector<2x64xf32>
    %cst_379 = arith.constant 5.000000e-01 : f32
    %1122 = vector.broadcast %cst_379 : f32 to vector<2x64xf32>
    %1123 = arith.addf %1121, %1122 : vector<2x64xf32>
    %1124 = vector.extract_strided_slice %1123 {offsets = [0, 0], sizes = [2, 32], strides = [1, 1]} : vector<2x64xf32> to vector<2x32xf32>
    %1125 = vector.extract_strided_slice %1123 {offsets = [0, 32], sizes = [2, 32], strides = [1, 1]} : vector<2x64xf32> to vector<2x32xf32>
    %1126 = vector.extract_strided_slice %1112 {offsets = [0, 64], sizes = [2, 32], strides = [1, 1]} : vector<2x128xf32> to vector<2x32xf32>
    %1127 = vector.extract_strided_slice %1110 {offsets = [0, 64], sizes = [1, 32], strides = [1, 1]} : vector<1x128xf32> to vector<1x32xf32>
    %1128 = vector.broadcast %1127 : vector<1x32xf32> to vector<2x32xf32>
    %1129 = arith.addf %1126, %1128 : vector<2x32xf32>
    %1130 = vector.extract_strided_slice %1112 {offsets = [0, 96], sizes = [2, 32], strides = [1, 1]} : vector<2x128xf32> to vector<2x32xf32>
    %1131 = vector.extract_strided_slice %1110 {offsets = [0, 96], sizes = [1, 32], strides = [1, 1]} : vector<1x128xf32> to vector<1x32xf32>
    %1132 = vector.broadcast %1131 : vector<1x32xf32> to vector<2x32xf32>
    %1133 = arith.addf %1130, %1132 : vector<2x32xf32>
    %1134 = arith.mulf %1124, %1133 : vector<2x32xf32>
    %1135 = arith.addf %1129, %1134 : vector<2x32xf32>
    %1136 = math.tanh %1135 : vector<2x32xf32>
    %1137 = arith.subf %1067, %1136 : vector<2x32xf32>
    %1138 = arith.mulf %1125, %1137 : vector<2x32xf32>
    %1139 = arith.addf %1136, %1138 : vector<2x32xf32>
    %c3_380 = arith.constant 3 : index
    %c0_381 = arith.constant 0 : index
    %c0_382 = arith.constant 0 : index
    %1140 = vector.load %arg1[%c3_380, %c0_381, %c0_382] : memref<5x64x128xf32, #tpu.memory_space<vmem>>, vector<1x64x128xf32>
    %1141 = vector.shape_cast %1140 : vector<1x64x128xf32> to vector<64x128xf32>
    %c3_383 = arith.constant 3 : index
    %c0_384 = arith.constant 0 : index
    %1142 = vector.load %arg2[%c3_383, %c0_384] : memref<5x128xf32, #tpu.memory_space<vmem>>, vector<1x128xf32>
    %1143 = tpu.concatenate %1139, %1099 in 1 : vector<2x32xf32>, vector<2x32xf32> -> vector<2x64xf32>
    %cst_385 = arith.constant dense<0.000000e+00> : vector<2x128xf32>
    %1144 = tpu.matmul %1143, %1141, %cst_385 {dimension_numbers = #tpu.dot_dimension_numbers<[1], [0], [0], [1], [0, 0, 1, 1], [], []>} : vector<2x64xf32>, vector<64x128xf32>, vector<2x128xf32> -> vector<2x128xf32>
    %1145 = vector.extract_strided_slice %1144 {offsets = [0, 0], sizes = [2, 64], strides = [1, 1]} : vector<2x128xf32> to vector<2x64xf32>
    %1146 = vector.extract_strided_slice %1142 {offsets = [0, 0], sizes = [1, 64], strides = [1, 1]} : vector<1x128xf32> to vector<1x64xf32>
    %1147 = vector.broadcast %1146 : vector<1x64xf32> to vector<2x64xf32>
    %1148 = arith.addf %1145, %1147 : vector<2x64xf32>
    %cst_386 = arith.constant 5.000000e-01 : f32
    %1149 = vector.broadcast %cst_386 : f32 to vector<2x64xf32>
    %1150 = arith.mulf %1149, %1148 : vector<2x64xf32>
    %1151 = math.tanh %1150 : vector<2x64xf32>
    %cst_387 = arith.constant 5.000000e-01 : f32
    %1152 = vector.broadcast %cst_387 : f32 to vector<2x64xf32>
    %1153 = arith.mulf %1152, %1151 : vector<2x64xf32>
    %cst_388 = arith.constant 5.000000e-01 : f32
    %1154 = vector.broadcast %cst_388 : f32 to vector<2x64xf32>
    %1155 = arith.addf %1153, %1154 : vector<2x64xf32>
    %1156 = vector.extract_strided_slice %1155 {offsets = [0, 0], sizes = [2, 32], strides = [1, 1]} : vector<2x64xf32> to vector<2x32xf32>
    %1157 = vector.extract_strided_slice %1155 {offsets = [0, 32], sizes = [2, 32], strides = [1, 1]} : vector<2x64xf32> to vector<2x32xf32>
    %1158 = vector.extract_strided_slice %1144 {offsets = [0, 64], sizes = [2, 32], strides = [1, 1]} : vector<2x128xf32> to vector<2x32xf32>
    %1159 = vector.extract_strided_slice %1142 {offsets = [0, 64], sizes = [1, 32], strides = [1, 1]} : vector<1x128xf32> to vector<1x32xf32>
    %1160 = vector.broadcast %1159 : vector<1x32xf32> to vector<2x32xf32>
    %1161 = arith.addf %1158, %1160 : vector<2x32xf32>
    %1162 = vector.extract_strided_slice %1144 {offsets = [0, 96], sizes = [2, 32], strides = [1, 1]} : vector<2x128xf32> to vector<2x32xf32>
    %1163 = vector.extract_strided_slice %1142 {offsets = [0, 96], sizes = [1, 32], strides = [1, 1]} : vector<1x128xf32> to vector<1x32xf32>
    %1164 = vector.broadcast %1163 : vector<1x32xf32> to vector<2x32xf32>
    %1165 = arith.addf %1162, %1164 : vector<2x32xf32>
    %1166 = arith.mulf %1156, %1165 : vector<2x32xf32>
    %1167 = arith.addf %1161, %1166 : vector<2x32xf32>
    %1168 = math.tanh %1167 : vector<2x32xf32>
    %1169 = arith.subf %1099, %1168 : vector<2x32xf32>
    %1170 = arith.mulf %1157, %1169 : vector<2x32xf32>
    %1171 = arith.addf %1168, %1170 : vector<2x32xf32>
    %c0_389 = arith.constant 0 : index
    %c0_390 = arith.constant 0 : index
    %1172 = vector.load %arg3[%c0_389, %c0_390] : memref<32x32xf32, #tpu.memory_space<vmem>>, vector<32x32xf32>
    %cst_391 = arith.constant dense<0.000000e+00> : vector<2x32xf32>
    %1173 = tpu.matmul %1171, %1172, %cst_391 {dimension_numbers = #tpu.dot_dimension_numbers<[1], [0], [0], [1], [0, 0, 1, 1], [], []>} : vector<2x32xf32>, vector<32x32xf32>, vector<2x32xf32> -> vector<2x32xf32>
    %c0_392 = arith.constant 0 : index
    %c0_393 = arith.constant 0 : index
    %1174 = vector.load %arg4[%c0_392, %c0_393] : memref<1x32xf32, #tpu.memory_space<vmem>>, vector<1x32xf32>
    %1175 = vector.broadcast %1174 : vector<1x32xf32> to vector<2x32xf32>
    %1176 = arith.addf %1173, %1175 : vector<2x32xf32>
    %c8_394 = arith.constant 8 : index
    %c0_395 = arith.constant 0 : index
    %c0_396 = arith.constant 0 : index
    %1177 = vector.load %arg5[%c8_394, %c0_395, %c0_396] : memref<12x2x32xf32, #tpu.memory_space<vmem>>, vector<1x2x32xf32>
    %1178 = vector.shape_cast %1177 : vector<1x2x32xf32> to vector<2x32xf32>
    %1179 = vector.shape_cast %1176 : vector<2x32xf32> to vector<1x2x32xf32>
    tpu.vector_store %arg5[%c8_394, %c0_395, %c0_396], %1179 {strides = array<i32>} : memref<12x2x32xf32, #tpu.memory_space<vmem>>, vector<1x2x32xf32>,
    %c4_397 = arith.constant 4 : index
    %c0_398 = arith.constant 0 : index
    %c0_399 = arith.constant 0 : index
    %1180 = vector.load %arg1[%c4_397, %c0_398, %c0_399] : memref<5x64x128xf32, #tpu.memory_space<vmem>>, vector<1x64x128xf32>
    %1181 = vector.shape_cast %1180 : vector<1x64x128xf32> to vector<64x128xf32>
    %c4_400 = arith.constant 4 : index
    %c0_401 = arith.constant 0 : index
    %1182 = vector.load %arg2[%c4_400, %c0_401] : memref<5x128xf32, #tpu.memory_space<vmem>>, vector<1x128xf32>
    %1183 = tpu.concatenate %1171, %1139 in 1 : vector<2x32xf32>, vector<2x32xf32> -> vector<2x64xf32>
    %cst_402 = arith.constant dense<0.000000e+00> : vector<2x128xf32>
    %1184 = tpu.matmul %1183, %1181, %cst_402 {dimension_numbers = #tpu.dot_dimension_numbers<[1], [0], [0], [1], [0, 0, 1, 1], [], []>} : vector<2x64xf32>, vector<64x128xf32>, vector<2x128xf32> -> vector<2x128xf32>
    %1185 = vector.extract_strided_slice %1184 {offsets = [0, 0], sizes = [2, 64], strides = [1, 1]} : vector<2x128xf32> to vector<2x64xf32>
    %1186 = vector.extract_strided_slice %1182 {offsets = [0, 0], sizes = [1, 64], strides = [1, 1]} : vector<1x128xf32> to vector<1x64xf32>
    %1187 = vector.broadcast %1186 : vector<1x64xf32> to vector<2x64xf32>
    %1188 = arith.addf %1185, %1187 : vector<2x64xf32>
    %cst_403 = arith.constant 5.000000e-01 : f32
    %1189 = vector.broadcast %cst_403 : f32 to vector<2x64xf32>
    %1190 = arith.mulf %1189, %1188 : vector<2x64xf32>
    %1191 = math.tanh %1190 : vector<2x64xf32>
    %cst_404 = arith.constant 5.000000e-01 : f32
    %1192 = vector.broadcast %cst_404 : f32 to vector<2x64xf32>
    %1193 = arith.mulf %1192, %1191 : vector<2x64xf32>
    %cst_405 = arith.constant 5.000000e-01 : f32
    %1194 = vector.broadcast %cst_405 : f32 to vector<2x64xf32>
    %1195 = arith.addf %1193, %1194 : vector<2x64xf32>
    %1196 = vector.extract_strided_slice %1195 {offsets = [0, 0], sizes = [2, 32], strides = [1, 1]} : vector<2x64xf32> to vector<2x32xf32>
    %1197 = vector.extract_strided_slice %1195 {offsets = [0, 32], sizes = [2, 32], strides = [1, 1]} : vector<2x64xf32> to vector<2x32xf32>
    %1198 = vector.extract_strided_slice %1184 {offsets = [0, 64], sizes = [2, 32], strides = [1, 1]} : vector<2x128xf32> to vector<2x32xf32>
    %1199 = vector.extract_strided_slice %1182 {offsets = [0, 64], sizes = [1, 32], strides = [1, 1]} : vector<1x128xf32> to vector<1x32xf32>
    %1200 = vector.broadcast %1199 : vector<1x32xf32> to vector<2x32xf32>
    %1201 = arith.addf %1198, %1200 : vector<2x32xf32>
    %1202 = vector.extract_strided_slice %1184 {offsets = [0, 96], sizes = [2, 32], strides = [1, 1]} : vector<2x128xf32> to vector<2x32xf32>
    %1203 = vector.extract_strided_slice %1182 {offsets = [0, 96], sizes = [1, 32], strides = [1, 1]} : vector<1x128xf32> to vector<1x32xf32>
    %1204 = vector.broadcast %1203 : vector<1x32xf32> to vector<2x32xf32>
    %1205 = arith.addf %1202, %1204 : vector<2x32xf32>
    %1206 = arith.mulf %1196, %1205 : vector<2x32xf32>
    %1207 = arith.addf %1201, %1206 : vector<2x32xf32>
    %1208 = math.tanh %1207 : vector<2x32xf32>
    %1209 = arith.subf %1139, %1208 : vector<2x32xf32>
    %1210 = arith.mulf %1197, %1209 : vector<2x32xf32>
    %1211 = arith.addf %1208, %1210 : vector<2x32xf32>
    %c3_406 = arith.constant 3 : index
    %c0_407 = arith.constant 0 : index
    %c0_408 = arith.constant 0 : index
    %1212 = vector.load %arg1[%c3_406, %c0_407, %c0_408] : memref<5x64x128xf32, #tpu.memory_space<vmem>>, vector<1x64x128xf32>
    %1213 = vector.shape_cast %1212 : vector<1x64x128xf32> to vector<64x128xf32>
    %c3_409 = arith.constant 3 : index
    %c0_410 = arith.constant 0 : index
    %1214 = vector.load %arg2[%c3_409, %c0_410] : memref<5x128xf32, #tpu.memory_space<vmem>>, vector<1x128xf32>
    %1215 = tpu.concatenate %1211, %1171 in 1 : vector<2x32xf32>, vector<2x32xf32> -> vector<2x64xf32>
    %cst_411 = arith.constant dense<0.000000e+00> : vector<2x128xf32>
    %1216 = tpu.matmul %1215, %1213, %cst_411 {dimension_numbers = #tpu.dot_dimension_numbers<[1], [0], [0], [1], [0, 0, 1, 1], [], []>} : vector<2x64xf32>, vector<64x128xf32>, vector<2x128xf32> -> vector<2x128xf32>
    %1217 = vector.extract_strided_slice %1216 {offsets = [0, 0], sizes = [2, 64], strides = [1, 1]} : vector<2x128xf32> to vector<2x64xf32>
    %1218 = vector.extract_strided_slice %1214 {offsets = [0, 0], sizes = [1, 64], strides = [1, 1]} : vector<1x128xf32> to vector<1x64xf32>
    %1219 = vector.broadcast %1218 : vector<1x64xf32> to vector<2x64xf32>
    %1220 = arith.addf %1217, %1219 : vector<2x64xf32>
    %cst_412 = arith.constant 5.000000e-01 : f32
    %1221 = vector.broadcast %cst_412 : f32 to vector<2x64xf32>
    %1222 = arith.mulf %1221, %1220 : vector<2x64xf32>
    %1223 = math.tanh %1222 : vector<2x64xf32>
    %cst_413 = arith.constant 5.000000e-01 : f32
    %1224 = vector.broadcast %cst_413 : f32 to vector<2x64xf32>
    %1225 = arith.mulf %1224, %1223 : vector<2x64xf32>
    %cst_414 = arith.constant 5.000000e-01 : f32
    %1226 = vector.broadcast %cst_414 : f32 to vector<2x64xf32>
    %1227 = arith.addf %1225, %1226 : vector<2x64xf32>
    %1228 = vector.extract_strided_slice %1227 {offsets = [0, 0], sizes = [2, 32], strides = [1, 1]} : vector<2x64xf32> to vector<2x32xf32>
    %1229 = vector.extract_strided_slice %1227 {offsets = [0, 32], sizes = [2, 32], strides = [1, 1]} : vector<2x64xf32> to vector<2x32xf32>
    %1230 = vector.extract_strided_slice %1216 {offsets = [0, 64], sizes = [2, 32], strides = [1, 1]} : vector<2x128xf32> to vector<2x32xf32>
    %1231 = vector.extract_strided_slice %1214 {offsets = [0, 64], sizes = [1, 32], strides = [1, 1]} : vector<1x128xf32> to vector<1x32xf32>
    %1232 = vector.broadcast %1231 : vector<1x32xf32> to vector<2x32xf32>
    %1233 = arith.addf %1230, %1232 : vector<2x32xf32>
    %1234 = vector.extract_strided_slice %1216 {offsets = [0, 96], sizes = [2, 32], strides = [1, 1]} : vector<2x128xf32> to vector<2x32xf32>
    %1235 = vector.extract_strided_slice %1214 {offsets = [0, 96], sizes = [1, 32], strides = [1, 1]} : vector<1x128xf32> to vector<1x32xf32>
    %1236 = vector.broadcast %1235 : vector<1x32xf32> to vector<2x32xf32>
    %1237 = arith.addf %1234, %1236 : vector<2x32xf32>
    %1238 = arith.mulf %1228, %1237 : vector<2x32xf32>
    %1239 = arith.addf %1233, %1238 : vector<2x32xf32>
    %1240 = math.tanh %1239 : vector<2x32xf32>
    %1241 = arith.subf %1171, %1240 : vector<2x32xf32>
    %1242 = arith.mulf %1229, %1241 : vector<2x32xf32>
    %1243 = arith.addf %1240, %1242 : vector<2x32xf32>
    %c0_415 = arith.constant 0 : index
    %c0_416 = arith.constant 0 : index
    %1244 = vector.load %arg3[%c0_415, %c0_416] : memref<32x32xf32, #tpu.memory_space<vmem>>, vector<32x32xf32>
    %cst_417 = arith.constant dense<0.000000e+00> : vector<2x32xf32>
    %1245 = tpu.matmul %1243, %1244, %cst_417 {dimension_numbers = #tpu.dot_dimension_numbers<[1], [0], [0], [1], [0, 0, 1, 1], [], []>} : vector<2x32xf32>, vector<32x32xf32>, vector<2x32xf32> -> vector<2x32xf32>
    %c0_418 = arith.constant 0 : index
    %c0_419 = arith.constant 0 : index
    %1246 = vector.load %arg4[%c0_418, %c0_419] : memref<1x32xf32, #tpu.memory_space<vmem>>, vector<1x32xf32>
    %1247 = vector.broadcast %1246 : vector<1x32xf32> to vector<2x32xf32>
    %1248 = arith.addf %1245, %1247 : vector<2x32xf32>
    %c9 = arith.constant 9 : index
    %c0_420 = arith.constant 0 : index
    %c0_421 = arith.constant 0 : index
    %1249 = vector.load %arg5[%c9, %c0_420, %c0_421] : memref<12x2x32xf32, #tpu.memory_space<vmem>>, vector<1x2x32xf32>
    %1250 = vector.shape_cast %1249 : vector<1x2x32xf32> to vector<2x32xf32>
    %1251 = vector.shape_cast %1248 : vector<2x32xf32> to vector<1x2x32xf32>
    tpu.vector_store %arg5[%c9, %c0_420, %c0_421], %1251 {strides = array<i32>} : memref<12x2x32xf32, #tpu.memory_space<vmem>>, vector<1x2x32xf32>,
    %c4_422 = arith.constant 4 : index
    %c0_423 = arith.constant 0 : index
    %c0_424 = arith.constant 0 : index
    %1252 = vector.load %arg1[%c4_422, %c0_423, %c0_424] : memref<5x64x128xf32, #tpu.memory_space<vmem>>, vector<1x64x128xf32>
    %1253 = vector.shape_cast %1252 : vector<1x64x128xf32> to vector<64x128xf32>
    %c4_425 = arith.constant 4 : index
    %c0_426 = arith.constant 0 : index
    %1254 = vector.load %arg2[%c4_425, %c0_426] : memref<5x128xf32, #tpu.memory_space<vmem>>, vector<1x128xf32>
    %1255 = tpu.concatenate %1243, %1211 in 1 : vector<2x32xf32>, vector<2x32xf32> -> vector<2x64xf32>
    %cst_427 = arith.constant dense<0.000000e+00> : vector<2x128xf32>
    %1256 = tpu.matmul %1255, %1253, %cst_427 {dimension_numbers = #tpu.dot_dimension_numbers<[1], [0], [0], [1], [0, 0, 1, 1], [], []>} : vector<2x64xf32>, vector<64x128xf32>, vector<2x128xf32> -> vector<2x128xf32>
    %1257 = vector.extract_strided_slice %1256 {offsets = [0, 0], sizes = [2, 64], strides = [1, 1]} : vector<2x128xf32> to vector<2x64xf32>
    %1258 = vector.extract_strided_slice %1254 {offsets = [0, 0], sizes = [1, 64], strides = [1, 1]} : vector<1x128xf32> to vector<1x64xf32>
    %1259 = vector.broadcast %1258 : vector<1x64xf32> to vector<2x64xf32>
    %1260 = arith.addf %1257, %1259 : vector<2x64xf32>
    %cst_428 = arith.constant 5.000000e-01 : f32
    %1261 = vector.broadcast %cst_428 : f32 to vector<2x64xf32>
    %1262 = arith.mulf %1261, %1260 : vector<2x64xf32>
    %1263 = math.tanh %1262 : vector<2x64xf32>
    %cst_429 = arith.constant 5.000000e-01 : f32
    %1264 = vector.broadcast %cst_429 : f32 to vector<2x64xf32>
    %1265 = arith.mulf %1264, %1263 : vector<2x64xf32>
    %cst_430 = arith.constant 5.000000e-01 : f32
    %1266 = vector.broadcast %cst_430 : f32 to vector<2x64xf32>
    %1267 = arith.addf %1265, %1266 : vector<2x64xf32>
    %1268 = vector.extract_strided_slice %1267 {offsets = [0, 0], sizes = [2, 32], strides = [1, 1]} : vector<2x64xf32> to vector<2x32xf32>
    %1269 = vector.extract_strided_slice %1267 {offsets = [0, 32], sizes = [2, 32], strides = [1, 1]} : vector<2x64xf32> to vector<2x32xf32>
    %1270 = vector.extract_strided_slice %1256 {offsets = [0, 64], sizes = [2, 32], strides = [1, 1]} : vector<2x128xf32> to vector<2x32xf32>
    %1271 = vector.extract_strided_slice %1254 {offsets = [0, 64], sizes = [1, 32], strides = [1, 1]} : vector<1x128xf32> to vector<1x32xf32>
    %1272 = vector.broadcast %1271 : vector<1x32xf32> to vector<2x32xf32>
    %1273 = arith.addf %1270, %1272 : vector<2x32xf32>
    %1274 = vector.extract_strided_slice %1256 {offsets = [0, 96], sizes = [2, 32], strides = [1, 1]} : vector<2x128xf32> to vector<2x32xf32>
    %1275 = vector.extract_strided_slice %1254 {offsets = [0, 96], sizes = [1, 32], strides = [1, 1]} : vector<1x128xf32> to vector<1x32xf32>
    %1276 = vector.broadcast %1275 : vector<1x32xf32> to vector<2x32xf32>
    %1277 = arith.addf %1274, %1276 : vector<2x32xf32>
    %1278 = arith.mulf %1268, %1277 : vector<2x32xf32>
    %1279 = arith.addf %1273, %1278 : vector<2x32xf32>
    %1280 = math.tanh %1279 : vector<2x32xf32>
    %1281 = arith.subf %1211, %1280 : vector<2x32xf32>
    %1282 = arith.mulf %1269, %1281 : vector<2x32xf32>
    %1283 = arith.addf %1280, %1282 : vector<2x32xf32>
    %c3_431 = arith.constant 3 : index
    %c0_432 = arith.constant 0 : index
    %c0_433 = arith.constant 0 : index
    %1284 = vector.load %arg1[%c3_431, %c0_432, %c0_433] : memref<5x64x128xf32, #tpu.memory_space<vmem>>, vector<1x64x128xf32>
    %1285 = vector.shape_cast %1284 : vector<1x64x128xf32> to vector<64x128xf32>
    %c3_434 = arith.constant 3 : index
    %c0_435 = arith.constant 0 : index
    %1286 = vector.load %arg2[%c3_434, %c0_435] : memref<5x128xf32, #tpu.memory_space<vmem>>, vector<1x128xf32>
    %1287 = tpu.concatenate %1283, %1243 in 1 : vector<2x32xf32>, vector<2x32xf32> -> vector<2x64xf32>
    %cst_436 = arith.constant dense<0.000000e+00> : vector<2x128xf32>
    %1288 = tpu.matmul %1287, %1285, %cst_436 {dimension_numbers = #tpu.dot_dimension_numbers<[1], [0], [0], [1], [0, 0, 1, 1], [], []>} : vector<2x64xf32>, vector<64x128xf32>, vector<2x128xf32> -> vector<2x128xf32>
    %1289 = vector.extract_strided_slice %1288 {offsets = [0, 0], sizes = [2, 64], strides = [1, 1]} : vector<2x128xf32> to vector<2x64xf32>
    %1290 = vector.extract_strided_slice %1286 {offsets = [0, 0], sizes = [1, 64], strides = [1, 1]} : vector<1x128xf32> to vector<1x64xf32>
    %1291 = vector.broadcast %1290 : vector<1x64xf32> to vector<2x64xf32>
    %1292 = arith.addf %1289, %1291 : vector<2x64xf32>
    %cst_437 = arith.constant 5.000000e-01 : f32
    %1293 = vector.broadcast %cst_437 : f32 to vector<2x64xf32>
    %1294 = arith.mulf %1293, %1292 : vector<2x64xf32>
    %1295 = math.tanh %1294 : vector<2x64xf32>
    %cst_438 = arith.constant 5.000000e-01 : f32
    %1296 = vector.broadcast %cst_438 : f32 to vector<2x64xf32>
    %1297 = arith.mulf %1296, %1295 : vector<2x64xf32>
    %cst_439 = arith.constant 5.000000e-01 : f32
    %1298 = vector.broadcast %cst_439 : f32 to vector<2x64xf32>
    %1299 = arith.addf %1297, %1298 : vector<2x64xf32>
    %1300 = vector.extract_strided_slice %1299 {offsets = [0, 0], sizes = [2, 32], strides = [1, 1]} : vector<2x64xf32> to vector<2x32xf32>
    %1301 = vector.extract_strided_slice %1299 {offsets = [0, 32], sizes = [2, 32], strides = [1, 1]} : vector<2x64xf32> to vector<2x32xf32>
    %1302 = vector.extract_strided_slice %1288 {offsets = [0, 64], sizes = [2, 32], strides = [1, 1]} : vector<2x128xf32> to vector<2x32xf32>
    %1303 = vector.extract_strided_slice %1286 {offsets = [0, 64], sizes = [1, 32], strides = [1, 1]} : vector<1x128xf32> to vector<1x32xf32>
    %1304 = vector.broadcast %1303 : vector<1x32xf32> to vector<2x32xf32>
    %1305 = arith.addf %1302, %1304 : vector<2x32xf32>
    %1306 = vector.extract_strided_slice %1288 {offsets = [0, 96], sizes = [2, 32], strides = [1, 1]} : vector<2x128xf32> to vector<2x32xf32>
    %1307 = vector.extract_strided_slice %1286 {offsets = [0, 96], sizes = [1, 32], strides = [1, 1]} : vector<1x128xf32> to vector<1x32xf32>
    %1308 = vector.broadcast %1307 : vector<1x32xf32> to vector<2x32xf32>
    %1309 = arith.addf %1306, %1308 : vector<2x32xf32>
    %1310 = arith.mulf %1300, %1309 : vector<2x32xf32>
    %1311 = arith.addf %1305, %1310 : vector<2x32xf32>
    %1312 = math.tanh %1311 : vector<2x32xf32>
    %1313 = arith.subf %1243, %1312 : vector<2x32xf32>
    %1314 = arith.mulf %1301, %1313 : vector<2x32xf32>
    %1315 = arith.addf %1312, %1314 : vector<2x32xf32>
    %c0_440 = arith.constant 0 : index
    %c0_441 = arith.constant 0 : index
    %1316 = vector.load %arg3[%c0_440, %c0_441] : memref<32x32xf32, #tpu.memory_space<vmem>>, vector<32x32xf32>
    %cst_442 = arith.constant dense<0.000000e+00> : vector<2x32xf32>
    %1317 = tpu.matmul %1315, %1316, %cst_442 {dimension_numbers = #tpu.dot_dimension_numbers<[1], [0], [0], [1], [0, 0, 1, 1], [], []>} : vector<2x32xf32>, vector<32x32xf32>, vector<2x32xf32> -> vector<2x32xf32>
    %c0_443 = arith.constant 0 : index
    %c0_444 = arith.constant 0 : index
    %1318 = vector.load %arg4[%c0_443, %c0_444] : memref<1x32xf32, #tpu.memory_space<vmem>>, vector<1x32xf32>
    %1319 = vector.broadcast %1318 : vector<1x32xf32> to vector<2x32xf32>
    %1320 = arith.addf %1317, %1319 : vector<2x32xf32>
    %c10 = arith.constant 10 : index
    %c0_445 = arith.constant 0 : index
    %c0_446 = arith.constant 0 : index
    %1321 = vector.load %arg5[%c10, %c0_445, %c0_446] : memref<12x2x32xf32, #tpu.memory_space<vmem>>, vector<1x2x32xf32>
    %1322 = vector.shape_cast %1321 : vector<1x2x32xf32> to vector<2x32xf32>
    %1323 = vector.shape_cast %1320 : vector<2x32xf32> to vector<1x2x32xf32>
    tpu.vector_store %arg5[%c10, %c0_445, %c0_446], %1323 {strides = array<i32>} : memref<12x2x32xf32, #tpu.memory_space<vmem>>, vector<1x2x32xf32>,
    %c4_447 = arith.constant 4 : index
    %c0_448 = arith.constant 0 : index
    %c0_449 = arith.constant 0 : index
    %1324 = vector.load %arg1[%c4_447, %c0_448, %c0_449] : memref<5x64x128xf32, #tpu.memory_space<vmem>>, vector<1x64x128xf32>
    %1325 = vector.shape_cast %1324 : vector<1x64x128xf32> to vector<64x128xf32>
    %c4_450 = arith.constant 4 : index
    %c0_451 = arith.constant 0 : index
    %1326 = vector.load %arg2[%c4_450, %c0_451] : memref<5x128xf32, #tpu.memory_space<vmem>>, vector<1x128xf32>
    %1327 = tpu.concatenate %1315, %1283 in 1 : vector<2x32xf32>, vector<2x32xf32> -> vector<2x64xf32>
    %cst_452 = arith.constant dense<0.000000e+00> : vector<2x128xf32>
    %1328 = tpu.matmul %1327, %1325, %cst_452 {dimension_numbers = #tpu.dot_dimension_numbers<[1], [0], [0], [1], [0, 0, 1, 1], [], []>} : vector<2x64xf32>, vector<64x128xf32>, vector<2x128xf32> -> vector<2x128xf32>
    %1329 = vector.extract_strided_slice %1328 {offsets = [0, 0], sizes = [2, 64], strides = [1, 1]} : vector<2x128xf32> to vector<2x64xf32>
    %1330 = vector.extract_strided_slice %1326 {offsets = [0, 0], sizes = [1, 64], strides = [1, 1]} : vector<1x128xf32> to vector<1x64xf32>
    %1331 = vector.broadcast %1330 : vector<1x64xf32> to vector<2x64xf32>
    %1332 = arith.addf %1329, %1331 : vector<2x64xf32>
    %cst_453 = arith.constant 5.000000e-01 : f32
    %1333 = vector.broadcast %cst_453 : f32 to vector<2x64xf32>
    %1334 = arith.mulf %1333, %1332 : vector<2x64xf32>
    %1335 = math.tanh %1334 : vector<2x64xf32>
    %cst_454 = arith.constant 5.000000e-01 : f32
    %1336 = vector.broadcast %cst_454 : f32 to vector<2x64xf32>
    %1337 = arith.mulf %1336, %1335 : vector<2x64xf32>
    %cst_455 = arith.constant 5.000000e-01 : f32
    %1338 = vector.broadcast %cst_455 : f32 to vector<2x64xf32>
    %1339 = arith.addf %1337, %1338 : vector<2x64xf32>
    %1340 = vector.extract_strided_slice %1339 {offsets = [0, 0], sizes = [2, 32], strides = [1, 1]} : vector<2x64xf32> to vector<2x32xf32>
    %1341 = vector.extract_strided_slice %1339 {offsets = [0, 32], sizes = [2, 32], strides = [1, 1]} : vector<2x64xf32> to vector<2x32xf32>
    %1342 = vector.extract_strided_slice %1328 {offsets = [0, 64], sizes = [2, 32], strides = [1, 1]} : vector<2x128xf32> to vector<2x32xf32>
    %1343 = vector.extract_strided_slice %1326 {offsets = [0, 64], sizes = [1, 32], strides = [1, 1]} : vector<1x128xf32> to vector<1x32xf32>
    %1344 = vector.broadcast %1343 : vector<1x32xf32> to vector<2x32xf32>
    %1345 = arith.addf %1342, %1344 : vector<2x32xf32>
    %1346 = vector.extract_strided_slice %1328 {offsets = [0, 96], sizes = [2, 32], strides = [1, 1]} : vector<2x128xf32> to vector<2x32xf32>
    %1347 = vector.extract_strided_slice %1326 {offsets = [0, 96], sizes = [1, 32], strides = [1, 1]} : vector<1x128xf32> to vector<1x32xf32>
    %1348 = vector.broadcast %1347 : vector<1x32xf32> to vector<2x32xf32>
    %1349 = arith.addf %1346, %1348 : vector<2x32xf32>
    %1350 = arith.mulf %1340, %1349 : vector<2x32xf32>
    %1351 = arith.addf %1345, %1350 : vector<2x32xf32>
    %1352 = math.tanh %1351 : vector<2x32xf32>
    %1353 = arith.subf %1283, %1352 : vector<2x32xf32>
    %1354 = arith.mulf %1341, %1353 : vector<2x32xf32>
    %1355 = arith.addf %1352, %1354 : vector<2x32xf32>
    %c3_456 = arith.constant 3 : index
    %c0_457 = arith.constant 0 : index
    %c0_458 = arith.constant 0 : index
    %1356 = vector.load %arg1[%c3_456, %c0_457, %c0_458] : memref<5x64x128xf32, #tpu.memory_space<vmem>>, vector<1x64x128xf32>
    %1357 = vector.shape_cast %1356 : vector<1x64x128xf32> to vector<64x128xf32>
    %c3_459 = arith.constant 3 : index
    %c0_460 = arith.constant 0 : index
    %1358 = vector.load %arg2[%c3_459, %c0_460] : memref<5x128xf32, #tpu.memory_space<vmem>>, vector<1x128xf32>
    %1359 = tpu.concatenate %1355, %1315 in 1 : vector<2x32xf32>, vector<2x32xf32> -> vector<2x64xf32>
    %cst_461 = arith.constant dense<0.000000e+00> : vector<2x128xf32>
    %1360 = tpu.matmul %1359, %1357, %cst_461 {dimension_numbers = #tpu.dot_dimension_numbers<[1], [0], [0], [1], [0, 0, 1, 1], [], []>} : vector<2x64xf32>, vector<64x128xf32>, vector<2x128xf32> -> vector<2x128xf32>
    %1361 = vector.extract_strided_slice %1360 {offsets = [0, 0], sizes = [2, 64], strides = [1, 1]} : vector<2x128xf32> to vector<2x64xf32>
    %1362 = vector.extract_strided_slice %1358 {offsets = [0, 0], sizes = [1, 64], strides = [1, 1]} : vector<1x128xf32> to vector<1x64xf32>
    %1363 = vector.broadcast %1362 : vector<1x64xf32> to vector<2x64xf32>
    %1364 = arith.addf %1361, %1363 : vector<2x64xf32>
    %cst_462 = arith.constant 5.000000e-01 : f32
    %1365 = vector.broadcast %cst_462 : f32 to vector<2x64xf32>
    %1366 = arith.mulf %1365, %1364 : vector<2x64xf32>
    %1367 = math.tanh %1366 : vector<2x64xf32>
    %cst_463 = arith.constant 5.000000e-01 : f32
    %1368 = vector.broadcast %cst_463 : f32 to vector<2x64xf32>
    %1369 = arith.mulf %1368, %1367 : vector<2x64xf32>
    %cst_464 = arith.constant 5.000000e-01 : f32
    %1370 = vector.broadcast %cst_464 : f32 to vector<2x64xf32>
    %1371 = arith.addf %1369, %1370 : vector<2x64xf32>
    %1372 = vector.extract_strided_slice %1371 {offsets = [0, 0], sizes = [2, 32], strides = [1, 1]} : vector<2x64xf32> to vector<2x32xf32>
    %1373 = vector.extract_strided_slice %1371 {offsets = [0, 32], sizes = [2, 32], strides = [1, 1]} : vector<2x64xf32> to vector<2x32xf32>
    %1374 = vector.extract_strided_slice %1360 {offsets = [0, 64], sizes = [2, 32], strides = [1, 1]} : vector<2x128xf32> to vector<2x32xf32>
    %1375 = vector.extract_strided_slice %1358 {offsets = [0, 64], sizes = [1, 32], strides = [1, 1]} : vector<1x128xf32> to vector<1x32xf32>
    %1376 = vector.broadcast %1375 : vector<1x32xf32> to vector<2x32xf32>
    %1377 = arith.addf %1374, %1376 : vector<2x32xf32>
    %1378 = vector.extract_strided_slice %1360 {offsets = [0, 96], sizes = [2, 32], strides = [1, 1]} : vector<2x128xf32> to vector<2x32xf32>
    %1379 = vector.extract_strided_slice %1358 {offsets = [0, 96], sizes = [1, 32], strides = [1, 1]} : vector<1x128xf32> to vector<1x32xf32>
    %1380 = vector.broadcast %1379 : vector<1x32xf32> to vector<2x32xf32>
    %1381 = arith.addf %1378, %1380 : vector<2x32xf32>
    %1382 = arith.mulf %1372, %1381 : vector<2x32xf32>
    %1383 = arith.addf %1377, %1382 : vector<2x32xf32>
    %1384 = math.tanh %1383 : vector<2x32xf32>
    %1385 = arith.subf %1315, %1384 : vector<2x32xf32>
    %1386 = arith.mulf %1373, %1385 : vector<2x32xf32>
    %1387 = arith.addf %1384, %1386 : vector<2x32xf32>
    %c0_465 = arith.constant 0 : index
    %c0_466 = arith.constant 0 : index
    %1388 = vector.load %arg3[%c0_465, %c0_466] : memref<32x32xf32, #tpu.memory_space<vmem>>, vector<32x32xf32>
    %cst_467 = arith.constant dense<0.000000e+00> : vector<2x32xf32>
    %1389 = tpu.matmul %1387, %1388, %cst_467 {dimension_numbers = #tpu.dot_dimension_numbers<[1], [0], [0], [1], [0, 0, 1, 1], [], []>} : vector<2x32xf32>, vector<32x32xf32>, vector<2x32xf32> -> vector<2x32xf32>
    %c0_468 = arith.constant 0 : index
    %c0_469 = arith.constant 0 : index
    %1390 = vector.load %arg4[%c0_468, %c0_469] : memref<1x32xf32, #tpu.memory_space<vmem>>, vector<1x32xf32>
    %1391 = vector.broadcast %1390 : vector<1x32xf32> to vector<2x32xf32>
    %1392 = arith.addf %1389, %1391 : vector<2x32xf32>
    %c11 = arith.constant 11 : index
    %c0_470 = arith.constant 0 : index
    %c0_471 = arith.constant 0 : index
    %1393 = vector.load %arg5[%c11, %c0_470, %c0_471] : memref<12x2x32xf32, #tpu.memory_space<vmem>>, vector<1x2x32xf32>
    %1394 = vector.shape_cast %1393 : vector<1x2x32xf32> to vector<2x32xf32>
    %1395 = vector.shape_cast %1392 : vector<2x32xf32> to vector<1x2x32xf32>
    tpu.vector_store %arg5[%c11, %c0_470, %c0_471], %1395 {strides = array<i32>} : memref<12x2x32xf32, #tpu.memory_space<vmem>>, vector<1x2x32xf32>,
    return
  }
}

</mosaic_0001>

<llo_original>
// kernel: tpu_custom_call.1
$region0: #{tpu_custom_call.1}
  #allocation0 [shape = 'u32[]', space=smem, size = 0x4, offset = 0x4, fixed_abs, tag = 'smem constant byte address 0x4 - core index']
  #allocation1 [shape = 'u32[144,128]{1,0:T(1,128)}', space=vmem, size = 0x12000, scoped, tag = 'internal scratch']
  %s0 = inlined_call_operand.hbm [shape: f32[9,2,32], index: 0, kind: input, shape index: {}]
  %s1 = inlined_call_operand.hbm [shape: f32[5,64,128], index: 1, kind: input, shape index: {}]
  %s2 = inlined_call_operand.hbm [shape: f32[5,128], index: 2, kind: input, shape index: {}]
  %s3 = inlined_call_operand.hbm [shape: f32[32,32], index: 3, kind: input, shape index: {}]
  %s4 = inlined_call_operand.vmem [shape: f32[1,32], index: 4, kind: input, shape index: {}]
  %s5 = inlined_call_operand.hbm [shape: f32[12,2,32], index: 5, kind: output, shape index: {}]
  %s6 = sld [smem:[#allocation0]]
  $region46: #{tpu_custom_call.1} parent=0
    _
  %s8 = ssub.s32 1, %s6
  %s9 = scalar_select 0, %s8, %s6
  $region1: #{tpu_custom_call.1} parent=0
    #allocation2 [shape = 'u8[9216]{0}', space=vmem, size = 0x2400, scoped, tag = 'input window, operand 0, single buffered']
    #allocation3 [shape = 's32[1]{0}', space=sflag, size = 0x4, scoped, tag = 'scoped memory for tpu_custom_call.1']
    #allocation4 [shape = 's32[1]{0}', space=sflag, size = 0x4, scoped, tag = 'scoped memory for tpu_custom_call.1']
    #allocation5 [shape = 'u8[163840]{0}', space=vmem, size = 0x28000, scoped, tag = 'input window, operand 1, single buffered']
    #allocation6 [shape = 's32[1]{0}', space=sflag, size = 0x4, scoped, tag = 'scoped memory for tpu_custom_call.1']
    #allocation7 [shape = 'u8[4096]{0}', space=vmem, size = 0x1000, scoped, tag = 'input window, operand 2, single buffered']
    #allocation8 [shape = 'u8[16384]{0}', space=vmem, size = 0x4000, scoped, tag = 'input window, operand 3, single buffered']
    #allocation9 [shape = 's32[1]{0}', space=sflag, size = 0x4, scoped, tag = 'scoped memory for tpu_custom_call.1']
    #allocation10 [shape = 'u8[12288]{0}', space=vmem, size = 0x3000, scoped, tag = 'output window, operand 0, single buffered']
    %10 = vsyncpa [#allocation3], 0
    %11 = vsyncpa [#allocation6], 0
    %12 = vsyncpa [#allocation9], 0
    %13 = vsyncpa [#allocation4], 0
    // Predicated region
    $region2: #{tpu_custom_call.1} parent=1 // pred_check
      _
    $region3: #{tpu_custom_call.1} parent=1 // pred_check_branch
      %15 = sbr.rel (0) target = $region5
    $region4: #{tpu_custom_call.1} parent=1 // pred_region
      %s17 = ssub.s32 288, 288
      %18 = vsyncadd [#allocation3], %s17
      %s19 = sshll.u32 [#allocation2], 4
      %s20 = int_to_ptr.vmem [resolvable:$true] %s19
      %25 = dma.hbm_to_vmem [thread:$0]  %s0, 288, %s20, [#allocation3], 32, 32, 2
    $region5: #{tpu_custom_call.1} parent=1 // pred_fallthru
      _
    // Predicated region
    $region6: #{tpu_custom_call.1} parent=1 // pred_check
      _
    $region7: #{tpu_custom_call.1} parent=1 // pred_check_branch
      %27 = sbr.rel (0) target = $region9
    $region8: #{tpu_custom_call.1} parent=1 // pred_region
      %s29 = ssub.s32 5120, 5120
      %30 = vsyncadd [#allocation6], %s29
      %s31 = sshll.u32 [#allocation5], 4
      %s32 = int_to_ptr.vmem [resolvable:$true] %s31
      %37 = dma.hbm_to_vmem [thread:$0]  %s1, 5120, %s32, [#allocation6], 128, 128, 8
    $region9: #{tpu_custom_call.1} parent=1 // pred_fallthru
      _
    // Predicated region
    $region10: #{tpu_custom_call.1} parent=1 // pred_check
      _
    $region11: #{tpu_custom_call.1} parent=1 // pred_check_branch
      %39 = sbr.rel (0) target = $region13
    $region12: #{tpu_custom_call.1} parent=1 // pred_region
      %s41 = ssub.s32 128, 128
      %42 = vsyncadd [#allocation6], %s41
      %s44 = sshll.u32 [#allocation7], 4
      %s45 = int_to_ptr.vmem [resolvable:$true] %s44
      %47 = dma.hbm_to_vmem [thread:$0]  %s2, 128, %s45, [#allocation6]
    $region13: #{tpu_custom_call.1} parent=1 // pred_fallthru
      _
    // Predicated region
    $region14: #{tpu_custom_call.1} parent=1 // pred_check
      _
    $region15: #{tpu_custom_call.1} parent=1 // pred_check_branch
      %49 = sbr.rel (0) target = $region17
    $region16: #{tpu_custom_call.1} parent=1 // pred_region
      %s51 = ssub.s32 512, 512
      %52 = vsyncadd [#allocation9], %s51
      %s53 = sshll.u32 [#allocation8], 4
      %s54 = int_to_ptr.vmem [resolvable:$true] %s53
      %59 = dma.hbm_to_vmem [thread:$0]  %s3, 512, %s54, [#allocation9], 128, 128, 8
    $region17: #{tpu_custom_call.1} parent=1 // pred_fallthru
      _
    // Predicated region
    $region18: #{tpu_custom_call.1} parent=1 // pred_check
      _
    $region19: #{tpu_custom_call.1} parent=1 // pred_check_branch
      %61 = sbr.rel (0) target = $region21
    $region20: #{tpu_custom_call.1} parent=1 // pred_region
      _
    $region21: #{tpu_custom_call.1} parent=1 // pred_fallthru
      _
    // Predicated region
    $region22: #{tpu_custom_call.1} parent=1 // pred_check
      _
    $region23: #{tpu_custom_call.1} parent=1 // pred_check_branch
      %63 = sbr.rel (0) target = $region25
    $region24: #{tpu_custom_call.1} parent=1 // pred_region
      %64 = dma.done [#allocation3], 288
    $region25: #{tpu_custom_call.1} parent=1 // pred_fallthru
      _
    // Predicated region
    $region26: #{tpu_custom_call.1} parent=1 // pred_check
      _
    $region27: #{tpu_custom_call.1} parent=1 // pred_check_branch
      %66 = sbr.rel (0) target = $region29
    $region28: #{tpu_custom_call.1} parent=1 // pred_region
      %67 = dma.done [#allocation6], 5120
    $region29: #{tpu_custom_call.1} parent=1 // pred_fallthru
      _
    // Predicated region
    $region30: #{tpu_custom_call.1} parent=1 // pred_check
      _
    $region31: #{tpu_custom_call.1} parent=1 // pred_check_branch
      %69 = sbr.rel (0) target = $region33
    $region32: #{tpu_custom_call.1} parent=1 // pred_region
      %70 = dma.done [#allocation6], 128
    $region33: #{tpu_custom_call.1} parent=1 // pred_fallthru
      _
    // Predicated region
    $region34: #{tpu_custom_call.1} parent=1 // pred_check
      _
    $region35: #{tpu_custom_call.1} parent=1 // pred_check_branch
      %72 = sbr.rel (0) target = $region37
    $region36: #{tpu_custom_call.1} parent=1 // pred_region
      %73 = dma.done [#allocation9], 512
    $region37: #{tpu_custom_call.1} parent=1 // pred_fallthru
      _
    %v74 = vld [vmem:[#allocation2] sm:$0x3]
    %v75 = vld [vmem:[#allocation5] sm:$0xff]
    %v76 = vld [vmem:[#allocation5 + $0x8] sm:$0xff]
    %v77 = vld [vmem:[#allocation5 + $0x10] sm:$0xff]
    %v78 = vld [vmem:[#allocation5 + $0x18] sm:$0xff]
    %v79 = vld [vmem:[#allocation5 + $0x20] sm:$0xff]
    %v80 = vld [vmem:[#allocation5 + $0x28] sm:$0xff]
    %v81 = vld [vmem:[#allocation5 + $0x30] sm:$0xff]
    %v82 = vld [vmem:[#allocation5 + $0x38] sm:$0xff]
    %v83 = vld [vmem:[#allocation7] sm:$0x1]
    %vm84 = vcmask 261120
    %v85 = vsel %vm84, %v74, 0.0
    %vm86 = vcmask 523264
    %v88 = vsel %vm86, %v85, 0
    %90 = vmatprep.subr.mxu0 0.0
    %91 = vmatpush1.msra.mxu0 %v75
    %92 = vmatprep.subr.mxu0 0.0
    %93 = vmatpush1.msra.mxu0 %v76
    %94 = vmatprep.subr.mxu0 0.0
    %95 = vmatpush1.msra.mxu0 %v77
    %96 = vmatprep.subr.mxu0 0.0
    %97 = vmatpush1.msra.mxu0 %v78
    %98 = vmatprep.subr.mxu0 0.0
    %99 = vmatpush1.msra.mxu0 %v79
    %100 = vmatprep.subr.mxu0 0.0
    %101 = vmatpush1.msra.mxu0 %v80
    %102 = vmatprep.subr.mxu0 0.0
    %103 = vmatpush1.msra.mxu0 %v81
    %104 = vmatprep.subr.mxu0 0.0
    %105 = vmatpush1.msra.mxu0 %v82
    %106 = vmatprep.subr.mxu0 0.0
    %107 = vmatpush1.msra.mxu0 0.0
    %108 = vmatprep.subr.mxu0 0.0
    %109 = vmatpush1.msra.mxu0 0.0
    %110 = vmatprep.subr.mxu0 0.0
    %111 = vmatpush1.msra.mxu0 0.0
    %112 = vmatprep.subr.mxu0 0.0
    %113 = vmatpush1.msra.mxu0 0.0
    %114 = vmatprep.subr.mxu0 0.0
    %115 = vmatpush1.msra.mxu0 0.0
    %116 = vmatprep.subr.mxu0 0.0
    %117 = vmatpush1.msra.mxu0 0.0
    %118 = vmatprep.subr.mxu0 0.0
    %119 = vmatpush1.msra.mxu0 0.0
    %120 = vmatprep.subr.mxu0 0.0
    %121 = vmatpush1.msra.mxu0 0.0
    %122 = vmatprep.subr.mxu0 0.0
    %123 = vmatpush1.msra.mxu0 0.0
    %124 = vmatprep.subr.mxu0 0.0
    %125 = vmatpush1.msra.mxu0 0.0
    %126 = vmatprep.subr.mxu0 0.0
    %127 = vmatpush1.msra.mxu0 0.0
    %128 = vmatprep.subr.mxu0 0.0
    %129 = vmatpush1.msra.mxu0 0.0
    %130 = vmatprep.subr.mxu0 0.0
    %131 = vmatpush1.msra.mxu0 0.0
    %132 = vmatprep.subr.mxu0 0.0
    %133 = vmatpush1.msra.mxu0 0.0
    %134 = vmatprep.subr.mxu0 0.0
    %135 = vmatpush1.msra.mxu0 0.0
    %136 = vmatprep.subr.mxu0 0.0
    %137 = vmatpush1.msra.mxu0 0.0
    %138 = vmatprep.subr.mxu0 0.0
    %139 = vmatpush1.msra.mxu0 0.0
    %140 = vmatprep.subr.mxu0 0.0
    %141 = vmatpush1.msra.mxu0 0.0
    %142 = vmatprep.subr.mxu0 0.0
    %143 = vmatpush1.msra.mxu0 0.0
    %144 = vmatprep.subr.mxu0 0.0
    %145 = vmatpush1.msra.mxu0 0.0
    %146 = vmatprep.subr.mxu0 0.0
    %147 = vmatpush1.msra.mxu0 0.0
    %148 = vmatprep.subr.mxu0 0.0
    %149 = vmatpush1.msra.mxu0 0.0
    %150 = vmatprep.subr.mxu0 0.0
    %151 = vmatpush1.msra.mxu0 0.0
    %152 = vmatprep.subr.mxu0 0.0
    %153 = vmatpush1.msra.mxu0 0.0
    %154 = vmatprep.mubr.f32.mxu0 0.0
    %155 = vmatmul.mubr.f32.gmra.mrb[0].mxu0 %v88
    %v156 = vpop.f32.mrb[0].mxu0
    %v157 = vadd.f32 0.0, %v156
    %v158 = vpop.f32.mrb[0].mxu0
    %159 = vdwg.mxu0
    %v160 = vlaneseq
    %v161 = vshrl.u32 %v160, 7
    %v162 = vsub.s32 0, %v161
    %v163 = vrot.slane %v83, %v162
    %v164 = vadd.f32 %v157, %v163
    %v165 = vmul.f32 %v164, 0.5
    %v166 = vtanh.pop %v165
    %v167 = vmul.f32 %v166, 0.5
    %v168 = vadd.f32 %v167, 0.5
    %170 = vrot.lane.b32.xlu0 %v164, 32
    %v171 = vpop.permute.xlu0 %170
    %v173 = vmul.f32 %v168, %v171
    %175 = vrot.lane.b32.xlu0 %v173, 64
    %v176 = vpop.permute.xlu0 %175
    %v178 = vadd.f32 %v164, %v176
    %v179 = vtanh.pop %v178
    %v180 = vsub.f32 0.0, %v179
    %182 = vrot.lane.b32.xlu0 %v180, 96
    %v183 = vpop.permute.xlu0 %182
    %v185 = vmul.f32 %v168, %v183
    %187 = vrot.lane.b32.xlu0 %v185, 32
    %v188 = vpop.permute.xlu0 %187
    %v190 = vadd.f32 %v179, %v188
    %s191 = scalar_lea.vmem [#allocation5], 64
    %v192 = vld [vmem:[%s191] sm:$0xff]
    %v193 = vld [vmem:[%s191 + $0x8] sm:$0xff]
    %v194 = vld [vmem:[%s191 + $0x10] sm:$0xff]
    %v195 = vld [vmem:[%s191 + $0x18] sm:$0xff]
    %v196 = vld [vmem:[%s191 + $0x20] sm:$0xff]
    %v197 = vld [vmem:[%s191 + $0x28] sm:$0xff]
    %v198 = vld [vmem:[%s191 + $0x30] sm:$0xff]
    %v199 = vld [vmem:[%s191 + $0x38] sm:$0xff]
    %v200 = vld [vmem:[#allocation7 + $0x1] sm:$0x1]
    %202 = vrot.lane.b32.xlu0 %v190, 64
    %v203 = vpop.permute.xlu0 %202
    %v205 = vsel %vm84, %v203, 0.0
    %v207 = vsel %vm86, %v205, 0
    %209 = vmatprep.subr.mxu0 0.0
    %210 = vmatpush1.msra.mxu0 %v192
    %211 = vmatprep.subr.mxu0 0.0
    %212 = vmatpush1.msra.mxu0 %v193
    %213 = vmatprep.subr.mxu0 0.0
    %214 = vmatpush1.msra.mxu0 %v194
    %215 = vmatprep.subr.mxu0 0.0
    %216 = vmatpush1.msra.mxu0 %v195
    %217 = vmatprep.subr.mxu0 0.0
    %218 = vmatpush1.msra.mxu0 %v196
    %219 = vmatprep.subr.mxu0 0.0
    %220 = vmatpush1.msra.mxu0 %v197
    %221 = vmatprep.subr.mxu0 0.0
    %222 = vmatpush1.msra.mxu0 %v198
    %223 = vmatprep.subr.mxu0 0.0
    %224 = vmatpush1.msra.mxu0 %v199
    %225 = vmatprep.subr.mxu0 0.0
    %226 = vmatpush1.msra.mxu0 0.0
    %227 = vmatprep.subr.mxu0 0.0
    %228 = vmatpush1.msra.mxu0 0.0
    %229 = vmatprep.subr.mxu0 0.0
    %230 = vmatpush1.msra.mxu0 0.0
    %231 = vmatprep.subr.mxu0 0.0
    %232 = vmatpush1.msra.mxu0 0.0
    %233 = vmatprep.subr.mxu0 0.0
    %234 = vmatpush1.msra.mxu0 0.0
    %235 = vmatprep.subr.mxu0 0.0
    %236 = vmatpush1.msra.mxu0 0.0
    %237 = vmatprep.subr.mxu0 0.0
    %238 = vmatpush1.msra.mxu0 0.0
    %239 = vmatprep.subr.mxu0 0.0
    %240 = vmatpush1.msra.mxu0 0.0
    %241 = vmatprep.subr.mxu0 0.0
    %242 = vmatpush1.msra.mxu0 0.0
    %243 = vmatprep.subr.mxu0 0.0
    %244 = vmatpush1.msra.mxu0 0.0
    %245 = vmatprep.subr.mxu0 0.0
    %246 = vmatpush1.msra.mxu0 0.0
    %247 = vmatprep.subr.mxu0 0.0
    %248 = vmatpush1.msra.mxu0 0.0
    %249 = vmatprep.subr.mxu0 0.0
    %250 = vmatpush1.msra.mxu0 0.0
    %251 = vmatprep.subr.mxu0 0.0
    %252 = vmatpush1.msra.mxu0 0.0
    %253 = vmatprep.subr.mxu0 0.0
    %254 = vmatpush1.msra.mxu0 0.0
    %255 = vmatprep.subr.mxu0 0.0
    %256 = vmatpush1.msra.mxu0 0.0
    %257 = vmatprep.subr.mxu0 0.0
    %258 = vmatpush1.msra.mxu0 0.0
    %259 = vmatprep.subr.mxu0 0.0
    %260 = vmatpush1.msra.mxu0 0.0
    %261 = vmatprep.subr.mxu0 0.0
    %262 = vmatpush1.msra.mxu0 0.0
    %263 = vmatprep.subr.mxu0 0.0
    %264 = vmatpush1.msra.mxu0 0.0
    %265 = vmatprep.subr.mxu0 0.0
    %266 = vmatpush1.msra.mxu0 0.0
    %267 = vmatprep.subr.mxu0 0.0
    %268 = vmatpush1.msra.mxu0 0.0
    %269 = vmatprep.subr.mxu0 0.0
    %270 = vmatpush1.msra.mxu0 0.0
    %271 = vmatprep.subr.mxu0 0.0
    %272 = vmatpush1.msra.mxu0 0.0
    %273 = vmatprep.mubr.f32.mxu0 0.0
    %274 = vmatmul.mubr.f32.gmra.mrb[0].mxu0 %v207
    %v275 = vpop.f32.mrb[0].mxu0
    %v276 = vadd.f32 0.0, %v275
    %v277 = vpop.f32.mrb[0].mxu0
    %278 = vdwg.mxu0
    %v279 = vlaneseq
    %v280 = vshrl.u32 %v279, 7
    %v281 = vsub.s32 0, %v280
    %v282 = vrot.slane %v200, %v281
    %v283 = vadd.f32 %v276, %v282
    %v284 = vmul.f32 %v283, 0.5
    %v285 = vtanh.pop %v284
    %v286 = vmul.f32 %v285, 0.5
    %v287 = vadd.f32 %v286, 0.5
    %289 = vrot.lane.b32.xlu0 %v283, 32
    %v290 = vpop.permute.xlu0 %289
    %v292 = vmul.f32 %v287, %v290
    %294 = vrot.lane.b32.xlu0 %v292, 64
    %v295 = vpop.permute.xlu0 %294
    %v297 = vadd.f32 %v283, %v295
    %v298 = vtanh.pop %v297
    %v299 = vsub.f32 0.0, %v298
    %301 = vrot.lane.b32.xlu0 %v299, 96
    %v302 = vpop.permute.xlu0 %301
    %v304 = vmul.f32 %v287, %v302
    %306 = vrot.lane.b32.xlu0 %v304, 32
    %v307 = vpop.permute.xlu0 %306
    %v309 = vadd.f32 %v298, %v307
    %s310 = scalar_lea.vmem [#allocation2], 2
    %v311 = vld [vmem:[%s310] sm:$0x3]
    %312 = vrot.lane.b32.xlu0 %v190, 96
    %v313 = vpop.permute.xlu0 %312
    %v315 = vsel %vm84, %v311, %v313
    %v317 = vsel %vm86, %v315, 0
    %319 = vmatprep.subr.mxu0 0.0
    %320 = vmatpush1.msra.mxu0 %v75
    %321 = vmatprep.subr.mxu0 0.0
    %322 = vmatpush1.msra.mxu0 %v76
    %323 = vmatprep.subr.mxu0 0.0
    %324 = vmatpush1.msra.mxu0 %v77
    %325 = vmatprep.subr.mxu0 0.0
    %326 = vmatpush1.msra.mxu0 %v78
    %327 = vmatprep.subr.mxu0 0.0
    %328 = vmatpush1.msra.mxu0 %v79
    %329 = vmatprep.subr.mxu0 0.0
    %330 = vmatpush1.msra.mxu0 %v80
    %331 = vmatprep.subr.mxu0 0.0
    %332 = vmatpush1.msra.mxu0 %v81
    %333 = vmatprep.subr.mxu0 0.0
    %334 = vmatpush1.msra.mxu0 %v82
    %335 = vmatprep.subr.mxu0 0.0
    %336 = vmatpush1.msra.mxu0 0.0
    %337 = vmatprep.subr.mxu0 0.0
    %338 = vmatpush1.msra.mxu0 0.0
    %339 = vmatprep.subr.mxu0 0.0
    %340 = vmatpush1.msra.mxu0 0.0
    %341 = vmatprep.subr.mxu0 0.0
    %342 = vmatpush1.msra.mxu0 0.0
    %343 = vmatprep.subr.mxu0 0.0
    %344 = vmatpush1.msra.mxu0 0.0
    %345 = vmatprep.subr.mxu0 0.0
    %346 = vmatpush1.msra.mxu0 0.0
    %347 = vmatprep.subr.mxu0 0.0
    %348 = vmatpush1.msra.mxu0 0.0
    %349 = vmatprep.subr.mxu0 0.0
    %350 = vmatpush1.msra.mxu0 0.0
    %351 = vmatprep.subr.mxu0 0.0
    %352 = vmatpush1.msra.mxu0 0.0
    %353 = vmatprep.subr.mxu0 0.0
    %354 = vmatpush1.msra.mxu0 0.0
    %355 = vmatprep.subr.mxu0 0.0
    %356 = vmatpush1.msra.mxu0 0.0
    %357 = vmatprep.subr.mxu0 0.0
    %358 = vmatpush1.msra.mxu0 0.0
    %359 = vmatprep.subr.mxu0 0.0
    %360 = vmatpush1.msra.mxu0 0.0
    %361 = vmatprep.subr.mxu0 0.0
    %362 = vmatpush1.msra.mxu0 0.0
    %363 = vmatprep.subr.mxu0 0.0
    %364 = vmatpush1.msra.mxu0 0.0
    %365 = vmatprep.subr.mxu0 0.0
    %366 = vmatpush1.msra.mxu0 0.0
    %367 = vmatprep.subr.mxu0 0.0
    %368 = vmatpush1.msra.mxu0 0.0
    %369 = vmatprep.subr.mxu0 0.0
    %370 = vmatpush1.msra.mxu0 0.0
    %371 = vmatprep.subr.mxu0 0.0
    %372 = vmatpush1.msra.mxu0 0.0
    %373 = vmatprep.subr.mxu0 0.0
    %374 = vmatpush1.msra.mxu0 0.0
    %375 = vmatprep.subr.mxu0 0.0
    %376 = vmatpush1.msra.mxu0 0.0
    %377 = vmatprep.subr.mxu0 0.0
    %378 = vmatpush1.msra.mxu0 0.0
    %379 = vmatprep.subr.mxu0 0.0
    %380 = vmatpush1.msra.mxu0 0.0
    %381 = vmatprep.subr.mxu0 0.0
    %382 = vmatpush1.msra.mxu0 0.0
    %383 = vmatprep.mubr.f32.mxu0 0.0
    %384 = vmatmul.mubr.f32.gmra.mrb[0].mxu0 %v317
    %v385 = vpop.f32.mrb[0].mxu0
    %v386 = vadd.f32 0.0, %v385
    %v387 = vpop.f32.mrb[0].mxu0
    %388 = vdwg.mxu0
    %v389 = vadd.f32 %v386, %v163
    %v390 = vmul.f32 %v389, 0.5
    %v391 = vtanh.pop %v390
    %v392 = vmul.f32 %v391, 0.5
    %v393 = vadd.f32 %v392, 0.5
    %395 = vrot.lane.b32.xlu0 %v389, 32
    %v396 = vpop.permute.xlu0 %395
    %v398 = vmul.f32 %v393, %v396
    %400 = vrot.lane.b32.xlu0 %v398, 64
    %v401 = vpop.permute.xlu0 %400
    %v403 = vadd.f32 %v389, %v401
    %v404 = vtanh.pop %v403
    %v405 = vsub.f32 %v190, %v404
    %407 = vrot.lane.b32.xlu0 %v405, 96
    %v408 = vpop.permute.xlu0 %407
    %v410 = vmul.f32 %v393, %v408
    %412 = vrot.lane.b32.xlu0 %v410, 32
    %v413 = vpop.permute.xlu0 %412
    %v415 = vadd.f32 %v404, %v413
    %417 = vrot.lane.b32.xlu0 %v415, 64
    %v418 = vpop.permute.xlu0 %417
    %421 = vrot.lane.b32.xlu0 %v309, 96
    %v422 = vpop.permute.xlu0 %421
    %v424 = vsel %vm84, %v418, %v422
    %v426 = vsel %vm86, %v424, 0
    %428 = vmatprep.subr.mxu0 0.0
    %429 = vmatpush1.msra.mxu0 %v192
    %430 = vmatprep.subr.mxu0 0.0
    %431 = vmatpush1.msra.mxu0 %v193
    %432 = vmatprep.subr.mxu0 0.0
    %433 = vmatpush1.msra.mxu0 %v194
    %434 = vmatprep.subr.mxu0 0.0
    %435 = vmatpush1.msra.mxu0 %v195
    %436 = vmatprep.subr.mxu0 0.0
    %437 = vmatpush1.msra.mxu0 %v196
    %438 = vmatprep.subr.mxu0 0.0
    %439 = vmatpush1.msra.mxu0 %v197
    %440 = vmatprep.subr.mxu0 0.0
    %441 = vmatpush1.msra.mxu0 %v198
    %442 = vmatprep.subr.mxu0 0.0
    %443 = vmatpush1.msra.mxu0 %v199
    %444 = vmatprep.subr.mxu0 0.0
    %445 = vmatpush1.msra.mxu0 0.0
    %446 = vmatprep.subr.mxu0 0.0
    %447 = vmatpush1.msra.mxu0 0.0
    %448 = vmatprep.subr.mxu0 0.0
    %449 = vmatpush1.msra.mxu0 0.0
    %450 = vmatprep.subr.mxu0 0.0
    %451 = vmatpush1.msra.mxu0 0.0
    %452 = vmatprep.subr.mxu0 0.0
    %453 = vmatpush1.msra.mxu0 0.0
    %454 = vmatprep.subr.mxu0 0.0
    %455 = vmatpush1.msra.mxu0 0.0
    %456 = vmatprep.subr.mxu0 0.0
    %457 = vmatpush1.msra.mxu0 0.0
    %458 = vmatprep.subr.mxu0 0.0
    %459 = vmatpush1.msra.mxu0 0.0
    %460 = vmatprep.subr.mxu0 0.0
    %461 = vmatpush1.msra.mxu0 0.0
    %462 = vmatprep.subr.mxu0 0.0
    %463 = vmatpush1.msra.mxu0 0.0
    %464 = vmatprep.subr.mxu0 0.0
    %465 = vmatpush1.msra.mxu0 0.0
    %466 = vmatprep.subr.mxu0 0.0
    %467 = vmatpush1.msra.mxu0 0.0
    %468 = vmatprep.subr.mxu0 0.0
    %469 = vmatpush1.msra.mxu0 0.0
    %470 = vmatprep.subr.mxu0 0.0
    %471 = vmatpush1.msra.mxu0 0.0
    %472 = vmatprep.subr.mxu0 0.0
    %473 = vmatpush1.msra.mxu0 0.0
    %474 = vmatprep.subr.mxu0 0.0
    %475 = vmatpush1.msra.mxu0 0.0
    %476 = vmatprep.subr.mxu0 0.0
    %477 = vmatpush1.msra.mxu0 0.0
    %478 = vmatprep.subr.mxu0 0.0
    %479 = vmatpush1.msra.mxu0 0.0
    %480 = vmatprep.subr.mxu0 0.0
    %481 = vmatpush1.msra.mxu0 0.0
    %482 = vmatprep.subr.mxu0 0.0
    %483 = vmatpush1.msra.mxu0 0.0
    %484 = vmatprep.subr.mxu0 0.0
    %485 = vmatpush1.msra.mxu0 0.0
    %486 = vmatprep.subr.mxu0 0.0
    %487 = vmatpush1.msra.mxu0 0.0
    %488 = vmatprep.subr.mxu0 0.0
    %489 = vmatpush1.msra.mxu0 0.0
    %490 = vmatprep.subr.mxu0 0.0
    %491 = vmatpush1.msra.mxu0 0.0
    %492 = vmatprep.mubr.f32.mxu0 0.0
    %493 = vmatmul.mubr.f32.gmra.mrb[0].mxu0 %v426
    %v494 = vpop.f32.mrb[0].mxu0
    %v495 = vadd.f32 0.0, %v494
    %v496 = vpop.f32.mrb[0].mxu0
    %497 = vdwg.mxu0
    %v498 = vadd.f32 %v495, %v282
    %v499 = vmul.f32 %v498, 0.5
    %v500 = vtanh.pop %v499
    %v501 = vmul.f32 %v500, 0.5
    %v502 = vadd.f32 %v501, 0.5
    %504 = vrot.lane.b32.xlu0 %v498, 32
    %v505 = vpop.permute.xlu0 %504
    %v507 = vmul.f32 %v502, %v505
    %509 = vrot.lane.b32.xlu0 %v507, 64
    %v510 = vpop.permute.xlu0 %509
    %v512 = vadd.f32 %v498, %v510
    %v513 = vtanh.pop %v512
    %v514 = vsub.f32 %v309, %v513
    %516 = vrot.lane.b32.xlu0 %v514, 96
    %v517 = vpop.permute.xlu0 %516
    %v519 = vmul.f32 %v502, %v517
    %521 = vrot.lane.b32.xlu0 %v519, 32
    %v522 = vpop.permute.xlu0 %521
    %v524 = vadd.f32 %v513, %v522
    %s525 = scalar_lea.vmem [#allocation2], 4
    %v526 = vld [vmem:[%s525] sm:$0x3]
    %527 = vrot.lane.b32.xlu0 %v415, 96
    %v528 = vpop.permute.xlu0 %527
    %v530 = vsel %vm84, %v526, %v528
    %v532 = vsel %vm86, %v530, 0
    %534 = vmatprep.subr.mxu0 0.0
    %535 = vmatpush1.msra.mxu0 %v75
    %536 = vmatprep.subr.mxu0 0.0
    %537 = vmatpush1.msra.mxu0 %v76
    %538 = vmatprep.subr.mxu0 0.0
    %539 = vmatpush1.msra.mxu0 %v77
    %540 = vmatprep.subr.mxu0 0.0
    %541 = vmatpush1.msra.mxu0 %v78
    %542 = vmatprep.subr.mxu0 0.0
    %543 = vmatpush1.msra.mxu0 %v79
    %544 = vmatprep.subr.mxu0 0.0
    %545 = vmatpush1.msra.mxu0 %v80
    %546 = vmatprep.subr.mxu0 0.0
    %547 = vmatpush1.msra.mxu0 %v81
    %548 = vmatprep.subr.mxu0 0.0
    %549 = vmatpush1.msra.mxu0 %v82
    %550 = vmatprep.subr.mxu0 0.0
    %551 = vmatpush1.msra.mxu0 0.0
    %552 = vmatprep.subr.mxu0 0.0
    %553 = vmatpush1.msra.mxu0 0.0
    %554 = vmatprep.subr.mxu0 0.0
    %555 = vmatpush1.msra.mxu0 0.0
    %556 = vmatprep.subr.mxu0 0.0
    %557 = vmatpush1.msra.mxu0 0.0
    %558 = vmatprep.subr.mxu0 0.0
    %559 = vmatpush1.msra.mxu0 0.0
    %560 = vmatprep.subr.mxu0 0.0
    %561 = vmatpush1.msra.mxu0 0.0
    %562 = vmatprep.subr.mxu0 0.0
    %563 = vmatpush1.msra.mxu0 0.0
    %564 = vmatprep.subr.mxu0 0.0
    %565 = vmatpush1.msra.mxu0 0.0
    %566 = vmatprep.subr.mxu0 0.0
    %567 = vmatpush1.msra.mxu0 0.0
    %568 = vmatprep.subr.mxu0 0.0
    %569 = vmatpush1.msra.mxu0 0.0
    %570 = vmatprep.subr.mxu0 0.0
    %571 = vmatpush1.msra.mxu0 0.0
    %572 = vmatprep.subr.mxu0 0.0
    %573 = vmatpush1.msra.mxu0 0.0
    %574 = vmatprep.subr.mxu0 0.0
    %575 = vmatpush1.msra.mxu0 0.0
    %576 = vmatprep.subr.mxu0 0.0
    %577 = vmatpush1.msra.mxu0 0.0
    %578 = vmatprep.subr.mxu0 0.0
    %579 = vmatpush1.msra.mxu0 0.0
    %580 = vmatprep.subr.mxu0 0.0
    %581 = vmatpush1.msra.mxu0 0.0
    %582 = vmatprep.subr.mxu0 0.0
    %583 = vmatpush1.msra.mxu0 0.0
    %584 = vmatprep.subr.mxu0 0.0
    %585 = vmatpush1.msra.mxu0 0.0
    %586 = vmatprep.subr.mxu0 0.0
    %587 = vmatpush1.msra.mxu0 0.0
    %588 = vmatprep.subr.mxu0 0.0
    %589 = vmatpush1.msra.mxu0 0.0
    %590 = vmatprep.subr.mxu0 0.0
    %591 = vmatpush1.msra.mxu0 0.0
    %592 = vmatprep.subr.mxu0 0.0
    %593 = vmatpush1.msra.mxu0 0.0
    %594 = vmatprep.subr.mxu0 0.0
    %595 = vmatpush1.msra.mxu0 0.0
    %596 = vmatprep.subr.mxu0 0.0
    %597 = vmatpush1.msra.mxu0 0.0
    %598 = vmatprep.mubr.f32.mxu0 0.0
    %599 = vmatmul.mubr.f32.gmra.mrb[0].mxu0 %v532
    %v600 = vpop.f32.mrb[0].mxu0
    %v601 = vadd.f32 0.0, %v600
    %v602 = vpop.f32.mrb[0].mxu0
    %603 = vdwg.mxu0
    %v604 = vadd.f32 %v601, %v163
    %v605 = vmul.f32 %v604, 0.5
    %v606 = vtanh.pop %v605
    %v607 = vmul.f32 %v606, 0.5
    %v608 = vadd.f32 %v607, 0.5
    %610 = vrot.lane.b32.xlu0 %v604, 32
    %v611 = vpop.permute.xlu0 %610
    %v613 = vmul.f32 %v608, %v611
    %615 = vrot.lane.b32.xlu0 %v613, 64
    %v616 = vpop.permute.xlu0 %615
    %v618 = vadd.f32 %v604, %v616
    %v619 = vtanh.pop %v618
    %v620 = vsub.f32 %v415, %v619
    %622 = vrot.lane.b32.xlu0 %v620, 96
    %v623 = vpop.permute.xlu0 %622
    %v625 = vmul.f32 %v608, %v623
    %627 = vrot.lane.b32.xlu0 %v625, 32
    %v628 = vpop.permute.xlu0 %627
    %v630 = vadd.f32 %v619, %v628
    %632 = vrot.lane.b32.xlu0 %v630, 64
    %v633 = vpop.permute.xlu0 %632
    %636 = vrot.lane.b32.xlu0 %v524, 96
    %v637 = vpop.permute.xlu0 %636
    %v639 = vsel %vm84, %v633, %v637
    %v641 = vsel %vm86, %v639, 0
    %643 = vmatprep.subr.mxu0 0.0
    %644 = vmatpush1.msra.mxu0 %v192
    %645 = vmatprep.subr.mxu0 0.0
    %646 = vmatpush1.msra.mxu0 %v193
    %647 = vmatprep.subr.mxu0 0.0
    %648 = vmatpush1.msra.mxu0 %v194
    %649 = vmatprep.subr.mxu0 0.0
    %650 = vmatpush1.msra.mxu0 %v195
    %651 = vmatprep.subr.mxu0 0.0
    %652 = vmatpush1.msra.mxu0 %v196
    %653 = vmatprep.subr.mxu0 0.0
    %654 = vmatpush1.msra.mxu0 %v197
    %655 = vmatprep.subr.mxu0 0.0
    %656 = vmatpush1.msra.mxu0 %v198
    %657 = vmatprep.subr.mxu0 0.0
    %658 = vmatpush1.msra.mxu0 %v199
    %659 = vmatprep.subr.mxu0 0.0
    %660 = vmatpush1.msra.mxu0 0.0
    %661 = vmatprep.subr.mxu0 0.0
    %662 = vmatpush1.msra.mxu0 0.0
    %663 = vmatprep.subr.mxu0 0.0
    %664 = vmatpush1.msra.mxu0 0.0
    %665 = vmatprep.subr.mxu0 0.0
    %666 = vmatpush1.msra.mxu0 0.0
    %667 = vmatprep.subr.mxu0 0.0
    %668 = vmatpush1.msra.mxu0 0.0
    %669 = vmatprep.subr.mxu0 0.0
    %670 = vmatpush1.msra.mxu0 0.0
    %671 = vmatprep.subr.mxu0 0.0
    %672 = vmatpush1.msra.mxu0 0.0
    %673 = vmatprep.subr.mxu0 0.0
    %674 = vmatpush1.msra.mxu0 0.0
    %675 = vmatprep.subr.mxu0 0.0
    %676 = vmatpush1.msra.mxu0 0.0
    %677 = vmatprep.subr.mxu0 0.0
    %678 = vmatpush1.msra.mxu0 0.0
    %679 = vmatprep.subr.mxu0 0.0
    %680 = vmatpush1.msra.mxu0 0.0
    %681 = vmatprep.subr.mxu0 0.0
    %682 = vmatpush1.msra.mxu0 0.0
    %683 = vmatprep.subr.mxu0 0.0
    %684 = vmatpush1.msra.mxu0 0.0
    %685 = vmatprep.subr.mxu0 0.0
    %686 = vmatpush1.msra.mxu0 0.0
    %687 = vmatprep.subr.mxu0 0.0
    %688 = vmatpush1.msra.mxu0 0.0
    %689 = vmatprep.subr.mxu0 0.0
    %690 = vmatpush1.msra.mxu0 0.0
    %691 = vmatprep.subr.mxu0 0.0
    %692 = vmatpush1.msra.mxu0 0.0
    %693 = vmatprep.subr.mxu0 0.0
    %694 = vmatpush1.msra.mxu0 0.0
    %695 = vmatprep.subr.mxu0 0.0
    %696 = vmatpush1.msra.mxu0 0.0
    %697 = vmatprep.subr.mxu0 0.0
    %698 = vmatpush1.msra.mxu0 0.0
    %699 = vmatprep.subr.mxu0 0.0
    %700 = vmatpush1.msra.mxu0 0.0
    %701 = vmatprep.subr.mxu0 0.0
    %702 = vmatpush1.msra.mxu0 0.0
    %703 = vmatprep.subr.mxu0 0.0
    %704 = vmatpush1.msra.mxu0 0.0
    %705 = vmatprep.subr.mxu0 0.0
    %706 = vmatpush1.msra.mxu0 0.0
    %707 = vmatprep.mubr.f32.mxu0 0.0
    %708 = vmatmul.mubr.f32.gmra.mrb[0].mxu0 %v641
    %v709 = vpop.f32.mrb[0].mxu0
    %v710 = vadd.f32 0.0, %v709
    %v711 = vpop.f32.mrb[0].mxu0
    %712 = vdwg.mxu0
    %v713 = vadd.f32 %v710, %v282
    %v714 = vmul.f32 %v713, 0.5
    %v715 = vtanh.pop %v714
    %v716 = vmul.f32 %v715, 0.5
    %v717 = vadd.f32 %v716, 0.5
    %719 = vrot.lane.b32.xlu0 %v713, 32
    %v720 = vpop.permute.xlu0 %719
    %v722 = vmul.f32 %v717, %v720
    %724 = vrot.lane.b32.xlu0 %v722, 64
    %v725 = vpop.permute.xlu0 %724
    %v727 = vadd.f32 %v713, %v725
    %v728 = vtanh.pop %v727
    %v729 = vsub.f32 %v524, %v728
    %731 = vrot.lane.b32.xlu0 %v729, 96
    %v732 = vpop.permute.xlu0 %731
    %v734 = vmul.f32 %v717, %v732
    %736 = vrot.lane.b32.xlu0 %v734, 32
    %v737 = vpop.permute.xlu0 %736
    %v739 = vadd.f32 %v728, %v737
    %s740 = scalar_lea.vmem [#allocation2], 6
    %v741 = vld [vmem:[%s740] sm:$0x3]
    %742 = vrot.lane.b32.xlu0 %v630, 96
    %v743 = vpop.permute.xlu0 %742
    %v745 = vsel %vm84, %v741, %v743
    %v747 = vsel %vm86, %v745, 0
    %749 = vmatprep.subr.mxu0 0.0
    %750 = vmatpush1.msra.mxu0 %v75
    %751 = vmatprep.subr.mxu0 0.0
    %752 = vmatpush1.msra.mxu0 %v76
    %753 = vmatprep.subr.mxu0 0.0
    %754 = vmatpush1.msra.mxu0 %v77
    %755 = vmatprep.subr.mxu0 0.0
    %756 = vmatpush1.msra.mxu0 %v78
    %757 = vmatprep.subr.mxu0 0.0
    %758 = vmatpush1.msra.mxu0 %v79
    %759 = vmatprep.subr.mxu0 0.0
    %760 = vmatpush1.msra.mxu0 %v80
    %761 = vmatprep.subr.mxu0 0.0
    %762 = vmatpush1.msra.mxu0 %v81
    %763 = vmatprep.subr.mxu0 0.0
    %764 = vmatpush1.msra.mxu0 %v82
    %765 = vmatprep.subr.mxu0 0.0
    %766 = vmatpush1.msra.mxu0 0.0
    %767 = vmatprep.subr.mxu0 0.0
    %768 = vmatpush1.msra.mxu0 0.0
    %769 = vmatprep.subr.mxu0 0.0
    %770 = vmatpush1.msra.mxu0 0.0
    %771 = vmatprep.subr.mxu0 0.0
    %772 = vmatpush1.msra.mxu0 0.0
    %773 = vmatprep.subr.mxu0 0.0
    %774 = vmatpush1.msra.mxu0 0.0
    %775 = vmatprep.subr.mxu0 0.0
    %776 = vmatpush1.msra.mxu0 0.0
    %777 = vmatprep.subr.mxu0 0.0
    %778 = vmatpush1.msra.mxu0 0.0
    %779 = vmatprep.subr.mxu0 0.0
    %780 = vmatpush1.msra.mxu0 0.0
    %781 = vmatprep.subr.mxu0 0.0
    %782 = vmatpush1.msra.mxu0 0.0
    %783 = vmatprep.subr.mxu0 0.0
    %784 = vmatpush1.msra.mxu0 0.0
    %785 = vmatprep.subr.mxu0 0.0
    %786 = vmatpush1.msra.mxu0 0.0
    %787 = vmatprep.subr.mxu0 0.0
    %788 = vmatpush1.msra.mxu0 0.0
    %789 = vmatprep.subr.mxu0 0.0
    %790 = vmatpush1.msra.mxu0 0.0
    %791 = vmatprep.subr.mxu0 0.0
    %792 = vmatpush1.msra.mxu0 0.0
    %793 = vmatprep.subr.mxu0 0.0
    %794 = vmatpush1.msra.mxu0 0.0
    %795 = vmatprep.subr.mxu0 0.0
    %796 = vmatpush1.msra.mxu0 0.0
    %797 = vmatprep.subr.mxu0 0.0
    %798 = vmatpush1.msra.mxu0 0.0
    %799 = vmatprep.subr.mxu0 0.0
    %800 = vmatpush1.msra.mxu0 0.0
    %801 = vmatprep.subr.mxu0 0.0
    %802 = vmatpush1.msra.mxu0 0.0
    %803 = vmatprep.subr.mxu0 0.0
    %804 = vmatpush1.msra.mxu0 0.0
    %805 = vmatprep.subr.mxu0 0.0
    %806 = vmatpush1.msra.mxu0 0.0
    %807 = vmatprep.subr.mxu0 0.0
    %808 = vmatpush1.msra.mxu0 0.0
    %809 = vmatprep.subr.mxu0 0.0
    %810 = vmatpush1.msra.mxu0 0.0
    %811 = vmatprep.subr.mxu0 0.0
    %812 = vmatpush1.msra.mxu0 0.0
    %813 = vmatprep.mubr.f32.mxu0 0.0
    %814 = vmatmul.mubr.f32.gmra.mrb[0].mxu0 %v747
    %v815 = vpop.f32.mrb[0].mxu0
    %v816 = vadd.f32 0.0, %v815
    %v817 = vpop.f32.mrb[0].mxu0
    %818 = vdwg.mxu0
    %v819 = vadd.f32 %v816, %v163
    %v820 = vmul.f32 %v819, 0.5
    %v821 = vtanh.pop %v820
    %v822 = vmul.f32 %v821, 0.5
    %v823 = vadd.f32 %v822, 0.5
    %825 = vrot.lane.b32.xlu0 %v819, 32
    %v826 = vpop.permute.xlu0 %825
    %v828 = vmul.f32 %v823, %v826
    %830 = vrot.lane.b32.xlu0 %v828, 64
    %v831 = vpop.permute.xlu0 %830
    %v833 = vadd.f32 %v819, %v831
    %v834 = vtanh.pop %v833
    %v835 = vsub.f32 %v630, %v834
    %837 = vrot.lane.b32.xlu0 %v835, 96
    %v838 = vpop.permute.xlu0 %837
    %v840 = vmul.f32 %v823, %v838
    %842 = vrot.lane.b32.xlu0 %v840, 32
    %v843 = vpop.permute.xlu0 %842
    %v845 = vadd.f32 %v834, %v843
    %847 = vrot.lane.b32.xlu0 %v845, 64
    %v848 = vpop.permute.xlu0 %847
    %851 = vrot.lane.b32.xlu0 %v739, 96
    %v852 = vpop.permute.xlu0 %851
    %v854 = vsel %vm84, %v848, %v852
    %v856 = vsel %vm86, %v854, 0
    %858 = vmatprep.subr.mxu0 0.0
    %859 = vmatpush1.msra.mxu0 %v192
    %860 = vmatprep.subr.mxu0 0.0
    %861 = vmatpush1.msra.mxu0 %v193
    %862 = vmatprep.subr.mxu0 0.0
    %863 = vmatpush1.msra.mxu0 %v194
    %864 = vmatprep.subr.mxu0 0.0
    %865 = vmatpush1.msra.mxu0 %v195
    %866 = vmatprep.subr.mxu0 0.0
    %867 = vmatpush1.msra.mxu0 %v196
    %868 = vmatprep.subr.mxu0 0.0
    %869 = vmatpush1.msra.mxu0 %v197
    %870 = vmatprep.subr.mxu0 0.0
    %871 = vmatpush1.msra.mxu0 %v198
    %872 = vmatprep.subr.mxu0 0.0
    %873 = vmatpush1.msra.mxu0 %v199
    %874 = vmatprep.subr.mxu0 0.0
    %875 = vmatpush1.msra.mxu0 0.0
    %876 = vmatprep.subr.mxu0 0.0
    %877 = vmatpush1.msra.mxu0 0.0
    %878 = vmatprep.subr.mxu0 0.0
    %879 = vmatpush1.msra.mxu0 0.0
    %880 = vmatprep.subr.mxu0 0.0
    %881 = vmatpush1.msra.mxu0 0.0
    %882 = vmatprep.subr.mxu0 0.0
    %883 = vmatpush1.msra.mxu0 0.0
    %884 = vmatprep.subr.mxu0 0.0
    %885 = vmatpush1.msra.mxu0 0.0
    %886 = vmatprep.subr.mxu0 0.0
    %887 = vmatpush1.msra.mxu0 0.0
    %888 = vmatprep.subr.mxu0 0.0
    %889 = vmatpush1.msra.mxu0 0.0
    %890 = vmatprep.subr.mxu0 0.0
    %891 = vmatpush1.msra.mxu0 0.0
    %892 = vmatprep.subr.mxu0 0.0
    %893 = vmatpush1.msra.mxu0 0.0
    %894 = vmatprep.subr.mxu0 0.0
    %895 = vmatpush1.msra.mxu0 0.0
    %896 = vmatprep.subr.mxu0 0.0
    %897 = vmatpush1.msra.mxu0 0.0
    %898 = vmatprep.subr.mxu0 0.0
    %899 = vmatpush1.msra.mxu0 0.0
    %900 = vmatprep.subr.mxu0 0.0
    %901 = vmatpush1.msra.mxu0 0.0
    %902 = vmatprep.subr.mxu0 0.0
    %903 = vmatpush1.msra.mxu0 0.0
    %904 = vmatprep.subr.mxu0 0.0
    %905 = vmatpush1.msra.mxu0 0.0
    %906 = vmatprep.subr.mxu0 0.0
    %907 = vmatpush1.msra.mxu0 0.0
    %908 = vmatprep.subr.mxu0 0.0
    %909 = vmatpush1.msra.mxu0 0.0
    %910 = vmatprep.subr.mxu0 0.0
    %911 = vmatpush1.msra.mxu0 0.0
    %912 = vmatprep.subr.mxu0 0.0
    %913 = vmatpush1.msra.mxu0 0.0
    %914 = vmatprep.subr.mxu0 0.0
    %915 = vmatpush1.msra.mxu0 0.0
    %916 = vmatprep.subr.mxu0 0.0
    %917 = vmatpush1.msra.mxu0 0.0
    %918 = vmatprep.subr.mxu0 0.0
    %919 = vmatpush1.msra.mxu0 0.0
    %920 = vmatprep.subr.mxu0 0.0
    %921 = vmatpush1.msra.mxu0 0.0
    %922 = vmatprep.mubr.f32.mxu0 0.0
    %923 = vmatmul.mubr.f32.gmra.mrb[0].mxu0 %v856
    %v924 = vpop.f32.mrb[0].mxu0
    %v925 = vadd.f32 0.0, %v924
    %v926 = vpop.f32.mrb[0].mxu0
    %927 = vdwg.mxu0
    %v928 = vadd.f32 %v925, %v282
    %v929 = vmul.f32 %v928, 0.5
    %v930 = vtanh.pop %v929
    %v931 = vmul.f32 %v930, 0.5
    %v932 = vadd.f32 %v931, 0.5
    %934 = vrot.lane.b32.xlu0 %v928, 32
    %v935 = vpop.permute.xlu0 %934
    %v937 = vmul.f32 %v932, %v935
    %939 = vrot.lane.b32.xlu0 %v937, 64
    %v940 = vpop.permute.xlu0 %939
    %v942 = vadd.f32 %v928, %v940
    %v943 = vtanh.pop %v942
    %v944 = vsub.f32 %v739, %v943
    %946 = vrot.lane.b32.xlu0 %v944, 96
    %v947 = vpop.permute.xlu0 %946
    %v949 = vmul.f32 %v932, %v947
    %951 = vrot.lane.b32.xlu0 %v949, 32
    %v952 = vpop.permute.xlu0 %951
    %v954 = vadd.f32 %v943, %v952
    %s955 = scalar_lea.vmem [#allocation2], 8
    %v956 = vld [vmem:[%s955] sm:$0x3]
    %957 = vrot.lane.b32.xlu0 %v845, 96
    %v958 = vpop.permute.xlu0 %957
    %v960 = vsel %vm84, %v956, %v958
    %v962 = vsel %vm86, %v960, 0
    %964 = vmatprep.subr.mxu0 0.0
    %965 = vmatpush1.msra.mxu0 %v75
    %966 = vmatprep.subr.mxu0 0.0
    %967 = vmatpush1.msra.mxu0 %v76
    %968 = vmatprep.subr.mxu0 0.0
    %969 = vmatpush1.msra.mxu0 %v77
    %970 = vmatprep.subr.mxu0 0.0
    %971 = vmatpush1.msra.mxu0 %v78
    %972 = vmatprep.subr.mxu0 0.0
    %973 = vmatpush1.msra.mxu0 %v79
    %974 = vmatprep.subr.mxu0 0.0
    %975 = vmatpush1.msra.mxu0 %v80
    %976 = vmatprep.subr.mxu0 0.0
    %977 = vmatpush1.msra.mxu0 %v81
    %978 = vmatprep.subr.mxu0 0.0
    %979 = vmatpush1.msra.mxu0 %v82
    %980 = vmatprep.subr.mxu0 0.0
    %981 = vmatpush1.msra.mxu0 0.0
    %982 = vmatprep.subr.mxu0 0.0
    %983 = vmatpush1.msra.mxu0 0.0
    %984 = vmatprep.subr.mxu0 0.0
    %985 = vmatpush1.msra.mxu0 0.0
    %986 = vmatprep.subr.mxu0 0.0
    %987 = vmatpush1.msra.mxu0 0.0
    %988 = vmatprep.subr.mxu0 0.0
    %989 = vmatpush1.msra.mxu0 0.0
    %990 = vmatprep.subr.mxu0 0.0
    %991 = vmatpush1.msra.mxu0 0.0
    %992 = vmatprep.subr.mxu0 0.0
    %993 = vmatpush1.msra.mxu0 0.0
    %994 = vmatprep.subr.mxu0 0.0
    %995 = vmatpush1.msra.mxu0 0.0
    %996 = vmatprep.subr.mxu0 0.0
    %997 = vmatpush1.msra.mxu0 0.0
    %998 = vmatprep.subr.mxu0 0.0
    %999 = vmatpush1.msra.mxu0 0.0
    %1000 = vmatprep.subr.mxu0 0.0
    %1001 = vmatpush1.msra.mxu0 0.0
    %1002 = vmatprep.subr.mxu0 0.0
    %1003 = vmatpush1.msra.mxu0 0.0
    %1004 = vmatprep.subr.mxu0 0.0
    %1005 = vmatpush1.msra.mxu0 0.0
    %1006 = vmatprep.subr.mxu0 0.0
    %1007 = vmatpush1.msra.mxu0 0.0
    %1008 = vmatprep.subr.mxu0 0.0
    %1009 = vmatpush1.msra.mxu0 0.0
    %1010 = vmatprep.subr.mxu0 0.0
    %1011 = vmatpush1.msra.mxu0 0.0
    %1012 = vmatprep.subr.mxu0 0.0
    %1013 = vmatpush1.msra.mxu0 0.0
    %1014 = vmatprep.subr.mxu0 0.0
    %1015 = vmatpush1.msra.mxu0 0.0
    %1016 = vmatprep.subr.mxu0 0.0
    %1017 = vmatpush1.msra.mxu0 0.0
    %1018 = vmatprep.subr.mxu0 0.0
    %1019 = vmatpush1.msra.mxu0 0.0
    %1020 = vmatprep.subr.mxu0 0.0
    %1021 = vmatpush1.msra.mxu0 0.0
    %1022 = vmatprep.subr.mxu0 0.0
    %1023 = vmatpush1.msra.mxu0 0.0
    %1024 = vmatprep.subr.mxu0 0.0
    %1025 = vmatpush1.msra.mxu0 0.0
    %1026 = vmatprep.subr.mxu0 0.0
    %1027 = vmatpush1.msra.mxu0 0.0
    %1028 = vmatprep.mubr.f32.mxu0 0.0
    %1029 = vmatmul.mubr.f32.gmra.mrb[0].mxu0 %v962
    %v1030 = vpop.f32.mrb[0].mxu0
    %v1031 = vadd.f32 0.0, %v1030
    %v1032 = vpop.f32.mrb[0].mxu0
    %1033 = vdwg.mxu0
    %v1034 = vadd.f32 %v1031, %v163
    %v1035 = vmul.f32 %v1034, 0.5
    %v1036 = vtanh.pop %v1035
    %v1037 = vmul.f32 %v1036, 0.5
    %v1038 = vadd.f32 %v1037, 0.5
    %1040 = vrot.lane.b32.xlu0 %v1034, 32
    %v1041 = vpop.permute.xlu0 %1040
    %v1043 = vmul.f32 %v1038, %v1041
    %1045 = vrot.lane.b32.xlu0 %v1043, 64
    %v1046 = vpop.permute.xlu0 %1045
    %v1048 = vadd.f32 %v1034, %v1046
    %v1049 = vtanh.pop %v1048
    %v1050 = vsub.f32 %v845, %v1049
    %1052 = vrot.lane.b32.xlu0 %v1050, 96
    %v1053 = vpop.permute.xlu0 %1052
    %v1055 = vmul.f32 %v1038, %v1053
    %1057 = vrot.lane.b32.xlu0 %v1055, 32
    %v1058 = vpop.permute.xlu0 %1057
    %v1060 = vadd.f32 %v1049, %v1058
    %1062 = vrot.lane.b32.xlu0 %v1060, 64
    %v1063 = vpop.permute.xlu0 %1062
    %1066 = vrot.lane.b32.xlu0 %v954, 96
    %v1067 = vpop.permute.xlu0 %1066
    %v1069 = vsel %vm84, %v1063, %v1067
    %v1071 = vsel %vm86, %v1069, 0
    %1073 = vmatprep.subr.mxu0 0.0
    %1074 = vmatpush1.msra.mxu0 %v192
    %1075 = vmatprep.subr.mxu0 0.0
    %1076 = vmatpush1.msra.mxu0 %v193
    %1077 = vmatprep.subr.mxu0 0.0
    %1078 = vmatpush1.msra.mxu0 %v194
    %1079 = vmatprep.subr.mxu0 0.0
    %1080 = vmatpush1.msra.mxu0 %v195
    %1081 = vmatprep.subr.mxu0 0.0
    %1082 = vmatpush1.msra.mxu0 %v196
    %1083 = vmatprep.subr.mxu0 0.0
    %1084 = vmatpush1.msra.mxu0 %v197
    %1085 = vmatprep.subr.mxu0 0.0
    %1086 = vmatpush1.msra.mxu0 %v198
    %1087 = vmatprep.subr.mxu0 0.0
    %1088 = vmatpush1.msra.mxu0 %v199
    %1089 = vmatprep.subr.mxu0 0.0
    %1090 = vmatpush1.msra.mxu0 0.0
    %1091 = vmatprep.subr.mxu0 0.0
    %1092 = vmatpush1.msra.mxu0 0.0
    %1093 = vmatprep.subr.mxu0 0.0
    %1094 = vmatpush1.msra.mxu0 0.0
    %1095 = vmatprep.subr.mxu0 0.0
    %1096 = vmatpush1.msra.mxu0 0.0
    %1097 = vmatprep.subr.mxu0 0.0
    %1098 = vmatpush1.msra.mxu0 0.0
    %1099 = vmatprep.subr.mxu0 0.0
    %1100 = vmatpush1.msra.mxu0 0.0
    %1101 = vmatprep.subr.mxu0 0.0
    %1102 = vmatpush1.msra.mxu0 0.0
    %1103 = vmatprep.subr.mxu0 0.0
    %1104 = vmatpush1.msra.mxu0 0.0
    %1105 = vmatprep.subr.mxu0 0.0
    %1106 = vmatpush1.msra.mxu0 0.0
    %1107 = vmatprep.subr.mxu0 0.0
    %1108 = vmatpush1.msra.mxu0 0.0
    %1109 = vmatprep.subr.mxu0 0.0
    %1110 = vmatpush1.msra.mxu0 0.0
    %1111 = vmatprep.subr.mxu0 0.0
    %1112 = vmatpush1.msra.mxu0 0.0
    %1113 = vmatprep.subr.mxu0 0.0
    %1114 = vmatpush1.msra.mxu0 0.0
    %1115 = vmatprep.subr.mxu0 0.0
    %1116 = vmatpush1.msra.mxu0 0.0
    %1117 = vmatprep.subr.mxu0 0.0
    %1118 = vmatpush1.msra.mxu0 0.0
    %1119 = vmatprep.subr.mxu0 0.0
    %1120 = vmatpush1.msra.mxu0 0.0
    %1121 = vmatprep.subr.mxu0 0.0
    %1122 = vmatpush1.msra.mxu0 0.0
    %1123 = vmatprep.subr.mxu0 0.0
    %1124 = vmatpush1.msra.mxu0 0.0
    %1125 = vmatprep.subr.mxu0 0.0
    %1126 = vmatpush1.msra.mxu0 0.0
    %1127 = vmatprep.subr.mxu0 0.0
    %1128 = vmatpush1.msra.mxu0 0.0
    %1129 = vmatprep.subr.mxu0 0.0
    %1130 = vmatpush1.msra.mxu0 0.0
    %1131 = vmatprep.subr.mxu0 0.0
    %1132 = vmatpush1.msra.mxu0 0.0
    %1133 = vmatprep.subr.mxu0 0.0
    %1134 = vmatpush1.msra.mxu0 0.0
    %1135 = vmatprep.subr.mxu0 0.0
    %1136 = vmatpush1.msra.mxu0 0.0
    %1137 = vmatprep.mubr.f32.mxu0 0.0
    %1138 = vmatmul.mubr.f32.gmra.mrb[0].mxu0 %v1071
    %v1139 = vpop.f32.mrb[0].mxu0
    %v1140 = vadd.f32 0.0, %v1139
    %v1141 = vpop.f32.mrb[0].mxu0
    %1142 = vdwg.mxu0
    %v1143 = vadd.f32 %v1140, %v282
    %v1144 = vmul.f32 %v1143, 0.5
    %v1145 = vtanh.pop %v1144
    %v1146 = vmul.f32 %v1145, 0.5
    %v1147 = vadd.f32 %v1146, 0.5
    %1149 = vrot.lane.b32.xlu0 %v1143, 32
    %v1150 = vpop.permute.xlu0 %1149
    %v1152 = vmul.f32 %v1147, %v1150
    %1154 = vrot.lane.b32.xlu0 %v1152, 64
    %v1155 = vpop.permute.xlu0 %1154
    %v1157 = vadd.f32 %v1143, %v1155
    %v1158 = vtanh.pop %v1157
    %v1159 = vsub.f32 %v954, %v1158
    %1161 = vrot.lane.b32.xlu0 %v1159, 96
    %v1162 = vpop.permute.xlu0 %1161
    %v1164 = vmul.f32 %v1147, %v1162
    %1166 = vrot.lane.b32.xlu0 %v1164, 32
    %v1167 = vpop.permute.xlu0 %1166
    %v1169 = vadd.f32 %v1158, %v1167
    %s1170 = scalar_lea.vmem [#allocation2], 10
    %v1171 = vld [vmem:[%s1170] sm:$0x3]
    %1172 = vrot.lane.b32.xlu0 %v1060, 96
    %v1173 = vpop.permute.xlu0 %1172
    %v1175 = vsel %vm84, %v1171, %v1173
    %v1177 = vsel %vm86, %v1175, 0
    %1179 = vmatprep.subr.mxu0 0.0
    %1180 = vmatpush1.msra.mxu0 %v75
    %1181 = vmatprep.subr.mxu0 0.0
    %1182 = vmatpush1.msra.mxu0 %v76
    %1183 = vmatprep.subr.mxu0 0.0
    %1184 = vmatpush1.msra.mxu0 %v77
    %1185 = vmatprep.subr.mxu0 0.0
    %1186 = vmatpush1.msra.mxu0 %v78
    %1187 = vmatprep.subr.mxu0 0.0
    %1188 = vmatpush1.msra.mxu0 %v79
    %1189 = vmatprep.subr.mxu0 0.0
    %1190 = vmatpush1.msra.mxu0 %v80
    %1191 = vmatprep.subr.mxu0 0.0
    %1192 = vmatpush1.msra.mxu0 %v81
    %1193 = vmatprep.subr.mxu0 0.0
    %1194 = vmatpush1.msra.mxu0 %v82
    %1195 = vmatprep.subr.mxu0 0.0
    %1196 = vmatpush1.msra.mxu0 0.0
    %1197 = vmatprep.subr.mxu0 0.0
    %1198 = vmatpush1.msra.mxu0 0.0
    %1199 = vmatprep.subr.mxu0 0.0
    %1200 = vmatpush1.msra.mxu0 0.0
    %1201 = vmatprep.subr.mxu0 0.0
    %1202 = vmatpush1.msra.mxu0 0.0
    %1203 = vmatprep.subr.mxu0 0.0
    %1204 = vmatpush1.msra.mxu0 0.0
    %1205 = vmatprep.subr.mxu0 0.0
    %1206 = vmatpush1.msra.mxu0 0.0
    %1207 = vmatprep.subr.mxu0 0.0
    %1208 = vmatpush1.msra.mxu0 0.0
    %1209 = vmatprep.subr.mxu0 0.0
    %1210 = vmatpush1.msra.mxu0 0.0
    %1211 = vmatprep.subr.mxu0 0.0
    %1212 = vmatpush1.msra.mxu0 0.0
    %1213 = vmatprep.subr.mxu0 0.0
    %1214 = vmatpush1.msra.mxu0 0.0
    %1215 = vmatprep.subr.mxu0 0.0
    %1216 = vmatpush1.msra.mxu0 0.0
    %1217 = vmatprep.subr.mxu0 0.0
    %1218 = vmatpush1.msra.mxu0 0.0
    %1219 = vmatprep.subr.mxu0 0.0
    %1220 = vmatpush1.msra.mxu0 0.0
    %1221 = vmatprep.subr.mxu0 0.0
    %1222 = vmatpush1.msra.mxu0 0.0
    %1223 = vmatprep.subr.mxu0 0.0
    %1224 = vmatpush1.msra.mxu0 0.0
    %1225 = vmatprep.subr.mxu0 0.0
    %1226 = vmatpush1.msra.mxu0 0.0
    %1227 = vmatprep.subr.mxu0 0.0
    %1228 = vmatpush1.msra.mxu0 0.0
    %1229 = vmatprep.subr.mxu0 0.0
    %1230 = vmatpush1.msra.mxu0 0.0
    %1231 = vmatprep.subr.mxu0 0.0
    %1232 = vmatpush1.msra.mxu0 0.0
    %1233 = vmatprep.subr.mxu0 0.0
    %1234 = vmatpush1.msra.mxu0 0.0
    %1235 = vmatprep.subr.mxu0 0.0
    %1236 = vmatpush1.msra.mxu0 0.0
    %1237 = vmatprep.subr.mxu0 0.0
    %1238 = vmatpush1.msra.mxu0 0.0
    %1239 = vmatprep.subr.mxu0 0.0
    %1240 = vmatpush1.msra.mxu0 0.0
    %1241 = vmatprep.subr.mxu0 0.0
    %1242 = vmatpush1.msra.mxu0 0.0
    %1243 = vmatprep.mubr.f32.mxu0 0.0
    %1244 = vmatmul.mubr.f32.gmra.mrb[0].mxu0 %v1177
    %v1245 = vpop.f32.mrb[0].mxu0
    %v1246 = vadd.f32 0.0, %v1245
    %v1247 = vpop.f32.mrb[0].mxu0
    %1248 = vdwg.mxu0
    %v1249 = vadd.f32 %v1246, %v163
    %v1250 = vmul.f32 %v1249, 0.5
    %v1251 = vtanh.pop %v1250
    %v1252 = vmul.f32 %v1251, 0.5
    %v1253 = vadd.f32 %v1252, 0.5
    %1255 = vrot.lane.b32.xlu0 %v1249, 32
    %v1256 = vpop.permute.xlu0 %1255
    %v1258 = vmul.f32 %v1253, %v1256
    %1260 = vrot.lane.b32.xlu0 %v1258, 64
    %v1261 = vpop.permute.xlu0 %1260
    %v1263 = vadd.f32 %v1249, %v1261
    %v1264 = vtanh.pop %v1263
    %v1265 = vsub.f32 %v1060, %v1264
    %1267 = vrot.lane.b32.xlu0 %v1265, 96
    %v1268 = vpop.permute.xlu0 %1267
    %v1270 = vmul.f32 %v1253, %v1268
    %1272 = vrot.lane.b32.xlu0 %v1270, 32
    %v1273 = vpop.permute.xlu0 %1272
    %v1275 = vadd.f32 %v1264, %v1273
    %1277 = vrot.lane.b32.xlu0 %v1275, 64
    %v1278 = vpop.permute.xlu0 %1277
    %1281 = vrot.lane.b32.xlu0 %v1169, 96
    %v1282 = vpop.permute.xlu0 %1281
    %v1284 = vsel %vm84, %v1278, %v1282
    %v1286 = vsel %vm86, %v1284, 0
    %1288 = vmatprep.subr.mxu0 0.0
    %1289 = vmatpush1.msra.mxu0 %v192
    %1290 = vmatprep.subr.mxu0 0.0
    %1291 = vmatpush1.msra.mxu0 %v193
    %1292 = vmatprep.subr.mxu0 0.0
    %1293 = vmatpush1.msra.mxu0 %v194
    %1294 = vmatprep.subr.mxu0 0.0
    %1295 = vmatpush1.msra.mxu0 %v195
    %1296 = vmatprep.subr.mxu0 0.0
    %1297 = vmatpush1.msra.mxu0 %v196
    %1298 = vmatprep.subr.mxu0 0.0
    %1299 = vmatpush1.msra.mxu0 %v197
    %1300 = vmatprep.subr.mxu0 0.0
    %1301 = vmatpush1.msra.mxu0 %v198
    %1302 = vmatprep.subr.mxu0 0.0
    %1303 = vmatpush1.msra.mxu0 %v199
    %1304 = vmatprep.subr.mxu0 0.0
    %1305 = vmatpush1.msra.mxu0 0.0
    %1306 = vmatprep.subr.mxu0 0.0
    %1307 = vmatpush1.msra.mxu0 0.0
    %1308 = vmatprep.subr.mxu0 0.0
    %1309 = vmatpush1.msra.mxu0 0.0
    %1310 = vmatprep.subr.mxu0 0.0
    %1311 = vmatpush1.msra.mxu0 0.0
    %1312 = vmatprep.subr.mxu0 0.0
    %1313 = vmatpush1.msra.mxu0 0.0
    %1314 = vmatprep.subr.mxu0 0.0
    %1315 = vmatpush1.msra.mxu0 0.0
    %1316 = vmatprep.subr.mxu0 0.0
    %1317 = vmatpush1.msra.mxu0 0.0
    %1318 = vmatprep.subr.mxu0 0.0
    %1319 = vmatpush1.msra.mxu0 0.0
    %1320 = vmatprep.subr.mxu0 0.0
    %1321 = vmatpush1.msra.mxu0 0.0
    %1322 = vmatprep.subr.mxu0 0.0
    %1323 = vmatpush1.msra.mxu0 0.0
    %1324 = vmatprep.subr.mxu0 0.0
    %1325 = vmatpush1.msra.mxu0 0.0
    %1326 = vmatprep.subr.mxu0 0.0
    %1327 = vmatpush1.msra.mxu0 0.0
    %1328 = vmatprep.subr.mxu0 0.0
    %1329 = vmatpush1.msra.mxu0 0.0
    %1330 = vmatprep.subr.mxu0 0.0
    %1331 = vmatpush1.msra.mxu0 0.0
    %1332 = vmatprep.subr.mxu0 0.0
    %1333 = vmatpush1.msra.mxu0 0.0
    %1334 = vmatprep.subr.mxu0 0.0
    %1335 = vmatpush1.msra.mxu0 0.0
    %1336 = vmatprep.subr.mxu0 0.0
    %1337 = vmatpush1.msra.mxu0 0.0
    %1338 = vmatprep.subr.mxu0 0.0
    %1339 = vmatpush1.msra.mxu0 0.0
    %1340 = vmatprep.subr.mxu0 0.0
    %1341 = vmatpush1.msra.mxu0 0.0
    %1342 = vmatprep.subr.mxu0 0.0
    %1343 = vmatpush1.msra.mxu0 0.0
    %1344 = vmatprep.subr.mxu0 0.0
    %1345 = vmatpush1.msra.mxu0 0.0
    %1346 = vmatprep.subr.mxu0 0.0
    %1347 = vmatpush1.msra.mxu0 0.0
    %1348 = vmatprep.subr.mxu0 0.0
    %1349 = vmatpush1.msra.mxu0 0.0
    %1350 = vmatprep.subr.mxu0 0.0
    %1351 = vmatpush1.msra.mxu0 0.0
    %1352 = vmatprep.mubr.f32.mxu0 0.0
    %1353 = vmatmul.mubr.f32.gmra.mrb[0].mxu0 %v1286
    %v1354 = vpop.f32.mrb[0].mxu0
    %v1355 = vadd.f32 0.0, %v1354
    %v1356 = vpop.f32.mrb[0].mxu0
    %1357 = vdwg.mxu0
    %v1358 = vadd.f32 %v1355, %v282
    %v1359 = vmul.f32 %v1358, 0.5
    %v1360 = vtanh.pop %v1359
    %v1361 = vmul.f32 %v1360, 0.5
    %v1362 = vadd.f32 %v1361, 0.5
    %1364 = vrot.lane.b32.xlu0 %v1358, 32
    %v1365 = vpop.permute.xlu0 %1364
    %v1367 = vmul.f32 %v1362, %v1365
    %1369 = vrot.lane.b32.xlu0 %v1367, 64
    %v1370 = vpop.permute.xlu0 %1369
    %v1372 = vadd.f32 %v1358, %v1370
    %v1373 = vtanh.pop %v1372
    %v1374 = vsub.f32 %v1169, %v1373
    %1376 = vrot.lane.b32.xlu0 %v1374, 96
    %v1377 = vpop.permute.xlu0 %1376
    %v1379 = vmul.f32 %v1362, %v1377
    %1381 = vrot.lane.b32.xlu0 %v1379, 32
    %v1382 = vpop.permute.xlu0 %1381
    %v1384 = vadd.f32 %v1373, %v1382
    %s1385 = scalar_lea.vmem [#allocation2], 12
    %v1386 = vld [vmem:[%s1385] sm:$0x3]
    %1387 = vrot.lane.b32.xlu0 %v1275, 96
    %v1388 = vpop.permute.xlu0 %1387
    %v1390 = vsel %vm84, %v1386, %v1388
    %v1392 = vsel %vm86, %v1390, 0
    %1394 = vmatprep.subr.mxu0 0.0
    %1395 = vmatpush1.msra.mxu0 %v75
    %1396 = vmatprep.subr.mxu0 0.0
    %1397 = vmatpush1.msra.mxu0 %v76
    %1398 = vmatprep.subr.mxu0 0.0
    %1399 = vmatpush1.msra.mxu0 %v77
    %1400 = vmatprep.subr.mxu0 0.0
    %1401 = vmatpush1.msra.mxu0 %v78
    %1402 = vmatprep.subr.mxu0 0.0
    %1403 = vmatpush1.msra.mxu0 %v79
    %1404 = vmatprep.subr.mxu0 0.0
    %1405 = vmatpush1.msra.mxu0 %v80
    %1406 = vmatprep.subr.mxu0 0.0
    %1407 = vmatpush1.msra.mxu0 %v81
    %1408 = vmatprep.subr.mxu0 0.0
    %1409 = vmatpush1.msra.mxu0 %v82
    %1410 = vmatprep.subr.mxu0 0.0
    %1411 = vmatpush1.msra.mxu0 0.0
    %1412 = vmatprep.subr.mxu0 0.0
    %1413 = vmatpush1.msra.mxu0 0.0
    %1414 = vmatprep.subr.mxu0 0.0
    %1415 = vmatpush1.msra.mxu0 0.0
    %1416 = vmatprep.subr.mxu0 0.0
    %1417 = vmatpush1.msra.mxu0 0.0
    %1418 = vmatprep.subr.mxu0 0.0
    %1419 = vmatpush1.msra.mxu0 0.0
    %1420 = vmatprep.subr.mxu0 0.0
    %1421 = vmatpush1.msra.mxu0 0.0
    %1422 = vmatprep.subr.mxu0 0.0
    %1423 = vmatpush1.msra.mxu0 0.0
    %1424 = vmatprep.subr.mxu0 0.0
    %1425 = vmatpush1.msra.mxu0 0.0
    %1426 = vmatprep.subr.mxu0 0.0
    %1427 = vmatpush1.msra.mxu0 0.0
    %1428 = vmatprep.subr.mxu0 0.0
    %1429 = vmatpush1.msra.mxu0 0.0
    %1430 = vmatprep.subr.mxu0 0.0
    %1431 = vmatpush1.msra.mxu0 0.0
    %1432 = vmatprep.subr.mxu0 0.0
    %1433 = vmatpush1.msra.mxu0 0.0
    %1434 = vmatprep.subr.mxu0 0.0
    %1435 = vmatpush1.msra.mxu0 0.0
    %1436 = vmatprep.subr.mxu0 0.0
    %1437 = vmatpush1.msra.mxu0 0.0
    %1438 = vmatprep.subr.mxu0 0.0
    %1439 = vmatpush1.msra.mxu0 0.0
    %1440 = vmatprep.subr.mxu0 0.0
    %1441 = vmatpush1.msra.mxu0 0.0
    %1442 = vmatprep.subr.mxu0 0.0
    %1443 = vmatpush1.msra.mxu0 0.0
    %1444 = vmatprep.subr.mxu0 0.0
    %1445 = vmatpush1.msra.mxu0 0.0
    %1446 = vmatprep.subr.mxu0 0.0
    %1447 = vmatpush1.msra.mxu0 0.0
    %1448 = vmatprep.subr.mxu0 0.0
    %1449 = vmatpush1.msra.mxu0 0.0
    %1450 = vmatprep.subr.mxu0 0.0
    %1451 = vmatpush1.msra.mxu0 0.0
    %1452 = vmatprep.subr.mxu0 0.0
    %1453 = vmatpush1.msra.mxu0 0.0
    %1454 = vmatprep.subr.mxu0 0.0
    %1455 = vmatpush1.msra.mxu0 0.0
    %1456 = vmatprep.subr.mxu0 0.0
    %1457 = vmatpush1.msra.mxu0 0.0
    %1458 = vmatprep.mubr.f32.mxu0 0.0
    %1459 = vmatmul.mubr.f32.gmra.mrb[0].mxu0 %v1392
    %v1460 = vpop.f32.mrb[0].mxu0
    %v1461 = vadd.f32 0.0, %v1460
    %v1462 = vpop.f32.mrb[0].mxu0
    %1463 = vdwg.mxu0
    %v1464 = vadd.f32 %v1461, %v163
    %v1465 = vmul.f32 %v1464, 0.5
    %v1466 = vtanh.pop %v1465
    %v1467 = vmul.f32 %v1466, 0.5
    %v1468 = vadd.f32 %v1467, 0.5
    %1470 = vrot.lane.b32.xlu0 %v1464, 32
    %v1471 = vpop.permute.xlu0 %1470
    %v1473 = vmul.f32 %v1468, %v1471
    %1475 = vrot.lane.b32.xlu0 %v1473, 64
    %v1476 = vpop.permute.xlu0 %1475
    %v1478 = vadd.f32 %v1464, %v1476
    %v1479 = vtanh.pop %v1478
    %v1480 = vsub.f32 %v1275, %v1479
    %1482 = vrot.lane.b32.xlu0 %v1480, 96
    %v1483 = vpop.permute.xlu0 %1482
    %v1485 = vmul.f32 %v1468, %v1483
    %1487 = vrot.lane.b32.xlu0 %v1485, 32
    %v1488 = vpop.permute.xlu0 %1487
    %v1490 = vadd.f32 %v1479, %v1488
    %1492 = vrot.lane.b32.xlu0 %v1490, 64
    %v1493 = vpop.permute.xlu0 %1492
    %1496 = vrot.lane.b32.xlu0 %v1384, 96
    %v1497 = vpop.permute.xlu0 %1496
    %v1499 = vsel %vm84, %v1493, %v1497
    %v1501 = vsel %vm86, %v1499, 0
    %1503 = vmatprep.subr.mxu0 0.0
    %1504 = vmatpush1.msra.mxu0 %v192
    %1505 = vmatprep.subr.mxu0 0.0
    %1506 = vmatpush1.msra.mxu0 %v193
    %1507 = vmatprep.subr.mxu0 0.0
    %1508 = vmatpush1.msra.mxu0 %v194
    %1509 = vmatprep.subr.mxu0 0.0
    %1510 = vmatpush1.msra.mxu0 %v195
    %1511 = vmatprep.subr.mxu0 0.0
    %1512 = vmatpush1.msra.mxu0 %v196
    %1513 = vmatprep.subr.mxu0 0.0
    %1514 = vmatpush1.msra.mxu0 %v197
    %1515 = vmatprep.subr.mxu0 0.0
    %1516 = vmatpush1.msra.mxu0 %v198
    %1517 = vmatprep.subr.mxu0 0.0
    %1518 = vmatpush1.msra.mxu0 %v199
    %1519 = vmatprep.subr.mxu0 0.0
    %1520 = vmatpush1.msra.mxu0 0.0
    %1521 = vmatprep.subr.mxu0 0.0
    %1522 = vmatpush1.msra.mxu0 0.0
    %1523 = vmatprep.subr.mxu0 0.0
    %1524 = vmatpush1.msra.mxu0 0.0
    %1525 = vmatprep.subr.mxu0 0.0
    %1526 = vmatpush1.msra.mxu0 0.0
    %1527 = vmatprep.subr.mxu0 0.0
    %1528 = vmatpush1.msra.mxu0 0.0
    %1529 = vmatprep.subr.mxu0 0.0
    %1530 = vmatpush1.msra.mxu0 0.0
    %1531 = vmatprep.subr.mxu0 0.0
    %1532 = vmatpush1.msra.mxu0 0.0
    %1533 = vmatprep.subr.mxu0 0.0
    %1534 = vmatpush1.msra.mxu0 0.0
    %1535 = vmatprep.subr.mxu0 0.0
    %1536 = vmatpush1.msra.mxu0 0.0
    %1537 = vmatprep.subr.mxu0 0.0
    %1538 = vmatpush1.msra.mxu0 0.0
    %1539 = vmatprep.subr.mxu0 0.0
    %1540 = vmatpush1.msra.mxu0 0.0
    %1541 = vmatprep.subr.mxu0 0.0
    %1542 = vmatpush1.msra.mxu0 0.0
    %1543 = vmatprep.subr.mxu0 0.0
    %1544 = vmatpush1.msra.mxu0 0.0
    %1545 = vmatprep.subr.mxu0 0.0
    %1546 = vmatpush1.msra.mxu0 0.0
    %1547 = vmatprep.subr.mxu0 0.0
    %1548 = vmatpush1.msra.mxu0 0.0
    %1549 = vmatprep.subr.mxu0 0.0
    %1550 = vmatpush1.msra.mxu0 0.0
    %1551 = vmatprep.subr.mxu0 0.0
    %1552 = vmatpush1.msra.mxu0 0.0
    %1553 = vmatprep.subr.mxu0 0.0
    %1554 = vmatpush1.msra.mxu0 0.0
    %1555 = vmatprep.subr.mxu0 0.0
    %1556 = vmatpush1.msra.mxu0 0.0
    %1557 = vmatprep.subr.mxu0 0.0
    %1558 = vmatpush1.msra.mxu0 0.0
    %1559 = vmatprep.subr.mxu0 0.0
    %1560 = vmatpush1.msra.mxu0 0.0
    %1561 = vmatprep.subr.mxu0 0.0
    %1562 = vmatpush1.msra.mxu0 0.0
    %1563 = vmatprep.subr.mxu0 0.0
    %1564 = vmatpush1.msra.mxu0 0.0
    %1565 = vmatprep.subr.mxu0 0.0
    %1566 = vmatpush1.msra.mxu0 0.0
    %1567 = vmatprep.mubr.f32.mxu0 0.0
    %1568 = vmatmul.mubr.f32.gmra.mrb[0].mxu0 %v1501
    %v1569 = vpop.f32.mrb[0].mxu0
    %v1570 = vadd.f32 0.0, %v1569
    %v1571 = vpop.f32.mrb[0].mxu0
    %1572 = vdwg.mxu0
    %v1573 = vadd.f32 %v1570, %v282
    %v1574 = vmul.f32 %v1573, 0.5
    %v1575 = vtanh.pop %v1574
    %v1576 = vmul.f32 %v1575, 0.5
    %v1577 = vadd.f32 %v1576, 0.5
    %1579 = vrot.lane.b32.xlu0 %v1573, 32
    %v1580 = vpop.permute.xlu0 %1579
    %v1582 = vmul.f32 %v1577, %v1580
    %1584 = vrot.lane.b32.xlu0 %v1582, 64
    %v1585 = vpop.permute.xlu0 %1584
    %v1587 = vadd.f32 %v1573, %v1585
    %v1588 = vtanh.pop %v1587
    %v1589 = vsub.f32 %v1384, %v1588
    %1591 = vrot.lane.b32.xlu0 %v1589, 96
    %v1592 = vpop.permute.xlu0 %1591
    %v1594 = vmul.f32 %v1577, %v1592
    %1596 = vrot.lane.b32.xlu0 %v1594, 32
    %v1597 = vpop.permute.xlu0 %1596
    %v1599 = vadd.f32 %v1588, %v1597
    %s1600 = scalar_lea.vmem [#allocation2], 14
    %v1601 = vld [vmem:[%s1600] sm:$0x3]
    %1602 = vrot.lane.b32.xlu0 %v1490, 96
    %v1603 = vpop.permute.xlu0 %1602
    %v1605 = vsel %vm84, %v1601, %v1603
    %v1607 = vsel %vm86, %v1605, 0
    %1609 = vmatprep.subr.mxu0 0.0
    %1610 = vmatpush1.msra.mxu0 %v75
    %1611 = vmatprep.subr.mxu0 0.0
    %1612 = vmatpush1.msra.mxu0 %v76
    %1613 = vmatprep.subr.mxu0 0.0
    %1614 = vmatpush1.msra.mxu0 %v77
    %1615 = vmatprep.subr.mxu0 0.0
    %1616 = vmatpush1.msra.mxu0 %v78
    %1617 = vmatprep.subr.mxu0 0.0
    %1618 = vmatpush1.msra.mxu0 %v79
    %1619 = vmatprep.subr.mxu0 0.0
    %1620 = vmatpush1.msra.mxu0 %v80
    %1621 = vmatprep.subr.mxu0 0.0
    %1622 = vmatpush1.msra.mxu0 %v81
    %1623 = vmatprep.subr.mxu0 0.0
    %1624 = vmatpush1.msra.mxu0 %v82
    %1625 = vmatprep.subr.mxu0 0.0
    %1626 = vmatpush1.msra.mxu0 0.0
    %1627 = vmatprep.subr.mxu0 0.0
    %1628 = vmatpush1.msra.mxu0 0.0
    %1629 = vmatprep.subr.mxu0 0.0
    %1630 = vmatpush1.msra.mxu0 0.0
    %1631 = vmatprep.subr.mxu0 0.0
    %1632 = vmatpush1.msra.mxu0 0.0
    %1633 = vmatprep.subr.mxu0 0.0
    %1634 = vmatpush1.msra.mxu0 0.0
    %1635 = vmatprep.subr.mxu0 0.0
    %1636 = vmatpush1.msra.mxu0 0.0
    %1637 = vmatprep.subr.mxu0 0.0
    %1638 = vmatpush1.msra.mxu0 0.0
    %1639 = vmatprep.subr.mxu0 0.0
    %1640 = vmatpush1.msra.mxu0 0.0
    %1641 = vmatprep.subr.mxu0 0.0
    %1642 = vmatpush1.msra.mxu0 0.0
    %1643 = vmatprep.subr.mxu0 0.0
    %1644 = vmatpush1.msra.mxu0 0.0
    %1645 = vmatprep.subr.mxu0 0.0
    %1646 = vmatpush1.msra.mxu0 0.0
    %1647 = vmatprep.subr.mxu0 0.0
    %1648 = vmatpush1.msra.mxu0 0.0
    %1649 = vmatprep.subr.mxu0 0.0
    %1650 = vmatpush1.msra.mxu0 0.0
    %1651 = vmatprep.subr.mxu0 0.0
    %1652 = vmatpush1.msra.mxu0 0.0
    %1653 = vmatprep.subr.mxu0 0.0
    %1654 = vmatpush1.msra.mxu0 0.0
    %1655 = vmatprep.subr.mxu0 0.0
    %1656 = vmatpush1.msra.mxu0 0.0
    %1657 = vmatprep.subr.mxu0 0.0
    %1658 = vmatpush1.msra.mxu0 0.0
    %1659 = vmatprep.subr.mxu0 0.0
    %1660 = vmatpush1.msra.mxu0 0.0
    %1661 = vmatprep.subr.mxu0 0.0
    %1662 = vmatpush1.msra.mxu0 0.0
    %1663 = vmatprep.subr.mxu0 0.0
    %1664 = vmatpush1.msra.mxu0 0.0
    %1665 = vmatprep.subr.mxu0 0.0
    %1666 = vmatpush1.msra.mxu0 0.0
    %1667 = vmatprep.subr.mxu0 0.0
    %1668 = vmatpush1.msra.mxu0 0.0
    %1669 = vmatprep.subr.mxu0 0.0
    %1670 = vmatpush1.msra.mxu0 0.0
    %1671 = vmatprep.subr.mxu0 0.0
    %1672 = vmatpush1.msra.mxu0 0.0
    %1673 = vmatprep.mubr.f32.mxu0 0.0
    %1674 = vmatmul.mubr.f32.gmra.mrb[0].mxu0 %v1607
    %v1675 = vpop.f32.mrb[0].mxu0
    %v1676 = vadd.f32 0.0, %v1675
    %v1677 = vpop.f32.mrb[0].mxu0
    %1678 = vdwg.mxu0
    %v1679 = vadd.f32 %v1676, %v163
    %v1680 = vmul.f32 %v1679, 0.5
    %v1681 = vtanh.pop %v1680
    %v1682 = vmul.f32 %v1681, 0.5
    %v1683 = vadd.f32 %v1682, 0.5
    %1685 = vrot.lane.b32.xlu0 %v1679, 32
    %v1686 = vpop.permute.xlu0 %1685
    %v1688 = vmul.f32 %v1683, %v1686
    %1690 = vrot.lane.b32.xlu0 %v1688, 64
    %v1691 = vpop.permute.xlu0 %1690
    %v1693 = vadd.f32 %v1679, %v1691
    %v1694 = vtanh.pop %v1693
    %v1695 = vsub.f32 %v1490, %v1694
    %1697 = vrot.lane.b32.xlu0 %v1695, 96
    %v1698 = vpop.permute.xlu0 %1697
    %v1700 = vmul.f32 %v1683, %v1698
    %1702 = vrot.lane.b32.xlu0 %v1700, 32
    %v1703 = vpop.permute.xlu0 %1702
    %v1705 = vadd.f32 %v1694, %v1703
    %1707 = vrot.lane.b32.xlu0 %v1705, 64
    %v1708 = vpop.permute.xlu0 %1707
    %1711 = vrot.lane.b32.xlu0 %v1599, 96
    %v1712 = vpop.permute.xlu0 %1711
    %v1714 = vsel %vm84, %v1708, %v1712
    %v1716 = vsel %vm86, %v1714, 0
    %1718 = vmatprep.subr.mxu0 0.0
    %1719 = vmatpush1.msra.mxu0 %v192
    %1720 = vmatprep.subr.mxu0 0.0
    %1721 = vmatpush1.msra.mxu0 %v193
    %1722 = vmatprep.subr.mxu0 0.0
    %1723 = vmatpush1.msra.mxu0 %v194
    %1724 = vmatprep.subr.mxu0 0.0
    %1725 = vmatpush1.msra.mxu0 %v195
    %1726 = vmatprep.subr.mxu0 0.0
    %1727 = vmatpush1.msra.mxu0 %v196
    %1728 = vmatprep.subr.mxu0 0.0
    %1729 = vmatpush1.msra.mxu0 %v197
    %1730 = vmatprep.subr.mxu0 0.0
    %1731 = vmatpush1.msra.mxu0 %v198
    %1732 = vmatprep.subr.mxu0 0.0
    %1733 = vmatpush1.msra.mxu0 %v199
    %1734 = vmatprep.subr.mxu0 0.0
    %1735 = vmatpush1.msra.mxu0 0.0
    %1736 = vmatprep.subr.mxu0 0.0
    %1737 = vmatpush1.msra.mxu0 0.0
    %1738 = vmatprep.subr.mxu0 0.0
    %1739 = vmatpush1.msra.mxu0 0.0
    %1740 = vmatprep.subr.mxu0 0.0
    %1741 = vmatpush1.msra.mxu0 0.0
    %1742 = vmatprep.subr.mxu0 0.0
    %1743 = vmatpush1.msra.mxu0 0.0
    %1744 = vmatprep.subr.mxu0 0.0
    %1745 = vmatpush1.msra.mxu0 0.0
    %1746 = vmatprep.subr.mxu0 0.0
    %1747 = vmatpush1.msra.mxu0 0.0
    %1748 = vmatprep.subr.mxu0 0.0
    %1749 = vmatpush1.msra.mxu0 0.0
    %1750 = vmatprep.subr.mxu0 0.0
    %1751 = vmatpush1.msra.mxu0 0.0
    %1752 = vmatprep.subr.mxu0 0.0
    %1753 = vmatpush1.msra.mxu0 0.0
    %1754 = vmatprep.subr.mxu0 0.0
    %1755 = vmatpush1.msra.mxu0 0.0
    %1756 = vmatprep.subr.mxu0 0.0
    %1757 = vmatpush1.msra.mxu0 0.0
    %1758 = vmatprep.subr.mxu0 0.0
    %1759 = vmatpush1.msra.mxu0 0.0
    %1760 = vmatprep.subr.mxu0 0.0
    %1761 = vmatpush1.msra.mxu0 0.0
    %1762 = vmatprep.subr.mxu0 0.0
    %1763 = vmatpush1.msra.mxu0 0.0
    %1764 = vmatprep.subr.mxu0 0.0
    %1765 = vmatpush1.msra.mxu0 0.0
    %1766 = vmatprep.subr.mxu0 0.0
    %1767 = vmatpush1.msra.mxu0 0.0
    %1768 = vmatprep.subr.mxu0 0.0
    %1769 = vmatpush1.msra.mxu0 0.0
    %1770 = vmatprep.subr.mxu0 0.0
    %1771 = vmatpush1.msra.mxu0 0.0
    %1772 = vmatprep.subr.mxu0 0.0
    %1773 = vmatpush1.msra.mxu0 0.0
    %1774 = vmatprep.subr.mxu0 0.0
    %1775 = vmatpush1.msra.mxu0 0.0
    %1776 = vmatprep.subr.mxu0 0.0
    %1777 = vmatpush1.msra.mxu0 0.0
    %1778 = vmatprep.subr.mxu0 0.0
    %1779 = vmatpush1.msra.mxu0 0.0
    %1780 = vmatprep.subr.mxu0 0.0
    %1781 = vmatpush1.msra.mxu0 0.0
    %1782 = vmatprep.mubr.f32.mxu0 0.0
    %1783 = vmatmul.mubr.f32.gmra.mrb[0].mxu0 %v1716
    %v1784 = vpop.f32.mrb[0].mxu0
    %v1785 = vadd.f32 0.0, %v1784
    %v1786 = vpop.f32.mrb[0].mxu0
    %1787 = vdwg.mxu0
    %v1788 = vadd.f32 %v1785, %v282
    %v1789 = vmul.f32 %v1788, 0.5
    %v1790 = vtanh.pop %v1789
    %v1791 = vmul.f32 %v1790, 0.5
    %v1792 = vadd.f32 %v1791, 0.5
    %1794 = vrot.lane.b32.xlu0 %v1788, 32
    %v1795 = vpop.permute.xlu0 %1794
    %v1797 = vmul.f32 %v1792, %v1795
    %1799 = vrot.lane.b32.xlu0 %v1797, 64
    %v1800 = vpop.permute.xlu0 %1799
    %v1802 = vadd.f32 %v1788, %v1800
    %v1803 = vtanh.pop %v1802
    %v1804 = vsub.f32 %v1599, %v1803
    %1806 = vrot.lane.b32.xlu0 %v1804, 96
    %v1807 = vpop.permute.xlu0 %1806
    %v1809 = vmul.f32 %v1792, %v1807
    %1811 = vrot.lane.b32.xlu0 %v1809, 32
    %v1812 = vpop.permute.xlu0 %1811
    %v1814 = vadd.f32 %v1803, %v1812
    %s1815 = scalar_lea.vmem [#allocation2], 16
    %v1816 = vld [vmem:[%s1815] sm:$0x3]
    %s1817 = scalar_lea.vmem [#allocation5], 128
    %v1818 = vld [vmem:[%s1817] sm:$0xff]
    %v1819 = vld [vmem:[%s1817 + $0x8] sm:$0xff]
    %v1820 = vld [vmem:[%s1817 + $0x10] sm:$0xff]
    %v1821 = vld [vmem:[%s1817 + $0x18] sm:$0xff]
    %v1822 = vld [vmem:[%s1817 + $0x20] sm:$0xff]
    %v1823 = vld [vmem:[%s1817 + $0x28] sm:$0xff]
    %v1824 = vld [vmem:[%s1817 + $0x30] sm:$0xff]
    %v1825 = vld [vmem:[%s1817 + $0x38] sm:$0xff]
    %v1826 = vld [vmem:[#allocation7 + $0x2] sm:$0x1]
    %1827 = vrot.lane.b32.xlu0 %v1705, 96
    %v1828 = vpop.permute.xlu0 %1827
    %v1830 = vsel %vm84, %v1816, %v1828
    %v1832 = vsel %vm86, %v1830, 0
    %1834 = vmatprep.subr.mxu0 0.0
    %1835 = vmatpush1.msra.mxu0 %v1818
    %1836 = vmatprep.subr.mxu0 0.0
    %1837 = vmatpush1.msra.mxu0 %v1819
    %1838 = vmatprep.subr.mxu0 0.0
    %1839 = vmatpush1.msra.mxu0 %v1820
    %1840 = vmatprep.subr.mxu0 0.0
    %1841 = vmatpush1.msra.mxu0 %v1821
    %1842 = vmatprep.subr.mxu0 0.0
    %1843 = vmatpush1.msra.mxu0 %v1822
    %1844 = vmatprep.subr.mxu0 0.0
    %1845 = vmatpush1.msra.mxu0 %v1823
    %1846 = vmatprep.subr.mxu0 0.0
    %1847 = vmatpush1.msra.mxu0 %v1824
    %1848 = vmatprep.subr.mxu0 0.0
    %1849 = vmatpush1.msra.mxu0 %v1825
    %1850 = vmatprep.subr.mxu0 0.0
    %1851 = vmatpush1.msra.mxu0 0.0
    %1852 = vmatprep.subr.mxu0 0.0
    %1853 = vmatpush1.msra.mxu0 0.0
    %1854 = vmatprep.subr.mxu0 0.0
    %1855 = vmatpush1.msra.mxu0 0.0
    %1856 = vmatprep.subr.mxu0 0.0
    %1857 = vmatpush1.msra.mxu0 0.0
    %1858 = vmatprep.subr.mxu0 0.0
    %1859 = vmatpush1.msra.mxu0 0.0
    %1860 = vmatprep.subr.mxu0 0.0
    %1861 = vmatpush1.msra.mxu0 0.0
    %1862 = vmatprep.subr.mxu0 0.0
    %1863 = vmatpush1.msra.mxu0 0.0
    %1864 = vmatprep.subr.mxu0 0.0
    %1865 = vmatpush1.msra.mxu0 0.0
    %1866 = vmatprep.subr.mxu0 0.0
    %1867 = vmatpush1.msra.mxu0 0.0
    %1868 = vmatprep.subr.mxu0 0.0
    %1869 = vmatpush1.msra.mxu0 0.0
    %1870 = vmatprep.subr.mxu0 0.0
    %1871 = vmatpush1.msra.mxu0 0.0
    %1872 = vmatprep.subr.mxu0 0.0
    %1873 = vmatpush1.msra.mxu0 0.0
    %1874 = vmatprep.subr.mxu0 0.0
    %1875 = vmatpush1.msra.mxu0 0.0
    %1876 = vmatprep.subr.mxu0 0.0
    %1877 = vmatpush1.msra.mxu0 0.0
    %1878 = vmatprep.subr.mxu0 0.0
    %1879 = vmatpush1.msra.mxu0 0.0
    %1880 = vmatprep.subr.mxu0 0.0
    %1881 = vmatpush1.msra.mxu0 0.0
    %1882 = vmatprep.subr.mxu0 0.0
    %1883 = vmatpush1.msra.mxu0 0.0
    %1884 = vmatprep.subr.mxu0 0.0
    %1885 = vmatpush1.msra.mxu0 0.0
    %1886 = vmatprep.subr.mxu0 0.0
    %1887 = vmatpush1.msra.mxu0 0.0
    %1888 = vmatprep.subr.mxu0 0.0
    %1889 = vmatpush1.msra.mxu0 0.0
    %1890 = vmatprep.subr.mxu0 0.0
    %1891 = vmatpush1.msra.mxu0 0.0
    %1892 = vmatprep.subr.mxu0 0.0
    %1893 = vmatpush1.msra.mxu0 0.0
    %1894 = vmatprep.subr.mxu0 0.0
    %1895 = vmatpush1.msra.mxu0 0.0
    %1896 = vmatprep.subr.mxu0 0.0
    %1897 = vmatpush1.msra.mxu0 0.0
    %1898 = vmatprep.mubr.f32.mxu0 0.0
    %1899 = vmatmul.mubr.f32.gmra.mrb[0].mxu0 %v1832
    %v1900 = vpop.f32.mrb[0].mxu0
    %v1901 = vadd.f32 0.0, %v1900
    %v1902 = vpop.f32.mrb[0].mxu0
    %1903 = vdwg.mxu0
    %v1904 = vlaneseq
    %v1905 = vshrl.u32 %v1904, 7
    %v1906 = vsub.s32 0, %v1905
    %v1907 = vrot.slane %v1826, %v1906
    %v1908 = vadd.f32 %v1901, %v1907
    %v1909 = vmul.f32 %v1908, 0.5
    %v1910 = vtanh.pop %v1909
    %v1911 = vmul.f32 %v1910, 0.5
    %v1912 = vadd.f32 %v1911, 0.5
    %1914 = vrot.lane.b32.xlu0 %v1908, 32
    %v1915 = vpop.permute.xlu0 %1914
    %v1917 = vmul.f32 %v1912, %v1915
    %1919 = vrot.lane.b32.xlu0 %v1917, 64
    %v1920 = vpop.permute.xlu0 %1919
    %v1922 = vadd.f32 %v1908, %v1920
    %v1923 = vtanh.pop %v1922
    %v1924 = vsub.f32 %v1705, %v1923
    %1926 = vrot.lane.b32.xlu0 %v1924, 96
    %v1927 = vpop.permute.xlu0 %1926
    %v1929 = vmul.f32 %v1912, %v1927
    %1931 = vrot.lane.b32.xlu0 %v1929, 32
    %v1932 = vpop.permute.xlu0 %1931
    %v1934 = vadd.f32 %v1923, %v1932
    %s1935 = scalar_lea.vmem [#allocation5], 192
    %v1936 = vld [vmem:[%s1935] sm:$0xff]
    %v1937 = vld [vmem:[%s1935 + $0x8] sm:$0xff]
    %v1938 = vld [vmem:[%s1935 + $0x10] sm:$0xff]
    %v1939 = vld [vmem:[%s1935 + $0x18] sm:$0xff]
    %v1940 = vld [vmem:[%s1935 + $0x20] sm:$0xff]
    %v1941 = vld [vmem:[%s1935 + $0x28] sm:$0xff]
    %v1942 = vld [vmem:[%s1935 + $0x30] sm:$0xff]
    %v1943 = vld [vmem:[%s1935 + $0x38] sm:$0xff]
    %v1944 = vld [vmem:[#allocation7 + $0x3] sm:$0x1]
    %1946 = vrot.lane.b32.xlu0 %v1934, 64
    %v1947 = vpop.permute.xlu0 %1946
    %1950 = vrot.lane.b32.xlu0 %v1814, 96
    %v1951 = vpop.permute.xlu0 %1950
    %v1953 = vsel %vm84, %v1947, %v1951
    %v1955 = vsel %vm86, %v1953, 0
    %1957 = vmatprep.subr.mxu0 0.0
    %1958 = vmatpush1.msra.mxu0 %v1936
    %1959 = vmatprep.subr.mxu0 0.0
    %1960 = vmatpush1.msra.mxu0 %v1937
    %1961 = vmatprep.subr.mxu0 0.0
    %1962 = vmatpush1.msra.mxu0 %v1938
    %1963 = vmatprep.subr.mxu0 0.0
    %1964 = vmatpush1.msra.mxu0 %v1939
    %1965 = vmatprep.subr.mxu0 0.0
    %1966 = vmatpush1.msra.mxu0 %v1940
    %1967 = vmatprep.subr.mxu0 0.0
    %1968 = vmatpush1.msra.mxu0 %v1941
    %1969 = vmatprep.subr.mxu0 0.0
    %1970 = vmatpush1.msra.mxu0 %v1942
    %1971 = vmatprep.subr.mxu0 0.0
    %1972 = vmatpush1.msra.mxu0 %v1943
    %1973 = vmatprep.subr.mxu0 0.0
    %1974 = vmatpush1.msra.mxu0 0.0
    %1975 = vmatprep.subr.mxu0 0.0
    %1976 = vmatpush1.msra.mxu0 0.0
    %1977 = vmatprep.subr.mxu0 0.0
    %1978 = vmatpush1.msra.mxu0 0.0
    %1979 = vmatprep.subr.mxu0 0.0
    %1980 = vmatpush1.msra.mxu0 0.0
    %1981 = vmatprep.subr.mxu0 0.0
    %1982 = vmatpush1.msra.mxu0 0.0
    %1983 = vmatprep.subr.mxu0 0.0
    %1984 = vmatpush1.msra.mxu0 0.0
    %1985 = vmatprep.subr.mxu0 0.0
    %1986 = vmatpush1.msra.mxu0 0.0
    %1987 = vmatprep.subr.mxu0 0.0
    %1988 = vmatpush1.msra.mxu0 0.0
    %1989 = vmatprep.subr.mxu0 0.0
    %1990 = vmatpush1.msra.mxu0 0.0
    %1991 = vmatprep.subr.mxu0 0.0
    %1992 = vmatpush1.msra.mxu0 0.0
    %1993 = vmatprep.subr.mxu0 0.0
    %1994 = vmatpush1.msra.mxu0 0.0
    %1995 = vmatprep.subr.mxu0 0.0
    %1996 = vmatpush1.msra.mxu0 0.0
    %1997 = vmatprep.subr.mxu0 0.0
    %1998 = vmatpush1.msra.mxu0 0.0
    %1999 = vmatprep.subr.mxu0 0.0
    %2000 = vmatpush1.msra.mxu0 0.0
    %2001 = vmatprep.subr.mxu0 0.0
    %2002 = vmatpush1.msra.mxu0 0.0
    %2003 = vmatprep.subr.mxu0 0.0
    %2004 = vmatpush1.msra.mxu0 0.0
    %2005 = vmatprep.subr.mxu0 0.0
    %2006 = vmatpush1.msra.mxu0 0.0
    %2007 = vmatprep.subr.mxu0 0.0
    %2008 = vmatpush1.msra.mxu0 0.0
    %2009 = vmatprep.subr.mxu0 0.0
    %2010 = vmatpush1.msra.mxu0 0.0
    %2011 = vmatprep.subr.mxu0 0.0
    %2012 = vmatpush1.msra.mxu0 0.0
    %2013 = vmatprep.subr.mxu0 0.0
    %2014 = vmatpush1.msra.mxu0 0.0
    %2015 = vmatprep.subr.mxu0 0.0
    %2016 = vmatpush1.msra.mxu0 0.0
    %2017 = vmatprep.subr.mxu0 0.0
    %2018 = vmatpush1.msra.mxu0 0.0
    %2019 = vmatprep.subr.mxu0 0.0
    %2020 = vmatpush1.msra.mxu0 0.0
    %2021 = vmatprep.mubr.f32.mxu0 0.0
    %2022 = vmatmul.mubr.f32.gmra.mrb[0].mxu0 %v1955
    %v2023 = vpop.f32.mrb[0].mxu0
    %v2024 = vadd.f32 0.0, %v2023
    %v2025 = vpop.f32.mrb[0].mxu0
    %2026 = vdwg.mxu0
    %v2027 = vlaneseq
    %v2028 = vshrl.u32 %v2027, 7
    %v2029 = vsub.s32 0, %v2028
    %v2030 = vrot.slane %v1944, %v2029
    %v2031 = vadd.f32 %v2024, %v2030
    %v2032 = vmul.f32 %v2031, 0.5
    %v2033 = vtanh.pop %v2032
    %v2034 = vmul.f32 %v2033, 0.5
    %v2035 = vadd.f32 %v2034, 0.5
    %2037 = vrot.lane.b32.xlu0 %v2031, 32
    %v2038 = vpop.permute.xlu0 %2037
    %v2040 = vmul.f32 %v2035, %v2038
    %2042 = vrot.lane.b32.xlu0 %v2040, 64
    %v2043 = vpop.permute.xlu0 %2042
    %v2045 = vadd.f32 %v2031, %v2043
    %v2046 = vtanh.pop %v2045
    %v2047 = vsub.f32 %v1814, %v2046
    %2049 = vrot.lane.b32.xlu0 %v2047, 96
    %v2050 = vpop.permute.xlu0 %2049
    %v2052 = vmul.f32 %v2035, %v2050
    %2054 = vrot.lane.b32.xlu0 %v2052, 32
    %v2055 = vpop.permute.xlu0 %2054
    %v2057 = vadd.f32 %v2046, %v2055
    %v2058 = vld [vmem:[#allocation8] sm:$0xff]
    %v2059 = vld [vmem:[#allocation8 + $0x8] sm:$0xff]
    %v2060 = vld [vmem:[#allocation8 + $0x10] sm:$0xff]
    %v2061 = vld [vmem:[#allocation8 + $0x18] sm:$0xff]
    %v2062 = vld [vmem:[%s4] sm:$0x1]
    %v2064 = vlaneseq
    %v2065 = vshrl.u32 %v2064, 7
    %v2066 = vsub.s32 0, %v2065
    %v2067 = vrot.slane %v2062, %v2066
    %2070 = vrot.lane.b32.xlu0 %v2057, 64
    %v2071 = vpop.permute.xlu0 %2070
    %v2072 = vsel %vm84, %v2071, 0
    %2074 = vmatprep.subr.mxu0 0.0
    %2075 = vmatpush1.msra.mxu0 %v2058
    %2076 = vmatprep.subr.mxu0 0.0
    %2077 = vmatpush1.msra.mxu0 %v2059
    %2078 = vmatprep.subr.mxu0 0.0
    %2079 = vmatpush1.msra.mxu0 %v2060
    %2080 = vmatprep.subr.mxu0 0.0
    %2081 = vmatpush1.msra.mxu0 %v2061
    %2082 = vmatprep.subr.mxu0 0.0
    %2083 = vmatpush1.msra.mxu0 0.0
    %2084 = vmatprep.subr.mxu0 0.0
    %2085 = vmatpush1.msra.mxu0 0.0
    %2086 = vmatprep.subr.mxu0 0.0
    %2087 = vmatpush1.msra.mxu0 0.0
    %2088 = vmatprep.subr.mxu0 0.0
    %2089 = vmatpush1.msra.mxu0 0.0
    %2090 = vmatprep.subr.mxu0 0.0
    %2091 = vmatpush1.msra.mxu0 0.0
    %2092 = vmatprep.subr.mxu0 0.0
    %2093 = vmatpush1.msra.mxu0 0.0
    %2094 = vmatprep.subr.mxu0 0.0
    %2095 = vmatpush1.msra.mxu0 0.0
    %2096 = vmatprep.subr.mxu0 0.0
    %2097 = vmatpush1.msra.mxu0 0.0
    %2098 = vmatprep.subr.mxu0 0.0
    %2099 = vmatpush1.msra.mxu0 0.0
    %2100 = vmatprep.subr.mxu0 0.0
    %2101 = vmatpush1.msra.mxu0 0.0
    %2102 = vmatprep.subr.mxu0 0.0
    %2103 = vmatpush1.msra.mxu0 0.0
    %2104 = vmatprep.subr.mxu0 0.0
    %2105 = vmatpush1.msra.mxu0 0.0
    %2106 = vmatprep.subr.mxu0 0.0
    %2107 = vmatpush1.msra.mxu0 0.0
    %2108 = vmatprep.subr.mxu0 0.0
    %2109 = vmatpush1.msra.mxu0 0.0
    %2110 = vmatprep.subr.mxu0 0.0
    %2111 = vmatpush1.msra.mxu0 0.0
    %2112 = vmatprep.subr.mxu0 0.0
    %2113 = vmatpush1.msra.mxu0 0.0
    %2114 = vmatprep.subr.mxu0 0.0
    %2115 = vmatpush1.msra.mxu0 0.0
    %2116 = vmatprep.subr.mxu0 0.0
    %2117 = vmatpush1.msra.mxu0 0.0
    %2118 = vmatprep.subr.mxu0 0.0
    %2119 = vmatpush1.msra.mxu0 0.0
    %2120 = vmatprep.subr.mxu0 0.0
    %2121 = vmatpush1.msra.mxu0 0.0
    %2122 = vmatprep.subr.mxu0 0.0
    %2123 = vmatpush1.msra.mxu0 0.0
    %2124 = vmatprep.subr.mxu0 0.0
    %2125 = vmatpush1.msra.mxu0 0.0
    %2126 = vmatprep.subr.mxu0 0.0
    %2127 = vmatpush1.msra.mxu0 0.0
    %2128 = vmatprep.subr.mxu0 0.0
    %2129 = vmatpush1.msra.mxu0 0.0
    %2130 = vmatprep.subr.mxu0 0.0
    %2131 = vmatpush1.msra.mxu0 0.0
    %2132 = vmatprep.subr.mxu0 0.0
    %2133 = vmatpush1.msra.mxu0 0.0
    %2134 = vmatprep.subr.mxu0 0.0
    %2135 = vmatpush1.msra.mxu0 0.0
    %2136 = vmatprep.subr.mxu0 0.0
    %2137 = vmatpush1.msra.mxu0 0.0
    %2138 = vmatprep.mubr.f32.mxu0 0.0
    %2139 = vmatmul.mubr.f32.gmra.mrb[0].mxu0 %v2072
    %v2140 = vpop.f32.mrb[0].mxu0
    %v2141 = vadd.f32 %v2067, %v2140
    %v2142 = vpop.f32.mrb[0].mxu0
    %2143 = vdwg.mxu0
    %vm2144 = vcmask 254976
    %2145 = vst.msk [vmem:[#allocation10] sm:$0x3] %vm2144, %v2141
    %s2146 = scalar_lea.vmem [#allocation5], 256
    %v2147 = vld [vmem:[%s2146] sm:$0xff]
    %v2148 = vld [vmem:[%s2146 + $0x8] sm:$0xff]
    %v2149 = vld [vmem:[%s2146 + $0x10] sm:$0xff]
    %v2150 = vld [vmem:[%s2146 + $0x18] sm:$0xff]
    %v2151 = vld [vmem:[%s2146 + $0x20] sm:$0xff]
    %v2152 = vld [vmem:[%s2146 + $0x28] sm:$0xff]
    %v2153 = vld [vmem:[%s2146 + $0x30] sm:$0xff]
    %v2154 = vld [vmem:[%s2146 + $0x38] sm:$0xff]
    %v2155 = vld [vmem:[#allocation7 + $0x4] sm:$0x1]
    %2157 = vrot.lane.b32.xlu0 %v1934, 96
    %v2158 = vpop.permute.xlu0 %2157
    %v2160 = vsel %vm84, %v2071, %v2158
    %v2162 = vsel %vm86, %v2160, 0
    %2164 = vmatprep.subr.mxu0 0.0
    %2165 = vmatpush1.msra.mxu0 %v2147
    %2166 = vmatprep.subr.mxu0 0.0
    %2167 = vmatpush1.msra.mxu0 %v2148
    %2168 = vmatprep.subr.mxu0 0.0
    %2169 = vmatpush1.msra.mxu0 %v2149
    %2170 = vmatprep.subr.mxu0 0.0
    %2171 = vmatpush1.msra.mxu0 %v2150
    %2172 = vmatprep.subr.mxu0 0.0
    %2173 = vmatpush1.msra.mxu0 %v2151
    %2174 = vmatprep.subr.mxu0 0.0
    %2175 = vmatpush1.msra.mxu0 %v2152
    %2176 = vmatprep.subr.mxu0 0.0
    %2177 = vmatpush1.msra.mxu0 %v2153
    %2178 = vmatprep.subr.mxu0 0.0
    %2179 = vmatpush1.msra.mxu0 %v2154
    %2180 = vmatprep.subr.mxu0 0.0
    %2181 = vmatpush1.msra.mxu0 0.0
    %2182 = vmatprep.subr.mxu0 0.0
    %2183 = vmatpush1.msra.mxu0 0.0
    %2184 = vmatprep.subr.mxu0 0.0
    %2185 = vmatpush1.msra.mxu0 0.0
    %2186 = vmatprep.subr.mxu0 0.0
    %2187 = vmatpush1.msra.mxu0 0.0
    %2188 = vmatprep.subr.mxu0 0.0
    %2189 = vmatpush1.msra.mxu0 0.0
    %2190 = vmatprep.subr.mxu0 0.0
    %2191 = vmatpush1.msra.mxu0 0.0
    %2192 = vmatprep.subr.mxu0 0.0
    %2193 = vmatpush1.msra.mxu0 0.0
    %2194 = vmatprep.subr.mxu0 0.0
    %2195 = vmatpush1.msra.mxu0 0.0
    %2196 = vmatprep.subr.mxu0 0.0
    %2197 = vmatpush1.msra.mxu0 0.0
    %2198 = vmatprep.subr.mxu0 0.0
    %2199 = vmatpush1.msra.mxu0 0.0
    %2200 = vmatprep.subr.mxu0 0.0
    %2201 = vmatpush1.msra.mxu0 0.0
    %2202 = vmatprep.subr.mxu0 0.0
    %2203 = vmatpush1.msra.mxu0 0.0
    %2204 = vmatprep.subr.mxu0 0.0
    %2205 = vmatpush1.msra.mxu0 0.0
    %2206 = vmatprep.subr.mxu0 0.0
    %2207 = vmatpush1.msra.mxu0 0.0
    %2208 = vmatprep.subr.mxu0 0.0
    %2209 = vmatpush1.msra.mxu0 0.0
    %2210 = vmatprep.subr.mxu0 0.0
    %2211 = vmatpush1.msra.mxu0 0.0
    %2212 = vmatprep.subr.mxu0 0.0
    %2213 = vmatpush1.msra.mxu0 0.0
    %2214 = vmatprep.subr.mxu0 0.0
    %2215 = vmatpush1.msra.mxu0 0.0
    %2216 = vmatprep.subr.mxu0 0.0
    %2217 = vmatpush1.msra.mxu0 0.0
    %2218 = vmatprep.subr.mxu0 0.0
    %2219 = vmatpush1.msra.mxu0 0.0
    %2220 = vmatprep.subr.mxu0 0.0
    %2221 = vmatpush1.msra.mxu0 0.0
    %2222 = vmatprep.subr.mxu0 0.0
    %2223 = vmatpush1.msra.mxu0 0.0
    %2224 = vmatprep.subr.mxu0 0.0
    %2225 = vmatpush1.msra.mxu0 0.0
    %2226 = vmatprep.subr.mxu0 0.0
    %2227 = vmatpush1.msra.mxu0 0.0
    %2228 = vmatprep.mubr.f32.mxu0 0.0
    %2229 = vmatmul.mubr.f32.gmra.mrb[0].mxu0 %v2162
    %v2230 = vpop.f32.mrb[0].mxu0
    %v2231 = vadd.f32 0.0, %v2230
    %v2232 = vpop.f32.mrb[0].mxu0
    %2233 = vdwg.mxu0
    %v2234 = vlaneseq
    %v2235 = vshrl.u32 %v2234, 7
    %v2236 = vsub.s32 0, %v2235
    %v2237 = vrot.slane %v2155, %v2236
    %v2238 = vadd.f32 %v2231, %v2237
    %v2239 = vmul.f32 %v2238, 0.5
    %v2240 = vtanh.pop %v2239
    %v2241 = vmul.f32 %v2240, 0.5
    %v2242 = vadd.f32 %v2241, 0.5
    %2244 = vrot.lane.b32.xlu0 %v2238, 32
    %v2245 = vpop.permute.xlu0 %2244
    %v2247 = vmul.f32 %v2242, %v2245
    %2249 = vrot.lane.b32.xlu0 %v2247, 64
    %v2250 = vpop.permute.xlu0 %2249
    %v2252 = vadd.f32 %v2238, %v2250
    %v2253 = vtanh.pop %v2252
    %v2254 = vsub.f32 %v1934, %v2253
    %2256 = vrot.lane.b32.xlu0 %v2254, 96
    %v2257 = vpop.permute.xlu0 %2256
    %v2259 = vmul.f32 %v2242, %v2257
    %2261 = vrot.lane.b32.xlu0 %v2259, 32
    %v2262 = vpop.permute.xlu0 %2261
    %v2264 = vadd.f32 %v2253, %v2262
    %v2265 = vld [vmem:[%s1935] sm:$0xff]
    %v2266 = vld [vmem:[%s1935 + $0x8] sm:$0xff]
    %v2267 = vld [vmem:[%s1935 + $0x10] sm:$0xff]
    %v2268 = vld [vmem:[%s1935 + $0x18] sm:$0xff]
    %v2269 = vld [vmem:[%s1935 + $0x20] sm:$0xff]
    %v2270 = vld [vmem:[%s1935 + $0x28] sm:$0xff]
    %v2271 = vld [vmem:[%s1935 + $0x30] sm:$0xff]
    %v2272 = vld [vmem:[%s1935 + $0x38] sm:$0xff]
    %v2273 = vld [vmem:[#allocation7 + $0x3] sm:$0x1]
    %2275 = vrot.lane.b32.xlu0 %v2264, 64
    %v2276 = vpop.permute.xlu0 %2275
    %2278 = vrot.lane.b32.xlu0 %v2057, 96
    %v2279 = vpop.permute.xlu0 %2278
    %v2281 = vsel %vm84, %v2276, %v2279
    %v2283 = vsel %vm86, %v2281, 0
    %2285 = vmatprep.subr.mxu0 0.0
    %2286 = vmatpush1.msra.mxu0 %v2265
    %2287 = vmatprep.subr.mxu0 0.0
    %2288 = vmatpush1.msra.mxu0 %v2266
    %2289 = vmatprep.subr.mxu0 0.0
    %2290 = vmatpush1.msra.mxu0 %v2267
    %2291 = vmatprep.subr.mxu0 0.0
    %2292 = vmatpush1.msra.mxu0 %v2268
    %2293 = vmatprep.subr.mxu0 0.0
    %2294 = vmatpush1.msra.mxu0 %v2269
    %2295 = vmatprep.subr.mxu0 0.0
    %2296 = vmatpush1.msra.mxu0 %v2270
    %2297 = vmatprep.subr.mxu0 0.0
    %2298 = vmatpush1.msra.mxu0 %v2271
    %2299 = vmatprep.subr.mxu0 0.0
    %2300 = vmatpush1.msra.mxu0 %v2272
    %2301 = vmatprep.subr.mxu0 0.0
    %2302 = vmatpush1.msra.mxu0 0.0
    %2303 = vmatprep.subr.mxu0 0.0
    %2304 = vmatpush1.msra.mxu0 0.0
    %2305 = vmatprep.subr.mxu0 0.0
    %2306 = vmatpush1.msra.mxu0 0.0
    %2307 = vmatprep.subr.mxu0 0.0
    %2308 = vmatpush1.msra.mxu0 0.0
    %2309 = vmatprep.subr.mxu0 0.0
    %2310 = vmatpush1.msra.mxu0 0.0
    %2311 = vmatprep.subr.mxu0 0.0
    %2312 = vmatpush1.msra.mxu0 0.0
    %2313 = vmatprep.subr.mxu0 0.0
    %2314 = vmatpush1.msra.mxu0 0.0
    %2315 = vmatprep.subr.mxu0 0.0
    %2316 = vmatpush1.msra.mxu0 0.0
    %2317 = vmatprep.subr.mxu0 0.0
    %2318 = vmatpush1.msra.mxu0 0.0
    %2319 = vmatprep.subr.mxu0 0.0
    %2320 = vmatpush1.msra.mxu0 0.0
    %2321 = vmatprep.subr.mxu0 0.0
    %2322 = vmatpush1.msra.mxu0 0.0
    %2323 = vmatprep.subr.mxu0 0.0
    %2324 = vmatpush1.msra.mxu0 0.0
    %2325 = vmatprep.subr.mxu0 0.0
    %2326 = vmatpush1.msra.mxu0 0.0
    %2327 = vmatprep.subr.mxu0 0.0
    %2328 = vmatpush1.msra.mxu0 0.0
    %2329 = vmatprep.subr.mxu0 0.0
    %2330 = vmatpush1.msra.mxu0 0.0
    %2331 = vmatprep.subr.mxu0 0.0
    %2332 = vmatpush1.msra.mxu0 0.0
    %2333 = vmatprep.subr.mxu0 0.0
    %2334 = vmatpush1.msra.mxu0 0.0
    %2335 = vmatprep.subr.mxu0 0.0
    %2336 = vmatpush1.msra.mxu0 0.0
    %2337 = vmatprep.subr.mxu0 0.0
    %2338 = vmatpush1.msra.mxu0 0.0
    %2339 = vmatprep.subr.mxu0 0.0
    %2340 = vmatpush1.msra.mxu0 0.0
    %2341 = vmatprep.subr.mxu0 0.0
    %2342 = vmatpush1.msra.mxu0 0.0
    %2343 = vmatprep.subr.mxu0 0.0
    %2344 = vmatpush1.msra.mxu0 0.0
    %2345 = vmatprep.subr.mxu0 0.0
    %2346 = vmatpush1.msra.mxu0 0.0
    %2347 = vmatprep.subr.mxu0 0.0
    %2348 = vmatpush1.msra.mxu0 0.0
    %2349 = vmatprep.mubr.f32.mxu0 0.0
    %2350 = vmatmul.mubr.f32.gmra.mrb[0].mxu0 %v2283
    %v2351 = vpop.f32.mrb[0].mxu0
    %v2352 = vadd.f32 0.0, %v2351
    %v2353 = vpop.f32.mrb[0].mxu0
    %2354 = vdwg.mxu0
    %v2355 = vlaneseq
    %v2356 = vshrl.u32 %v2355, 7
    %v2357 = vsub.s32 0, %v2356
    %v2358 = vrot.slane %v2273, %v2357
    %v2359 = vadd.f32 %v2352, %v2358
    %v2360 = vmul.f32 %v2359, 0.5
    %v2361 = vtanh.pop %v2360
    %v2362 = vmul.f32 %v2361, 0.5
    %v2363 = vadd.f32 %v2362, 0.5
    %2365 = vrot.lane.b32.xlu0 %v2359, 32
    %v2366 = vpop.permute.xlu0 %2365
    %v2368 = vmul.f32 %v2363, %v2366
    %2370 = vrot.lane.b32.xlu0 %v2368, 64
    %v2371 = vpop.permute.xlu0 %2370
    %v2373 = vadd.f32 %v2359, %v2371
    %v2374 = vtanh.pop %v2373
    %v2375 = vsub.f32 %v2057, %v2374
    %2377 = vrot.lane.b32.xlu0 %v2375, 96
    %v2378 = vpop.permute.xlu0 %2377
    %v2380 = vmul.f32 %v2363, %v2378
    %2382 = vrot.lane.b32.xlu0 %v2380, 32
    %v2383 = vpop.permute.xlu0 %2382
    %v2385 = vadd.f32 %v2374, %v2383
    %v2386 = vld [vmem:[#allocation8] sm:$0xff]
    %v2387 = vld [vmem:[#allocation8 + $0x8] sm:$0xff]
    %v2388 = vld [vmem:[#allocation8 + $0x10] sm:$0xff]
    %v2389 = vld [vmem:[#allocation8 + $0x18] sm:$0xff]
    %v2390 = vld [vmem:[%s4] sm:$0x1]
    %v2392 = vlaneseq
    %v2393 = vshrl.u32 %v2392, 7
    %v2394 = vsub.s32 0, %v2393
    %v2395 = vrot.slane %v2390, %v2394
    %2398 = vrot.lane.b32.xlu0 %v2385, 64
    %v2399 = vpop.permute.xlu0 %2398
    %v2400 = vsel %vm84, %v2399, 0
    %2402 = vmatprep.subr.mxu0 0.0
    %2403 = vmatpush1.msra.mxu0 %v2386
    %2404 = vmatprep.subr.mxu0 0.0
    %2405 = vmatpush1.msra.mxu0 %v2387
    %2406 = vmatprep.subr.mxu0 0.0
    %2407 = vmatpush1.msra.mxu0 %v2388
    %2408 = vmatprep.subr.mxu0 0.0
    %2409 = vmatpush1.msra.mxu0 %v2389
    %2410 = vmatprep.subr.mxu0 0.0
    %2411 = vmatpush1.msra.mxu0 0.0
    %2412 = vmatprep.subr.mxu0 0.0
    %2413 = vmatpush1.msra.mxu0 0.0
    %2414 = vmatprep.subr.mxu0 0.0
    %2415 = vmatpush1.msra.mxu0 0.0
    %2416 = vmatprep.subr.mxu0 0.0
    %2417 = vmatpush1.msra.mxu0 0.0
    %2418 = vmatprep.subr.mxu0 0.0
    %2419 = vmatpush1.msra.mxu0 0.0
    %2420 = vmatprep.subr.mxu0 0.0
    %2421 = vmatpush1.msra.mxu0 0.0
    %2422 = vmatprep.subr.mxu0 0.0
    %2423 = vmatpush1.msra.mxu0 0.0
    %2424 = vmatprep.subr.mxu0 0.0
    %2425 = vmatpush1.msra.mxu0 0.0
    %2426 = vmatprep.subr.mxu0 0.0
    %2427 = vmatpush1.msra.mxu0 0.0
    %2428 = vmatprep.subr.mxu0 0.0
    %2429 = vmatpush1.msra.mxu0 0.0
    %2430 = vmatprep.subr.mxu0 0.0
    %2431 = vmatpush1.msra.mxu0 0.0
    %2432 = vmatprep.subr.mxu0 0.0
    %2433 = vmatpush1.msra.mxu0 0.0
    %2434 = vmatprep.subr.mxu0 0.0
    %2435 = vmatpush1.msra.mxu0 0.0
    %2436 = vmatprep.subr.mxu0 0.0
    %2437 = vmatpush1.msra.mxu0 0.0
    %2438 = vmatprep.subr.mxu0 0.0
    %2439 = vmatpush1.msra.mxu0 0.0
    %2440 = vmatprep.subr.mxu0 0.0
    %2441 = vmatpush1.msra.mxu0 0.0
    %2442 = vmatprep.subr.mxu0 0.0
    %2443 = vmatpush1.msra.mxu0 0.0
    %2444 = vmatprep.subr.mxu0 0.0
    %2445 = vmatpush1.msra.mxu0 0.0
    %2446 = vmatprep.subr.mxu0 0.0
    %2447 = vmatpush1.msra.mxu0 0.0
    %2448 = vmatprep.subr.mxu0 0.0
    %2449 = vmatpush1.msra.mxu0 0.0
    %2450 = vmatprep.subr.mxu0 0.0
    %2451 = vmatpush1.msra.mxu0 0.0
    %2452 = vmatprep.subr.mxu0 0.0
    %2453 = vmatpush1.msra.mxu0 0.0
    %2454 = vmatprep.subr.mxu0 0.0
    %2455 = vmatpush1.msra.mxu0 0.0
    %2456 = vmatprep.subr.mxu0 0.0
    %2457 = vmatpush1.msra.mxu0 0.0
    %2458 = vmatprep.subr.mxu0 0.0
    %2459 = vmatpush1.msra.mxu0 0.0
    %2460 = vmatprep.subr.mxu0 0.0
    %2461 = vmatpush1.msra.mxu0 0.0
    %2462 = vmatprep.subr.mxu0 0.0
    %2463 = vmatpush1.msra.mxu0 0.0
    %2464 = vmatprep.subr.mxu0 0.0
    %2465 = vmatpush1.msra.mxu0 0.0
    %2466 = vmatprep.mubr.f32.mxu0 0.0
    %2467 = vmatmul.mubr.f32.gmra.mrb[0].mxu0 %v2400
    %v2468 = vpop.f32.mrb[0].mxu0
    %v2469 = vadd.f32 %v2395, %v2468
    %v2470 = vpop.f32.mrb[0].mxu0
    %2471 = vdwg.mxu0
    %s2472 = scalar_lea.vmem [#allocation10], 2
    %2473 = vst.msk [vmem:[%s2472] sm:$0x3] %vm2144, %v2469
    %v2474 = vld [vmem:[%s2146] sm:$0xff]
    %v2475 = vld [vmem:[%s2146 + $0x8] sm:$0xff]
    %v2476 = vld [vmem:[%s2146 + $0x10] sm:$0xff]
    %v2477 = vld [vmem:[%s2146 + $0x18] sm:$0xff]
    %v2478 = vld [vmem:[%s2146 + $0x20] sm:$0xff]
    %v2479 = vld [vmem:[%s2146 + $0x28] sm:$0xff]
    %v2480 = vld [vmem:[%s2146 + $0x30] sm:$0xff]
    %v2481 = vld [vmem:[%s2146 + $0x38] sm:$0xff]
    %v2482 = vld [vmem:[#allocation7 + $0x4] sm:$0x1]
    %2484 = vrot.lane.b32.xlu0 %v2264, 96
    %v2485 = vpop.permute.xlu0 %2484
    %v2487 = vsel %vm84, %v2399, %v2485
    %v2489 = vsel %vm86, %v2487, 0
    %2491 = vmatprep.subr.mxu0 0.0
    %2492 = vmatpush1.msra.mxu0 %v2474
    %2493 = vmatprep.subr.mxu0 0.0
    %2494 = vmatpush1.msra.mxu0 %v2475
    %2495 = vmatprep.subr.mxu0 0.0
    %2496 = vmatpush1.msra.mxu0 %v2476
    %2497 = vmatprep.subr.mxu0 0.0
    %2498 = vmatpush1.msra.mxu0 %v2477
    %2499 = vmatprep.subr.mxu0 0.0
    %2500 = vmatpush1.msra.mxu0 %v2478
    %2501 = vmatprep.subr.mxu0 0.0
    %2502 = vmatpush1.msra.mxu0 %v2479
    %2503 = vmatprep.subr.mxu0 0.0
    %2504 = vmatpush1.msra.mxu0 %v2480
    %2505 = vmatprep.subr.mxu0 0.0
    %2506 = vmatpush1.msra.mxu0 %v2481
    %2507 = vmatprep.subr.mxu0 0.0
    %2508 = vmatpush1.msra.mxu0 0.0
    %2509 = vmatprep.subr.mxu0 0.0
    %2510 = vmatpush1.msra.mxu0 0.0
    %2511 = vmatprep.subr.mxu0 0.0
    %2512 = vmatpush1.msra.mxu0 0.0
    %2513 = vmatprep.subr.mxu0 0.0
    %2514 = vmatpush1.msra.mxu0 0.0
    %2515 = vmatprep.subr.mxu0 0.0
    %2516 = vmatpush1.msra.mxu0 0.0
    %2517 = vmatprep.subr.mxu0 0.0
    %2518 = vmatpush1.msra.mxu0 0.0
    %2519 = vmatprep.subr.mxu0 0.0
    %2520 = vmatpush1.msra.mxu0 0.0
    %2521 = vmatprep.subr.mxu0 0.0
    %2522 = vmatpush1.msra.mxu0 0.0
    %2523 = vmatprep.subr.mxu0 0.0
    %2524 = vmatpush1.msra.mxu0 0.0
    %2525 = vmatprep.subr.mxu0 0.0
    %2526 = vmatpush1.msra.mxu0 0.0
    %2527 = vmatprep.subr.mxu0 0.0
    %2528 = vmatpush1.msra.mxu0 0.0
    %2529 = vmatprep.subr.mxu0 0.0
    %2530 = vmatpush1.msra.mxu0 0.0
    %2531 = vmatprep.subr.mxu0 0.0
    %2532 = vmatpush1.msra.mxu0 0.0
    %2533 = vmatprep.subr.mxu0 0.0
    %2534 = vmatpush1.msra.mxu0 0.0
    %2535 = vmatprep.subr.mxu0 0.0
    %2536 = vmatpush1.msra.mxu0 0.0
    %2537 = vmatprep.subr.mxu0 0.0
    %2538 = vmatpush1.msra.mxu0 0.0
    %2539 = vmatprep.subr.mxu0 0.0
    %2540 = vmatpush1.msra.mxu0 0.0
    %2541 = vmatprep.subr.mxu0 0.0
    %2542 = vmatpush1.msra.mxu0 0.0
    %2543 = vmatprep.subr.mxu0 0.0
    %2544 = vmatpush1.msra.mxu0 0.0
    %2545 = vmatprep.subr.mxu0 0.0
    %2546 = vmatpush1.msra.mxu0 0.0
    %2547 = vmatprep.subr.mxu0 0.0
    %2548 = vmatpush1.msra.mxu0 0.0
    %2549 = vmatprep.subr.mxu0 0.0
    %2550 = vmatpush1.msra.mxu0 0.0
    %2551 = vmatprep.subr.mxu0 0.0
    %2552 = vmatpush1.msra.mxu0 0.0
    %2553 = vmatprep.subr.mxu0 0.0
    %2554 = vmatpush1.msra.mxu0 0.0
    %2555 = vmatprep.mubr.f32.mxu0 0.0
    %2556 = vmatmul.mubr.f32.gmra.mrb[0].mxu0 %v2489
    %v2557 = vpop.f32.mrb[0].mxu0
    %v2558 = vadd.f32 0.0, %v2557
    %v2559 = vpop.f32.mrb[0].mxu0
    %2560 = vdwg.mxu0
    %v2561 = vlaneseq
    %v2562 = vshrl.u32 %v2561, 7
    %v2563 = vsub.s32 0, %v2562
    %v2564 = vrot.slane %v2482, %v2563
    %v2565 = vadd.f32 %v2558, %v2564
    %v2566 = vmul.f32 %v2565, 0.5
    %v2567 = vtanh.pop %v2566
    %v2568 = vmul.f32 %v2567, 0.5
    %v2569 = vadd.f32 %v2568, 0.5
    %2571 = vrot.lane.b32.xlu0 %v2565, 32
    %v2572 = vpop.permute.xlu0 %2571
    %v2574 = vmul.f32 %v2569, %v2572
    %2576 = vrot.lane.b32.xlu0 %v2574, 64
    %v2577 = vpop.permute.xlu0 %2576
    %v2579 = vadd.f32 %v2565, %v2577
    %v2580 = vtanh.pop %v2579
    %v2581 = vsub.f32 %v2264, %v2580
    %2583 = vrot.lane.b32.xlu0 %v2581, 96
    %v2584 = vpop.permute.xlu0 %2583
    %v2586 = vmul.f32 %v2569, %v2584
    %2588 = vrot.lane.b32.xlu0 %v2586, 32
    %v2589 = vpop.permute.xlu0 %2588
    %v2591 = vadd.f32 %v2580, %v2589
    %v2592 = vld [vmem:[%s1935] sm:$0xff]
    %v2593 = vld [vmem:[%s1935 + $0x8] sm:$0xff]
    %v2594 = vld [vmem:[%s1935 + $0x10] sm:$0xff]
    %v2595 = vld [vmem:[%s1935 + $0x18] sm:$0xff]
    %v2596 = vld [vmem:[%s1935 + $0x20] sm:$0xff]
    %v2597 = vld [vmem:[%s1935 + $0x28] sm:$0xff]
    %v2598 = vld [vmem:[%s1935 + $0x30] sm:$0xff]
    %v2599 = vld [vmem:[%s1935 + $0x38] sm:$0xff]
    %v2600 = vld [vmem:[#allocation7 + $0x3] sm:$0x1]
    %2602 = vrot.lane.b32.xlu0 %v2591, 64
    %v2603 = vpop.permute.xlu0 %2602
    %2605 = vrot.lane.b32.xlu0 %v2385, 96
    %v2606 = vpop.permute.xlu0 %2605
    %v2608 = vsel %vm84, %v2603, %v2606
    %v2610 = vsel %vm86, %v2608, 0
    %2612 = vmatprep.subr.mxu0 0.0
    %2613 = vmatpush1.msra.mxu0 %v2592
    %2614 = vmatprep.subr.mxu0 0.0
    %2615 = vmatpush1.msra.mxu0 %v2593
    %2616 = vmatprep.subr.mxu0 0.0
    %2617 = vmatpush1.msra.mxu0 %v2594
    %2618 = vmatprep.subr.mxu0 0.0
    %2619 = vmatpush1.msra.mxu0 %v2595
    %2620 = vmatprep.subr.mxu0 0.0
    %2621 = vmatpush1.msra.mxu0 %v2596
    %2622 = vmatprep.subr.mxu0 0.0
    %2623 = vmatpush1.msra.mxu0 %v2597
    %2624 = vmatprep.subr.mxu0 0.0
    %2625 = vmatpush1.msra.mxu0 %v2598
    %2626 = vmatprep.subr.mxu0 0.0
    %2627 = vmatpush1.msra.mxu0 %v2599
    %2628 = vmatprep.subr.mxu0 0.0
    %2629 = vmatpush1.msra.mxu0 0.0
    %2630 = vmatprep.subr.mxu0 0.0
    %2631 = vmatpush1.msra.mxu0 0.0
    %2632 = vmatprep.subr.mxu0 0.0
    %2633 = vmatpush1.msra.mxu0 0.0
    %2634 = vmatprep.subr.mxu0 0.0
    %2635 = vmatpush1.msra.mxu0 0.0
    %2636 = vmatprep.subr.mxu0 0.0
    %2637 = vmatpush1.msra.mxu0 0.0
    %2638 = vmatprep.subr.mxu0 0.0
    %2639 = vmatpush1.msra.mxu0 0.0
    %2640 = vmatprep.subr.mxu0 0.0
    %2641 = vmatpush1.msra.mxu0 0.0
    %2642 = vmatprep.subr.mxu0 0.0
    %2643 = vmatpush1.msra.mxu0 0.0
    %2644 = vmatprep.subr.mxu0 0.0
    %2645 = vmatpush1.msra.mxu0 0.0
    %2646 = vmatprep.subr.mxu0 0.0
    %2647 = vmatpush1.msra.mxu0 0.0
    %2648 = vmatprep.subr.mxu0 0.0
    %2649 = vmatpush1.msra.mxu0 0.0
    %2650 = vmatprep.subr.mxu0 0.0
    %2651 = vmatpush1.msra.mxu0 0.0
    %2652 = vmatprep.subr.mxu0 0.0
    %2653 = vmatpush1.msra.mxu0 0.0
    %2654 = vmatprep.subr.mxu0 0.0
    %2655 = vmatpush1.msra.mxu0 0.0
    %2656 = vmatprep.subr.mxu0 0.0
    %2657 = vmatpush1.msra.mxu0 0.0
    %2658 = vmatprep.subr.mxu0 0.0
    %2659 = vmatpush1.msra.mxu0 0.0
    %2660 = vmatprep.subr.mxu0 0.0
    %2661 = vmatpush1.msra.mxu0 0.0
    %2662 = vmatprep.subr.mxu0 0.0
    %2663 = vmatpush1.msra.mxu0 0.0
    %2664 = vmatprep.subr.mxu0 0.0
    %2665 = vmatpush1.msra.mxu0 0.0
    %2666 = vmatprep.subr.mxu0 0.0
    %2667 = vmatpush1.msra.mxu0 0.0
    %2668 = vmatprep.subr.mxu0 0.0
    %2669 = vmatpush1.msra.mxu0 0.0
    %2670 = vmatprep.subr.mxu0 0.0
    %2671 = vmatpush1.msra.mxu0 0.0
    %2672 = vmatprep.subr.mxu0 0.0
    %2673 = vmatpush1.msra.mxu0 0.0
    %2674 = vmatprep.subr.mxu0 0.0
    %2675 = vmatpush1.msra.mxu0 0.0
    %2676 = vmatprep.mubr.f32.mxu0 0.0
    %2677 = vmatmul.mubr.f32.gmra.mrb[0].mxu0 %v2610
    %v2678 = vpop.f32.mrb[0].mxu0
    %v2679 = vadd.f32 0.0, %v2678
    %v2680 = vpop.f32.mrb[0].mxu0
    %2681 = vdwg.mxu0
    %v2682 = vlaneseq
    %v2683 = vshrl.u32 %v2682, 7
    %v2684 = vsub.s32 0, %v2683
    %v2685 = vrot.slane %v2600, %v2684
    %v2686 = vadd.f32 %v2679, %v2685
    %v2687 = vmul.f32 %v2686, 0.5
    %v2688 = vtanh.pop %v2687
    %v2689 = vmul.f32 %v2688, 0.5
    %v2690 = vadd.f32 %v2689, 0.5
    %2692 = vrot.lane.b32.xlu0 %v2686, 32
    %v2693 = vpop.permute.xlu0 %2692
    %v2695 = vmul.f32 %v2690, %v2693
    %2697 = vrot.lane.b32.xlu0 %v2695, 64
    %v2698 = vpop.permute.xlu0 %2697
    %v2700 = vadd.f32 %v2686, %v2698
    %v2701 = vtanh.pop %v2700
    %v2702 = vsub.f32 %v2385, %v2701
    %2704 = vrot.lane.b32.xlu0 %v2702, 96
    %v2705 = vpop.permute.xlu0 %2704
    %v2707 = vmul.f32 %v2690, %v2705
    %2709 = vrot.lane.b32.xlu0 %v2707, 32
    %v2710 = vpop.permute.xlu0 %2709
    %v2712 = vadd.f32 %v2701, %v2710
    %v2713 = vld [vmem:[#allocation8] sm:$0xff]
    %v2714 = vld [vmem:[#allocation8 + $0x8] sm:$0xff]
    %v2715 = vld [vmem:[#allocation8 + $0x10] sm:$0xff]
    %v2716 = vld [vmem:[#allocation8 + $0x18] sm:$0xff]
    %v2717 = vld [vmem:[%s4] sm:$0x1]
    %v2719 = vlaneseq
    %v2720 = vshrl.u32 %v2719, 7
    %v2721 = vsub.s32 0, %v2720
    %v2722 = vrot.slane %v2717, %v2721
    %2725 = vrot.lane.b32.xlu0 %v2712, 64
    %v2726 = vpop.permute.xlu0 %2725
    %v2727 = vsel %vm84, %v2726, 0
    %2729 = vmatprep.subr.mxu0 0.0
    %2730 = vmatpush1.msra.mxu0 %v2713
    %2731 = vmatprep.subr.mxu0 0.0
    %2732 = vmatpush1.msra.mxu0 %v2714
    %2733 = vmatprep.subr.mxu0 0.0
    %2734 = vmatpush1.msra.mxu0 %v2715
    %2735 = vmatprep.subr.mxu0 0.0
    %2736 = vmatpush1.msra.mxu0 %v2716
    %2737 = vmatprep.subr.mxu0 0.0
    %2738 = vmatpush1.msra.mxu0 0.0
    %2739 = vmatprep.subr.mxu0 0.0
    %2740 = vmatpush1.msra.mxu0 0.0
    %2741 = vmatprep.subr.mxu0 0.0
    %2742 = vmatpush1.msra.mxu0 0.0
    %2743 = vmatprep.subr.mxu0 0.0
    %2744 = vmatpush1.msra.mxu0 0.0
    %2745 = vmatprep.subr.mxu0 0.0
    %2746 = vmatpush1.msra.mxu0 0.0
    %2747 = vmatprep.subr.mxu0 0.0
    %2748 = vmatpush1.msra.mxu0 0.0
    %2749 = vmatprep.subr.mxu0 0.0
    %2750 = vmatpush1.msra.mxu0 0.0
    %2751 = vmatprep.subr.mxu0 0.0
    %2752 = vmatpush1.msra.mxu0 0.0
    %2753 = vmatprep.subr.mxu0 0.0
    %2754 = vmatpush1.msra.mxu0 0.0
    %2755 = vmatprep.subr.mxu0 0.0
    %2756 = vmatpush1.msra.mxu0 0.0
    %2757 = vmatprep.subr.mxu0 0.0
    %2758 = vmatpush1.msra.mxu0 0.0
    %2759 = vmatprep.subr.mxu0 0.0
    %2760 = vmatpush1.msra.mxu0 0.0
    %2761 = vmatprep.subr.mxu0 0.0
    %2762 = vmatpush1.msra.mxu0 0.0
    %2763 = vmatprep.subr.mxu0 0.0
    %2764 = vmatpush1.msra.mxu0 0.0
    %2765 = vmatprep.subr.mxu0 0.0
    %2766 = vmatpush1.msra.mxu0 0.0
    %2767 = vmatprep.subr.mxu0 0.0
    %2768 = vmatpush1.msra.mxu0 0.0
    %2769 = vmatprep.subr.mxu0 0.0
    %2770 = vmatpush1.msra.mxu0 0.0
    %2771 = vmatprep.subr.mxu0 0.0
    %2772 = vmatpush1.msra.mxu0 0.0
    %2773 = vmatprep.subr.mxu0 0.0
    %2774 = vmatpush1.msra.mxu0 0.0
    %2775 = vmatprep.subr.mxu0 0.0
    %2776 = vmatpush1.msra.mxu0 0.0
    %2777 = vmatprep.subr.mxu0 0.0
    %2778 = vmatpush1.msra.mxu0 0.0
    %2779 = vmatprep.subr.mxu0 0.0
    %2780 = vmatpush1.msra.mxu0 0.0
    %2781 = vmatprep.subr.mxu0 0.0
    %2782 = vmatpush1.msra.mxu0 0.0
    %2783 = vmatprep.subr.mxu0 0.0
    %2784 = vmatpush1.msra.mxu0 0.0
    %2785 = vmatprep.subr.mxu0 0.0
    %2786 = vmatpush1.msra.mxu0 0.0
    %2787 = vmatprep.subr.mxu0 0.0
    %2788 = vmatpush1.msra.mxu0 0.0
    %2789 = vmatprep.subr.mxu0 0.0
    %2790 = vmatpush1.msra.mxu0 0.0
    %2791 = vmatprep.subr.mxu0 0.0
    %2792 = vmatpush1.msra.mxu0 0.0
    %2793 = vmatprep.mubr.f32.mxu0 0.0
    %2794 = vmatmul.mubr.f32.gmra.mrb[0].mxu0 %v2727
    %v2795 = vpop.f32.mrb[0].mxu0
    %v2796 = vadd.f32 %v2722, %v2795
    %v2797 = vpop.f32.mrb[0].mxu0
    %2798 = vdwg.mxu0
    %s2799 = scalar_lea.vmem [#allocation10], 4
    %2800 = vst.msk [vmem:[%s2799] sm:$0x3] %vm2144, %v2796
    %v2801 = vld [vmem:[%s2146] sm:$0xff]
    %v2802 = vld [vmem:[%s2146 + $0x8] sm:$0xff]
    %v2803 = vld [vmem:[%s2146 + $0x10] sm:$0xff]
    %v2804 = vld [vmem:[%s2146 + $0x18] sm:$0xff]
    %v2805 = vld [vmem:[%s2146 + $0x20] sm:$0xff]
    %v2806 = vld [vmem:[%s2146 + $0x28] sm:$0xff]
    %v2807 = vld [vmem:[%s2146 + $0x30] sm:$0xff]
    %v2808 = vld [vmem:[%s2146 + $0x38] sm:$0xff]
    %v2809 = vld [vmem:[#allocation7 + $0x4] sm:$0x1]
    %2811 = vrot.lane.b32.xlu0 %v2591, 96
    %v2812 = vpop.permute.xlu0 %2811
    %v2814 = vsel %vm84, %v2726, %v2812
    %v2816 = vsel %vm86, %v2814, 0
    %2818 = vmatprep.subr.mxu0 0.0
    %2819 = vmatpush1.msra.mxu0 %v2801
    %2820 = vmatprep.subr.mxu0 0.0
    %2821 = vmatpush1.msra.mxu0 %v2802
    %2822 = vmatprep.subr.mxu0 0.0
    %2823 = vmatpush1.msra.mxu0 %v2803
    %2824 = vmatprep.subr.mxu0 0.0
    %2825 = vmatpush1.msra.mxu0 %v2804
    %2826 = vmatprep.subr.mxu0 0.0
    %2827 = vmatpush1.msra.mxu0 %v2805
    %2828 = vmatprep.subr.mxu0 0.0
    %2829 = vmatpush1.msra.mxu0 %v2806
    %2830 = vmatprep.subr.mxu0 0.0
    %2831 = vmatpush1.msra.mxu0 %v2807
    %2832 = vmatprep.subr.mxu0 0.0
    %2833 = vmatpush1.msra.mxu0 %v2808
    %2834 = vmatprep.subr.mxu0 0.0
    %2835 = vmatpush1.msra.mxu0 0.0
    %2836 = vmatprep.subr.mxu0 0.0
    %2837 = vmatpush1.msra.mxu0 0.0
    %2838 = vmatprep.subr.mxu0 0.0
    %2839 = vmatpush1.msra.mxu0 0.0
    %2840 = vmatprep.subr.mxu0 0.0
    %2841 = vmatpush1.msra.mxu0 0.0
    %2842 = vmatprep.subr.mxu0 0.0
    %2843 = vmatpush1.msra.mxu0 0.0
    %2844 = vmatprep.subr.mxu0 0.0
    %2845 = vmatpush1.msra.mxu0 0.0
    %2846 = vmatprep.subr.mxu0 0.0
    %2847 = vmatpush1.msra.mxu0 0.0
    %2848 = vmatprep.subr.mxu0 0.0
    %2849 = vmatpush1.msra.mxu0 0.0
    %2850 = vmatprep.subr.mxu0 0.0
    %2851 = vmatpush1.msra.mxu0 0.0
    %2852 = vmatprep.subr.mxu0 0.0
    %2853 = vmatpush1.msra.mxu0 0.0
    %2854 = vmatprep.subr.mxu0 0.0
    %2855 = vmatpush1.msra.mxu0 0.0
    %2856 = vmatprep.subr.mxu0 0.0
    %2857 = vmatpush1.msra.mxu0 0.0
    %2858 = vmatprep.subr.mxu0 0.0
    %2859 = vmatpush1.msra.mxu0 0.0
    %2860 = vmatprep.subr.mxu0 0.0
    %2861 = vmatpush1.msra.mxu0 0.0
    %2862 = vmatprep.subr.mxu0 0.0
    %2863 = vmatpush1.msra.mxu0 0.0
    %2864 = vmatprep.subr.mxu0 0.0
    %2865 = vmatpush1.msra.mxu0 0.0
    %2866 = vmatprep.subr.mxu0 0.0
    %2867 = vmatpush1.msra.mxu0 0.0
    %2868 = vmatprep.subr.mxu0 0.0
    %2869 = vmatpush1.msra.mxu0 0.0
    %2870 = vmatprep.subr.mxu0 0.0
    %2871 = vmatpush1.msra.mxu0 0.0
    %2872 = vmatprep.subr.mxu0 0.0
    %2873 = vmatpush1.msra.mxu0 0.0
    %2874 = vmatprep.subr.mxu0 0.0
    %2875 = vmatpush1.msra.mxu0 0.0
    %2876 = vmatprep.subr.mxu0 0.0
    %2877 = vmatpush1.msra.mxu0 0.0
    %2878 = vmatprep.subr.mxu0 0.0
    %2879 = vmatpush1.msra.mxu0 0.0
    %2880 = vmatprep.subr.mxu0 0.0
    %2881 = vmatpush1.msra.mxu0 0.0
    %2882 = vmatprep.mubr.f32.mxu0 0.0
    %2883 = vmatmul.mubr.f32.gmra.mrb[0].mxu0 %v2816
    %v2884 = vpop.f32.mrb[0].mxu0
    %v2885 = vadd.f32 0.0, %v2884
    %v2886 = vpop.f32.mrb[0].mxu0
    %2887 = vdwg.mxu0
    %v2888 = vlaneseq
    %v2889 = vshrl.u32 %v2888, 7
    %v2890 = vsub.s32 0, %v2889
    %v2891 = vrot.slane %v2809, %v2890
    %v2892 = vadd.f32 %v2885, %v2891
    %v2893 = vmul.f32 %v2892, 0.5
    %v2894 = vtanh.pop %v2893
    %v2895 = vmul.f32 %v2894, 0.5
    %v2896 = vadd.f32 %v2895, 0.5
    %2898 = vrot.lane.b32.xlu0 %v2892, 32
    %v2899 = vpop.permute.xlu0 %2898
    %v2901 = vmul.f32 %v2896, %v2899
    %2903 = vrot.lane.b32.xlu0 %v2901, 64
    %v2904 = vpop.permute.xlu0 %2903
    %v2906 = vadd.f32 %v2892, %v2904
    %v2907 = vtanh.pop %v2906
    %v2908 = vsub.f32 %v2591, %v2907
    %2910 = vrot.lane.b32.xlu0 %v2908, 96
    %v2911 = vpop.permute.xlu0 %2910
    %v2913 = vmul.f32 %v2896, %v2911
    %2915 = vrot.lane.b32.xlu0 %v2913, 32
    %v2916 = vpop.permute.xlu0 %2915
    %v2918 = vadd.f32 %v2907, %v2916
    %v2919 = vld [vmem:[%s1935] sm:$0xff]
    %v2920 = vld [vmem:[%s1935 + $0x8] sm:$0xff]
    %v2921 = vld [vmem:[%s1935 + $0x10] sm:$0xff]
    %v2922 = vld [vmem:[%s1935 + $0x18] sm:$0xff]
    %v2923 = vld [vmem:[%s1935 + $0x20] sm:$0xff]
    %v2924 = vld [vmem:[%s1935 + $0x28] sm:$0xff]
    %v2925 = vld [vmem:[%s1935 + $0x30] sm:$0xff]
    %v2926 = vld [vmem:[%s1935 + $0x38] sm:$0xff]
    %v2927 = vld [vmem:[#allocation7 + $0x3] sm:$0x1]
    %2929 = vrot.lane.b32.xlu0 %v2918, 64
    %v2930 = vpop.permute.xlu0 %2929
    %2932 = vrot.lane.b32.xlu0 %v2712, 96
    %v2933 = vpop.permute.xlu0 %2932
    %v2935 = vsel %vm84, %v2930, %v2933
    %v2937 = vsel %vm86, %v2935, 0
    %2939 = vmatprep.subr.mxu0 0.0
    %2940 = vmatpush1.msra.mxu0 %v2919
    %2941 = vmatprep.subr.mxu0 0.0
    %2942 = vmatpush1.msra.mxu0 %v2920
    %2943 = vmatprep.subr.mxu0 0.0
    %2944 = vmatpush1.msra.mxu0 %v2921
    %2945 = vmatprep.subr.mxu0 0.0
    %2946 = vmatpush1.msra.mxu0 %v2922
    %2947 = vmatprep.subr.mxu0 0.0
    %2948 = vmatpush1.msra.mxu0 %v2923
    %2949 = vmatprep.subr.mxu0 0.0
    %2950 = vmatpush1.msra.mxu0 %v2924
    %2951 = vmatprep.subr.mxu0 0.0
    %2952 = vmatpush1.msra.mxu0 %v2925
    %2953 = vmatprep.subr.mxu0 0.0
    %2954 = vmatpush1.msra.mxu0 %v2926
    %2955 = vmatprep.subr.mxu0 0.0
    %2956 = vmatpush1.msra.mxu0 0.0
    %2957 = vmatprep.subr.mxu0 0.0
    %2958 = vmatpush1.msra.mxu0 0.0
    %2959 = vmatprep.subr.mxu0 0.0
    %2960 = vmatpush1.msra.mxu0 0.0
    %2961 = vmatprep.subr.mxu0 0.0
    %2962 = vmatpush1.msra.mxu0 0.0
    %2963 = vmatprep.subr.mxu0 0.0
    %2964 = vmatpush1.msra.mxu0 0.0
    %2965 = vmatprep.subr.mxu0 0.0
    %2966 = vmatpush1.msra.mxu0 0.0
    %2967 = vmatprep.subr.mxu0 0.0
    %2968 = vmatpush1.msra.mxu0 0.0
    %2969 = vmatprep.subr.mxu0 0.0
    %2970 = vmatpush1.msra.mxu0 0.0
    %2971 = vmatprep.subr.mxu0 0.0
    %2972 = vmatpush1.msra.mxu0 0.0
    %2973 = vmatprep.subr.mxu0 0.0
    %2974 = vmatpush1.msra.mxu0 0.0
    %2975 = vmatprep.subr.mxu0 0.0
    %2976 = vmatpush1.msra.mxu0 0.0
    %2977 = vmatprep.subr.mxu0 0.0
    %2978 = vmatpush1.msra.mxu0 0.0
    %2979 = vmatprep.subr.mxu0 0.0
    %2980 = vmatpush1.msra.mxu0 0.0
    %2981 = vmatprep.subr.mxu0 0.0
    %2982 = vmatpush1.msra.mxu0 0.0
    %2983 = vmatprep.subr.mxu0 0.0
    %2984 = vmatpush1.msra.mxu0 0.0
    %2985 = vmatprep.subr.mxu0 0.0
    %2986 = vmatpush1.msra.mxu0 0.0
    %2987 = vmatprep.subr.mxu0 0.0
    %2988 = vmatpush1.msra.mxu0 0.0
    %2989 = vmatprep.subr.mxu0 0.0
    %2990 = vmatpush1.msra.mxu0 0.0
    %2991 = vmatprep.subr.mxu0 0.0
    %2992 = vmatpush1.msra.mxu0 0.0
    %2993 = vmatprep.subr.mxu0 0.0
    %2994 = vmatpush1.msra.mxu0 0.0
    %2995 = vmatprep.subr.mxu0 0.0
    %2996 = vmatpush1.msra.mxu0 0.0
    %2997 = vmatprep.subr.mxu0 0.0
    %2998 = vmatpush1.msra.mxu0 0.0
    %2999 = vmatprep.subr.mxu0 0.0
    %3000 = vmatpush1.msra.mxu0 0.0
    %3001 = vmatprep.subr.mxu0 0.0
    %3002 = vmatpush1.msra.mxu0 0.0
    %3003 = vmatprep.mubr.f32.mxu0 0.0
    %3004 = vmatmul.mubr.f32.gmra.mrb[0].mxu0 %v2937
    %v3005 = vpop.f32.mrb[0].mxu0
    %v3006 = vadd.f32 0.0, %v3005
    %v3007 = vpop.f32.mrb[0].mxu0
    %3008 = vdwg.mxu0
    %v3009 = vlaneseq
    %v3010 = vshrl.u32 %v3009, 7
    %v3011 = vsub.s32 0, %v3010
    %v3012 = vrot.slane %v2927, %v3011
    %v3013 = vadd.f32 %v3006, %v3012
    %v3014 = vmul.f32 %v3013, 0.5
    %v3015 = vtanh.pop %v3014
    %v3016 = vmul.f32 %v3015, 0.5
    %v3017 = vadd.f32 %v3016, 0.5
    %3019 = vrot.lane.b32.xlu0 %v3013, 32
    %v3020 = vpop.permute.xlu0 %3019
    %v3022 = vmul.f32 %v3017, %v3020
    %3024 = vrot.lane.b32.xlu0 %v3022, 64
    %v3025 = vpop.permute.xlu0 %3024
    %v3027 = vadd.f32 %v3013, %v3025
    %v3028 = vtanh.pop %v3027
    %v3029 = vsub.f32 %v2712, %v3028
    %3031 = vrot.lane.b32.xlu0 %v3029, 96
    %v3032 = vpop.permute.xlu0 %3031
    %v3034 = vmul.f32 %v3017, %v3032
    %3036 = vrot.lane.b32.xlu0 %v3034, 32
    %v3037 = vpop.permute.xlu0 %3036
    %v3039 = vadd.f32 %v3028, %v3037
    %v3040 = vld [vmem:[#allocation8] sm:$0xff]
    %v3041 = vld [vmem:[#allocation8 + $0x8] sm:$0xff]
    %v3042 = vld [vmem:[#allocation8 + $0x10] sm:$0xff]
    %v3043 = vld [vmem:[#allocation8 + $0x18] sm:$0xff]
    %v3044 = vld [vmem:[%s4] sm:$0x1]
    %v3046 = vlaneseq
    %v3047 = vshrl.u32 %v3046, 7
    %v3048 = vsub.s32 0, %v3047
    %v3049 = vrot.slane %v3044, %v3048
    %3052 = vrot.lane.b32.xlu0 %v3039, 64
    %v3053 = vpop.permute.xlu0 %3052
    %v3054 = vsel %vm84, %v3053, 0
    %3056 = vmatprep.subr.mxu0 0.0
    %3057 = vmatpush1.msra.mxu0 %v3040
    %3058 = vmatprep.subr.mxu0 0.0
    %3059 = vmatpush1.msra.mxu0 %v3041
    %3060 = vmatprep.subr.mxu0 0.0
    %3061 = vmatpush1.msra.mxu0 %v3042
    %3062 = vmatprep.subr.mxu0 0.0
    %3063 = vmatpush1.msra.mxu0 %v3043
    %3064 = vmatprep.subr.mxu0 0.0
    %3065 = vmatpush1.msra.mxu0 0.0
    %3066 = vmatprep.subr.mxu0 0.0
    %3067 = vmatpush1.msra.mxu0 0.0
    %3068 = vmatprep.subr.mxu0 0.0
    %3069 = vmatpush1.msra.mxu0 0.0
    %3070 = vmatprep.subr.mxu0 0.0
    %3071 = vmatpush1.msra.mxu0 0.0
    %3072 = vmatprep.subr.mxu0 0.0
    %3073 = vmatpush1.msra.mxu0 0.0
    %3074 = vmatprep.subr.mxu0 0.0
    %3075 = vmatpush1.msra.mxu0 0.0
    %3076 = vmatprep.subr.mxu0 0.0
    %3077 = vmatpush1.msra.mxu0 0.0
    %3078 = vmatprep.subr.mxu0 0.0
    %3079 = vmatpush1.msra.mxu0 0.0
    %3080 = vmatprep.subr.mxu0 0.0
    %3081 = vmatpush1.msra.mxu0 0.0
    %3082 = vmatprep.subr.mxu0 0.0
    %3083 = vmatpush1.msra.mxu0 0.0
    %3084 = vmatprep.subr.mxu0 0.0
    %3085 = vmatpush1.msra.mxu0 0.0
    %3086 = vmatprep.subr.mxu0 0.0
    %3087 = vmatpush1.msra.mxu0 0.0
    %3088 = vmatprep.subr.mxu0 0.0
    %3089 = vmatpush1.msra.mxu0 0.0
    %3090 = vmatprep.subr.mxu0 0.0
    %3091 = vmatpush1.msra.mxu0 0.0
    %3092 = vmatprep.subr.mxu0 0.0
    %3093 = vmatpush1.msra.mxu0 0.0
    %3094 = vmatprep.subr.mxu0 0.0
    %3095 = vmatpush1.msra.mxu0 0.0
    %3096 = vmatprep.subr.mxu0 0.0
    %3097 = vmatpush1.msra.mxu0 0.0
    %3098 = vmatprep.subr.mxu0 0.0
    %3099 = vmatpush1.msra.mxu0 0.0
    %3100 = vmatprep.subr.mxu0 0.0
    %3101 = vmatpush1.msra.mxu0 0.0
    %3102 = vmatprep.subr.mxu0 0.0
    %3103 = vmatpush1.msra.mxu0 0.0
    %3104 = vmatprep.subr.mxu0 0.0
    %3105 = vmatpush1.msra.mxu0 0.0
    %3106 = vmatprep.subr.mxu0 0.0
    %3107 = vmatpush1.msra.mxu0 0.0
    %3108 = vmatprep.subr.mxu0 0.0
    %3109 = vmatpush1.msra.mxu0 0.0
    %3110 = vmatprep.subr.mxu0 0.0
    %3111 = vmatpush1.msra.mxu0 0.0
    %3112 = vmatprep.subr.mxu0 0.0
    %3113 = vmatpush1.msra.mxu0 0.0
    %3114 = vmatprep.subr.mxu0 0.0
    %3115 = vmatpush1.msra.mxu0 0.0
    %3116 = vmatprep.subr.mxu0 0.0
    %3117 = vmatpush1.msra.mxu0 0.0
    %3118 = vmatprep.subr.mxu0 0.0
    %3119 = vmatpush1.msra.mxu0 0.0
    %3120 = vmatprep.mubr.f32.mxu0 0.0
    %3121 = vmatmul.mubr.f32.gmra.mrb[0].mxu0 %v3054
    %v3122 = vpop.f32.mrb[0].mxu0
    %v3123 = vadd.f32 %v3049, %v3122
    %v3124 = vpop.f32.mrb[0].mxu0
    %3125 = vdwg.mxu0
    %s3126 = scalar_lea.vmem [#allocation10], 6
    %3127 = vst.msk [vmem:[%s3126] sm:$0x3] %vm2144, %v3123
    %v3128 = vld [vmem:[%s2146] sm:$0xff]
    %v3129 = vld [vmem:[%s2146 + $0x8] sm:$0xff]
    %v3130 = vld [vmem:[%s2146 + $0x10] sm:$0xff]
    %v3131 = vld [vmem:[%s2146 + $0x18] sm:$0xff]
    %v3132 = vld [vmem:[%s2146 + $0x20] sm:$0xff]
    %v3133 = vld [vmem:[%s2146 + $0x28] sm:$0xff]
    %v3134 = vld [vmem:[%s2146 + $0x30] sm:$0xff]
    %v3135 = vld [vmem:[%s2146 + $0x38] sm:$0xff]
    %v3136 = vld [vmem:[#allocation7 + $0x4] sm:$0x1]
    %3138 = vrot.lane.b32.xlu0 %v2918, 96
    %v3139 = vpop.permute.xlu0 %3138
    %v3141 = vsel %vm84, %v3053, %v3139
    %v3143 = vsel %vm86, %v3141, 0
    %3145 = vmatprep.subr.mxu0 0.0
    %3146 = vmatpush1.msra.mxu0 %v3128
    %3147 = vmatprep.subr.mxu0 0.0
    %3148 = vmatpush1.msra.mxu0 %v3129
    %3149 = vmatprep.subr.mxu0 0.0
    %3150 = vmatpush1.msra.mxu0 %v3130
    %3151 = vmatprep.subr.mxu0 0.0
    %3152 = vmatpush1.msra.mxu0 %v3131
    %3153 = vmatprep.subr.mxu0 0.0
    %3154 = vmatpush1.msra.mxu0 %v3132
    %3155 = vmatprep.subr.mxu0 0.0
    %3156 = vmatpush1.msra.mxu0 %v3133
    %3157 = vmatprep.subr.mxu0 0.0
    %3158 = vmatpush1.msra.mxu0 %v3134
    %3159 = vmatprep.subr.mxu0 0.0
    %3160 = vmatpush1.msra.mxu0 %v3135
    %3161 = vmatprep.subr.mxu0 0.0
    %3162 = vmatpush1.msra.mxu0 0.0
    %3163 = vmatprep.subr.mxu0 0.0
    %3164 = vmatpush1.msra.mxu0 0.0
    %3165 = vmatprep.subr.mxu0 0.0
    %3166 = vmatpush1.msra.mxu0 0.0
    %3167 = vmatprep.subr.mxu0 0.0
    %3168 = vmatpush1.msra.mxu0 0.0
    %3169 = vmatprep.subr.mxu0 0.0
    %3170 = vmatpush1.msra.mxu0 0.0
    %3171 = vmatprep.subr.mxu0 0.0
    %3172 = vmatpush1.msra.mxu0 0.0
    %3173 = vmatprep.subr.mxu0 0.0
    %3174 = vmatpush1.msra.mxu0 0.0
    %3175 = vmatprep.subr.mxu0 0.0
    %3176 = vmatpush1.msra.mxu0 0.0
    %3177 = vmatprep.subr.mxu0 0.0
    %3178 = vmatpush1.msra.mxu0 0.0
    %3179 = vmatprep.subr.mxu0 0.0
    %3180 = vmatpush1.msra.mxu0 0.0
    %3181 = vmatprep.subr.mxu0 0.0
    %3182 = vmatpush1.msra.mxu0 0.0
    %3183 = vmatprep.subr.mxu0 0.0
    %3184 = vmatpush1.msra.mxu0 0.0
    %3185 = vmatprep.subr.mxu0 0.0
    %3186 = vmatpush1.msra.mxu0 0.0
    %3187 = vmatprep.subr.mxu0 0.0
    %3188 = vmatpush1.msra.mxu0 0.0
    %3189 = vmatprep.subr.mxu0 0.0
    %3190 = vmatpush1.msra.mxu0 0.0
    %3191 = vmatprep.subr.mxu0 0.0
    %3192 = vmatpush1.msra.mxu0 0.0
    %3193 = vmatprep.subr.mxu0 0.0
    %3194 = vmatpush1.msra.mxu0 0.0
    %3195 = vmatprep.subr.mxu0 0.0
    %3196 = vmatpush1.msra.mxu0 0.0
    %3197 = vmatprep.subr.mxu0 0.0
    %3198 = vmatpush1.msra.mxu0 0.0
    %3199 = vmatprep.subr.mxu0 0.0
    %3200 = vmatpush1.msra.mxu0 0.0
    %3201 = vmatprep.subr.mxu0 0.0
    %3202 = vmatpush1.msra.mxu0 0.0
    %3203 = vmatprep.subr.mxu0 0.0
    %3204 = vmatpush1.msra.mxu0 0.0
    %3205 = vmatprep.subr.mxu0 0.0
    %3206 = vmatpush1.msra.mxu0 0.0
    %3207 = vmatprep.subr.mxu0 0.0
    %3208 = vmatpush1.msra.mxu0 0.0
    %3209 = vmatprep.mubr.f32.mxu0 0.0
    %3210 = vmatmul.mubr.f32.gmra.mrb[0].mxu0 %v3143
    %v3211 = vpop.f32.mrb[0].mxu0
    %v3212 = vadd.f32 0.0, %v3211
    %v3213 = vpop.f32.mrb[0].mxu0
    %3214 = vdwg.mxu0
    %v3215 = vlaneseq
    %v3216 = vshrl.u32 %v3215, 7
    %v3217 = vsub.s32 0, %v3216
    %v3218 = vrot.slane %v3136, %v3217
    %v3219 = vadd.f32 %v3212, %v3218
    %v3220 = vmul.f32 %v3219, 0.5
    %v3221 = vtanh.pop %v3220
    %v3222 = vmul.f32 %v3221, 0.5
    %v3223 = vadd.f32 %v3222, 0.5
    %3225 = vrot.lane.b32.xlu0 %v3219, 32
    %v3226 = vpop.permute.xlu0 %3225
    %v3228 = vmul.f32 %v3223, %v3226
    %3230 = vrot.lane.b32.xlu0 %v3228, 64
    %v3231 = vpop.permute.xlu0 %3230
    %v3233 = vadd.f32 %v3219, %v3231
    %v3234 = vtanh.pop %v3233
    %v3235 = vsub.f32 %v2918, %v3234
    %3237 = vrot.lane.b32.xlu0 %v3235, 96
    %v3238 = vpop.permute.xlu0 %3237
    %v3240 = vmul.f32 %v3223, %v3238
    %3242 = vrot.lane.b32.xlu0 %v3240, 32
    %v3243 = vpop.permute.xlu0 %3242
    %v3245 = vadd.f32 %v3234, %v3243
    %v3246 = vld [vmem:[%s1935] sm:$0xff]
    %v3247 = vld [vmem:[%s1935 + $0x8] sm:$0xff]
    %v3248 = vld [vmem:[%s1935 + $0x10] sm:$0xff]
    %v3249 = vld [vmem:[%s1935 + $0x18] sm:$0xff]
    %v3250 = vld [vmem:[%s1935 + $0x20] sm:$0xff]
    %v3251 = vld [vmem:[%s1935 + $0x28] sm:$0xff]
    %v3252 = vld [vmem:[%s1935 + $0x30] sm:$0xff]
    %v3253 = vld [vmem:[%s1935 + $0x38] sm:$0xff]
    %v3254 = vld [vmem:[#allocation7 + $0x3] sm:$0x1]
    %3256 = vrot.lane.b32.xlu0 %v3245, 64
    %v3257 = vpop.permute.xlu0 %3256
    %3259 = vrot.lane.b32.xlu0 %v3039, 96
    %v3260 = vpop.permute.xlu0 %3259
    %v3262 = vsel %vm84, %v3257, %v3260
    %v3264 = vsel %vm86, %v3262, 0
    %3266 = vmatprep.subr.mxu0 0.0
    %3267 = vmatpush1.msra.mxu0 %v3246
    %3268 = vmatprep.subr.mxu0 0.0
    %3269 = vmatpush1.msra.mxu0 %v3247
    %3270 = vmatprep.subr.mxu0 0.0
    %3271 = vmatpush1.msra.mxu0 %v3248
    %3272 = vmatprep.subr.mxu0 0.0
    %3273 = vmatpush1.msra.mxu0 %v3249
    %3274 = vmatprep.subr.mxu0 0.0
    %3275 = vmatpush1.msra.mxu0 %v3250
    %3276 = vmatprep.subr.mxu0 0.0
    %3277 = vmatpush1.msra.mxu0 %v3251
    %3278 = vmatprep.subr.mxu0 0.0
    %3279 = vmatpush1.msra.mxu0 %v3252
    %3280 = vmatprep.subr.mxu0 0.0
    %3281 = vmatpush1.msra.mxu0 %v3253
    %3282 = vmatprep.subr.mxu0 0.0
    %3283 = vmatpush1.msra.mxu0 0.0
    %3284 = vmatprep.subr.mxu0 0.0
    %3285 = vmatpush1.msra.mxu0 0.0
    %3286 = vmatprep.subr.mxu0 0.0
    %3287 = vmatpush1.msra.mxu0 0.0
    %3288 = vmatprep.subr.mxu0 0.0
    %3289 = vmatpush1.msra.mxu0 0.0
    %3290 = vmatprep.subr.mxu0 0.0
    %3291 = vmatpush1.msra.mxu0 0.0
    %3292 = vmatprep.subr.mxu0 0.0
    %3293 = vmatpush1.msra.mxu0 0.0
    %3294 = vmatprep.subr.mxu0 0.0
    %3295 = vmatpush1.msra.mxu0 0.0
    %3296 = vmatprep.subr.mxu0 0.0
    %3297 = vmatpush1.msra.mxu0 0.0
    %3298 = vmatprep.subr.mxu0 0.0
    %3299 = vmatpush1.msra.mxu0 0.0
    %3300 = vmatprep.subr.mxu0 0.0
    %3301 = vmatpush1.msra.mxu0 0.0
    %3302 = vmatprep.subr.mxu0 0.0
    %3303 = vmatpush1.msra.mxu0 0.0
    %3304 = vmatprep.subr.mxu0 0.0
    %3305 = vmatpush1.msra.mxu0 0.0
    %3306 = vmatprep.subr.mxu0 0.0
    %3307 = vmatpush1.msra.mxu0 0.0
    %3308 = vmatprep.subr.mxu0 0.0
    %3309 = vmatpush1.msra.mxu0 0.0
    %3310 = vmatprep.subr.mxu0 0.0
    %3311 = vmatpush1.msra.mxu0 0.0
    %3312 = vmatprep.subr.mxu0 0.0
    %3313 = vmatpush1.msra.mxu0 0.0
    %3314 = vmatprep.subr.mxu0 0.0
    %3315 = vmatpush1.msra.mxu0 0.0
    %3316 = vmatprep.subr.mxu0 0.0
    %3317 = vmatpush1.msra.mxu0 0.0
    %3318 = vmatprep.subr.mxu0 0.0
    %3319 = vmatpush1.msra.mxu0 0.0
    %3320 = vmatprep.subr.mxu0 0.0
    %3321 = vmatpush1.msra.mxu0 0.0
    %3322 = vmatprep.subr.mxu0 0.0
    %3323 = vmatpush1.msra.mxu0 0.0
    %3324 = vmatprep.subr.mxu0 0.0
    %3325 = vmatpush1.msra.mxu0 0.0
    %3326 = vmatprep.subr.mxu0 0.0
    %3327 = vmatpush1.msra.mxu0 0.0
    %3328 = vmatprep.subr.mxu0 0.0
    %3329 = vmatpush1.msra.mxu0 0.0
    %3330 = vmatprep.mubr.f32.mxu0 0.0
    %3331 = vmatmul.mubr.f32.gmra.mrb[0].mxu0 %v3264
    %v3332 = vpop.f32.mrb[0].mxu0
    %v3333 = vadd.f32 0.0, %v3332
    %v3334 = vpop.f32.mrb[0].mxu0
    %3335 = vdwg.mxu0
    %v3336 = vlaneseq
    %v3337 = vshrl.u32 %v3336, 7
    %v3338 = vsub.s32 0, %v3337
    %v3339 = vrot.slane %v3254, %v3338
    %v3340 = vadd.f32 %v3333, %v3339
    %v3341 = vmul.f32 %v3340, 0.5
    %v3342 = vtanh.pop %v3341
    %v3343 = vmul.f32 %v3342, 0.5
    %v3344 = vadd.f32 %v3343, 0.5
    %3346 = vrot.lane.b32.xlu0 %v3340, 32
    %v3347 = vpop.permute.xlu0 %3346
    %v3349 = vmul.f32 %v3344, %v3347
    %3351 = vrot.lane.b32.xlu0 %v3349, 64
    %v3352 = vpop.permute.xlu0 %3351
    %v3354 = vadd.f32 %v3340, %v3352
    %v3355 = vtanh.pop %v3354
    %v3356 = vsub.f32 %v3039, %v3355
    %3358 = vrot.lane.b32.xlu0 %v3356, 96
    %v3359 = vpop.permute.xlu0 %3358
    %v3361 = vmul.f32 %v3344, %v3359
    %3363 = vrot.lane.b32.xlu0 %v3361, 32
    %v3364 = vpop.permute.xlu0 %3363
    %v3366 = vadd.f32 %v3355, %v3364
    %v3367 = vld [vmem:[#allocation8] sm:$0xff]
    %v3368 = vld [vmem:[#allocation8 + $0x8] sm:$0xff]
    %v3369 = vld [vmem:[#allocation8 + $0x10] sm:$0xff]
    %v3370 = vld [vmem:[#allocation8 + $0x18] sm:$0xff]
    %v3371 = vld [vmem:[%s4] sm:$0x1]
    %v3373 = vlaneseq
    %v3374 = vshrl.u32 %v3373, 7
    %v3375 = vsub.s32 0, %v3374
    %v3376 = vrot.slane %v3371, %v3375
    %3379 = vrot.lane.b32.xlu0 %v3366, 64
    %v3380 = vpop.permute.xlu0 %3379
    %v3381 = vsel %vm84, %v3380, 0
    %3383 = vmatprep.subr.mxu0 0.0
    %3384 = vmatpush1.msra.mxu0 %v3367
    %3385 = vmatprep.subr.mxu0 0.0
    %3386 = vmatpush1.msra.mxu0 %v3368
    %3387 = vmatprep.subr.mxu0 0.0
    %3388 = vmatpush1.msra.mxu0 %v3369
    %3389 = vmatprep.subr.mxu0 0.0
    %3390 = vmatpush1.msra.mxu0 %v3370
    %3391 = vmatprep.subr.mxu0 0.0
    %3392 = vmatpush1.msra.mxu0 0.0
    %3393 = vmatprep.subr.mxu0 0.0
    %3394 = vmatpush1.msra.mxu0 0.0
    %3395 = vmatprep.subr.mxu0 0.0
    %3396 = vmatpush1.msra.mxu0 0.0
    %3397 = vmatprep.subr.mxu0 0.0
    %3398 = vmatpush1.msra.mxu0 0.0
    %3399 = vmatprep.subr.mxu0 0.0
    %3400 = vmatpush1.msra.mxu0 0.0
    %3401 = vmatprep.subr.mxu0 0.0
    %3402 = vmatpush1.msra.mxu0 0.0
    %3403 = vmatprep.subr.mxu0 0.0
    %3404 = vmatpush1.msra.mxu0 0.0
    %3405 = vmatprep.subr.mxu0 0.0
    %3406 = vmatpush1.msra.mxu0 0.0
    %3407 = vmatprep.subr.mxu0 0.0
    %3408 = vmatpush1.msra.mxu0 0.0
    %3409 = vmatprep.subr.mxu0 0.0
    %3410 = vmatpush1.msra.mxu0 0.0
    %3411 = vmatprep.subr.mxu0 0.0
    %3412 = vmatpush1.msra.mxu0 0.0
    %3413 = vmatprep.subr.mxu0 0.0
    %3414 = vmatpush1.msra.mxu0 0.0
    %3415 = vmatprep.subr.mxu0 0.0
    %3416 = vmatpush1.msra.mxu0 0.0
    %3417 = vmatprep.subr.mxu0 0.0
    %3418 = vmatpush1.msra.mxu0 0.0
    %3419 = vmatprep.subr.mxu0 0.0
    %3420 = vmatpush1.msra.mxu0 0.0
    %3421 = vmatprep.subr.mxu0 0.0
    %3422 = vmatpush1.msra.mxu0 0.0
    %3423 = vmatprep.subr.mxu0 0.0
    %3424 = vmatpush1.msra.mxu0 0.0
    %3425 = vmatprep.subr.mxu0 0.0
    %3426 = vmatpush1.msra.mxu0 0.0
    %3427 = vmatprep.subr.mxu0 0.0
    %3428 = vmatpush1.msra.mxu0 0.0
    %3429 = vmatprep.subr.mxu0 0.0
    %3430 = vmatpush1.msra.mxu0 0.0
    %3431 = vmatprep.subr.mxu0 0.0
    %3432 = vmatpush1.msra.mxu0 0.0
    %3433 = vmatprep.subr.mxu0 0.0
    %3434 = vmatpush1.msra.mxu0 0.0
    %3435 = vmatprep.subr.mxu0 0.0
    %3436 = vmatpush1.msra.mxu0 0.0
    %3437 = vmatprep.subr.mxu0 0.0
    %3438 = vmatpush1.msra.mxu0 0.0
    %3439 = vmatprep.subr.mxu0 0.0
    %3440 = vmatpush1.msra.mxu0 0.0
    %3441 = vmatprep.subr.mxu0 0.0
    %3442 = vmatpush1.msra.mxu0 0.0
    %3443 = vmatprep.subr.mxu0 0.0
    %3444 = vmatpush1.msra.mxu0 0.0
    %3445 = vmatprep.subr.mxu0 0.0
    %3446 = vmatpush1.msra.mxu0 0.0
    %3447 = vmatprep.mubr.f32.mxu0 0.0
    %3448 = vmatmul.mubr.f32.gmra.mrb[0].mxu0 %v3381
    %v3449 = vpop.f32.mrb[0].mxu0
    %v3450 = vadd.f32 %v3376, %v3449
    %v3451 = vpop.f32.mrb[0].mxu0
    %3452 = vdwg.mxu0
    %s3453 = scalar_lea.vmem [#allocation10], 8
    %3454 = vst.msk [vmem:[%s3453] sm:$0x3] %vm2144, %v3450
    %v3455 = vld [vmem:[%s2146] sm:$0xff]
    %v3456 = vld [vmem:[%s2146 + $0x8] sm:$0xff]
    %v3457 = vld [vmem:[%s2146 + $0x10] sm:$0xff]
    %v3458 = vld [vmem:[%s2146 + $0x18] sm:$0xff]
    %v3459 = vld [vmem:[%s2146 + $0x20] sm:$0xff]
    %v3460 = vld [vmem:[%s2146 + $0x28] sm:$0xff]
    %v3461 = vld [vmem:[%s2146 + $0x30] sm:$0xff]
    %v3462 = vld [vmem:[%s2146 + $0x38] sm:$0xff]
    %v3463 = vld [vmem:[#allocation7 + $0x4] sm:$0x1]
    %3465 = vrot.lane.b32.xlu0 %v3245, 96
    %v3466 = vpop.permute.xlu0 %3465
    %v3468 = vsel %vm84, %v3380, %v3466
    %v3470 = vsel %vm86, %v3468, 0
    %3472 = vmatprep.subr.mxu0 0.0
    %3473 = vmatpush1.msra.mxu0 %v3455
    %3474 = vmatprep.subr.mxu0 0.0
    %3475 = vmatpush1.msra.mxu0 %v3456
    %3476 = vmatprep.subr.mxu0 0.0
    %3477 = vmatpush1.msra.mxu0 %v3457
    %3478 = vmatprep.subr.mxu0 0.0
    %3479 = vmatpush1.msra.mxu0 %v3458
    %3480 = vmatprep.subr.mxu0 0.0
    %3481 = vmatpush1.msra.mxu0 %v3459
    %3482 = vmatprep.subr.mxu0 0.0
    %3483 = vmatpush1.msra.mxu0 %v3460
    %3484 = vmatprep.subr.mxu0 0.0
    %3485 = vmatpush1.msra.mxu0 %v3461
    %3486 = vmatprep.subr.mxu0 0.0
    %3487 = vmatpush1.msra.mxu0 %v3462
    %3488 = vmatprep.subr.mxu0 0.0
    %3489 = vmatpush1.msra.mxu0 0.0
    %3490 = vmatprep.subr.mxu0 0.0
    %3491 = vmatpush1.msra.mxu0 0.0
    %3492 = vmatprep.subr.mxu0 0.0
    %3493 = vmatpush1.msra.mxu0 0.0
    %3494 = vmatprep.subr.mxu0 0.0
    %3495 = vmatpush1.msra.mxu0 0.0
    %3496 = vmatprep.subr.mxu0 0.0
    %3497 = vmatpush1.msra.mxu0 0.0
    %3498 = vmatprep.subr.mxu0 0.0
    %3499 = vmatpush1.msra.mxu0 0.0
    %3500 = vmatprep.subr.mxu0 0.0
    %3501 = vmatpush1.msra.mxu0 0.0
    %3502 = vmatprep.subr.mxu0 0.0
    %3503 = vmatpush1.msra.mxu0 0.0
    %3504 = vmatprep.subr.mxu0 0.0
    %3505 = vmatpush1.msra.mxu0 0.0
    %3506 = vmatprep.subr.mxu0 0.0
    %3507 = vmatpush1.msra.mxu0 0.0
    %3508 = vmatprep.subr.mxu0 0.0
    %3509 = vmatpush1.msra.mxu0 0.0
    %3510 = vmatprep.subr.mxu0 0.0
    %3511 = vmatpush1.msra.mxu0 0.0
    %3512 = vmatprep.subr.mxu0 0.0
    %3513 = vmatpush1.msra.mxu0 0.0
    %3514 = vmatprep.subr.mxu0 0.0
    %3515 = vmatpush1.msra.mxu0 0.0
    %3516 = vmatprep.subr.mxu0 0.0
    %3517 = vmatpush1.msra.mxu0 0.0
    %3518 = vmatprep.subr.mxu0 0.0
    %3519 = vmatpush1.msra.mxu0 0.0
    %3520 = vmatprep.subr.mxu0 0.0
    %3521 = vmatpush1.msra.mxu0 0.0
    %3522 = vmatprep.subr.mxu0 0.0
    %3523 = vmatpush1.msra.mxu0 0.0
    %3524 = vmatprep.subr.mxu0 0.0
    %3525 = vmatpush1.msra.mxu0 0.0
    %3526 = vmatprep.subr.mxu0 0.0
    %3527 = vmatpush1.msra.mxu0 0.0
    %3528 = vmatprep.subr.mxu0 0.0
    %3529 = vmatpush1.msra.mxu0 0.0
    %3530 = vmatprep.subr.mxu0 0.0
    %3531 = vmatpush1.msra.mxu0 0.0
    %3532 = vmatprep.subr.mxu0 0.0
    %3533 = vmatpush1.msra.mxu0 0.0
    %3534 = vmatprep.subr.mxu0 0.0
    %3535 = vmatpush1.msra.mxu0 0.0
    %3536 = vmatprep.mubr.f32.mxu0 0.0
    %3537 = vmatmul.mubr.f32.gmra.mrb[0].mxu0 %v3470
    %v3538 = vpop.f32.mrb[0].mxu0
    %v3539 = vadd.f32 0.0, %v3538
    %v3540 = vpop.f32.mrb[0].mxu0
    %3541 = vdwg.mxu0
    %v3542 = vlaneseq
    %v3543 = vshrl.u32 %v3542, 7
    %v3544 = vsub.s32 0, %v3543
    %v3545 = vrot.slane %v3463, %v3544
    %v3546 = vadd.f32 %v3539, %v3545
    %v3547 = vmul.f32 %v3546, 0.5
    %v3548 = vtanh.pop %v3547
    %v3549 = vmul.f32 %v3548, 0.5
    %v3550 = vadd.f32 %v3549, 0.5
    %3552 = vrot.lane.b32.xlu0 %v3546, 32
    %v3553 = vpop.permute.xlu0 %3552
    %v3555 = vmul.f32 %v3550, %v3553
    %3557 = vrot.lane.b32.xlu0 %v3555, 64
    %v3558 = vpop.permute.xlu0 %3557
    %v3560 = vadd.f32 %v3546, %v3558
    %v3561 = vtanh.pop %v3560
    %v3562 = vsub.f32 %v3245, %v3561
    %3564 = vrot.lane.b32.xlu0 %v3562, 96
    %v3565 = vpop.permute.xlu0 %3564
    %v3567 = vmul.f32 %v3550, %v3565
    %3569 = vrot.lane.b32.xlu0 %v3567, 32
    %v3570 = vpop.permute.xlu0 %3569
    %v3572 = vadd.f32 %v3561, %v3570
    %v3573 = vld [vmem:[%s1935] sm:$0xff]
    %v3574 = vld [vmem:[%s1935 + $0x8] sm:$0xff]
    %v3575 = vld [vmem:[%s1935 + $0x10] sm:$0xff]
    %v3576 = vld [vmem:[%s1935 + $0x18] sm:$0xff]
    %v3577 = vld [vmem:[%s1935 + $0x20] sm:$0xff]
    %v3578 = vld [vmem:[%s1935 + $0x28] sm:$0xff]
    %v3579 = vld [vmem:[%s1935 + $0x30] sm:$0xff]
    %v3580 = vld [vmem:[%s1935 + $0x38] sm:$0xff]
    %v3581 = vld [vmem:[#allocation7 + $0x3] sm:$0x1]
    %3583 = vrot.lane.b32.xlu0 %v3572, 64
    %v3584 = vpop.permute.xlu0 %3583
    %3586 = vrot.lane.b32.xlu0 %v3366, 96
    %v3587 = vpop.permute.xlu0 %3586
    %v3589 = vsel %vm84, %v3584, %v3587
    %v3591 = vsel %vm86, %v3589, 0
    %3593 = vmatprep.subr.mxu0 0.0
    %3594 = vmatpush1.msra.mxu0 %v3573
    %3595 = vmatprep.subr.mxu0 0.0
    %3596 = vmatpush1.msra.mxu0 %v3574
    %3597 = vmatprep.subr.mxu0 0.0
    %3598 = vmatpush1.msra.mxu0 %v3575
    %3599 = vmatprep.subr.mxu0 0.0
    %3600 = vmatpush1.msra.mxu0 %v3576
    %3601 = vmatprep.subr.mxu0 0.0
    %3602 = vmatpush1.msra.mxu0 %v3577
    %3603 = vmatprep.subr.mxu0 0.0
    %3604 = vmatpush1.msra.mxu0 %v3578
    %3605 = vmatprep.subr.mxu0 0.0
    %3606 = vmatpush1.msra.mxu0 %v3579
    %3607 = vmatprep.subr.mxu0 0.0
    %3608 = vmatpush1.msra.mxu0 %v3580
    %3609 = vmatprep.subr.mxu0 0.0
    %3610 = vmatpush1.msra.mxu0 0.0
    %3611 = vmatprep.subr.mxu0 0.0
    %3612 = vmatpush1.msra.mxu0 0.0
    %3613 = vmatprep.subr.mxu0 0.0
    %3614 = vmatpush1.msra.mxu0 0.0
    %3615 = vmatprep.subr.mxu0 0.0
    %3616 = vmatpush1.msra.mxu0 0.0
    %3617 = vmatprep.subr.mxu0 0.0
    %3618 = vmatpush1.msra.mxu0 0.0
    %3619 = vmatprep.subr.mxu0 0.0
    %3620 = vmatpush1.msra.mxu0 0.0
    %3621 = vmatprep.subr.mxu0 0.0
    %3622 = vmatpush1.msra.mxu0 0.0
    %3623 = vmatprep.subr.mxu0 0.0
    %3624 = vmatpush1.msra.mxu0 0.0
    %3625 = vmatprep.subr.mxu0 0.0
    %3626 = vmatpush1.msra.mxu0 0.0
    %3627 = vmatprep.subr.mxu0 0.0
    %3628 = vmatpush1.msra.mxu0 0.0
    %3629 = vmatprep.subr.mxu0 0.0
    %3630 = vmatpush1.msra.mxu0 0.0
    %3631 = vmatprep.subr.mxu0 0.0
    %3632 = vmatpush1.msra.mxu0 0.0
    %3633 = vmatprep.subr.mxu0 0.0
    %3634 = vmatpush1.msra.mxu0 0.0
    %3635 = vmatprep.subr.mxu0 0.0
    %3636 = vmatpush1.msra.mxu0 0.0
    %3637 = vmatprep.subr.mxu0 0.0
    %3638 = vmatpush1.msra.mxu0 0.0
    %3639 = vmatprep.subr.mxu0 0.0
    %3640 = vmatpush1.msra.mxu0 0.0
    %3641 = vmatprep.subr.mxu0 0.0
    %3642 = vmatpush1.msra.mxu0 0.0
    %3643 = vmatprep.subr.mxu0 0.0
    %3644 = vmatpush1.msra.mxu0 0.0
    %3645 = vmatprep.subr.mxu0 0.0
    %3646 = vmatpush1.msra.mxu0 0.0
    %3647 = vmatprep.subr.mxu0 0.0
    %3648 = vmatpush1.msra.mxu0 0.0
    %3649 = vmatprep.subr.mxu0 0.0
    %3650 = vmatpush1.msra.mxu0 0.0
    %3651 = vmatprep.subr.mxu0 0.0
    %3652 = vmatpush1.msra.mxu0 0.0
    %3653 = vmatprep.subr.mxu0 0.0
    %3654 = vmatpush1.msra.mxu0 0.0
    %3655 = vmatprep.subr.mxu0 0.0
    %3656 = vmatpush1.msra.mxu0 0.0
    %3657 = vmatprep.mubr.f32.mxu0 0.0
    %3658 = vmatmul.mubr.f32.gmra.mrb[0].mxu0 %v3591
    %v3659 = vpop.f32.mrb[0].mxu0
    %v3660 = vadd.f32 0.0, %v3659
    %v3661 = vpop.f32.mrb[0].mxu0
    %3662 = vdwg.mxu0
    %v3663 = vlaneseq
    %v3664 = vshrl.u32 %v3663, 7
    %v3665 = vsub.s32 0, %v3664
    %v3666 = vrot.slane %v3581, %v3665
    %v3667 = vadd.f32 %v3660, %v3666
    %v3668 = vmul.f32 %v3667, 0.5
    %v3669 = vtanh.pop %v3668
    %v3670 = vmul.f32 %v3669, 0.5
    %v3671 = vadd.f32 %v3670, 0.5
    %3673 = vrot.lane.b32.xlu0 %v3667, 32
    %v3674 = vpop.permute.xlu0 %3673
    %v3676 = vmul.f32 %v3671, %v3674
    %3678 = vrot.lane.b32.xlu0 %v3676, 64
    %v3679 = vpop.permute.xlu0 %3678
    %v3681 = vadd.f32 %v3667, %v3679
    %v3682 = vtanh.pop %v3681
    %v3683 = vsub.f32 %v3366, %v3682
    %3685 = vrot.lane.b32.xlu0 %v3683, 96
    %v3686 = vpop.permute.xlu0 %3685
    %v3688 = vmul.f32 %v3671, %v3686
    %3690 = vrot.lane.b32.xlu0 %v3688, 32
    %v3691 = vpop.permute.xlu0 %3690
    %v3693 = vadd.f32 %v3682, %v3691
    %v3694 = vld [vmem:[#allocation8] sm:$0xff]
    %v3695 = vld [vmem:[#allocation8 + $0x8] sm:$0xff]
    %v3696 = vld [vmem:[#allocation8 + $0x10] sm:$0xff]
    %v3697 = vld [vmem:[#allocation8 + $0x18] sm:$0xff]
    %v3698 = vld [vmem:[%s4] sm:$0x1]
    %v3700 = vlaneseq
    %v3701 = vshrl.u32 %v3700, 7
    %v3702 = vsub.s32 0, %v3701
    %v3703 = vrot.slane %v3698, %v3702
    %3706 = vrot.lane.b32.xlu0 %v3693, 64
    %v3707 = vpop.permute.xlu0 %3706
    %v3708 = vsel %vm84, %v3707, 0
    %3710 = vmatprep.subr.mxu0 0.0
    %3711 = vmatpush1.msra.mxu0 %v3694
    %3712 = vmatprep.subr.mxu0 0.0
    %3713 = vmatpush1.msra.mxu0 %v3695
    %3714 = vmatprep.subr.mxu0 0.0
    %3715 = vmatpush1.msra.mxu0 %v3696
    %3716 = vmatprep.subr.mxu0 0.0
    %3717 = vmatpush1.msra.mxu0 %v3697
    %3718 = vmatprep.subr.mxu0 0.0
    %3719 = vmatpush1.msra.mxu0 0.0
    %3720 = vmatprep.subr.mxu0 0.0
    %3721 = vmatpush1.msra.mxu0 0.0
    %3722 = vmatprep.subr.mxu0 0.0
    %3723 = vmatpush1.msra.mxu0 0.0
    %3724 = vmatprep.subr.mxu0 0.0
    %3725 = vmatpush1.msra.mxu0 0.0
    %3726 = vmatprep.subr.mxu0 0.0
    %3727 = vmatpush1.msra.mxu0 0.0
    %3728 = vmatprep.subr.mxu0 0.0
    %3729 = vmatpush1.msra.mxu0 0.0
    %3730 = vmatprep.subr.mxu0 0.0
    %3731 = vmatpush1.msra.mxu0 0.0
    %3732 = vmatprep.subr.mxu0 0.0
    %3733 = vmatpush1.msra.mxu0 0.0
    %3734 = vmatprep.subr.mxu0 0.0
    %3735 = vmatpush1.msra.mxu0 0.0
    %3736 = vmatprep.subr.mxu0 0.0
    %3737 = vmatpush1.msra.mxu0 0.0
    %3738 = vmatprep.subr.mxu0 0.0
    %3739 = vmatpush1.msra.mxu0 0.0
    %3740 = vmatprep.subr.mxu0 0.0
    %3741 = vmatpush1.msra.mxu0 0.0
    %3742 = vmatprep.subr.mxu0 0.0
    %3743 = vmatpush1.msra.mxu0 0.0
    %3744 = vmatprep.subr.mxu0 0.0
    %3745 = vmatpush1.msra.mxu0 0.0
    %3746 = vmatprep.subr.mxu0 0.0
    %3747 = vmatpush1.msra.mxu0 0.0
    %3748 = vmatprep.subr.mxu0 0.0
    %3749 = vmatpush1.msra.mxu0 0.0
    %3750 = vmatprep.subr.mxu0 0.0
    %3751 = vmatpush1.msra.mxu0 0.0
    %3752 = vmatprep.subr.mxu0 0.0
    %3753 = vmatpush1.msra.mxu0 0.0
    %3754 = vmatprep.subr.mxu0 0.0
    %3755 = vmatpush1.msra.mxu0 0.0
    %3756 = vmatprep.subr.mxu0 0.0
    %3757 = vmatpush1.msra.mxu0 0.0
    %3758 = vmatprep.subr.mxu0 0.0
    %3759 = vmatpush1.msra.mxu0 0.0
    %3760 = vmatprep.subr.mxu0 0.0
    %3761 = vmatpush1.msra.mxu0 0.0
    %3762 = vmatprep.subr.mxu0 0.0
    %3763 = vmatpush1.msra.mxu0 0.0
    %3764 = vmatprep.subr.mxu0 0.0
    %3765 = vmatpush1.msra.mxu0 0.0
    %3766 = vmatprep.subr.mxu0 0.0
    %3767 = vmatpush1.msra.mxu0 0.0
    %3768 = vmatprep.subr.mxu0 0.0
    %3769 = vmatpush1.msra.mxu0 0.0
    %3770 = vmatprep.subr.mxu0 0.0
    %3771 = vmatpush1.msra.mxu0 0.0
    %3772 = vmatprep.subr.mxu0 0.0
    %3773 = vmatpush1.msra.mxu0 0.0
    %3774 = vmatprep.mubr.f32.mxu0 0.0
    %3775 = vmatmul.mubr.f32.gmra.mrb[0].mxu0 %v3708
    %v3776 = vpop.f32.mrb[0].mxu0
    %v3777 = vadd.f32 %v3703, %v3776
    %v3778 = vpop.f32.mrb[0].mxu0
    %3779 = vdwg.mxu0
    %s3780 = scalar_lea.vmem [#allocation10], 10
    %3781 = vst.msk [vmem:[%s3780] sm:$0x3] %vm2144, %v3777
    %v3782 = vld [vmem:[%s2146] sm:$0xff]
    %v3783 = vld [vmem:[%s2146 + $0x8] sm:$0xff]
    %v3784 = vld [vmem:[%s2146 + $0x10] sm:$0xff]
    %v3785 = vld [vmem:[%s2146 + $0x18] sm:$0xff]
    %v3786 = vld [vmem:[%s2146 + $0x20] sm:$0xff]
    %v3787 = vld [vmem:[%s2146 + $0x28] sm:$0xff]
    %v3788 = vld [vmem:[%s2146 + $0x30] sm:$0xff]
    %v3789 = vld [vmem:[%s2146 + $0x38] sm:$0xff]
    %v3790 = vld [vmem:[#allocation7 + $0x4] sm:$0x1]
    %3792 = vrot.lane.b32.xlu0 %v3572, 96
    %v3793 = vpop.permute.xlu0 %3792
    %v3795 = vsel %vm84, %v3707, %v3793
    %v3797 = vsel %vm86, %v3795, 0
    %3799 = vmatprep.subr.mxu0 0.0
    %3800 = vmatpush1.msra.mxu0 %v3782
    %3801 = vmatprep.subr.mxu0 0.0
    %3802 = vmatpush1.msra.mxu0 %v3783
    %3803 = vmatprep.subr.mxu0 0.0
    %3804 = vmatpush1.msra.mxu0 %v3784
    %3805 = vmatprep.subr.mxu0 0.0
    %3806 = vmatpush1.msra.mxu0 %v3785
    %3807 = vmatprep.subr.mxu0 0.0
    %3808 = vmatpush1.msra.mxu0 %v3786
    %3809 = vmatprep.subr.mxu0 0.0
    %3810 = vmatpush1.msra.mxu0 %v3787
    %3811 = vmatprep.subr.mxu0 0.0
    %3812 = vmatpush1.msra.mxu0 %v3788
    %3813 = vmatprep.subr.mxu0 0.0
    %3814 = vmatpush1.msra.mxu0 %v3789
    %3815 = vmatprep.subr.mxu0 0.0
    %3816 = vmatpush1.msra.mxu0 0.0
    %3817 = vmatprep.subr.mxu0 0.0
    %3818 = vmatpush1.msra.mxu0 0.0
    %3819 = vmatprep.subr.mxu0 0.0
    %3820 = vmatpush1.msra.mxu0 0.0
    %3821 = vmatprep.subr.mxu0 0.0
    %3822 = vmatpush1.msra.mxu0 0.0
    %3823 = vmatprep.subr.mxu0 0.0
    %3824 = vmatpush1.msra.mxu0 0.0
    %3825 = vmatprep.subr.mxu0 0.0
    %3826 = vmatpush1.msra.mxu0 0.0
    %3827 = vmatprep.subr.mxu0 0.0
    %3828 = vmatpush1.msra.mxu0 0.0
    %3829 = vmatprep.subr.mxu0 0.0
    %3830 = vmatpush1.msra.mxu0 0.0
    %3831 = vmatprep.subr.mxu0 0.0
    %3832 = vmatpush1.msra.mxu0 0.0
    %3833 = vmatprep.subr.mxu0 0.0
    %3834 = vmatpush1.msra.mxu0 0.0
    %3835 = vmatprep.subr.mxu0 0.0
    %3836 = vmatpush1.msra.mxu0 0.0
    %3837 = vmatprep.subr.mxu0 0.0
    %3838 = vmatpush1.msra.mxu0 0.0
    %3839 = vmatprep.subr.mxu0 0.0
    %3840 = vmatpush1.msra.mxu0 0.0
    %3841 = vmatprep.subr.mxu0 0.0
    %3842 = vmatpush1.msra.mxu0 0.0
    %3843 = vmatprep.subr.mxu0 0.0
    %3844 = vmatpush1.msra.mxu0 0.0
    %3845 = vmatprep.subr.mxu0 0.0
    %3846 = vmatpush1.msra.mxu0 0.0
    %3847 = vmatprep.subr.mxu0 0.0
    %3848 = vmatpush1.msra.mxu0 0.0
    %3849 = vmatprep.subr.mxu0 0.0
    %3850 = vmatpush1.msra.mxu0 0.0
    %3851 = vmatprep.subr.mxu0 0.0
    %3852 = vmatpush1.msra.mxu0 0.0
    %3853 = vmatprep.subr.mxu0 0.0
    %3854 = vmatpush1.msra.mxu0 0.0
    %3855 = vmatprep.subr.mxu0 0.0
    %3856 = vmatpush1.msra.mxu0 0.0
    %3857 = vmatprep.subr.mxu0 0.0
    %3858 = vmatpush1.msra.mxu0 0.0
    %3859 = vmatprep.subr.mxu0 0.0
    %3860 = vmatpush1.msra.mxu0 0.0
    %3861 = vmatprep.subr.mxu0 0.0
    %3862 = vmatpush1.msra.mxu0 0.0
    %3863 = vmatprep.mubr.f32.mxu0 0.0
    %3864 = vmatmul.mubr.f32.gmra.mrb[0].mxu0 %v3797
    %v3865 = vpop.f32.mrb[0].mxu0
    %v3866 = vadd.f32 0.0, %v3865
    %v3867 = vpop.f32.mrb[0].mxu0
    %3868 = vdwg.mxu0
    %v3869 = vlaneseq
    %v3870 = vshrl.u32 %v3869, 7
    %v3871 = vsub.s32 0, %v3870
    %v3872 = vrot.slane %v3790, %v3871
    %v3873 = vadd.f32 %v3866, %v3872
    %v3874 = vmul.f32 %v3873, 0.5
    %v3875 = vtanh.pop %v3874
    %v3876 = vmul.f32 %v3875, 0.5
    %v3877 = vadd.f32 %v3876, 0.5
    %3879 = vrot.lane.b32.xlu0 %v3873, 32
    %v3880 = vpop.permute.xlu0 %3879
    %v3882 = vmul.f32 %v3877, %v3880
    %3884 = vrot.lane.b32.xlu0 %v3882, 64
    %v3885 = vpop.permute.xlu0 %3884
    %v3887 = vadd.f32 %v3873, %v3885
    %v3888 = vtanh.pop %v3887
    %v3889 = vsub.f32 %v3572, %v3888
    %3891 = vrot.lane.b32.xlu0 %v3889, 96
    %v3892 = vpop.permute.xlu0 %3891
    %v3894 = vmul.f32 %v3877, %v3892
    %3896 = vrot.lane.b32.xlu0 %v3894, 32
    %v3897 = vpop.permute.xlu0 %3896
    %v3899 = vadd.f32 %v3888, %v3897
    %v3900 = vld [vmem:[%s1935] sm:$0xff]
    %v3901 = vld [vmem:[%s1935 + $0x8] sm:$0xff]
    %v3902 = vld [vmem:[%s1935 + $0x10] sm:$0xff]
    %v3903 = vld [vmem:[%s1935 + $0x18] sm:$0xff]
    %v3904 = vld [vmem:[%s1935 + $0x20] sm:$0xff]
    %v3905 = vld [vmem:[%s1935 + $0x28] sm:$0xff]
    %v3906 = vld [vmem:[%s1935 + $0x30] sm:$0xff]
    %v3907 = vld [vmem:[%s1935 + $0x38] sm:$0xff]
    %v3908 = vld [vmem:[#allocation7 + $0x3] sm:$0x1]
    %3910 = vrot.lane.b32.xlu0 %v3899, 64
    %v3911 = vpop.permute.xlu0 %3910
    %3913 = vrot.lane.b32.xlu0 %v3693, 96
    %v3914 = vpop.permute.xlu0 %3913
    %v3916 = vsel %vm84, %v3911, %v3914
    %v3918 = vsel %vm86, %v3916, 0
    %3920 = vmatprep.subr.mxu0 0.0
    %3921 = vmatpush1.msra.mxu0 %v3900
    %3922 = vmatprep.subr.mxu0 0.0
    %3923 = vmatpush1.msra.mxu0 %v3901
    %3924 = vmatprep.subr.mxu0 0.0
    %3925 = vmatpush1.msra.mxu0 %v3902
    %3926 = vmatprep.subr.mxu0 0.0
    %3927 = vmatpush1.msra.mxu0 %v3903
    %3928 = vmatprep.subr.mxu0 0.0
    %3929 = vmatpush1.msra.mxu0 %v3904
    %3930 = vmatprep.subr.mxu0 0.0
    %3931 = vmatpush1.msra.mxu0 %v3905
    %3932 = vmatprep.subr.mxu0 0.0
    %3933 = vmatpush1.msra.mxu0 %v3906
    %3934 = vmatprep.subr.mxu0 0.0
    %3935 = vmatpush1.msra.mxu0 %v3907
    %3936 = vmatprep.subr.mxu0 0.0
    %3937 = vmatpush1.msra.mxu0 0.0
    %3938 = vmatprep.subr.mxu0 0.0
    %3939 = vmatpush1.msra.mxu0 0.0
    %3940 = vmatprep.subr.mxu0 0.0
    %3941 = vmatpush1.msra.mxu0 0.0
    %3942 = vmatprep.subr.mxu0 0.0
    %3943 = vmatpush1.msra.mxu0 0.0
    %3944 = vmatprep.subr.mxu0 0.0
    %3945 = vmatpush1.msra.mxu0 0.0
    %3946 = vmatprep.subr.mxu0 0.0
    %3947 = vmatpush1.msra.mxu0 0.0
    %3948 = vmatprep.subr.mxu0 0.0
    %3949 = vmatpush1.msra.mxu0 0.0
    %3950 = vmatprep.subr.mxu0 0.0
    %3951 = vmatpush1.msra.mxu0 0.0
    %3952 = vmatprep.subr.mxu0 0.0
    %3953 = vmatpush1.msra.mxu0 0.0
    %3954 = vmatprep.subr.mxu0 0.0
    %3955 = vmatpush1.msra.mxu0 0.0
    %3956 = vmatprep.subr.mxu0 0.0
    %3957 = vmatpush1.msra.mxu0 0.0
    %3958 = vmatprep.subr.mxu0 0.0
    %3959 = vmatpush1.msra.mxu0 0.0
    %3960 = vmatprep.subr.mxu0 0.0
    %3961 = vmatpush1.msra.mxu0 0.0
    %3962 = vmatprep.subr.mxu0 0.0
    %3963 = vmatpush1.msra.mxu0 0.0
    %3964 = vmatprep.subr.mxu0 0.0
    %3965 = vmatpush1.msra.mxu0 0.0
    %3966 = vmatprep.subr.mxu0 0.0
    %3967 = vmatpush1.msra.mxu0 0.0
    %3968 = vmatprep.subr.mxu0 0.0
    %3969 = vmatpush1.msra.mxu0 0.0
    %3970 = vmatprep.subr.mxu0 0.0
    %3971 = vmatpush1.msra.mxu0 0.0
    %3972 = vmatprep.subr.mxu0 0.0
    %3973 = vmatpush1.msra.mxu0 0.0
    %3974 = vmatprep.subr.mxu0 0.0
    %3975 = vmatpush1.msra.mxu0 0.0
    %3976 = vmatprep.subr.mxu0 0.0
    %3977 = vmatpush1.msra.mxu0 0.0
    %3978 = vmatprep.subr.mxu0 0.0
    %3979 = vmatpush1.msra.mxu0 0.0
    %3980 = vmatprep.subr.mxu0 0.0
    %3981 = vmatpush1.msra.mxu0 0.0
    %3982 = vmatprep.subr.mxu0 0.0
    %3983 = vmatpush1.msra.mxu0 0.0
    %3984 = vmatprep.mubr.f32.mxu0 0.0
    %3985 = vmatmul.mubr.f32.gmra.mrb[0].mxu0 %v3918
    %v3986 = vpop.f32.mrb[0].mxu0
    %v3987 = vadd.f32 0.0, %v3986
    %v3988 = vpop.f32.mrb[0].mxu0
    %3989 = vdwg.mxu0
    %v3990 = vlaneseq
    %v3991 = vshrl.u32 %v3990, 7
    %v3992 = vsub.s32 0, %v3991
    %v3993 = vrot.slane %v3908, %v3992
    %v3994 = vadd.f32 %v3987, %v3993
    %v3995 = vmul.f32 %v3994, 0.5
    %v3996 = vtanh.pop %v3995
    %v3997 = vmul.f32 %v3996, 0.5
    %v3998 = vadd.f32 %v3997, 0.5
    %4000 = vrot.lane.b32.xlu0 %v3994, 32
    %v4001 = vpop.permute.xlu0 %4000
    %v4003 = vmul.f32 %v3998, %v4001
    %4005 = vrot.lane.b32.xlu0 %v4003, 64
    %v4006 = vpop.permute.xlu0 %4005
    %v4008 = vadd.f32 %v3994, %v4006
    %v4009 = vtanh.pop %v4008
    %v4010 = vsub.f32 %v3693, %v4009
    %4012 = vrot.lane.b32.xlu0 %v4010, 96
    %v4013 = vpop.permute.xlu0 %4012
    %v4015 = vmul.f32 %v3998, %v4013
    %4017 = vrot.lane.b32.xlu0 %v4015, 32
    %v4018 = vpop.permute.xlu0 %4017
    %v4020 = vadd.f32 %v4009, %v4018
    %v4021 = vld [vmem:[#allocation8] sm:$0xff]
    %v4022 = vld [vmem:[#allocation8 + $0x8] sm:$0xff]
    %v4023 = vld [vmem:[#allocation8 + $0x10] sm:$0xff]
    %v4024 = vld [vmem:[#allocation8 + $0x18] sm:$0xff]
    %v4025 = vld [vmem:[%s4] sm:$0x1]
    %v4027 = vlaneseq
    %v4028 = vshrl.u32 %v4027, 7
    %v4029 = vsub.s32 0, %v4028
    %v4030 = vrot.slane %v4025, %v4029
    %4033 = vrot.lane.b32.xlu0 %v4020, 64
    %v4034 = vpop.permute.xlu0 %4033
    %v4035 = vsel %vm84, %v4034, 0
    %4037 = vmatprep.subr.mxu0 0.0
    %4038 = vmatpush1.msra.mxu0 %v4021
    %4039 = vmatprep.subr.mxu0 0.0
    %4040 = vmatpush1.msra.mxu0 %v4022
    %4041 = vmatprep.subr.mxu0 0.0
    %4042 = vmatpush1.msra.mxu0 %v4023
    %4043 = vmatprep.subr.mxu0 0.0
    %4044 = vmatpush1.msra.mxu0 %v4024
    %4045 = vmatprep.subr.mxu0 0.0
    %4046 = vmatpush1.msra.mxu0 0.0
    %4047 = vmatprep.subr.mxu0 0.0
    %4048 = vmatpush1.msra.mxu0 0.0
    %4049 = vmatprep.subr.mxu0 0.0
    %4050 = vmatpush1.msra.mxu0 0.0
    %4051 = vmatprep.subr.mxu0 0.0
    %4052 = vmatpush1.msra.mxu0 0.0
    %4053 = vmatprep.subr.mxu0 0.0
    %4054 = vmatpush1.msra.mxu0 0.0
    %4055 = vmatprep.subr.mxu0 0.0
    %4056 = vmatpush1.msra.mxu0 0.0
    %4057 = vmatprep.subr.mxu0 0.0
    %4058 = vmatpush1.msra.mxu0 0.0
    %4059 = vmatprep.subr.mxu0 0.0
    %4060 = vmatpush1.msra.mxu0 0.0
    %4061 = vmatprep.subr.mxu0 0.0
    %4062 = vmatpush1.msra.mxu0 0.0
    %4063 = vmatprep.subr.mxu0 0.0
    %4064 = vmatpush1.msra.mxu0 0.0
    %4065 = vmatprep.subr.mxu0 0.0
    %4066 = vmatpush1.msra.mxu0 0.0
    %4067 = vmatprep.subr.mxu0 0.0
    %4068 = vmatpush1.msra.mxu0 0.0
    %4069 = vmatprep.subr.mxu0 0.0
    %4070 = vmatpush1.msra.mxu0 0.0
    %4071 = vmatprep.subr.mxu0 0.0
    %4072 = vmatpush1.msra.mxu0 0.0
    %4073 = vmatprep.subr.mxu0 0.0
    %4074 = vmatpush1.msra.mxu0 0.0
    %4075 = vmatprep.subr.mxu0 0.0
    %4076 = vmatpush1.msra.mxu0 0.0
    %4077 = vmatprep.subr.mxu0 0.0
    %4078 = vmatpush1.msra.mxu0 0.0
    %4079 = vmatprep.subr.mxu0 0.0
    %4080 = vmatpush1.msra.mxu0 0.0
    %4081 = vmatprep.subr.mxu0 0.0
    %4082 = vmatpush1.msra.mxu0 0.0
    %4083 = vmatprep.subr.mxu0 0.0
    %4084 = vmatpush1.msra.mxu0 0.0
    %4085 = vmatprep.subr.mxu0 0.0
    %4086 = vmatpush1.msra.mxu0 0.0
    %4087 = vmatprep.subr.mxu0 0.0
    %4088 = vmatpush1.msra.mxu0 0.0
    %4089 = vmatprep.subr.mxu0 0.0
    %4090 = vmatpush1.msra.mxu0 0.0
    %4091 = vmatprep.subr.mxu0 0.0
    %4092 = vmatpush1.msra.mxu0 0.0
    %4093 = vmatprep.subr.mxu0 0.0
    %4094 = vmatpush1.msra.mxu0 0.0
    %4095 = vmatprep.subr.mxu0 0.0
    %4096 = vmatpush1.msra.mxu0 0.0
    %4097 = vmatprep.subr.mxu0 0.0
    %4098 = vmatpush1.msra.mxu0 0.0
    %4099 = vmatprep.subr.mxu0 0.0
    %4100 = vmatpush1.msra.mxu0 0.0
    %4101 = vmatprep.mubr.f32.mxu0 0.0
    %4102 = vmatmul.mubr.f32.gmra.mrb[0].mxu0 %v4035
    %v4103 = vpop.f32.mrb[0].mxu0
    %v4104 = vadd.f32 %v4030, %v4103
    %v4105 = vpop.f32.mrb[0].mxu0
    %4106 = vdwg.mxu0
    %s4107 = scalar_lea.vmem [#allocation10], 12
    %4108 = vst.msk [vmem:[%s4107] sm:$0x3] %vm2144, %v4104
    %v4109 = vld [vmem:[%s2146] sm:$0xff]
    %v4110 = vld [vmem:[%s2146 + $0x8] sm:$0xff]
    %v4111 = vld [vmem:[%s2146 + $0x10] sm:$0xff]
    %v4112 = vld [vmem:[%s2146 + $0x18] sm:$0xff]
    %v4113 = vld [vmem:[%s2146 + $0x20] sm:$0xff]
    %v4114 = vld [vmem:[%s2146 + $0x28] sm:$0xff]
    %v4115 = vld [vmem:[%s2146 + $0x30] sm:$0xff]
    %v4116 = vld [vmem:[%s2146 + $0x38] sm:$0xff]
    %v4117 = vld [vmem:[#allocation7 + $0x4] sm:$0x1]
    %4119 = vrot.lane.b32.xlu0 %v3899, 96
    %v4120 = vpop.permute.xlu0 %4119
    %v4122 = vsel %vm84, %v4034, %v4120
    %v4124 = vsel %vm86, %v4122, 0
    %4126 = vmatprep.subr.mxu0 0.0
    %4127 = vmatpush1.msra.mxu0 %v4109
    %4128 = vmatprep.subr.mxu0 0.0
    %4129 = vmatpush1.msra.mxu0 %v4110
    %4130 = vmatprep.subr.mxu0 0.0
    %4131 = vmatpush1.msra.mxu0 %v4111
    %4132 = vmatprep.subr.mxu0 0.0
    %4133 = vmatpush1.msra.mxu0 %v4112
    %4134 = vmatprep.subr.mxu0 0.0
    %4135 = vmatpush1.msra.mxu0 %v4113
    %4136 = vmatprep.subr.mxu0 0.0
    %4137 = vmatpush1.msra.mxu0 %v4114
    %4138 = vmatprep.subr.mxu0 0.0
    %4139 = vmatpush1.msra.mxu0 %v4115
    %4140 = vmatprep.subr.mxu0 0.0
    %4141 = vmatpush1.msra.mxu0 %v4116
    %4142 = vmatprep.subr.mxu0 0.0
    %4143 = vmatpush1.msra.mxu0 0.0
    %4144 = vmatprep.subr.mxu0 0.0
    %4145 = vmatpush1.msra.mxu0 0.0
    %4146 = vmatprep.subr.mxu0 0.0
    %4147 = vmatpush1.msra.mxu0 0.0
    %4148 = vmatprep.subr.mxu0 0.0
    %4149 = vmatpush1.msra.mxu0 0.0
    %4150 = vmatprep.subr.mxu0 0.0
    %4151 = vmatpush1.msra.mxu0 0.0
    %4152 = vmatprep.subr.mxu0 0.0
    %4153 = vmatpush1.msra.mxu0 0.0
    %4154 = vmatprep.subr.mxu0 0.0
    %4155 = vmatpush1.msra.mxu0 0.0
    %4156 = vmatprep.subr.mxu0 0.0
    %4157 = vmatpush1.msra.mxu0 0.0
    %4158 = vmatprep.subr.mxu0 0.0
    %4159 = vmatpush1.msra.mxu0 0.0
    %4160 = vmatprep.subr.mxu0 0.0
    %4161 = vmatpush1.msra.mxu0 0.0
    %4162 = vmatprep.subr.mxu0 0.0
    %4163 = vmatpush1.msra.mxu0 0.0
    %4164 = vmatprep.subr.mxu0 0.0
    %4165 = vmatpush1.msra.mxu0 0.0
    %4166 = vmatprep.subr.mxu0 0.0
    %4167 = vmatpush1.msra.mxu0 0.0
    %4168 = vmatprep.subr.mxu0 0.0
    %4169 = vmatpush1.msra.mxu0 0.0
    %4170 = vmatprep.subr.mxu0 0.0
    %4171 = vmatpush1.msra.mxu0 0.0
    %4172 = vmatprep.subr.mxu0 0.0
    %4173 = vmatpush1.msra.mxu0 0.0
    %4174 = vmatprep.subr.mxu0 0.0
    %4175 = vmatpush1.msra.mxu0 0.0
    %4176 = vmatprep.subr.mxu0 0.0
    %4177 = vmatpush1.msra.mxu0 0.0
    %4178 = vmatprep.subr.mxu0 0.0
    %4179 = vmatpush1.msra.mxu0 0.0
    %4180 = vmatprep.subr.mxu0 0.0
    %4181 = vmatpush1.msra.mxu0 0.0
    %4182 = vmatprep.subr.mxu0 0.0
    %4183 = vmatpush1.msra.mxu0 0.0
    %4184 = vmatprep.subr.mxu0 0.0
    %4185 = vmatpush1.msra.mxu0 0.0
    %4186 = vmatprep.subr.mxu0 0.0
    %4187 = vmatpush1.msra.mxu0 0.0
    %4188 = vmatprep.subr.mxu0 0.0
    %4189 = vmatpush1.msra.mxu0 0.0
    %4190 = vmatprep.mubr.f32.mxu0 0.0
    %4191 = vmatmul.mubr.f32.gmra.mrb[0].mxu0 %v4124
    %v4192 = vpop.f32.mrb[0].mxu0
    %v4193 = vadd.f32 0.0, %v4192
    %v4194 = vpop.f32.mrb[0].mxu0
    %4195 = vdwg.mxu0
    %v4196 = vlaneseq
    %v4197 = vshrl.u32 %v4196, 7
    %v4198 = vsub.s32 0, %v4197
    %v4199 = vrot.slane %v4117, %v4198
    %v4200 = vadd.f32 %v4193, %v4199
    %v4201 = vmul.f32 %v4200, 0.5
    %v4202 = vtanh.pop %v4201
    %v4203 = vmul.f32 %v4202, 0.5
    %v4204 = vadd.f32 %v4203, 0.5
    %4206 = vrot.lane.b32.xlu0 %v4200, 32
    %v4207 = vpop.permute.xlu0 %4206
    %v4209 = vmul.f32 %v4204, %v4207
    %4211 = vrot.lane.b32.xlu0 %v4209, 64
    %v4212 = vpop.permute.xlu0 %4211
    %v4214 = vadd.f32 %v4200, %v4212
    %v4215 = vtanh.pop %v4214
    %v4216 = vsub.f32 %v3899, %v4215
    %4218 = vrot.lane.b32.xlu0 %v4216, 96
    %v4219 = vpop.permute.xlu0 %4218
    %v4221 = vmul.f32 %v4204, %v4219
    %4223 = vrot.lane.b32.xlu0 %v4221, 32
    %v4224 = vpop.permute.xlu0 %4223
    %v4226 = vadd.f32 %v4215, %v4224
    %v4227 = vld [vmem:[%s1935] sm:$0xff]
    %v4228 = vld [vmem:[%s1935 + $0x8] sm:$0xff]
    %v4229 = vld [vmem:[%s1935 + $0x10] sm:$0xff]
    %v4230 = vld [vmem:[%s1935 + $0x18] sm:$0xff]
    %v4231 = vld [vmem:[%s1935 + $0x20] sm:$0xff]
    %v4232 = vld [vmem:[%s1935 + $0x28] sm:$0xff]
    %v4233 = vld [vmem:[%s1935 + $0x30] sm:$0xff]
    %v4234 = vld [vmem:[%s1935 + $0x38] sm:$0xff]
    %v4235 = vld [vmem:[#allocation7 + $0x3] sm:$0x1]
    %4237 = vrot.lane.b32.xlu0 %v4226, 64
    %v4238 = vpop.permute.xlu0 %4237
    %4240 = vrot.lane.b32.xlu0 %v4020, 96
    %v4241 = vpop.permute.xlu0 %4240
    %v4243 = vsel %vm84, %v4238, %v4241
    %v4245 = vsel %vm86, %v4243, 0
    %4247 = vmatprep.subr.mxu0 0.0
    %4248 = vmatpush1.msra.mxu0 %v4227
    %4249 = vmatprep.subr.mxu0 0.0
    %4250 = vmatpush1.msra.mxu0 %v4228
    %4251 = vmatprep.subr.mxu0 0.0
    %4252 = vmatpush1.msra.mxu0 %v4229
    %4253 = vmatprep.subr.mxu0 0.0
    %4254 = vmatpush1.msra.mxu0 %v4230
    %4255 = vmatprep.subr.mxu0 0.0
    %4256 = vmatpush1.msra.mxu0 %v4231
    %4257 = vmatprep.subr.mxu0 0.0
    %4258 = vmatpush1.msra.mxu0 %v4232
    %4259 = vmatprep.subr.mxu0 0.0
    %4260 = vmatpush1.msra.mxu0 %v4233
    %4261 = vmatprep.subr.mxu0 0.0
    %4262 = vmatpush1.msra.mxu0 %v4234
    %4263 = vmatprep.subr.mxu0 0.0
    %4264 = vmatpush1.msra.mxu0 0.0
    %4265 = vmatprep.subr.mxu0 0.0
    %4266 = vmatpush1.msra.mxu0 0.0
    %4267 = vmatprep.subr.mxu0 0.0
    %4268 = vmatpush1.msra.mxu0 0.0
    %4269 = vmatprep.subr.mxu0 0.0
    %4270 = vmatpush1.msra.mxu0 0.0
    %4271 = vmatprep.subr.mxu0 0.0
    %4272 = vmatpush1.msra.mxu0 0.0
    %4273 = vmatprep.subr.mxu0 0.0
    %4274 = vmatpush1.msra.mxu0 0.0
    %4275 = vmatprep.subr.mxu0 0.0
    %4276 = vmatpush1.msra.mxu0 0.0
    %4277 = vmatprep.subr.mxu0 0.0
    %4278 = vmatpush1.msra.mxu0 0.0
    %4279 = vmatprep.subr.mxu0 0.0
    %4280 = vmatpush1.msra.mxu0 0.0
    %4281 = vmatprep.subr.mxu0 0.0
    %4282 = vmatpush1.msra.mxu0 0.0
    %4283 = vmatprep.subr.mxu0 0.0
    %4284 = vmatpush1.msra.mxu0 0.0
    %4285 = vmatprep.subr.mxu0 0.0
    %4286 = vmatpush1.msra.mxu0 0.0
    %4287 = vmatprep.subr.mxu0 0.0
    %4288 = vmatpush1.msra.mxu0 0.0
    %4289 = vmatprep.subr.mxu0 0.0
    %4290 = vmatpush1.msra.mxu0 0.0
    %4291 = vmatprep.subr.mxu0 0.0
    %4292 = vmatpush1.msra.mxu0 0.0
    %4293 = vmatprep.subr.mxu0 0.0
    %4294 = vmatpush1.msra.mxu0 0.0
    %4295 = vmatprep.subr.mxu0 0.0
    %4296 = vmatpush1.msra.mxu0 0.0
    %4297 = vmatprep.subr.mxu0 0.0
    %4298 = vmatpush1.msra.mxu0 0.0
    %4299 = vmatprep.subr.mxu0 0.0
    %4300 = vmatpush1.msra.mxu0 0.0
    %4301 = vmatprep.subr.mxu0 0.0
    %4302 = vmatpush1.msra.mxu0 0.0
    %4303 = vmatprep.subr.mxu0 0.0
    %4304 = vmatpush1.msra.mxu0 0.0
    %4305 = vmatprep.subr.mxu0 0.0
    %4306 = vmatpush1.msra.mxu0 0.0
    %4307 = vmatprep.subr.mxu0 0.0
    %4308 = vmatpush1.msra.mxu0 0.0
    %4309 = vmatprep.subr.mxu0 0.0
    %4310 = vmatpush1.msra.mxu0 0.0
    %4311 = vmatprep.mubr.f32.mxu0 0.0
    %4312 = vmatmul.mubr.f32.gmra.mrb[0].mxu0 %v4245
    %v4313 = vpop.f32.mrb[0].mxu0
    %v4314 = vadd.f32 0.0, %v4313
    %v4315 = vpop.f32.mrb[0].mxu0
    %4316 = vdwg.mxu0
    %v4317 = vlaneseq
    %v4318 = vshrl.u32 %v4317, 7
    %v4319 = vsub.s32 0, %v4318
    %v4320 = vrot.slane %v4235, %v4319
    %v4321 = vadd.f32 %v4314, %v4320
    %v4322 = vmul.f32 %v4321, 0.5
    %v4323 = vtanh.pop %v4322
    %v4324 = vmul.f32 %v4323, 0.5
    %v4325 = vadd.f32 %v4324, 0.5
    %4327 = vrot.lane.b32.xlu0 %v4321, 32
    %v4328 = vpop.permute.xlu0 %4327
    %v4330 = vmul.f32 %v4325, %v4328
    %4332 = vrot.lane.b32.xlu0 %v4330, 64
    %v4333 = vpop.permute.xlu0 %4332
    %v4335 = vadd.f32 %v4321, %v4333
    %v4336 = vtanh.pop %v4335
    %v4337 = vsub.f32 %v4020, %v4336
    %4339 = vrot.lane.b32.xlu0 %v4337, 96
    %v4340 = vpop.permute.xlu0 %4339
    %v4342 = vmul.f32 %v4325, %v4340
    %4344 = vrot.lane.b32.xlu0 %v4342, 32
    %v4345 = vpop.permute.xlu0 %4344
    %v4347 = vadd.f32 %v4336, %v4345
    %v4348 = vld [vmem:[#allocation8] sm:$0xff]
    %v4349 = vld [vmem:[#allocation8 + $0x8] sm:$0xff]
    %v4350 = vld [vmem:[#allocation8 + $0x10] sm:$0xff]
    %v4351 = vld [vmem:[#allocation8 + $0x18] sm:$0xff]
    %v4352 = vld [vmem:[%s4] sm:$0x1]
    %v4354 = vlaneseq
    %v4355 = vshrl.u32 %v4354, 7
    %v4356 = vsub.s32 0, %v4355
    %v4357 = vrot.slane %v4352, %v4356
    %4360 = vrot.lane.b32.xlu0 %v4347, 64
    %v4361 = vpop.permute.xlu0 %4360
    %v4362 = vsel %vm84, %v4361, 0
    %4364 = vmatprep.subr.mxu0 0.0
    %4365 = vmatpush1.msra.mxu0 %v4348
    %4366 = vmatprep.subr.mxu0 0.0
    %4367 = vmatpush1.msra.mxu0 %v4349
    %4368 = vmatprep.subr.mxu0 0.0
    %4369 = vmatpush1.msra.mxu0 %v4350
    %4370 = vmatprep.subr.mxu0 0.0
    %4371 = vmatpush1.msra.mxu0 %v4351
    %4372 = vmatprep.subr.mxu0 0.0
    %4373 = vmatpush1.msra.mxu0 0.0
    %4374 = vmatprep.subr.mxu0 0.0
    %4375 = vmatpush1.msra.mxu0 0.0
    %4376 = vmatprep.subr.mxu0 0.0
    %4377 = vmatpush1.msra.mxu0 0.0
    %4378 = vmatprep.subr.mxu0 0.0
    %4379 = vmatpush1.msra.mxu0 0.0
    %4380 = vmatprep.subr.mxu0 0.0
    %4381 = vmatpush1.msra.mxu0 0.0
    %4382 = vmatprep.subr.mxu0 0.0
    %4383 = vmatpush1.msra.mxu0 0.0
    %4384 = vmatprep.subr.mxu0 0.0
    %4385 = vmatpush1.msra.mxu0 0.0
    %4386 = vmatprep.subr.mxu0 0.0
    %4387 = vmatpush1.msra.mxu0 0.0
    %4388 = vmatprep.subr.mxu0 0.0
    %4389 = vmatpush1.msra.mxu0 0.0
    %4390 = vmatprep.subr.mxu0 0.0
    %4391 = vmatpush1.msra.mxu0 0.0
    %4392 = vmatprep.subr.mxu0 0.0
    %4393 = vmatpush1.msra.mxu0 0.0
    %4394 = vmatprep.subr.mxu0 0.0
    %4395 = vmatpush1.msra.mxu0 0.0
    %4396 = vmatprep.subr.mxu0 0.0
    %4397 = vmatpush1.msra.mxu0 0.0
    %4398 = vmatprep.subr.mxu0 0.0
    %4399 = vmatpush1.msra.mxu0 0.0
    %4400 = vmatprep.subr.mxu0 0.0
    %4401 = vmatpush1.msra.mxu0 0.0
    %4402 = vmatprep.subr.mxu0 0.0
    %4403 = vmatpush1.msra.mxu0 0.0
    %4404 = vmatprep.subr.mxu0 0.0
    %4405 = vmatpush1.msra.mxu0 0.0
    %4406 = vmatprep.subr.mxu0 0.0
    %4407 = vmatpush1.msra.mxu0 0.0
    %4408 = vmatprep.subr.mxu0 0.0
    %4409 = vmatpush1.msra.mxu0 0.0
    %4410 = vmatprep.subr.mxu0 0.0
    %4411 = vmatpush1.msra.mxu0 0.0
    %4412 = vmatprep.subr.mxu0 0.0
    %4413 = vmatpush1.msra.mxu0 0.0
    %4414 = vmatprep.subr.mxu0 0.0
    %4415 = vmatpush1.msra.mxu0 0.0
    %4416 = vmatprep.subr.mxu0 0.0
    %4417 = vmatpush1.msra.mxu0 0.0
    %4418 = vmatprep.subr.mxu0 0.0
    %4419 = vmatpush1.msra.mxu0 0.0
    %4420 = vmatprep.subr.mxu0 0.0
    %4421 = vmatpush1.msra.mxu0 0.0
    %4422 = vmatprep.subr.mxu0 0.0
    %4423 = vmatpush1.msra.mxu0 0.0
    %4424 = vmatprep.subr.mxu0 0.0
    %4425 = vmatpush1.msra.mxu0 0.0
    %4426 = vmatprep.subr.mxu0 0.0
    %4427 = vmatpush1.msra.mxu0 0.0
    %4428 = vmatprep.mubr.f32.mxu0 0.0
    %4429 = vmatmul.mubr.f32.gmra.mrb[0].mxu0 %v4362
    %v4430 = vpop.f32.mrb[0].mxu0
    %v4431 = vadd.f32 %v4357, %v4430
    %v4432 = vpop.f32.mrb[0].mxu0
    %4433 = vdwg.mxu0
    %s4434 = scalar_lea.vmem [#allocation10], 14
    %4435 = vst.msk [vmem:[%s4434] sm:$0x3] %vm2144, %v4431
    %v4436 = vld [vmem:[%s2146] sm:$0xff]
    %v4437 = vld [vmem:[%s2146 + $0x8] sm:$0xff]
    %v4438 = vld [vmem:[%s2146 + $0x10] sm:$0xff]
    %v4439 = vld [vmem:[%s2146 + $0x18] sm:$0xff]
    %v4440 = vld [vmem:[%s2146 + $0x20] sm:$0xff]
    %v4441 = vld [vmem:[%s2146 + $0x28] sm:$0xff]
    %v4442 = vld [vmem:[%s2146 + $0x30] sm:$0xff]
    %v4443 = vld [vmem:[%s2146 + $0x38] sm:$0xff]
    %v4444 = vld [vmem:[#allocation7 + $0x4] sm:$0x1]
    %4446 = vrot.lane.b32.xlu0 %v4226, 96
    %v4447 = vpop.permute.xlu0 %4446
    %v4449 = vsel %vm84, %v4361, %v4447
    %v4451 = vsel %vm86, %v4449, 0
    %4453 = vmatprep.subr.mxu0 0.0
    %4454 = vmatpush1.msra.mxu0 %v4436
    %4455 = vmatprep.subr.mxu0 0.0
    %4456 = vmatpush1.msra.mxu0 %v4437
    %4457 = vmatprep.subr.mxu0 0.0
    %4458 = vmatpush1.msra.mxu0 %v4438
    %4459 = vmatprep.subr.mxu0 0.0
    %4460 = vmatpush1.msra.mxu0 %v4439
    %4461 = vmatprep.subr.mxu0 0.0
    %4462 = vmatpush1.msra.mxu0 %v4440
    %4463 = vmatprep.subr.mxu0 0.0
    %4464 = vmatpush1.msra.mxu0 %v4441
    %4465 = vmatprep.subr.mxu0 0.0
    %4466 = vmatpush1.msra.mxu0 %v4442
    %4467 = vmatprep.subr.mxu0 0.0
    %4468 = vmatpush1.msra.mxu0 %v4443
    %4469 = vmatprep.subr.mxu0 0.0
    %4470 = vmatpush1.msra.mxu0 0.0
    %4471 = vmatprep.subr.mxu0 0.0
    %4472 = vmatpush1.msra.mxu0 0.0
    %4473 = vmatprep.subr.mxu0 0.0
    %4474 = vmatpush1.msra.mxu0 0.0
    %4475 = vmatprep.subr.mxu0 0.0
    %4476 = vmatpush1.msra.mxu0 0.0
    %4477 = vmatprep.subr.mxu0 0.0
    %4478 = vmatpush1.msra.mxu0 0.0
    %4479 = vmatprep.subr.mxu0 0.0
    %4480 = vmatpush1.msra.mxu0 0.0
    %4481 = vmatprep.subr.mxu0 0.0
    %4482 = vmatpush1.msra.mxu0 0.0
    %4483 = vmatprep.subr.mxu0 0.0
    %4484 = vmatpush1.msra.mxu0 0.0
    %4485 = vmatprep.subr.mxu0 0.0
    %4486 = vmatpush1.msra.mxu0 0.0
    %4487 = vmatprep.subr.mxu0 0.0
    %4488 = vmatpush1.msra.mxu0 0.0
    %4489 = vmatprep.subr.mxu0 0.0
    %4490 = vmatpush1.msra.mxu0 0.0
    %4491 = vmatprep.subr.mxu0 0.0
    %4492 = vmatpush1.msra.mxu0 0.0
    %4493 = vmatprep.subr.mxu0 0.0
    %4494 = vmatpush1.msra.mxu0 0.0
    %4495 = vmatprep.subr.mxu0 0.0
    %4496 = vmatpush1.msra.mxu0 0.0
    %4497 = vmatprep.subr.mxu0 0.0
    %4498 = vmatpush1.msra.mxu0 0.0
    %4499 = vmatprep.subr.mxu0 0.0
    %4500 = vmatpush1.msra.mxu0 0.0
    %4501 = vmatprep.subr.mxu0 0.0
    %4502 = vmatpush1.msra.mxu0 0.0
    %4503 = vmatprep.subr.mxu0 0.0
    %4504 = vmatpush1.msra.mxu0 0.0
    %4505 = vmatprep.subr.mxu0 0.0
    %4506 = vmatpush1.msra.mxu0 0.0
    %4507 = vmatprep.subr.mxu0 0.0
    %4508 = vmatpush1.msra.mxu0 0.0
    %4509 = vmatprep.subr.mxu0 0.0
    %4510 = vmatpush1.msra.mxu0 0.0
    %4511 = vmatprep.subr.mxu0 0.0
    %4512 = vmatpush1.msra.mxu0 0.0
    %4513 = vmatprep.subr.mxu0 0.0
    %4514 = vmatpush1.msra.mxu0 0.0
    %4515 = vmatprep.subr.mxu0 0.0
    %4516 = vmatpush1.msra.mxu0 0.0
    %4517 = vmatprep.mubr.f32.mxu0 0.0
    %4518 = vmatmul.mubr.f32.gmra.mrb[0].mxu0 %v4451
    %v4519 = vpop.f32.mrb[0].mxu0
    %v4520 = vadd.f32 0.0, %v4519
    %v4521 = vpop.f32.mrb[0].mxu0
    %4522 = vdwg.mxu0
    %v4523 = vlaneseq
    %v4524 = vshrl.u32 %v4523, 7
    %v4525 = vsub.s32 0, %v4524
    %v4526 = vrot.slane %v4444, %v4525
    %v4527 = vadd.f32 %v4520, %v4526
    %v4528 = vmul.f32 %v4527, 0.5
    %v4529 = vtanh.pop %v4528
    %v4530 = vmul.f32 %v4529, 0.5
    %v4531 = vadd.f32 %v4530, 0.5
    %4533 = vrot.lane.b32.xlu0 %v4527, 32
    %v4534 = vpop.permute.xlu0 %4533
    %v4536 = vmul.f32 %v4531, %v4534
    %4538 = vrot.lane.b32.xlu0 %v4536, 64
    %v4539 = vpop.permute.xlu0 %4538
    %v4541 = vadd.f32 %v4527, %v4539
    %v4542 = vtanh.pop %v4541
    %v4543 = vsub.f32 %v4226, %v4542
    %4545 = vrot.lane.b32.xlu0 %v4543, 96
    %v4546 = vpop.permute.xlu0 %4545
    %v4548 = vmul.f32 %v4531, %v4546
    %4550 = vrot.lane.b32.xlu0 %v4548, 32
    %v4551 = vpop.permute.xlu0 %4550
    %v4553 = vadd.f32 %v4542, %v4551
    %v4554 = vld [vmem:[%s1935] sm:$0xff]
    %v4555 = vld [vmem:[%s1935 + $0x8] sm:$0xff]
    %v4556 = vld [vmem:[%s1935 + $0x10] sm:$0xff]
    %v4557 = vld [vmem:[%s1935 + $0x18] sm:$0xff]
    %v4558 = vld [vmem:[%s1935 + $0x20] sm:$0xff]
    %v4559 = vld [vmem:[%s1935 + $0x28] sm:$0xff]
    %v4560 = vld [vmem:[%s1935 + $0x30] sm:$0xff]
    %v4561 = vld [vmem:[%s1935 + $0x38] sm:$0xff]
    %v4562 = vld [vmem:[#allocation7 + $0x3] sm:$0x1]
    %4564 = vrot.lane.b32.xlu0 %v4553, 64
    %v4565 = vpop.permute.xlu0 %4564
    %4567 = vrot.lane.b32.xlu0 %v4347, 96
    %v4568 = vpop.permute.xlu0 %4567
    %v4570 = vsel %vm84, %v4565, %v4568
    %v4572 = vsel %vm86, %v4570, 0
    %4574 = vmatprep.subr.mxu0 0.0
    %4575 = vmatpush1.msra.mxu0 %v4554
    %4576 = vmatprep.subr.mxu0 0.0
    %4577 = vmatpush1.msra.mxu0 %v4555
    %4578 = vmatprep.subr.mxu0 0.0
    %4579 = vmatpush1.msra.mxu0 %v4556
    %4580 = vmatprep.subr.mxu0 0.0
    %4581 = vmatpush1.msra.mxu0 %v4557
    %4582 = vmatprep.subr.mxu0 0.0
    %4583 = vmatpush1.msra.mxu0 %v4558
    %4584 = vmatprep.subr.mxu0 0.0
    %4585 = vmatpush1.msra.mxu0 %v4559
    %4586 = vmatprep.subr.mxu0 0.0
    %4587 = vmatpush1.msra.mxu0 %v4560
    %4588 = vmatprep.subr.mxu0 0.0
    %4589 = vmatpush1.msra.mxu0 %v4561
    %4590 = vmatprep.subr.mxu0 0.0
    %4591 = vmatpush1.msra.mxu0 0.0
    %4592 = vmatprep.subr.mxu0 0.0
    %4593 = vmatpush1.msra.mxu0 0.0
    %4594 = vmatprep.subr.mxu0 0.0
    %4595 = vmatpush1.msra.mxu0 0.0
    %4596 = vmatprep.subr.mxu0 0.0
    %4597 = vmatpush1.msra.mxu0 0.0
    %4598 = vmatprep.subr.mxu0 0.0
    %4599 = vmatpush1.msra.mxu0 0.0
    %4600 = vmatprep.subr.mxu0 0.0
    %4601 = vmatpush1.msra.mxu0 0.0
    %4602 = vmatprep.subr.mxu0 0.0
    %4603 = vmatpush1.msra.mxu0 0.0
    %4604 = vmatprep.subr.mxu0 0.0
    %4605 = vmatpush1.msra.mxu0 0.0
    %4606 = vmatprep.subr.mxu0 0.0
    %4607 = vmatpush1.msra.mxu0 0.0
    %4608 = vmatprep.subr.mxu0 0.0
    %4609 = vmatpush1.msra.mxu0 0.0
    %4610 = vmatprep.subr.mxu0 0.0
    %4611 = vmatpush1.msra.mxu0 0.0
    %4612 = vmatprep.subr.mxu0 0.0
    %4613 = vmatpush1.msra.mxu0 0.0
    %4614 = vmatprep.subr.mxu0 0.0
    %4615 = vmatpush1.msra.mxu0 0.0
    %4616 = vmatprep.subr.mxu0 0.0
    %4617 = vmatpush1.msra.mxu0 0.0
    %4618 = vmatprep.subr.mxu0 0.0
    %4619 = vmatpush1.msra.mxu0 0.0
    %4620 = vmatprep.subr.mxu0 0.0
    %4621 = vmatpush1.msra.mxu0 0.0
    %4622 = vmatprep.subr.mxu0 0.0
    %4623 = vmatpush1.msra.mxu0 0.0
    %4624 = vmatprep.subr.mxu0 0.0
    %4625 = vmatpush1.msra.mxu0 0.0
    %4626 = vmatprep.subr.mxu0 0.0
    %4627 = vmatpush1.msra.mxu0 0.0
    %4628 = vmatprep.subr.mxu0 0.0
    %4629 = vmatpush1.msra.mxu0 0.0
    %4630 = vmatprep.subr.mxu0 0.0
    %4631 = vmatpush1.msra.mxu0 0.0
    %4632 = vmatprep.subr.mxu0 0.0
    %4633 = vmatpush1.msra.mxu0 0.0
    %4634 = vmatprep.subr.mxu0 0.0
    %4635 = vmatpush1.msra.mxu0 0.0
    %4636 = vmatprep.subr.mxu0 0.0
    %4637 = vmatpush1.msra.mxu0 0.0
    %4638 = vmatprep.mubr.f32.mxu0 0.0
    %4639 = vmatmul.mubr.f32.gmra.mrb[0].mxu0 %v4572
    %v4640 = vpop.f32.mrb[0].mxu0
    %v4641 = vadd.f32 0.0, %v4640
    %v4642 = vpop.f32.mrb[0].mxu0
    %4643 = vdwg.mxu0
    %v4644 = vlaneseq
    %v4645 = vshrl.u32 %v4644, 7
    %v4646 = vsub.s32 0, %v4645
    %v4647 = vrot.slane %v4562, %v4646
    %v4648 = vadd.f32 %v4641, %v4647
    %v4649 = vmul.f32 %v4648, 0.5
    %v4650 = vtanh.pop %v4649
    %v4651 = vmul.f32 %v4650, 0.5
    %v4652 = vadd.f32 %v4651, 0.5
    %4654 = vrot.lane.b32.xlu0 %v4648, 32
    %v4655 = vpop.permute.xlu0 %4654
    %v4657 = vmul.f32 %v4652, %v4655
    %4659 = vrot.lane.b32.xlu0 %v4657, 64
    %v4660 = vpop.permute.xlu0 %4659
    %v4662 = vadd.f32 %v4648, %v4660
    %v4663 = vtanh.pop %v4662
    %v4664 = vsub.f32 %v4347, %v4663
    %4666 = vrot.lane.b32.xlu0 %v4664, 96
    %v4667 = vpop.permute.xlu0 %4666
    %v4669 = vmul.f32 %v4652, %v4667
    %4671 = vrot.lane.b32.xlu0 %v4669, 32
    %v4672 = vpop.permute.xlu0 %4671
    %v4674 = vadd.f32 %v4663, %v4672
    %v4675 = vld [vmem:[#allocation8] sm:$0xff]
    %v4676 = vld [vmem:[#allocation8 + $0x8] sm:$0xff]
    %v4677 = vld [vmem:[#allocation8 + $0x10] sm:$0xff]
    %v4678 = vld [vmem:[#allocation8 + $0x18] sm:$0xff]
    %v4679 = vld [vmem:[%s4] sm:$0x1]
    %v4681 = vlaneseq
    %v4682 = vshrl.u32 %v4681, 7
    %v4683 = vsub.s32 0, %v4682
    %v4684 = vrot.slane %v4679, %v4683
    %4687 = vrot.lane.b32.xlu0 %v4674, 64
    %v4688 = vpop.permute.xlu0 %4687
    %v4689 = vsel %vm84, %v4688, 0
    %4691 = vmatprep.subr.mxu0 0.0
    %4692 = vmatpush1.msra.mxu0 %v4675
    %4693 = vmatprep.subr.mxu0 0.0
    %4694 = vmatpush1.msra.mxu0 %v4676
    %4695 = vmatprep.subr.mxu0 0.0
    %4696 = vmatpush1.msra.mxu0 %v4677
    %4697 = vmatprep.subr.mxu0 0.0
    %4698 = vmatpush1.msra.mxu0 %v4678
    %4699 = vmatprep.subr.mxu0 0.0
    %4700 = vmatpush1.msra.mxu0 0.0
    %4701 = vmatprep.subr.mxu0 0.0
    %4702 = vmatpush1.msra.mxu0 0.0
    %4703 = vmatprep.subr.mxu0 0.0
    %4704 = vmatpush1.msra.mxu0 0.0
    %4705 = vmatprep.subr.mxu0 0.0
    %4706 = vmatpush1.msra.mxu0 0.0
    %4707 = vmatprep.subr.mxu0 0.0
    %4708 = vmatpush1.msra.mxu0 0.0
    %4709 = vmatprep.subr.mxu0 0.0
    %4710 = vmatpush1.msra.mxu0 0.0
    %4711 = vmatprep.subr.mxu0 0.0
    %4712 = vmatpush1.msra.mxu0 0.0
    %4713 = vmatprep.subr.mxu0 0.0
    %4714 = vmatpush1.msra.mxu0 0.0
    %4715 = vmatprep.subr.mxu0 0.0
    %4716 = vmatpush1.msra.mxu0 0.0
    %4717 = vmatprep.subr.mxu0 0.0
    %4718 = vmatpush1.msra.mxu0 0.0
    %4719 = vmatprep.subr.mxu0 0.0
    %4720 = vmatpush1.msra.mxu0 0.0
    %4721 = vmatprep.subr.mxu0 0.0
    %4722 = vmatpush1.msra.mxu0 0.0
    %4723 = vmatprep.subr.mxu0 0.0
    %4724 = vmatpush1.msra.mxu0 0.0
    %4725 = vmatprep.subr.mxu0 0.0
    %4726 = vmatpush1.msra.mxu0 0.0
    %4727 = vmatprep.subr.mxu0 0.0
    %4728 = vmatpush1.msra.mxu0 0.0
    %4729 = vmatprep.subr.mxu0 0.0
    %4730 = vmatpush1.msra.mxu0 0.0
    %4731 = vmatprep.subr.mxu0 0.0
    %4732 = vmatpush1.msra.mxu0 0.0
    %4733 = vmatprep.subr.mxu0 0.0
    %4734 = vmatpush1.msra.mxu0 0.0
    %4735 = vmatprep.subr.mxu0 0.0
    %4736 = vmatpush1.msra.mxu0 0.0
    %4737 = vmatprep.subr.mxu0 0.0
    %4738 = vmatpush1.msra.mxu0 0.0
    %4739 = vmatprep.subr.mxu0 0.0
    %4740 = vmatpush1.msra.mxu0 0.0
    %4741 = vmatprep.subr.mxu0 0.0
    %4742 = vmatpush1.msra.mxu0 0.0
    %4743 = vmatprep.subr.mxu0 0.0
    %4744 = vmatpush1.msra.mxu0 0.0
    %4745 = vmatprep.subr.mxu0 0.0
    %4746 = vmatpush1.msra.mxu0 0.0
    %4747 = vmatprep.subr.mxu0 0.0
    %4748 = vmatpush1.msra.mxu0 0.0
    %4749 = vmatprep.subr.mxu0 0.0
    %4750 = vmatpush1.msra.mxu0 0.0
    %4751 = vmatprep.subr.mxu0 0.0
    %4752 = vmatpush1.msra.mxu0 0.0
    %4753 = vmatprep.subr.mxu0 0.0
    %4754 = vmatpush1.msra.mxu0 0.0
    %4755 = vmatprep.mubr.f32.mxu0 0.0
    %4756 = vmatmul.mubr.f32.gmra.mrb[0].mxu0 %v4689
    %v4757 = vpop.f32.mrb[0].mxu0
    %v4758 = vadd.f32 %v4684, %v4757
    %v4759 = vpop.f32.mrb[0].mxu0
    %4760 = vdwg.mxu0
    %s4761 = scalar_lea.vmem [#allocation10], 16
    %4762 = vst.msk [vmem:[%s4761] sm:$0x3] %vm2144, %v4758
    %v4763 = vld [vmem:[%s2146] sm:$0xff]
    %v4764 = vld [vmem:[%s2146 + $0x8] sm:$0xff]
    %v4765 = vld [vmem:[%s2146 + $0x10] sm:$0xff]
    %v4766 = vld [vmem:[%s2146 + $0x18] sm:$0xff]
    %v4767 = vld [vmem:[%s2146 + $0x20] sm:$0xff]
    %v4768 = vld [vmem:[%s2146 + $0x28] sm:$0xff]
    %v4769 = vld [vmem:[%s2146 + $0x30] sm:$0xff]
    %v4770 = vld [vmem:[%s2146 + $0x38] sm:$0xff]
    %v4771 = vld [vmem:[#allocation7 + $0x4] sm:$0x1]
    %4773 = vrot.lane.b32.xlu0 %v4553, 96
    %v4774 = vpop.permute.xlu0 %4773
    %v4776 = vsel %vm84, %v4688, %v4774
    %v4778 = vsel %vm86, %v4776, 0
    %4780 = vmatprep.subr.mxu0 0.0
    %4781 = vmatpush1.msra.mxu0 %v4763
    %4782 = vmatprep.subr.mxu0 0.0
    %4783 = vmatpush1.msra.mxu0 %v4764
    %4784 = vmatprep.subr.mxu0 0.0
    %4785 = vmatpush1.msra.mxu0 %v4765
    %4786 = vmatprep.subr.mxu0 0.0
    %4787 = vmatpush1.msra.mxu0 %v4766
    %4788 = vmatprep.subr.mxu0 0.0
    %4789 = vmatpush1.msra.mxu0 %v4767
    %4790 = vmatprep.subr.mxu0 0.0
    %4791 = vmatpush1.msra.mxu0 %v4768
    %4792 = vmatprep.subr.mxu0 0.0
    %4793 = vmatpush1.msra.mxu0 %v4769
    %4794 = vmatprep.subr.mxu0 0.0
    %4795 = vmatpush1.msra.mxu0 %v4770
    %4796 = vmatprep.subr.mxu0 0.0
    %4797 = vmatpush1.msra.mxu0 0.0
    %4798 = vmatprep.subr.mxu0 0.0
    %4799 = vmatpush1.msra.mxu0 0.0
    %4800 = vmatprep.subr.mxu0 0.0
    %4801 = vmatpush1.msra.mxu0 0.0
    %4802 = vmatprep.subr.mxu0 0.0
    %4803 = vmatpush1.msra.mxu0 0.0
    %4804 = vmatprep.subr.mxu0 0.0
    %4805 = vmatpush1.msra.mxu0 0.0
    %4806 = vmatprep.subr.mxu0 0.0
    %4807 = vmatpush1.msra.mxu0 0.0
    %4808 = vmatprep.subr.mxu0 0.0
    %4809 = vmatpush1.msra.mxu0 0.0
    %4810 = vmatprep.subr.mxu0 0.0
    %4811 = vmatpush1.msra.mxu0 0.0
    %4812 = vmatprep.subr.mxu0 0.0
    %4813 = vmatpush1.msra.mxu0 0.0
    %4814 = vmatprep.subr.mxu0 0.0
    %4815 = vmatpush1.msra.mxu0 0.0
    %4816 = vmatprep.subr.mxu0 0.0
    %4817 = vmatpush1.msra.mxu0 0.0
    %4818 = vmatprep.subr.mxu0 0.0
    %4819 = vmatpush1.msra.mxu0 0.0
    %4820 = vmatprep.subr.mxu0 0.0
    %4821 = vmatpush1.msra.mxu0 0.0
    %4822 = vmatprep.subr.mxu0 0.0
    %4823 = vmatpush1.msra.mxu0 0.0
    %4824 = vmatprep.subr.mxu0 0.0
    %4825 = vmatpush1.msra.mxu0 0.0
    %4826 = vmatprep.subr.mxu0 0.0
    %4827 = vmatpush1.msra.mxu0 0.0
    %4828 = vmatprep.subr.mxu0 0.0
    %4829 = vmatpush1.msra.mxu0 0.0
    %4830 = vmatprep.subr.mxu0 0.0
    %4831 = vmatpush1.msra.mxu0 0.0
    %4832 = vmatprep.subr.mxu0 0.0
    %4833 = vmatpush1.msra.mxu0 0.0
    %4834 = vmatprep.subr.mxu0 0.0
    %4835 = vmatpush1.msra.mxu0 0.0
    %4836 = vmatprep.subr.mxu0 0.0
    %4837 = vmatpush1.msra.mxu0 0.0
    %4838 = vmatprep.subr.mxu0 0.0
    %4839 = vmatpush1.msra.mxu0 0.0
    %4840 = vmatprep.subr.mxu0 0.0
    %4841 = vmatpush1.msra.mxu0 0.0
    %4842 = vmatprep.subr.mxu0 0.0
    %4843 = vmatpush1.msra.mxu0 0.0
    %4844 = vmatprep.mubr.f32.mxu0 0.0
    %4845 = vmatmul.mubr.f32.gmra.mrb[0].mxu0 %v4778
    %v4846 = vpop.f32.mrb[0].mxu0
    %v4847 = vadd.f32 0.0, %v4846
    %v4848 = vpop.f32.mrb[0].mxu0
    %4849 = vdwg.mxu0
    %v4850 = vlaneseq
    %v4851 = vshrl.u32 %v4850, 7
    %v4852 = vsub.s32 0, %v4851
    %v4853 = vrot.slane %v4771, %v4852
    %v4854 = vadd.f32 %v4847, %v4853
    %v4855 = vmul.f32 %v4854, 0.5
    %v4856 = vtanh.pop %v4855
    %v4857 = vmul.f32 %v4856, 0.5
    %v4858 = vadd.f32 %v4857, 0.5
    %4860 = vrot.lane.b32.xlu0 %v4854, 32
    %v4861 = vpop.permute.xlu0 %4860
    %v4863 = vmul.f32 %v4858, %v4861
    %4865 = vrot.lane.b32.xlu0 %v4863, 64
    %v4866 = vpop.permute.xlu0 %4865
    %v4868 = vadd.f32 %v4854, %v4866
    %v4869 = vtanh.pop %v4868
    %v4870 = vsub.f32 %v4553, %v4869
    %4872 = vrot.lane.b32.xlu0 %v4870, 96
    %v4873 = vpop.permute.xlu0 %4872
    %v4875 = vmul.f32 %v4858, %v4873
    %4877 = vrot.lane.b32.xlu0 %v4875, 32
    %v4878 = vpop.permute.xlu0 %4877
    %v4880 = vadd.f32 %v4869, %v4878
    %v4881 = vld [vmem:[%s1935] sm:$0xff]
    %v4882 = vld [vmem:[%s1935 + $0x8] sm:$0xff]
    %v4883 = vld [vmem:[%s1935 + $0x10] sm:$0xff]
    %v4884 = vld [vmem:[%s1935 + $0x18] sm:$0xff]
    %v4885 = vld [vmem:[%s1935 + $0x20] sm:$0xff]
    %v4886 = vld [vmem:[%s1935 + $0x28] sm:$0xff]
    %v4887 = vld [vmem:[%s1935 + $0x30] sm:$0xff]
    %v4888 = vld [vmem:[%s1935 + $0x38] sm:$0xff]
    %v4889 = vld [vmem:[#allocation7 + $0x3] sm:$0x1]
    %4891 = vrot.lane.b32.xlu0 %v4880, 64
    %v4892 = vpop.permute.xlu0 %4891
    %4894 = vrot.lane.b32.xlu0 %v4674, 96
    %v4895 = vpop.permute.xlu0 %4894
    %v4897 = vsel %vm84, %v4892, %v4895
    %v4899 = vsel %vm86, %v4897, 0
    %4901 = vmatprep.subr.mxu0 0.0
    %4902 = vmatpush1.msra.mxu0 %v4881
    %4903 = vmatprep.subr.mxu0 0.0
    %4904 = vmatpush1.msra.mxu0 %v4882
    %4905 = vmatprep.subr.mxu0 0.0
    %4906 = vmatpush1.msra.mxu0 %v4883
    %4907 = vmatprep.subr.mxu0 0.0
    %4908 = vmatpush1.msra.mxu0 %v4884
    %4909 = vmatprep.subr.mxu0 0.0
    %4910 = vmatpush1.msra.mxu0 %v4885
    %4911 = vmatprep.subr.mxu0 0.0
    %4912 = vmatpush1.msra.mxu0 %v4886
    %4913 = vmatprep.subr.mxu0 0.0
    %4914 = vmatpush1.msra.mxu0 %v4887
    %4915 = vmatprep.subr.mxu0 0.0
    %4916 = vmatpush1.msra.mxu0 %v4888
    %4917 = vmatprep.subr.mxu0 0.0
    %4918 = vmatpush1.msra.mxu0 0.0
    %4919 = vmatprep.subr.mxu0 0.0
    %4920 = vmatpush1.msra.mxu0 0.0
    %4921 = vmatprep.subr.mxu0 0.0
    %4922 = vmatpush1.msra.mxu0 0.0
    %4923 = vmatprep.subr.mxu0 0.0
    %4924 = vmatpush1.msra.mxu0 0.0
    %4925 = vmatprep.subr.mxu0 0.0
    %4926 = vmatpush1.msra.mxu0 0.0
    %4927 = vmatprep.subr.mxu0 0.0
    %4928 = vmatpush1.msra.mxu0 0.0
    %4929 = vmatprep.subr.mxu0 0.0
    %4930 = vmatpush1.msra.mxu0 0.0
    %4931 = vmatprep.subr.mxu0 0.0
    %4932 = vmatpush1.msra.mxu0 0.0
    %4933 = vmatprep.subr.mxu0 0.0
    %4934 = vmatpush1.msra.mxu0 0.0
    %4935 = vmatprep.subr.mxu0 0.0
    %4936 = vmatpush1.msra.mxu0 0.0
    %4937 = vmatprep.subr.mxu0 0.0
    %4938 = vmatpush1.msra.mxu0 0.0
    %4939 = vmatprep.subr.mxu0 0.0
    %4940 = vmatpush1.msra.mxu0 0.0
    %4941 = vmatprep.subr.mxu0 0.0
    %4942 = vmatpush1.msra.mxu0 0.0
    %4943 = vmatprep.subr.mxu0 0.0
    %4944 = vmatpush1.msra.mxu0 0.0
    %4945 = vmatprep.subr.mxu0 0.0
    %4946 = vmatpush1.msra.mxu0 0.0
    %4947 = vmatprep.subr.mxu0 0.0
    %4948 = vmatpush1.msra.mxu0 0.0
    %4949 = vmatprep.subr.mxu0 0.0
    %4950 = vmatpush1.msra.mxu0 0.0
    %4951 = vmatprep.subr.mxu0 0.0
    %4952 = vmatpush1.msra.mxu0 0.0
    %4953 = vmatprep.subr.mxu0 0.0
    %4954 = vmatpush1.msra.mxu0 0.0
    %4955 = vmatprep.subr.mxu0 0.0
    %4956 = vmatpush1.msra.mxu0 0.0
    %4957 = vmatprep.subr.mxu0 0.0
    %4958 = vmatpush1.msra.mxu0 0.0
    %4959 = vmatprep.subr.mxu0 0.0
    %4960 = vmatpush1.msra.mxu0 0.0
    %4961 = vmatprep.subr.mxu0 0.0
    %4962 = vmatpush1.msra.mxu0 0.0
    %4963 = vmatprep.subr.mxu0 0.0
    %4964 = vmatpush1.msra.mxu0 0.0
    %4965 = vmatprep.mubr.f32.mxu0 0.0
    %4966 = vmatmul.mubr.f32.gmra.mrb[0].mxu0 %v4899
    %v4967 = vpop.f32.mrb[0].mxu0
    %v4968 = vadd.f32 0.0, %v4967
    %v4969 = vpop.f32.mrb[0].mxu0
    %4970 = vdwg.mxu0
    %v4971 = vlaneseq
    %v4972 = vshrl.u32 %v4971, 7
    %v4973 = vsub.s32 0, %v4972
    %v4974 = vrot.slane %v4889, %v4973
    %v4975 = vadd.f32 %v4968, %v4974
    %v4976 = vmul.f32 %v4975, 0.5
    %v4977 = vtanh.pop %v4976
    %v4978 = vmul.f32 %v4977, 0.5
    %v4979 = vadd.f32 %v4978, 0.5
    %4981 = vrot.lane.b32.xlu0 %v4975, 32
    %v4982 = vpop.permute.xlu0 %4981
    %v4984 = vmul.f32 %v4979, %v4982
    %4986 = vrot.lane.b32.xlu0 %v4984, 64
    %v4987 = vpop.permute.xlu0 %4986
    %v4989 = vadd.f32 %v4975, %v4987
    %v4990 = vtanh.pop %v4989
    %v4991 = vsub.f32 %v4674, %v4990
    %4993 = vrot.lane.b32.xlu0 %v4991, 96
    %v4994 = vpop.permute.xlu0 %4993
    %v4996 = vmul.f32 %v4979, %v4994
    %4998 = vrot.lane.b32.xlu0 %v4996, 32
    %v4999 = vpop.permute.xlu0 %4998
    %v5001 = vadd.f32 %v4990, %v4999
    %v5002 = vld [vmem:[#allocation8] sm:$0xff]
    %v5003 = vld [vmem:[#allocation8 + $0x8] sm:$0xff]
    %v5004 = vld [vmem:[#allocation8 + $0x10] sm:$0xff]
    %v5005 = vld [vmem:[#allocation8 + $0x18] sm:$0xff]
    %v5006 = vld [vmem:[%s4] sm:$0x1]
    %v5008 = vlaneseq
    %v5009 = vshrl.u32 %v5008, 7
    %v5010 = vsub.s32 0, %v5009
    %v5011 = vrot.slane %v5006, %v5010
    %5014 = vrot.lane.b32.xlu0 %v5001, 64
    %v5015 = vpop.permute.xlu0 %5014
    %v5016 = vsel %vm84, %v5015, 0
    %5018 = vmatprep.subr.mxu0 0.0
    %5019 = vmatpush1.msra.mxu0 %v5002
    %5020 = vmatprep.subr.mxu0 0.0
    %5021 = vmatpush1.msra.mxu0 %v5003
    %5022 = vmatprep.subr.mxu0 0.0
    %5023 = vmatpush1.msra.mxu0 %v5004
    %5024 = vmatprep.subr.mxu0 0.0
    %5025 = vmatpush1.msra.mxu0 %v5005
    %5026 = vmatprep.subr.mxu0 0.0
    %5027 = vmatpush1.msra.mxu0 0.0
    %5028 = vmatprep.subr.mxu0 0.0
    %5029 = vmatpush1.msra.mxu0 0.0
    %5030 = vmatprep.subr.mxu0 0.0
    %5031 = vmatpush1.msra.mxu0 0.0
    %5032 = vmatprep.subr.mxu0 0.0
    %5033 = vmatpush1.msra.mxu0 0.0
    %5034 = vmatprep.subr.mxu0 0.0
    %5035 = vmatpush1.msra.mxu0 0.0
    %5036 = vmatprep.subr.mxu0 0.0
    %5037 = vmatpush1.msra.mxu0 0.0
    %5038 = vmatprep.subr.mxu0 0.0
    %5039 = vmatpush1.msra.mxu0 0.0
    %5040 = vmatprep.subr.mxu0 0.0
    %5041 = vmatpush1.msra.mxu0 0.0
    %5042 = vmatprep.subr.mxu0 0.0
    %5043 = vmatpush1.msra.mxu0 0.0
    %5044 = vmatprep.subr.mxu0 0.0
    %5045 = vmatpush1.msra.mxu0 0.0
    %5046 = vmatprep.subr.mxu0 0.0
    %5047 = vmatpush1.msra.mxu0 0.0
    %5048 = vmatprep.subr.mxu0 0.0
    %5049 = vmatpush1.msra.mxu0 0.0
    %5050 = vmatprep.subr.mxu0 0.0
    %5051 = vmatpush1.msra.mxu0 0.0
    %5052 = vmatprep.subr.mxu0 0.0
    %5053 = vmatpush1.msra.mxu0 0.0
    %5054 = vmatprep.subr.mxu0 0.0
    %5055 = vmatpush1.msra.mxu0 0.0
    %5056 = vmatprep.subr.mxu0 0.0
    %5057 = vmatpush1.msra.mxu0 0.0
    %5058 = vmatprep.subr.mxu0 0.0
    %5059 = vmatpush1.msra.mxu0 0.0
    %5060 = vmatprep.subr.mxu0 0.0
    %5061 = vmatpush1.msra.mxu0 0.0
    %5062 = vmatprep.subr.mxu0 0.0
    %5063 = vmatpush1.msra.mxu0 0.0
    %5064 = vmatprep.subr.mxu0 0.0
    %5065 = vmatpush1.msra.mxu0 0.0
    %5066 = vmatprep.subr.mxu0 0.0
    %5067 = vmatpush1.msra.mxu0 0.0
    %5068 = vmatprep.subr.mxu0 0.0
    %5069 = vmatpush1.msra.mxu0 0.0
    %5070 = vmatprep.subr.mxu0 0.0
    %5071 = vmatpush1.msra.mxu0 0.0
    %5072 = vmatprep.subr.mxu0 0.0
    %5073 = vmatpush1.msra.mxu0 0.0
    %5074 = vmatprep.subr.mxu0 0.0
    %5075 = vmatpush1.msra.mxu0 0.0
    %5076 = vmatprep.subr.mxu0 0.0
    %5077 = vmatpush1.msra.mxu0 0.0
    %5078 = vmatprep.subr.mxu0 0.0
    %5079 = vmatpush1.msra.mxu0 0.0
    %5080 = vmatprep.subr.mxu0 0.0
    %5081 = vmatpush1.msra.mxu0 0.0
    %5082 = vmatprep.mubr.f32.mxu0 0.0
    %5083 = vmatmul.mubr.f32.gmra.mrb[0].mxu0 %v5016
    %v5084 = vpop.f32.mrb[0].mxu0
    %v5085 = vadd.f32 %v5011, %v5084
    %v5086 = vpop.f32.mrb[0].mxu0
    %5087 = vdwg.mxu0
    %s5088 = scalar_lea.vmem [#allocation10], 18
    %5089 = vst.msk [vmem:[%s5088] sm:$0x3] %vm2144, %v5085
    %v5090 = vld [vmem:[%s2146] sm:$0xff]
    %v5091 = vld [vmem:[%s2146 + $0x8] sm:$0xff]
    %v5092 = vld [vmem:[%s2146 + $0x10] sm:$0xff]
    %v5093 = vld [vmem:[%s2146 + $0x18] sm:$0xff]
    %v5094 = vld [vmem:[%s2146 + $0x20] sm:$0xff]
    %v5095 = vld [vmem:[%s2146 + $0x28] sm:$0xff]
    %v5096 = vld [vmem:[%s2146 + $0x30] sm:$0xff]
    %v5097 = vld [vmem:[%s2146 + $0x38] sm:$0xff]
    %v5098 = vld [vmem:[#allocation7 + $0x4] sm:$0x1]
    %5100 = vrot.lane.b32.xlu0 %v4880, 96
    %v5101 = vpop.permute.xlu0 %5100
    %v5103 = vsel %vm84, %v5015, %v5101
    %v5105 = vsel %vm86, %v5103, 0
    %5107 = vmatprep.subr.mxu0 0.0
    %5108 = vmatpush1.msra.mxu0 %v5090
    %5109 = vmatprep.subr.mxu0 0.0
    %5110 = vmatpush1.msra.mxu0 %v5091
    %5111 = vmatprep.subr.mxu0 0.0
    %5112 = vmatpush1.msra.mxu0 %v5092
    %5113 = vmatprep.subr.mxu0 0.0
    %5114 = vmatpush1.msra.mxu0 %v5093
    %5115 = vmatprep.subr.mxu0 0.0
    %5116 = vmatpush1.msra.mxu0 %v5094
    %5117 = vmatprep.subr.mxu0 0.0
    %5118 = vmatpush1.msra.mxu0 %v5095
    %5119 = vmatprep.subr.mxu0 0.0
    %5120 = vmatpush1.msra.mxu0 %v5096
    %5121 = vmatprep.subr.mxu0 0.0
    %5122 = vmatpush1.msra.mxu0 %v5097
    %5123 = vmatprep.subr.mxu0 0.0
    %5124 = vmatpush1.msra.mxu0 0.0
    %5125 = vmatprep.subr.mxu0 0.0
    %5126 = vmatpush1.msra.mxu0 0.0
    %5127 = vmatprep.subr.mxu0 0.0
    %5128 = vmatpush1.msra.mxu0 0.0
    %5129 = vmatprep.subr.mxu0 0.0
    %5130 = vmatpush1.msra.mxu0 0.0
    %5131 = vmatprep.subr.mxu0 0.0
    %5132 = vmatpush1.msra.mxu0 0.0
    %5133 = vmatprep.subr.mxu0 0.0
    %5134 = vmatpush1.msra.mxu0 0.0
    %5135 = vmatprep.subr.mxu0 0.0
    %5136 = vmatpush1.msra.mxu0 0.0
    %5137 = vmatprep.subr.mxu0 0.0
    %5138 = vmatpush1.msra.mxu0 0.0
    %5139 = vmatprep.subr.mxu0 0.0
    %5140 = vmatpush1.msra.mxu0 0.0
    %5141 = vmatprep.subr.mxu0 0.0
    %5142 = vmatpush1.msra.mxu0 0.0
    %5143 = vmatprep.subr.mxu0 0.0
    %5144 = vmatpush1.msra.mxu0 0.0
    %5145 = vmatprep.subr.mxu0 0.0
    %5146 = vmatpush1.msra.mxu0 0.0
    %5147 = vmatprep.subr.mxu0 0.0
    %5148 = vmatpush1.msra.mxu0 0.0
    %5149 = vmatprep.subr.mxu0 0.0
    %5150 = vmatpush1.msra.mxu0 0.0
    %5151 = vmatprep.subr.mxu0 0.0
    %5152 = vmatpush1.msra.mxu0 0.0
    %5153 = vmatprep.subr.mxu0 0.0
    %5154 = vmatpush1.msra.mxu0 0.0
    %5155 = vmatprep.subr.mxu0 0.0
    %5156 = vmatpush1.msra.mxu0 0.0
    %5157 = vmatprep.subr.mxu0 0.0
    %5158 = vmatpush1.msra.mxu0 0.0
    %5159 = vmatprep.subr.mxu0 0.0
    %5160 = vmatpush1.msra.mxu0 0.0
    %5161 = vmatprep.subr.mxu0 0.0
    %5162 = vmatpush1.msra.mxu0 0.0
    %5163 = vmatprep.subr.mxu0 0.0
    %5164 = vmatpush1.msra.mxu0 0.0
    %5165 = vmatprep.subr.mxu0 0.0
    %5166 = vmatpush1.msra.mxu0 0.0
    %5167 = vmatprep.subr.mxu0 0.0
    %5168 = vmatpush1.msra.mxu0 0.0
    %5169 = vmatprep.subr.mxu0 0.0
    %5170 = vmatpush1.msra.mxu0 0.0
    %5171 = vmatprep.mubr.f32.mxu0 0.0
    %5172 = vmatmul.mubr.f32.gmra.mrb[0].mxu0 %v5105
    %v5173 = vpop.f32.mrb[0].mxu0
    %v5174 = vadd.f32 0.0, %v5173
    %v5175 = vpop.f32.mrb[0].mxu0
    %5176 = vdwg.mxu0
    %v5177 = vlaneseq
    %v5178 = vshrl.u32 %v5177, 7
    %v5179 = vsub.s32 0, %v5178
    %v5180 = vrot.slane %v5098, %v5179
    %v5181 = vadd.f32 %v5174, %v5180
    %v5182 = vmul.f32 %v5181, 0.5
    %v5183 = vtanh.pop %v5182
    %v5184 = vmul.f32 %v5183, 0.5
    %v5185 = vadd.f32 %v5184, 0.5
    %5187 = vrot.lane.b32.xlu0 %v5181, 32
    %v5188 = vpop.permute.xlu0 %5187
    %v5190 = vmul.f32 %v5185, %v5188
    %5192 = vrot.lane.b32.xlu0 %v5190, 64
    %v5193 = vpop.permute.xlu0 %5192
    %v5195 = vadd.f32 %v5181, %v5193
    %v5196 = vtanh.pop %v5195
    %v5197 = vsub.f32 %v4880, %v5196
    %5199 = vrot.lane.b32.xlu0 %v5197, 96
    %v5200 = vpop.permute.xlu0 %5199
    %v5202 = vmul.f32 %v5185, %v5200
    %5204 = vrot.lane.b32.xlu0 %v5202, 32
    %v5205 = vpop.permute.xlu0 %5204
    %v5207 = vadd.f32 %v5196, %v5205
    %v5208 = vld [vmem:[%s1935] sm:$0xff]
    %v5209 = vld [vmem:[%s1935 + $0x8] sm:$0xff]
    %v5210 = vld [vmem:[%s1935 + $0x10] sm:$0xff]
    %v5211 = vld [vmem:[%s1935 + $0x18] sm:$0xff]
    %v5212 = vld [vmem:[%s1935 + $0x20] sm:$0xff]
    %v5213 = vld [vmem:[%s1935 + $0x28] sm:$0xff]
    %v5214 = vld [vmem:[%s1935 + $0x30] sm:$0xff]
    %v5215 = vld [vmem:[%s1935 + $0x38] sm:$0xff]
    %v5216 = vld [vmem:[#allocation7 + $0x3] sm:$0x1]
    %5218 = vrot.lane.b32.xlu0 %v5207, 64
    %v5219 = vpop.permute.xlu0 %5218
    %5221 = vrot.lane.b32.xlu0 %v5001, 96
    %v5222 = vpop.permute.xlu0 %5221
    %v5224 = vsel %vm84, %v5219, %v5222
    %v5226 = vsel %vm86, %v5224, 0
    %5228 = vmatprep.subr.mxu0 0.0
    %5229 = vmatpush1.msra.mxu0 %v5208
    %5230 = vmatprep.subr.mxu0 0.0
    %5231 = vmatpush1.msra.mxu0 %v5209
    %5232 = vmatprep.subr.mxu0 0.0
    %5233 = vmatpush1.msra.mxu0 %v5210
    %5234 = vmatprep.subr.mxu0 0.0
    %5235 = vmatpush1.msra.mxu0 %v5211
    %5236 = vmatprep.subr.mxu0 0.0
    %5237 = vmatpush1.msra.mxu0 %v5212
    %5238 = vmatprep.subr.mxu0 0.0
    %5239 = vmatpush1.msra.mxu0 %v5213
    %5240 = vmatprep.subr.mxu0 0.0
    %5241 = vmatpush1.msra.mxu0 %v5214
    %5242 = vmatprep.subr.mxu0 0.0
    %5243 = vmatpush1.msra.mxu0 %v5215
    %5244 = vmatprep.subr.mxu0 0.0
    %5245 = vmatpush1.msra.mxu0 0.0
    %5246 = vmatprep.subr.mxu0 0.0
    %5247 = vmatpush1.msra.mxu0 0.0
    %5248 = vmatprep.subr.mxu0 0.0
    %5249 = vmatpush1.msra.mxu0 0.0
    %5250 = vmatprep.subr.mxu0 0.0
    %5251 = vmatpush1.msra.mxu0 0.0
    %5252 = vmatprep.subr.mxu0 0.0
    %5253 = vmatpush1.msra.mxu0 0.0
    %5254 = vmatprep.subr.mxu0 0.0
    %5255 = vmatpush1.msra.mxu0 0.0
    %5256 = vmatprep.subr.mxu0 0.0
    %5257 = vmatpush1.msra.mxu0 0.0
    %5258 = vmatprep.subr.mxu0 0.0
    %5259 = vmatpush1.msra.mxu0 0.0
    %5260 = vmatprep.subr.mxu0 0.0
    %5261 = vmatpush1.msra.mxu0 0.0
    %5262 = vmatprep.subr.mxu0 0.0
    %5263 = vmatpush1.msra.mxu0 0.0
    %5264 = vmatprep.subr.mxu0 0.0
    %5265 = vmatpush1.msra.mxu0 0.0
    %5266 = vmatprep.subr.mxu0 0.0
    %5267 = vmatpush1.msra.mxu0 0.0
    %5268 = vmatprep.subr.mxu0 0.0
    %5269 = vmatpush1.msra.mxu0 0.0
    %5270 = vmatprep.subr.mxu0 0.0
    %5271 = vmatpush1.msra.mxu0 0.0
    %5272 = vmatprep.subr.mxu0 0.0
    %5273 = vmatpush1.msra.mxu0 0.0
    %5274 = vmatprep.subr.mxu0 0.0
    %5275 = vmatpush1.msra.mxu0 0.0
    %5276 = vmatprep.subr.mxu0 0.0
    %5277 = vmatpush1.msra.mxu0 0.0
    %5278 = vmatprep.subr.mxu0 0.0
    %5279 = vmatpush1.msra.mxu0 0.0
    %5280 = vmatprep.subr.mxu0 0.0
    %5281 = vmatpush1.msra.mxu0 0.0
    %5282 = vmatprep.subr.mxu0 0.0
    %5283 = vmatpush1.msra.mxu0 0.0
    %5284 = vmatprep.subr.mxu0 0.0
    %5285 = vmatpush1.msra.mxu0 0.0
    %5286 = vmatprep.subr.mxu0 0.0
    %5287 = vmatpush1.msra.mxu0 0.0
    %5288 = vmatprep.subr.mxu0 0.0
    %5289 = vmatpush1.msra.mxu0 0.0
    %5290 = vmatprep.subr.mxu0 0.0
    %5291 = vmatpush1.msra.mxu0 0.0
    %5292 = vmatprep.mubr.f32.mxu0 0.0
    %5293 = vmatmul.mubr.f32.gmra.mrb[0].mxu0 %v5226
    %v5294 = vpop.f32.mrb[0].mxu0
    %v5295 = vadd.f32 0.0, %v5294
    %v5296 = vpop.f32.mrb[0].mxu0
    %5297 = vdwg.mxu0
    %v5298 = vlaneseq
    %v5299 = vshrl.u32 %v5298, 7
    %v5300 = vsub.s32 0, %v5299
    %v5301 = vrot.slane %v5216, %v5300
    %v5302 = vadd.f32 %v5295, %v5301
    %v5303 = vmul.f32 %v5302, 0.5
    %v5304 = vtanh.pop %v5303
    %v5305 = vmul.f32 %v5304, 0.5
    %v5306 = vadd.f32 %v5305, 0.5
    %5308 = vrot.lane.b32.xlu0 %v5302, 32
    %v5309 = vpop.permute.xlu0 %5308
    %v5311 = vmul.f32 %v5306, %v5309
    %5313 = vrot.lane.b32.xlu0 %v5311, 64
    %v5314 = vpop.permute.xlu0 %5313
    %v5316 = vadd.f32 %v5302, %v5314
    %v5317 = vtanh.pop %v5316
    %v5318 = vsub.f32 %v5001, %v5317
    %5320 = vrot.lane.b32.xlu0 %v5318, 96
    %v5321 = vpop.permute.xlu0 %5320
    %v5323 = vmul.f32 %v5306, %v5321
    %5325 = vrot.lane.b32.xlu0 %v5323, 32
    %v5326 = vpop.permute.xlu0 %5325
    %v5328 = vadd.f32 %v5317, %v5326
    %v5329 = vld [vmem:[#allocation8] sm:$0xff]
    %v5330 = vld [vmem:[#allocation8 + $0x8] sm:$0xff]
    %v5331 = vld [vmem:[#allocation8 + $0x10] sm:$0xff]
    %v5332 = vld [vmem:[#allocation8 + $0x18] sm:$0xff]
    %v5333 = vld [vmem:[%s4] sm:$0x1]
    %v5335 = vlaneseq
    %v5336 = vshrl.u32 %v5335, 7
    %v5337 = vsub.s32 0, %v5336
    %v5338 = vrot.slane %v5333, %v5337
    %5341 = vrot.lane.b32.xlu0 %v5328, 64
    %v5342 = vpop.permute.xlu0 %5341
    %v5343 = vsel %vm84, %v5342, 0
    %5345 = vmatprep.subr.mxu0 0.0
    %5346 = vmatpush1.msra.mxu0 %v5329
    %5347 = vmatprep.subr.mxu0 0.0
    %5348 = vmatpush1.msra.mxu0 %v5330
    %5349 = vmatprep.subr.mxu0 0.0
    %5350 = vmatpush1.msra.mxu0 %v5331
    %5351 = vmatprep.subr.mxu0 0.0
    %5352 = vmatpush1.msra.mxu0 %v5332
    %5353 = vmatprep.subr.mxu0 0.0
    %5354 = vmatpush1.msra.mxu0 0.0
    %5355 = vmatprep.subr.mxu0 0.0
    %5356 = vmatpush1.msra.mxu0 0.0
    %5357 = vmatprep.subr.mxu0 0.0
    %5358 = vmatpush1.msra.mxu0 0.0
    %5359 = vmatprep.subr.mxu0 0.0
    %5360 = vmatpush1.msra.mxu0 0.0
    %5361 = vmatprep.subr.mxu0 0.0
    %5362 = vmatpush1.msra.mxu0 0.0
    %5363 = vmatprep.subr.mxu0 0.0
    %5364 = vmatpush1.msra.mxu0 0.0
    %5365 = vmatprep.subr.mxu0 0.0
    %5366 = vmatpush1.msra.mxu0 0.0
    %5367 = vmatprep.subr.mxu0 0.0
    %5368 = vmatpush1.msra.mxu0 0.0
    %5369 = vmatprep.subr.mxu0 0.0
    %5370 = vmatpush1.msra.mxu0 0.0
    %5371 = vmatprep.subr.mxu0 0.0
    %5372 = vmatpush1.msra.mxu0 0.0
    %5373 = vmatprep.subr.mxu0 0.0
    %5374 = vmatpush1.msra.mxu0 0.0
    %5375 = vmatprep.subr.mxu0 0.0
    %5376 = vmatpush1.msra.mxu0 0.0
    %5377 = vmatprep.subr.mxu0 0.0
    %5378 = vmatpush1.msra.mxu0 0.0
    %5379 = vmatprep.subr.mxu0 0.0
    %5380 = vmatpush1.msra.mxu0 0.0
    %5381 = vmatprep.subr.mxu0 0.0
    %5382 = vmatpush1.msra.mxu0 0.0
    %5383 = vmatprep.subr.mxu0 0.0
    %5384 = vmatpush1.msra.mxu0 0.0
    %5385 = vmatprep.subr.mxu0 0.0
    %5386 = vmatpush1.msra.mxu0 0.0
    %5387 = vmatprep.subr.mxu0 0.0
    %5388 = vmatpush1.msra.mxu0 0.0
    %5389 = vmatprep.subr.mxu0 0.0
    %5390 = vmatpush1.msra.mxu0 0.0
    %5391 = vmatprep.subr.mxu0 0.0
    %5392 = vmatpush1.msra.mxu0 0.0
    %5393 = vmatprep.subr.mxu0 0.0
    %5394 = vmatpush1.msra.mxu0 0.0
    %5395 = vmatprep.subr.mxu0 0.0
    %5396 = vmatpush1.msra.mxu0 0.0
    %5397 = vmatprep.subr.mxu0 0.0
    %5398 = vmatpush1.msra.mxu0 0.0
    %5399 = vmatprep.subr.mxu0 0.0
    %5400 = vmatpush1.msra.mxu0 0.0
    %5401 = vmatprep.subr.mxu0 0.0
    %5402 = vmatpush1.msra.mxu0 0.0
    %5403 = vmatprep.subr.mxu0 0.0
    %5404 = vmatpush1.msra.mxu0 0.0
    %5405 = vmatprep.subr.mxu0 0.0
    %5406 = vmatpush1.msra.mxu0 0.0
    %5407 = vmatprep.subr.mxu0 0.0
    %5408 = vmatpush1.msra.mxu0 0.0
    %5409 = vmatprep.mubr.f32.mxu0 0.0
    %5410 = vmatmul.mubr.f32.gmra.mrb[0].mxu0 %v5343
    %v5411 = vpop.f32.mrb[0].mxu0
    %v5412 = vadd.f32 %v5338, %v5411
    %v5413 = vpop.f32.mrb[0].mxu0
    %5414 = vdwg.mxu0
    %s5415 = scalar_lea.vmem [#allocation10], 20
    %5416 = vst.msk [vmem:[%s5415] sm:$0x3] %vm2144, %v5412
    %v5417 = vld [vmem:[%s2146] sm:$0xff]
    %v5418 = vld [vmem:[%s2146 + $0x8] sm:$0xff]
    %v5419 = vld [vmem:[%s2146 + $0x10] sm:$0xff]
    %v5420 = vld [vmem:[%s2146 + $0x18] sm:$0xff]
    %v5421 = vld [vmem:[%s2146 + $0x20] sm:$0xff]
    %v5422 = vld [vmem:[%s2146 + $0x28] sm:$0xff]
    %v5423 = vld [vmem:[%s2146 + $0x30] sm:$0xff]
    %v5424 = vld [vmem:[%s2146 + $0x38] sm:$0xff]
    %v5425 = vld [vmem:[#allocation7 + $0x4] sm:$0x1]
    %5427 = vrot.lane.b32.xlu0 %v5207, 96
    %v5428 = vpop.permute.xlu0 %5427
    %v5430 = vsel %vm84, %v5342, %v5428
    %v5432 = vsel %vm86, %v5430, 0
    %5434 = vmatprep.subr.mxu0 0.0
    %5435 = vmatpush1.msra.mxu0 %v5417
    %5436 = vmatprep.subr.mxu0 0.0
    %5437 = vmatpush1.msra.mxu0 %v5418
    %5438 = vmatprep.subr.mxu0 0.0
    %5439 = vmatpush1.msra.mxu0 %v5419
    %5440 = vmatprep.subr.mxu0 0.0
    %5441 = vmatpush1.msra.mxu0 %v5420
    %5442 = vmatprep.subr.mxu0 0.0
    %5443 = vmatpush1.msra.mxu0 %v5421
    %5444 = vmatprep.subr.mxu0 0.0
    %5445 = vmatpush1.msra.mxu0 %v5422
    %5446 = vmatprep.subr.mxu0 0.0
    %5447 = vmatpush1.msra.mxu0 %v5423
    %5448 = vmatprep.subr.mxu0 0.0
    %5449 = vmatpush1.msra.mxu0 %v5424
    %5450 = vmatprep.subr.mxu0 0.0
    %5451 = vmatpush1.msra.mxu0 0.0
    %5452 = vmatprep.subr.mxu0 0.0
    %5453 = vmatpush1.msra.mxu0 0.0
    %5454 = vmatprep.subr.mxu0 0.0
    %5455 = vmatpush1.msra.mxu0 0.0
    %5456 = vmatprep.subr.mxu0 0.0
    %5457 = vmatpush1.msra.mxu0 0.0
    %5458 = vmatprep.subr.mxu0 0.0
    %5459 = vmatpush1.msra.mxu0 0.0
    %5460 = vmatprep.subr.mxu0 0.0
    %5461 = vmatpush1.msra.mxu0 0.0
    %5462 = vmatprep.subr.mxu0 0.0
    %5463 = vmatpush1.msra.mxu0 0.0
    %5464 = vmatprep.subr.mxu0 0.0
    %5465 = vmatpush1.msra.mxu0 0.0
    %5466 = vmatprep.subr.mxu0 0.0
    %5467 = vmatpush1.msra.mxu0 0.0
    %5468 = vmatprep.subr.mxu0 0.0
    %5469 = vmatpush1.msra.mxu0 0.0
    %5470 = vmatprep.subr.mxu0 0.0
    %5471 = vmatpush1.msra.mxu0 0.0
    %5472 = vmatprep.subr.mxu0 0.0
    %5473 = vmatpush1.msra.mxu0 0.0
    %5474 = vmatprep.subr.mxu0 0.0
    %5475 = vmatpush1.msra.mxu0 0.0
    %5476 = vmatprep.subr.mxu0 0.0
    %5477 = vmatpush1.msra.mxu0 0.0
    %5478 = vmatprep.subr.mxu0 0.0
    %5479 = vmatpush1.msra.mxu0 0.0
    %5480 = vmatprep.subr.mxu0 0.0
    %5481 = vmatpush1.msra.mxu0 0.0
    %5482 = vmatprep.subr.mxu0 0.0
    %5483 = vmatpush1.msra.mxu0 0.0
    %5484 = vmatprep.subr.mxu0 0.0
    %5485 = vmatpush1.msra.mxu0 0.0
    %5486 = vmatprep.subr.mxu0 0.0
    %5487 = vmatpush1.msra.mxu0 0.0
    %5488 = vmatprep.subr.mxu0 0.0
    %5489 = vmatpush1.msra.mxu0 0.0
    %5490 = vmatprep.subr.mxu0 0.0
    %5491 = vmatpush1.msra.mxu0 0.0
    %5492 = vmatprep.subr.mxu0 0.0
    %5493 = vmatpush1.msra.mxu0 0.0
    %5494 = vmatprep.subr.mxu0 0.0
    %5495 = vmatpush1.msra.mxu0 0.0
    %5496 = vmatprep.subr.mxu0 0.0
    %5497 = vmatpush1.msra.mxu0 0.0
    %5498 = vmatprep.mubr.f32.mxu0 0.0
    %5499 = vmatmul.mubr.f32.gmra.mrb[0].mxu0 %v5432
    %v5500 = vpop.f32.mrb[0].mxu0
    %v5501 = vadd.f32 0.0, %v5500
    %v5502 = vpop.f32.mrb[0].mxu0
    %5503 = vdwg.mxu0
    %v5504 = vlaneseq
    %v5505 = vshrl.u32 %v5504, 7
    %v5506 = vsub.s32 0, %v5505
    %v5507 = vrot.slane %v5425, %v5506
    %v5508 = vadd.f32 %v5501, %v5507
    %v5509 = vmul.f32 %v5508, 0.5
    %v5510 = vtanh.pop %v5509
    %v5511 = vmul.f32 %v5510, 0.5
    %v5512 = vadd.f32 %v5511, 0.5
    %5514 = vrot.lane.b32.xlu0 %v5508, 32
    %v5515 = vpop.permute.xlu0 %5514
    %v5517 = vmul.f32 %v5512, %v5515
    %5519 = vrot.lane.b32.xlu0 %v5517, 64
    %v5520 = vpop.permute.xlu0 %5519
    %v5522 = vadd.f32 %v5508, %v5520
    %v5523 = vtanh.pop %v5522
    %v5524 = vsub.f32 %v5207, %v5523
    %5526 = vrot.lane.b32.xlu0 %v5524, 96
    %v5527 = vpop.permute.xlu0 %5526
    %v5529 = vmul.f32 %v5512, %v5527
    %5531 = vrot.lane.b32.xlu0 %v5529, 32
    %v5532 = vpop.permute.xlu0 %5531
    %v5534 = vadd.f32 %v5523, %v5532
    %v5535 = vld [vmem:[%s1935] sm:$0xff]
    %v5536 = vld [vmem:[%s1935 + $0x8] sm:$0xff]
    %v5537 = vld [vmem:[%s1935 + $0x10] sm:$0xff]
    %v5538 = vld [vmem:[%s1935 + $0x18] sm:$0xff]
    %v5539 = vld [vmem:[%s1935 + $0x20] sm:$0xff]
    %v5540 = vld [vmem:[%s1935 + $0x28] sm:$0xff]
    %v5541 = vld [vmem:[%s1935 + $0x30] sm:$0xff]
    %v5542 = vld [vmem:[%s1935 + $0x38] sm:$0xff]
    %v5543 = vld [vmem:[#allocation7 + $0x3] sm:$0x1]
    %5545 = vrot.lane.b32.xlu0 %v5534, 64
    %v5546 = vpop.permute.xlu0 %5545
    %5548 = vrot.lane.b32.xlu0 %v5328, 96
    %v5549 = vpop.permute.xlu0 %5548
    %v5551 = vsel %vm84, %v5546, %v5549
    %v5553 = vsel %vm86, %v5551, 0
    %5555 = vmatprep.subr.mxu0 0.0
    %5556 = vmatpush1.msra.mxu0 %v5535
    %5557 = vmatprep.subr.mxu0 0.0
    %5558 = vmatpush1.msra.mxu0 %v5536
    %5559 = vmatprep.subr.mxu0 0.0
    %5560 = vmatpush1.msra.mxu0 %v5537
    %5561 = vmatprep.subr.mxu0 0.0
    %5562 = vmatpush1.msra.mxu0 %v5538
    %5563 = vmatprep.subr.mxu0 0.0
    %5564 = vmatpush1.msra.mxu0 %v5539
    %5565 = vmatprep.subr.mxu0 0.0
    %5566 = vmatpush1.msra.mxu0 %v5540
    %5567 = vmatprep.subr.mxu0 0.0
    %5568 = vmatpush1.msra.mxu0 %v5541
    %5569 = vmatprep.subr.mxu0 0.0
    %5570 = vmatpush1.msra.mxu0 %v5542
    %5571 = vmatprep.subr.mxu0 0.0
    %5572 = vmatpush1.msra.mxu0 0.0
    %5573 = vmatprep.subr.mxu0 0.0
    %5574 = vmatpush1.msra.mxu0 0.0
    %5575 = vmatprep.subr.mxu0 0.0
    %5576 = vmatpush1.msra.mxu0 0.0
    %5577 = vmatprep.subr.mxu0 0.0
    %5578 = vmatpush1.msra.mxu0 0.0
    %5579 = vmatprep.subr.mxu0 0.0
    %5580 = vmatpush1.msra.mxu0 0.0
    %5581 = vmatprep.subr.mxu0 0.0
    %5582 = vmatpush1.msra.mxu0 0.0
    %5583 = vmatprep.subr.mxu0 0.0
    %5584 = vmatpush1.msra.mxu0 0.0
    %5585 = vmatprep.subr.mxu0 0.0
    %5586 = vmatpush1.msra.mxu0 0.0
    %5587 = vmatprep.subr.mxu0 0.0
    %5588 = vmatpush1.msra.mxu0 0.0
    %5589 = vmatprep.subr.mxu0 0.0
    %5590 = vmatpush1.msra.mxu0 0.0
    %5591 = vmatprep.subr.mxu0 0.0
    %5592 = vmatpush1.msra.mxu0 0.0
    %5593 = vmatprep.subr.mxu0 0.0
    %5594 = vmatpush1.msra.mxu0 0.0
    %5595 = vmatprep.subr.mxu0 0.0
    %5596 = vmatpush1.msra.mxu0 0.0
    %5597 = vmatprep.subr.mxu0 0.0
    %5598 = vmatpush1.msra.mxu0 0.0
    %5599 = vmatprep.subr.mxu0 0.0
    %5600 = vmatpush1.msra.mxu0 0.0
    %5601 = vmatprep.subr.mxu0 0.0
    %5602 = vmatpush1.msra.mxu0 0.0
    %5603 = vmatprep.subr.mxu0 0.0
    %5604 = vmatpush1.msra.mxu0 0.0
    %5605 = vmatprep.subr.mxu0 0.0
    %5606 = vmatpush1.msra.mxu0 0.0
    %5607 = vmatprep.subr.mxu0 0.0
    %5608 = vmatpush1.msra.mxu0 0.0
    %5609 = vmatprep.subr.mxu0 0.0
    %5610 = vmatpush1.msra.mxu0 0.0
    %5611 = vmatprep.subr.mxu0 0.0
    %5612 = vmatpush1.msra.mxu0 0.0
    %5613 = vmatprep.subr.mxu0 0.0
    %5614 = vmatpush1.msra.mxu0 0.0
    %5615 = vmatprep.subr.mxu0 0.0
    %5616 = vmatpush1.msra.mxu0 0.0
    %5617 = vmatprep.subr.mxu0 0.0
    %5618 = vmatpush1.msra.mxu0 0.0
    %5619 = vmatprep.mubr.f32.mxu0 0.0
    %5620 = vmatmul.mubr.f32.gmra.mrb[0].mxu0 %v5553
    %v5621 = vpop.f32.mrb[0].mxu0
    %v5622 = vadd.f32 0.0, %v5621
    %v5623 = vpop.f32.mrb[0].mxu0
    %5624 = vdwg.mxu0
    %v5625 = vlaneseq
    %v5626 = vshrl.u32 %v5625, 7
    %v5627 = vsub.s32 0, %v5626
    %v5628 = vrot.slane %v5543, %v5627
    %v5629 = vadd.f32 %v5622, %v5628
    %v5630 = vmul.f32 %v5629, 0.5
    %v5631 = vtanh.pop %v5630
    %v5632 = vmul.f32 %v5631, 0.5
    %v5633 = vadd.f32 %v5632, 0.5
    %5635 = vrot.lane.b32.xlu0 %v5629, 32
    %v5636 = vpop.permute.xlu0 %5635
    %v5638 = vmul.f32 %v5633, %v5636
    %5640 = vrot.lane.b32.xlu0 %v5638, 64
    %v5641 = vpop.permute.xlu0 %5640
    %v5643 = vadd.f32 %v5629, %v5641
    %v5644 = vtanh.pop %v5643
    %v5645 = vsub.f32 %v5328, %v5644
    %5647 = vrot.lane.b32.xlu0 %v5645, 96
    %v5648 = vpop.permute.xlu0 %5647
    %v5650 = vmul.f32 %v5633, %v5648
    %5652 = vrot.lane.b32.xlu0 %v5650, 32
    %v5653 = vpop.permute.xlu0 %5652
    %v5655 = vadd.f32 %v5644, %v5653
    %v5656 = vld [vmem:[#allocation8] sm:$0xff]
    %v5657 = vld [vmem:[#allocation8 + $0x8] sm:$0xff]
    %v5658 = vld [vmem:[#allocation8 + $0x10] sm:$0xff]
    %v5659 = vld [vmem:[#allocation8 + $0x18] sm:$0xff]
    %v5660 = vld [vmem:[%s4] sm:$0x1]
    %v5662 = vlaneseq
    %v5663 = vshrl.u32 %v5662, 7
    %v5664 = vsub.s32 0, %v5663
    %v5665 = vrot.slane %v5660, %v5664
    %5668 = vrot.lane.b32.xlu0 %v5655, 64
    %v5669 = vpop.permute.xlu0 %5668
    %v5670 = vsel %vm84, %v5669, 0
    %5672 = vmatprep.subr.mxu0 0.0
    %5673 = vmatpush1.msra.mxu0 %v5656
    %5674 = vmatprep.subr.mxu0 0.0
    %5675 = vmatpush1.msra.mxu0 %v5657
    %5676 = vmatprep.subr.mxu0 0.0
    %5677 = vmatpush1.msra.mxu0 %v5658
    %5678 = vmatprep.subr.mxu0 0.0
    %5679 = vmatpush1.msra.mxu0 %v5659
    %5680 = vmatprep.subr.mxu0 0.0
    %5681 = vmatpush1.msra.mxu0 0.0
    %5682 = vmatprep.subr.mxu0 0.0
    %5683 = vmatpush1.msra.mxu0 0.0
    %5684 = vmatprep.subr.mxu0 0.0
    %5685 = vmatpush1.msra.mxu0 0.0
    %5686 = vmatprep.subr.mxu0 0.0
    %5687 = vmatpush1.msra.mxu0 0.0
    %5688 = vmatprep.subr.mxu0 0.0
    %5689 = vmatpush1.msra.mxu0 0.0
    %5690 = vmatprep.subr.mxu0 0.0
    %5691 = vmatpush1.msra.mxu0 0.0
    %5692 = vmatprep.subr.mxu0 0.0
    %5693 = vmatpush1.msra.mxu0 0.0
    %5694 = vmatprep.subr.mxu0 0.0
    %5695 = vmatpush1.msra.mxu0 0.0
    %5696 = vmatprep.subr.mxu0 0.0
    %5697 = vmatpush1.msra.mxu0 0.0
    %5698 = vmatprep.subr.mxu0 0.0
    %5699 = vmatpush1.msra.mxu0 0.0
    %5700 = vmatprep.subr.mxu0 0.0
    %5701 = vmatpush1.msra.mxu0 0.0
    %5702 = vmatprep.subr.mxu0 0.0
    %5703 = vmatpush1.msra.mxu0 0.0
    %5704 = vmatprep.subr.mxu0 0.0
    %5705 = vmatpush1.msra.mxu0 0.0
    %5706 = vmatprep.subr.mxu0 0.0
    %5707 = vmatpush1.msra.mxu0 0.0
    %5708 = vmatprep.subr.mxu0 0.0
    %5709 = vmatpush1.msra.mxu0 0.0
    %5710 = vmatprep.subr.mxu0 0.0
    %5711 = vmatpush1.msra.mxu0 0.0
    %5712 = vmatprep.subr.mxu0 0.0
    %5713 = vmatpush1.msra.mxu0 0.0
    %5714 = vmatprep.subr.mxu0 0.0
    %5715 = vmatpush1.msra.mxu0 0.0
    %5716 = vmatprep.subr.mxu0 0.0
    %5717 = vmatpush1.msra.mxu0 0.0
    %5718 = vmatprep.subr.mxu0 0.0
    %5719 = vmatpush1.msra.mxu0 0.0
    %5720 = vmatprep.subr.mxu0 0.0
    %5721 = vmatpush1.msra.mxu0 0.0
    %5722 = vmatprep.subr.mxu0 0.0
    %5723 = vmatpush1.msra.mxu0 0.0
    %5724 = vmatprep.subr.mxu0 0.0
    %5725 = vmatpush1.msra.mxu0 0.0
    %5726 = vmatprep.subr.mxu0 0.0
    %5727 = vmatpush1.msra.mxu0 0.0
    %5728 = vmatprep.subr.mxu0 0.0
    %5729 = vmatpush1.msra.mxu0 0.0
    %5730 = vmatprep.subr.mxu0 0.0
    %5731 = vmatpush1.msra.mxu0 0.0
    %5732 = vmatprep.subr.mxu0 0.0
    %5733 = vmatpush1.msra.mxu0 0.0
    %5734 = vmatprep.subr.mxu0 0.0
    %5735 = vmatpush1.msra.mxu0 0.0
    %5736 = vmatprep.mubr.f32.mxu0 0.0
    %5737 = vmatmul.mubr.f32.gmra.mrb[0].mxu0 %v5670
    %v5738 = vpop.f32.mrb[0].mxu0
    %v5739 = vadd.f32 %v5665, %v5738
    %v5740 = vpop.f32.mrb[0].mxu0
    %5741 = vdwg.mxu0
    %s5742 = scalar_lea.vmem [#allocation10], 22
    %5743 = vst.msk [vmem:[%s5742] sm:$0x3] %vm2144, %v5739
    // Predicated region
    $region38: #{tpu_custom_call.1} parent=1 // pred_check
      _
    $region39: #{tpu_custom_call.1} parent=1 // pred_check_branch
      %5745 = sbr.rel (0) target = $region41
    $region40: #{tpu_custom_call.1} parent=1 // pred_region
      %s5747 = ssub.s32 384, 384
      %5748 = vsyncadd [#allocation4], %s5747
      %s5749 = sshll.u32 [#allocation10], 4
      %s5750 = int_to_ptr.vmem [resolvable:$true] %s5749
      %5755 = dma.vmem_to_hbm [thread:$0]  %s5750, 384, %s5, [#allocation4], 32, 32, 2
    $region41: #{tpu_custom_call.1} parent=1 // pred_fallthru
      _
    // Predicated region
    $region42: #{tpu_custom_call.1} parent=1 // pred_check
      _
    $region43: #{tpu_custom_call.1} parent=1 // pred_check_branch
      %5757 = sbr.rel (0) target = $region45
    $region44: #{tpu_custom_call.1} parent=1 // pred_region
      %5758 = dma.done [#allocation4], 384
    $region45: #{tpu_custom_call.1} parent=1 // pred_fallthru
      _
    %5759 = vsyncpa [#allocation3], 1
    %5760 = vsyncpa [#allocation6], 1
    %5761 = vsyncpa [#allocation9], 1
    %5762 = vsyncpa [#allocation4], 1

</llo_original>
